<compile_context>
chip_gen: v5e
topology: v5e:2x2
jax: 0.10.0
libtpu: 0.0.40
codegen_flags: <defaults>
</compile_context>

<pallas_src>
import jax
import jax.numpy as jnp
from jax.experimental import pallas as pl
from jax.experimental.pallas import tpu as pltpu


# ----------------------------- chip-generation knobs -----------------------------

def _chip_generation():
    try:
        kind = jax.devices()[0].device_kind.lower()
    except Exception:
        return 0
    for g in (7, 6, 5, 4, 3, 2):
        if f"v{g}" in kind or f"tpu{g}" in kind:
            return g
    return 0


_GEN = _chip_generation()
# bf16 VPU exists on v6e/v7x; keep fused pre-BN math in f32 on v5e and older.
_BN_DTYPE = jnp.float32 if 0 < _GEN <= 5 else jnp.bfloat16
# v5e/v6e (and v4) have 128 MiB physical VMEM; v7x only 64 MiB.
if _GEN == 7:
    _VMEM_LIMIT = 48 * 1024 * 1024
elif _GEN in (4, 5, 6):
    _VMEM_LIMIT = 100 * 1024 * 1024
else:
    _VMEM_LIMIT = None
# v7x has 2 TensorCores: make sure the (only) parallel grid axis has >= 2 tiles.
_MIN_TILES = 2 if _GEN == 7 else 1

_TM_CANDIDATES = (2048, 1024, 512, 256, 128, 64, 32, 16, 8)


def _pick_tm(m):
    """Largest row tile that divides M exactly (no M padding / edge masking).
    Falls back to a single full-extent tile (always legal) for small/odd M."""
    for c in _TM_CANDIDATES:
        if m % c == 0 and m // c >= _MIN_TILES:
            return c
    return m


def _compiler_params():
    kw = dict(dimension_semantics=("parallel",))
    if _VMEM_LIMIT is not None:
        kw["vmem_limit_bytes"] = _VMEM_LIMIT
    return pltpu.CompilerParams(**kw)


def _bn_cast(bn, width, dtype):
    """Inference-BN (scale, shift) vectors: zero-pad to `width`, cast to `dtype`.
    Zero scale/shift on padded channels keeps them inert."""
    s, t = bn
    c = s.shape[0]
    if width > c:
        s = jnp.pad(s, (0, width - c))
        t = jnp.pad(t, (0, width - c))
    return s.astype(dtype), t.astype(dtype)


# ----------------------------- Pallas kernel -----------------------------

def _make_mm_kernel(has_pre_bn, has_post_bn):
    """Fused matmul: [BN+ReLU ->] dot [-> BN+ReLU].

    Ref order: a, [s1, t1], b, [s2, t2], o.  Grid is a 1-D parallel sweep over
    M tiles; the weight (and BN vectors) are fully VMEM-resident so there is
    no K loop and no accumulator scratch."""

    def kernel(*refs):
        o_ref = refs[-1]
        it = iter(refs[:-1])
        a_ref = next(it)
        if has_pre_bn:
            s1_ref = next(it)
            t1_ref = next(it)
        b_ref = next(it)
        if has_post_bn:
            s2_ref = next(it)
            t2_ref = next(it)

        a = a_ref[...]
        b = b_ref[...]
        if has_pre_bn:
            # scale/shift dtype decides VPU precision: bf16 on v6e/v7x, f32 on v5e.
            a = jnp.maximum(a * s1_ref[...] + t1_ref[...], 0)
        y = jnp.dot(a.astype(b.dtype), b, preferred_element_type=jnp.float32)
        if has_post_bn:
            y = jnp.maximum(y * s2_ref[...] + t2_ref[...], 0)
        o_ref[...] = y.astype(o_ref.dtype)

    return kernel


def fused_matmul(a, b, pre_bn=None, post_bn=None, out_dtype=jnp.bfloat16):
    """epilogue( (relu(a*s1+t1) if pre_bn else a) @ b ), 1-D grid over M.

    Full-K / full-N blocks (no activation padding, weight stays VMEM-resident);
    f32 MXU accumulation; optional fused BN+ReLU on input and output."""
    M, K = a.shape
    K2, N = b.shape
    assert K == K2
    tm = _pick_tm(M)

    inputs = [a]
    in_specs = [pl.BlockSpec((tm, K), lambda i: (i, 0))]
    if pre_bn is not None:
        s1, t1 = pre_bn
        inputs += [s1.reshape(1, K), t1.reshape(1, K)]
        in_specs += [pl.BlockSpec((1, K), lambda i: (0, 0)),
                     pl.BlockSpec((1, K), lambda i: (0, 0))]
    inputs.append(b)
    in_specs.append(pl.BlockSpec((K, N), lambda i: (0, 0)))
    if post_bn is not None:
        s2, t2 = post_bn
        inputs += [s2.astype(jnp.float32).reshape(1, N),
                   t2.astype(jnp.float32).reshape(1, N)]
        in_specs += [pl.BlockSpec((1, N), lambda i: (0, 0)),
                     pl.BlockSpec((1, N), lambda i: (0, 0))]

    cost = pl.CostEstimate(
        flops=2 * M * K * N,
        transcendentals=0,
        bytes_accessed=(a.size * a.dtype.itemsize + b.size * b.dtype.itemsize
                        + M * N * jnp.dtype(out_dtype).itemsize),
    )

    return pl.pallas_call(
        _make_mm_kernel(pre_bn is not None, post_bn is not None),
        out_shape=jax.ShapeDtypeStruct((M, N), out_dtype),
        grid=(M // tm,),
        in_specs=in_specs,
        out_specs=pl.BlockSpec((tm, N), lambda i: (i, 0)),
        compiler_params=_compiler_params(),
        cost_estimate=cost,
    )(*inputs)


# ----------------------------- conv / pooling glue -----------------------------

def conv1x1(x, w, pre_bn=None, post_bn=None):
    """(Optionally BN+ReLU fused) 1x1 conv as one fused MXU matmul."""
    n, h, wd, c = x.shape
    cout, cin = w.shape[0], w.shape[1]
    wm = w.reshape(cout, cin).T.astype(jnp.bfloat16)        # (Cin, Cout)
    if c > cin:                                             # channel-padded input buffer
        wm = jnp.pad(wm, ((0, c - cin), (0, 0)))
    pre = _bn_cast(pre_bn, c, _BN_DTYPE) if pre_bn is not None else None
    out = fused_matmul(x.reshape(n * h * wd, c), wm, pre_bn=pre, post_bn=post_bn)
    return out.reshape(n, h, wd, cout)


def conv2d_im2col(x, w, stride, padding, post_bn=None):
    """Spatial conv via im2col (JAX glue) + fused bf16 MXU matmul."""
    # TODO(synk): 7x7/3x3 convs still materialize im2col patches in plain JAX;
    # an in-kernel 9-tap accumulation (halo'd spatial tiles) would cut HBM
    # reads ~9x for the growth convs.
    cout, cin, kh, kw = w.shape
    n, h, wd, c = x.shape
    assert c == cin
    ho = (h + 2 * padding - kh) // stride + 1
    wo = (wd + 2 * padding - kw) // stride + 1
    xp = jnp.pad(x, ((0, 0), (padding, padding), (padding, padding), (0, 0)))
    patches = [xp[:, i:i + stride * ho:stride, j:j + stride * wo:stride, :]
               for i in range(kh) for j in range(kw)]
    a = jnp.concatenate(patches, axis=-1).reshape(n * ho * wo, kh * kw * cin)
    wm = jnp.transpose(w, (2, 3, 1, 0)).reshape(kh * kw * cin, cout).astype(jnp.bfloat16)
    out = fused_matmul(a, wm, post_bn=post_bn)
    return out.reshape(n, ho, wo, cout)


def maxpool_3x3_s2_p1(x):
    # TODO(synk): pooling kept in plain JAX (elementwise max over 9 strided slices).
    n, h, w, c = x.shape
    ho = (h + 2 - 3) // 2 + 1
    wo = (w + 2 - 3) // 2 + 1
    xp = jnp.pad(x, ((0, 0), (1, 1), (1, 1), (0, 0)), constant_values=-jnp.inf)
    out = None
    for i in range(3):
        for j in range(3):
            s = xp[:, i:i + 2 * ho:2, j:j + 2 * wo:2, :]
            out = s if out is None else jnp.maximum(out, s)
    return out


def avgpool_2x2_s2(x):
    # TODO(synk): could be fused into the transition conv1x1 epilogue; assumes even H/W.
    n, h, w, c = x.shape
    return x.astype(jnp.float32).reshape(n, h // 2, 2, w // 2, 2, c).mean(
        axis=(2, 4)).astype(x.dtype)


# ----------------------------- dense block -----------------------------

def dense_block(x, layers, growth=32):
    """DenseNet block with a preallocated channel-padded feature buffer.

    Concat is replaced by in-place channel-slice writes (O(L) HBM traffic).
    conv1 always reads the full-width buffer; zero-initialized channels and
    zero-padded weight rows make not-yet-written channels contribute nothing."""
    n, h, w, c_in = x.shape
    m = n * h * w
    c_final = c_in + growth * len(layers)          # 256 / 512 / 1024 / 1024
    buf = jnp.pad(x.reshape(m, c_in), ((0, 0), (0, c_final - c_in)))
    c = c_in
    for layer in layers:
        w1 = layer["conv1"]                                       # (128, c, 1, 1)
        w1m = w1.reshape(w1.shape[0], c).T.astype(jnp.bfloat16)   # (c, 128)
        w1m = jnp.pad(w1m, ((0, c_final - c), (0, 0)))            # zero rows for unwritten ch
        # ONE kernel: norm1+ReLU -> 1x1 conv (->128) -> norm2+ReLU
        y = fused_matmul(buf, w1m,
                         pre_bn=_bn_cast(layer["norm1"], c_final, _BN_DTYPE),
                         post_bn=layer["norm2"])
        # 3x3 growth conv (->32), written at natural width (no 128-lane pad, no slice)
        z = conv2d_im2col(y.reshape(n, h, w, w1.shape[0]), layer["conv2"],
                          stride=1, padding=1)
        # TODO(synk): an input_output_aliases write of this 32-ch slab straight from
        # the conv2 kernel would drop this (small) JAX-side slice update too.
        buf = buf.at[:, c:c + growth].set(z.reshape(m, growth))
        c += growth
    return buf.reshape(n, h, w, c_final)


# ----------------------------- parameters -----------------------------

def _conv_w(key, cout, cin, kh, kw):
    std = (2.0 / (cin * kh * kw)) ** 0.5
    return std * jax.random.normal(key, (cout, cin, kh, kw), jnp.float32)


def _bn_affine(key, c, eps=1e-5):
    # Inference-mode BN: y = (x - mean)/sqrt(var+eps)*weight + bias  ->  x*scale + shift
    k1, k2, k3 = jax.random.split(key, 3)
    weight = 1.0 + 0.05 * jax.random.normal(k1, (c,), jnp.float32)
    bias = 0.05 * jax.random.normal(k2, (c,), jnp.float32)
    mean = 0.05 * jax.random.normal(k3, (c,), jnp.float32)
    var = jnp.ones((c,), jnp.float32)
    scale = weight / jnp.sqrt(var + eps)
    shift = bias - mean * scale
    return (scale, shift)


def init_densenet121_params(key, out_size):
    cnt = [0]

    def nk():
        cnt[0] += 1
        return jax.random.fold_in(key, cnt[0])

    growth, bn_size = 32, 4
    block_config = (6, 12, 24, 16)
    p = {}
    p["conv0"] = _conv_w(nk(), 64, 3, 7, 7)
    p["norm0"] = _bn_affine(nk(), 64)
    num_features = 64
    blocks, transitions = [], []
    for bi, num_layers in enumerate(block_config):
        layers = []
        nf = num_features
        for _ in range(num_layers):
            layers.append({
                "norm1": _bn_affine(nk(), nf),
                "conv1": _conv_w(nk(), bn_size * growth, nf, 1, 1),
                "norm2": _bn_affine(nk(), bn_size * growth),
                "conv2": _conv_w(nk(), growth, bn_size * growth, 3, 3),
            })
            nf += growth
        blocks.append(layers)
        num_features = nf
        if bi != len(block_config) - 1:
            transitions.append({
                "norm": _bn_affine(nk(), num_features),
                "conv": _conv_w(nk(), num_features // 2, num_features, 1, 1),
            })
            num_features //= 2
    p["blocks"] = blocks
    p["transitions"] = transitions
    p["norm5"] = _bn_affine(nk(), num_features)  # num_features == 1024
    p["classifier_w"] = (1.0 / num_features ** 0.5) * jax.random.normal(
        nk(), (num_features, out_size), jnp.float32)
    p["classifier_b"] = 0.01 * jax.random.normal(nk(), (out_size,), jnp.float32)
    return p


# ----------------------------- forward pass -----------------------------

def densenet121_forward(params, x_nchw):
    # layout: input is NCHW (PyTorch convention); compute runs NHWC, bf16.
    x = jnp.transpose(x_nchw, (0, 2, 3, 1)).astype(jnp.bfloat16)

    # stem: conv0 7x7/s2 with fused norm0+ReLU epilogue -> maxpool 3x3/s2
    x = conv2d_im2col(x, params["conv0"], stride=2, padding=3,
                      post_bn=params["norm0"])
    x = maxpool_3x3_s2_p1(x)

    n_blocks = len(params["blocks"])
    for bi, layers in enumerate(params["blocks"]):
        x = dense_block(x, layers)
        if bi != n_blocks - 1:
            t = params["transitions"][bi]
            # fused transition: norm+ReLU+conv1x1 (one kernel) -> avgpool 2x2
            x = conv1x1(x, t["conv"], pre_bn=t["norm"])
            x = avgpool_2x2_s2(x)

    # classifier head: norm5+ReLU fused as pre-BN of the (f32-weight) classifier
    # matmul over every pixel; global average pool is linear, so it is commuted
    # AFTER the matmul -> the full-res f32 normed features never hit HBM.
    n, h, w, c = x.shape
    feats = fused_matmul(
        x.reshape(n * h * w, c), params["classifier_w"].astype(jnp.float32),
        pre_bn=_bn_cast(params["norm5"], c, jnp.float32),
        out_dtype=jnp.float32)
    logits = feats.reshape(n, h * w, -1).mean(axis=1) + params["classifier_b"]
    return jax.nn.sigmoid(logits)   # tiny (N, out_size) epilogue kept in JAX


# ----------------------------- main -----------------------------

if __name__ == "__main__":
    out_size = 14  # CheXNet-style multi-label output
    key = jax.random.PRNGKey(0)
    params = init_densenet121_params(jax.random.fold_in(key, 1), out_size)
    x = jax.random.normal(jax.random.fold_in(key, 2), (2, 3, 32, 32), jnp.float32)  # NCHW

    fwd = jax.jit(densenet121_forward)
    out = fwd(params, x)
    out = jax.block_until_ready(out)

    assert out.shape == (2, out_size)
    assert bool(jnp.all(jnp.isfinite(out)))
    assert bool(jnp.all((out >= 0.0) & (out <= 1.0)))  # sigmoid range
    print("KERNEL_OK")
</pallas_src>

<mosaic_0001>
module attributes {stable_mosaic.version = 11 : i64} {
  func.func @kernel(%arg0: i32, %arg1: memref<512x147xbf16, #tpu.memory_space<vmem>>, %arg2: memref<147x64xbf16, #tpu.memory_space<vmem>>, %arg3: memref<1x64xf32, #tpu.memory_space<vmem>>, %arg4: memref<1x64xf32, #tpu.memory_space<vmem>>, %arg5: memref<512x64xbf16, #tpu.memory_space<vmem>>) attributes {dimension_semantics = [#tpu.dimension_semantics<parallel>], iteration_bounds = array<i64: 1>, scalar_prefetch = 0 : i64, scratch_operands = 0 : i64, tpu.core_type = #tpu.core_type<tc>, window_params = [{transform_indices = @transform_0, window_bounds = array<i64: 512, 147>}, {pipeline_mode = #tpu.pipeline_mode<synchronous>, transform_indices = @transform_1, window_bounds = array<i64: 147, 64>}, {pipeline_mode = #tpu.pipeline_mode<synchronous>, transform_indices = @transform_2, window_bounds = array<i64: 1, 64>}, {pipeline_mode = #tpu.pipeline_mode<synchronous>, transform_indices = @transform_3, window_bounds = array<i64: 1, 64>}, {transform_indices = @transform_4, window_bounds = array<i64: 512, 64>}]} {
    %c0 = arith.constant 0 : index
    %c0_0 = arith.constant 0 : index
    %0 = vector.load %arg1[%c0, %c0_0] : memref<512x147xbf16, #tpu.memory_space<vmem>>, vector<512x147xbf16>
    %c0_1 = arith.constant 0 : index
    %c0_2 = arith.constant 0 : index
    %1 = vector.load %arg2[%c0_1, %c0_2] : memref<147x64xbf16, #tpu.memory_space<vmem>>, vector<147x64xbf16>
    %cst = arith.constant dense<0.000000e+00> : vector<512x64xf32>
    %2 = tpu.matmul %0, %1, %cst {dimension_numbers = #tpu.dot_dimension_numbers<[1], [0], [0], [1], [0, 0, 1, 1], [], []>} : vector<512x147xbf16>, vector<147x64xbf16>, vector<512x64xf32> -> vector<512x64xf32>
    %c0_3 = arith.constant 0 : index
    %c0_4 = arith.constant 0 : index
    %3 = vector.load %arg3[%c0_3, %c0_4] : memref<1x64xf32, #tpu.memory_space<vmem>>, vector<1x64xf32>
    %4 = vector.broadcast %3 : vector<1x64xf32> to vector<512x64xf32>
    %5 = arith.mulf %2, %4 : vector<512x64xf32>
    %c0_5 = arith.constant 0 : index
    %c0_6 = arith.constant 0 : index
    %6 = vector.load %arg4[%c0_5, %c0_6] : memref<1x64xf32, #tpu.memory_space<vmem>>, vector<1x64xf32>
    %7 = vector.broadcast %6 : vector<1x64xf32> to vector<512x64xf32>
    %8 = arith.addf %5, %7 : vector<512x64xf32>
    %cst_7 = arith.constant 0.000000e+00 : f32
    %9 = vector.broadcast %cst_7 : f32 to vector<512x64xf32>
    %10 = arith.maximumf %8, %9 : vector<512x64xf32>
    %11 = arith.truncf %10 : vector<512x64xf32> to vector<512x64xbf16>
    %c0_8 = arith.constant 0 : index
    %c0_9 = arith.constant 0 : index
    %12 = vector.load %arg5[%c0_8, %c0_9] : memref<512x64xbf16, #tpu.memory_space<vmem>>, vector<512x64xbf16>
    tpu.vector_store %arg5[%c0_8, %c0_9], %11 {strides = array<i32>} : memref<512x64xbf16, #tpu.memory_space<vmem>>, vector<512x64xbf16>,
    return
  }
  func.func @transform_0(%arg0: i32) -> (i32, i32) {
    %c0_i32 = arith.constant 0 : i32
    %c0_i32_0 = arith.constant 0 : i32
    return %arg0, %c0_i32 : i32, i32
  }
  func.func @transform_1(%arg0: i32) -> (i32, i32) {
    %c0_i32 = arith.constant 0 : i32
    %c0_i32_0 = arith.constant 0 : i32
    %c0_i32_1 = arith.constant 0 : i32
    return %c0_i32, %c0_i32_0 : i32, i32
  }
  func.func @transform_2(%arg0: i32) -> (i32, i32) {
    %c0_i32 = arith.constant 0 : i32
    %c0_i32_0 = arith.constant 0 : i32
    %c0_i32_1 = arith.constant 0 : i32
    return %c0_i32, %c0_i32_0 : i32, i32
  }
  func.func @transform_3(%arg0: i32) -> (i32, i32) {
    %c0_i32 = arith.constant 0 : i32
    %c0_i32_0 = arith.constant 0 : i32
    %c0_i32_1 = arith.constant 0 : i32
    return %c0_i32, %c0_i32_0 : i32, i32
  }
  func.func @transform_4(%arg0: i32) -> (i32, i32) {
    %c0_i32 = arith.constant 0 : i32
    %c0_i32_0 = arith.constant 0 : i32
    return %arg0, %c0_i32 : i32, i32
  }
}

module attributes {stable_mosaic.version = 11 : i64} {
  func.func @kernel(%arg0: i32, %arg1: memref<128x256xbf16, #tpu.memory_space<vmem>>, %arg2: memref<1x256xbf16, #tpu.memory_space<vmem>>, %arg3: memref<1x256xbf16, #tpu.memory_space<vmem>>, %arg4: memref<256x128xbf16, #tpu.memory_space<vmem>>, %arg5: memref<1x128xf32, #tpu.memory_space<vmem>>, %arg6: memref<1x128xf32, #tpu.memory_space<vmem>>, %arg7: memref<128x128xbf16, #tpu.memory_space<vmem>>) attributes {dimension_semantics = [#tpu.dimension_semantics<parallel>], iteration_bounds = array<i64: 1>, scalar_prefetch = 0 : i64, scratch_operands = 0 : i64, tpu.core_type = #tpu.core_type<tc>, window_params = [{transform_indices = @transform_0, window_bounds = array<i64: 128, 256>}, {pipeline_mode = #tpu.pipeline_mode<synchronous>, transform_indices = @transform_1, window_bounds = array<i64: 1, 256>}, {pipeline_mode = #tpu.pipeline_mode<synchronous>, transform_indices = @transform_2, window_bounds = array<i64: 1, 256>}, {pipeline_mode = #tpu.pipeline_mode<synchronous>, transform_indices = @transform_3, window_bounds = array<i64: 256, 128>}, {pipeline_mode = #tpu.pipeline_mode<synchronous>, transform_indices = @transform_4, window_bounds = array<i64: 1, 128>}, {pipeline_mode = #tpu.pipeline_mode<synchronous>, transform_indices = @transform_5, window_bounds = array<i64: 1, 128>}, {transform_indices = @transform_6, window_bounds = array<i64: 128, 128>}]} {
    %c0 = arith.constant 0 : index
    %c0_0 = arith.constant 0 : index
    %0 = vector.load %arg1[%c0, %c0_0] : memref<128x256xbf16, #tpu.memory_space<vmem>>, vector<128x256xbf16>
    %c0_1 = arith.constant 0 : index
    %c0_2 = arith.constant 0 : index
    %1 = vector.load %arg4[%c0_1, %c0_2] : memref<256x128xbf16, #tpu.memory_space<vmem>>, vector<256x128xbf16>
    %c0_3 = arith.constant 0 : index
    %c0_4 = arith.constant 0 : index
    %2 = vector.load %arg2[%c0_3, %c0_4] : memref<1x256xbf16, #tpu.memory_space<vmem>>, vector<1x256xbf16>
    %3 = vector.broadcast %2 : vector<1x256xbf16> to vector<128x256xbf16>
    %4 = arith.mulf %0, %3 : vector<128x256xbf16>
    %c0_5 = arith.constant 0 : index
    %c0_6 = arith.constant 0 : index
    %5 = vector.load %arg3[%c0_5, %c0_6] : memref<1x256xbf16, #tpu.memory_space<vmem>>, vector<1x256xbf16>
    %6 = vector.broadcast %5 : vector<1x256xbf16> to vector<128x256xbf16>
    %7 = arith.addf %4, %6 : vector<128x256xbf16>
    %cst = arith.constant 0.000000e+00 : bf16
    %8 = vector.broadcast %cst : bf16 to vector<128x256xbf16>
    %9 = arith.maximumf %7, %8 : vector<128x256xbf16>
    %cst_7 = arith.constant dense<0.000000e+00> : vector<128x128xf32>
    %10 = tpu.matmul %9, %1, %cst_7 {dimension_numbers = #tpu.dot_dimension_numbers<[1], [0], [0], [1], [0, 0, 1, 1], [], []>} : vector<128x256xbf16>, vector<256x128xbf16>, vector<128x128xf32> -> vector<128x128xf32>
    %c0_8 = arith.constant 0 : index
    %c0_9 = arith.constant 0 : index
    %11 = vector.load %arg5[%c0_8, %c0_9] : memref<1x128xf32, #tpu.memory_space<vmem>>, vector<1x128xf32>
    %12 = vector.broadcast %11 : vector<1x128xf32> to vector<128x128xf32>
    %13 = arith.mulf %10, %12 : vector<128x128xf32>
    %c0_10 = arith.constant 0 : index
    %c0_11 = arith.constant 0 : index
    %14 = vector.load %arg6[%c0_10, %c0_11] : memref<1x128xf32, #tpu.memory_space<vmem>>, vector<1x128xf32>
    %15 = vector.broadcast %14 : vector<1x128xf32> to vector<128x128xf32>
    %16 = arith.addf %13, %15 : vector<128x128xf32>
    %cst_12 = arith.constant 0.000000e+00 : f32
    %17 = vector.broadcast %cst_12 : f32 to vector<128x128xf32>
    %18 = arith.maximumf %16, %17 : vector<128x128xf32>
    %19 = arith.truncf %18 : vector<128x128xf32> to vector<128x128xbf16>
    %c0_13 = arith.constant 0 : index
    %c0_14 = arith.constant 0 : index
    %20 = vector.load %arg7[%c0_13, %c0_14] : memref<128x128xbf16, #tpu.memory_space<vmem>>, vector<128x128xbf16>
    tpu.vector_store %arg7[%c0_13, %c0_14], %19 {strides = array<i32>} : memref<128x128xbf16, #tpu.memory_space<vmem>>, vector<128x128xbf16>,
    return
  }
  func.func @transform_0(%arg0: i32) -> (i32, i32) {
    %c0_i32 = arith.constant 0 : i32
    %c0_i32_0 = arith.constant 0 : i32
    return %arg0, %c0_i32 : i32, i32
  }
  func.func @transform_1(%arg0: i32) -> (i32, i32) {
    %c0_i32 = arith.constant 0 : i32
    %c0_i32_0 = arith.constant 0 : i32
    %c0_i32_1 = arith.constant 0 : i32
    return %c0_i32, %c0_i32_0 : i32, i32
  }
  func.func @transform_2(%arg0: i32) -> (i32, i32) {
    %c0_i32 = arith.constant 0 : i32
    %c0_i32_0 = arith.constant 0 : i32
    %c0_i32_1 = arith.constant 0 : i32
    return %c0_i32, %c0_i32_0 : i32, i32
  }
  func.func @transform_3(%arg0: i32) -> (i32, i32) {
    %c0_i32 = arith.constant 0 : i32
    %c0_i32_0 = arith.constant 0 : i32
    %c0_i32_1 = arith.constant 0 : i32
    return %c0_i32, %c0_i32_0 : i32, i32
  }
  func.func @transform_4(%arg0: i32) -> (i32, i32) {
    %c0_i32 = arith.constant 0 : i32
    %c0_i32_0 = arith.constant 0 : i32
    %c0_i32_1 = arith.constant 0 : i32
    return %c0_i32, %c0_i32_0 : i32, i32
  }
  func.func @transform_5(%arg0: i32) -> (i32, i32) {
    %c0_i32 = arith.constant 0 : i32
    %c0_i32_0 = arith.constant 0 : i32
    %c0_i32_1 = arith.constant 0 : i32
    return %c0_i32, %c0_i32_0 : i32, i32
  }
  func.func @transform_6(%arg0: i32) -> (i32, i32) {
    %c0_i32 = arith.constant 0 : i32
    %c0_i32_0 = arith.constant 0 : i32
    return %arg0, %c0_i32 : i32, i32
  }
}

module attributes {stable_mosaic.version = 11 : i64} {
  func.func @kernel(%arg0: i32, %arg1: memref<128x1152xbf16, #tpu.memory_space<vmem>>, %arg2: memref<1152x32xbf16, #tpu.memory_space<vmem>>, %arg3: memref<128x32xbf16, #tpu.memory_space<vmem>>) attributes {dimension_semantics = [#tpu.dimension_semantics<parallel>], iteration_bounds = array<i64: 1>, scalar_prefetch = 0 : i64, scratch_operands = 0 : i64, tpu.core_type = #tpu.core_type<tc>, window_params = [{transform_indices = @transform_0, window_bounds = array<i64: 128, 1152>}, {pipeline_mode = #tpu.pipeline_mode<synchronous>, transform_indices = @transform_1, window_bounds = array<i64: 1152, 32>}, {transform_indices = @transform_2, window_bounds = array<i64: 128, 32>}]} {
    %c0 = arith.constant 0 : index
    %c0_0 = arith.constant 0 : index
    %0 = vector.load %arg1[%c0, %c0_0] : memref<128x1152xbf16, #tpu.memory_space<vmem>>, vector<128x1152xbf16>
    %c0_1 = arith.constant 0 : index
    %c0_2 = arith.constant 0 : index
    %1 = vector.load %arg2[%c0_1, %c0_2] : memref<1152x32xbf16, #tpu.memory_space<vmem>>, vector<1152x32xbf16>
    %cst = arith.constant dense<0.000000e+00> : vector<128x32xf32>
    %2 = tpu.matmul %0, %1, %cst {dimension_numbers = #tpu.dot_dimension_numbers<[1], [0], [0], [1], [0, 0, 1, 1], [], []>} : vector<128x1152xbf16>, vector<1152x32xbf16>, vector<128x32xf32> -> vector<128x32xf32>
    %3 = arith.truncf %2 : vector<128x32xf32> to vector<128x32xbf16>
    %c0_3 = arith.constant 0 : index
    %c0_4 = arith.constant 0 : index
    %4 = vector.load %arg3[%c0_3, %c0_4] : memref<128x32xbf16, #tpu.memory_space<vmem>>, vector<128x32xbf16>
    tpu.vector_store %arg3[%c0_3, %c0_4], %3 {strides = array<i32>} : memref<128x32xbf16, #tpu.memory_space<vmem>>, vector<128x32xbf16>,
    return
  }
  func.func @transform_0(%arg0: i32) -> (i32, i32) {
    %c0_i32 = arith.constant 0 : i32
    %c0_i32_0 = arith.constant 0 : i32
    return %arg0, %c0_i32 : i32, i32
  }
  func.func @transform_1(%arg0: i32) -> (i32, i32) {
    %c0_i32 = arith.constant 0 : i32
    %c0_i32_0 = arith.constant 0 : i32
    %c0_i32_1 = arith.constant 0 : i32
    return %c0_i32, %c0_i32_0 : i32, i32
  }
  func.func @transform_2(%arg0: i32) -> (i32, i32) {
    %c0_i32 = arith.constant 0 : i32
    %c0_i32_0 = arith.constant 0 : i32
    return %arg0, %c0_i32 : i32, i32
  }
}

module attributes {stable_mosaic.version = 11 : i64} {
  func.func @kernel(%arg0: i32, %arg1: memref<128x256xbf16, #tpu.memory_space<vmem>>, %arg2: memref<1x256xbf16, #tpu.memory_space<vmem>>, %arg3: memref<1x256xbf16, #tpu.memory_space<vmem>>, %arg4: memref<256x128xbf16, #tpu.memory_space<vmem>>, %arg5: memref<128x128xbf16, #tpu.memory_space<vmem>>) attributes {dimension_semantics = [#tpu.dimension_semantics<parallel>], iteration_bounds = array<i64: 1>, scalar_prefetch = 0 : i64, scratch_operands = 0 : i64, tpu.core_type = #tpu.core_type<tc>, window_params = [{transform_indices = @transform_0, window_bounds = array<i64: 128, 256>}, {pipeline_mode = #tpu.pipeline_mode<synchronous>, transform_indices = @transform_1, window_bounds = array<i64: 1, 256>}, {pipeline_mode = #tpu.pipeline_mode<synchronous>, transform_indices = @transform_2, window_bounds = array<i64: 1, 256>}, {pipeline_mode = #tpu.pipeline_mode<synchronous>, transform_indices = @transform_3, window_bounds = array<i64: 256, 128>}, {transform_indices = @transform_4, window_bounds = array<i64: 128, 128>}]} {
    %c0 = arith.constant 0 : index
    %c0_0 = arith.constant 0 : index
    %0 = vector.load %arg1[%c0, %c0_0] : memref<128x256xbf16, #tpu.memory_space<vmem>>, vector<128x256xbf16>
    %c0_1 = arith.constant 0 : index
    %c0_2 = arith.constant 0 : index
    %1 = vector.load %arg4[%c0_1, %c0_2] : memref<256x128xbf16, #tpu.memory_space<vmem>>, vector<256x128xbf16>
    %c0_3 = arith.constant 0 : index
    %c0_4 = arith.constant 0 : index
    %2 = vector.load %arg2[%c0_3, %c0_4] : memref<1x256xbf16, #tpu.memory_space<vmem>>, vector<1x256xbf16>
    %3 = vector.broadcast %2 : vector<1x256xbf16> to vector<128x256xbf16>
    %4 = arith.mulf %0, %3 : vector<128x256xbf16>
    %c0_5 = arith.constant 0 : index
    %c0_6 = arith.constant 0 : index
    %5 = vector.load %arg3[%c0_5, %c0_6] : memref<1x256xbf16, #tpu.memory_space<vmem>>, vector<1x256xbf16>
    %6 = vector.broadcast %5 : vector<1x256xbf16> to vector<128x256xbf16>
    %7 = arith.addf %4, %6 : vector<128x256xbf16>
    %cst = arith.constant 0.000000e+00 : bf16
    %8 = vector.broadcast %cst : bf16 to vector<128x256xbf16>
    %9 = arith.maximumf %7, %8 : vector<128x256xbf16>
    %cst_7 = arith.constant dense<0.000000e+00> : vector<128x128xf32>
    %10 = tpu.matmul %9, %1, %cst_7 {dimension_numbers = #tpu.dot_dimension_numbers<[1], [0], [0], [1], [0, 0, 1, 1], [], []>} : vector<128x256xbf16>, vector<256x128xbf16>, vector<128x128xf32> -> vector<128x128xf32>
    %11 = arith.truncf %10 : vector<128x128xf32> to vector<128x128xbf16>
    %c0_8 = arith.constant 0 : index
    %c0_9 = arith.constant 0 : index
    %12 = vector.load %arg5[%c0_8, %c0_9] : memref<128x128xbf16, #tpu.memory_space<vmem>>, vector<128x128xbf16>
    tpu.vector_store %arg5[%c0_8, %c0_9], %11 {strides = array<i32>} : memref<128x128xbf16, #tpu.memory_space<vmem>>, vector<128x128xbf16>,
    return
  }
  func.func @transform_0(%arg0: i32) -> (i32, i32) {
    %c0_i32 = arith.constant 0 : i32
    %c0_i32_0 = arith.constant 0 : i32
    return %arg0, %c0_i32 : i32, i32
  }
  func.func @transform_1(%arg0: i32) -> (i32, i32) {
    %c0_i32 = arith.constant 0 : i32
    %c0_i32_0 = arith.constant 0 : i32
    %c0_i32_1 = arith.constant 0 : i32
    return %c0_i32, %c0_i32_0 : i32, i32
  }
  func.func @transform_2(%arg0: i32) -> (i32, i32) {
    %c0_i32 = arith.constant 0 : i32
    %c0_i32_0 = arith.constant 0 : i32
    %c0_i32_1 = arith.constant 0 : i32
    return %c0_i32, %c0_i32_0 : i32, i32
  }
  func.func @transform_3(%arg0: i32) -> (i32, i32) {
    %c0_i32 = arith.constant 0 : i32
    %c0_i32_0 = arith.constant 0 : i32
    %c0_i32_1 = arith.constant 0 : i32
    return %c0_i32, %c0_i32_0 : i32, i32
  }
  func.func @transform_4(%arg0: i32) -> (i32, i32) {
    %c0_i32 = arith.constant 0 : i32
    %c0_i32_0 = arith.constant 0 : i32
    return %arg0, %c0_i32 : i32, i32
  }
}

module attributes {stable_mosaic.version = 11 : i64} {
  func.func @kernel(%arg0: i32, %arg1: memref<32x512xbf16, #tpu.memory_space<vmem>>, %arg2: memref<1x512xbf16, #tpu.memory_space<vmem>>, %arg3: memref<1x512xbf16, #tpu.memory_space<vmem>>, %arg4: memref<512x128xbf16, #tpu.memory_space<vmem>>, %arg5: memref<1x128xf32, #tpu.memory_space<vmem>>, %arg6: memref<1x128xf32, #tpu.memory_space<vmem>>, %arg7: memref<32x128xbf16, #tpu.memory_space<vmem>>) attributes {dimension_semantics = [#tpu.dimension_semantics<parallel>], iteration_bounds = array<i64: 1>, scalar_prefetch = 0 : i64, scratch_operands = 0 : i64, tpu.core_type = #tpu.core_type<tc>, window_params = [{transform_indices = @transform_0, window_bounds = array<i64: 32, 512>}, {pipeline_mode = #tpu.pipeline_mode<synchronous>, transform_indices = @transform_1, window_bounds = array<i64: 1, 512>}, {pipeline_mode = #tpu.pipeline_mode<synchronous>, transform_indices = @transform_2, window_bounds = array<i64: 1, 512>}, {pipeline_mode = #tpu.pipeline_mode<synchronous>, transform_indices = @transform_3, window_bounds = array<i64: 512, 128>}, {pipeline_mode = #tpu.pipeline_mode<synchronous>, transform_indices = @transform_4, window_bounds = array<i64: 1, 128>}, {pipeline_mode = #tpu.pipeline_mode<synchronous>, transform_indices = @transform_5, window_bounds = array<i64: 1, 128>}, {transform_indices = @transform_6, window_bounds = array<i64: 32, 128>}]} {
    %c0 = arith.constant 0 : index
    %c0_0 = arith.constant 0 : index
    %0 = vector.load %arg1[%c0, %c0_0] : memref<32x512xbf16, #tpu.memory_space<vmem>>, vector<32x512xbf16>
    %c0_1 = arith.constant 0 : index
    %c0_2 = arith.constant 0 : index
    %1 = vector.load %arg4[%c0_1, %c0_2] : memref<512x128xbf16, #tpu.memory_space<vmem>>, vector<512x128xbf16>
    %c0_3 = arith.constant 0 : index
    %c0_4 = arith.constant 0 : index
    %2 = vector.load %arg2[%c0_3, %c0_4] : memref<1x512xbf16, #tpu.memory_space<vmem>>, vector<1x512xbf16>
    %3 = vector.broadcast %2 : vector<1x512xbf16> to vector<32x512xbf16>
    %4 = arith.mulf %0, %3 : vector<32x512xbf16>
    %c0_5 = arith.constant 0 : index
    %c0_6 = arith.constant 0 : index
    %5 = vector.load %arg3[%c0_5, %c0_6] : memref<1x512xbf16, #tpu.memory_space<vmem>>, vector<1x512xbf16>
    %6 = vector.broadcast %5 : vector<1x512xbf16> to vector<32x512xbf16>
    %7 = arith.addf %4, %6 : vector<32x512xbf16>
    %cst = arith.constant 0.000000e+00 : bf16
    %8 = vector.broadcast %cst : bf16 to vector<32x512xbf16>
    %9 = arith.maximumf %7, %8 : vector<32x512xbf16>
    %cst_7 = arith.constant dense<0.000000e+00> : vector<32x128xf32>
    %10 = tpu.matmul %9, %1, %cst_7 {dimension_numbers = #tpu.dot_dimension_numbers<[1], [0], [0], [1], [0, 0, 1, 1], [], []>} : vector<32x512xbf16>, vector<512x128xbf16>, vector<32x128xf32> -> vector<32x128xf32>
    %c0_8 = arith.constant 0 : index
    %c0_9 = arith.constant 0 : index
    %11 = vector.load %arg5[%c0_8, %c0_9] : memref<1x128xf32, #tpu.memory_space<vmem>>, vector<1x128xf32>
    %12 = vector.broadcast %11 : vector<1x128xf32> to vector<32x128xf32>
    %13 = arith.mulf %10, %12 : vector<32x128xf32>
    %c0_10 = arith.constant 0 : index
    %c0_11 = arith.constant 0 : index
    %14 = vector.load %arg6[%c0_10, %c0_11] : memref<1x128xf32, #tpu.memory_space<vmem>>, vector<1x128xf32>
    %15 = vector.broadcast %14 : vector<1x128xf32> to vector<32x128xf32>
    %16 = arith.addf %13, %15 : vector<32x128xf32>
    %cst_12 = arith.constant 0.000000e+00 : f32
    %17 = vector.broadcast %cst_12 : f32 to vector<32x128xf32>
    %18 = arith.maximumf %16, %17 : vector<32x128xf32>
    %19 = arith.truncf %18 : vector<32x128xf32> to vector<32x128xbf16>
    %c0_13 = arith.constant 0 : index
    %c0_14 = arith.constant 0 : index
    %20 = vector.load %arg7[%c0_13, %c0_14] : memref<32x128xbf16, #tpu.memory_space<vmem>>, vector<32x128xbf16>
    tpu.vector_store %arg7[%c0_13, %c0_14], %19 {strides = array<i32>} : memref<32x128xbf16, #tpu.memory_space<vmem>>, vector<32x128xbf16>,
    return
  }
  func.func @transform_0(%arg0: i32) -> (i32, i32) {
    %c0_i32 = arith.constant 0 : i32
    %c0_i32_0 = arith.constant 0 : i32
    return %arg0, %c0_i32 : i32, i32
  }
  func.func @transform_1(%arg0: i32) -> (i32, i32) {
    %c0_i32 = arith.constant 0 : i32
    %c0_i32_0 = arith.constant 0 : i32
    %c0_i32_1 = arith.constant 0 : i32
    return %c0_i32, %c0_i32_0 : i32, i32
  }
  func.func @transform_2(%arg0: i32) -> (i32, i32) {
    %c0_i32 = arith.constant 0 : i32
    %c0_i32_0 = arith.constant 0 : i32
    %c0_i32_1 = arith.constant 0 : i32
    return %c0_i32, %c0_i32_0 : i32, i32
  }
  func.func @transform_3(%arg0: i32) -> (i32, i32) {
    %c0_i32 = arith.constant 0 : i32
    %c0_i32_0 = arith.constant 0 : i32
    %c0_i32_1 = arith.constant 0 : i32
    return %c0_i32, %c0_i32_0 : i32, i32
  }
  func.func @transform_4(%arg0: i32) -> (i32, i32) {
    %c0_i32 = arith.constant 0 : i32
    %c0_i32_0 = arith.constant 0 : i32
    %c0_i32_1 = arith.constant 0 : i32
    return %c0_i32, %c0_i32_0 : i32, i32
  }
  func.func @transform_5(%arg0: i32) -> (i32, i32) {
    %c0_i32 = arith.constant 0 : i32
    %c0_i32_0 = arith.constant 0 : i32
    %c0_i32_1 = arith.constant 0 : i32
    return %c0_i32, %c0_i32_0 : i32, i32
  }
  func.func @transform_6(%arg0: i32) -> (i32, i32) {
    %c0_i32 = arith.constant 0 : i32
    %c0_i32_0 = arith.constant 0 : i32
    return %arg0, %c0_i32 : i32, i32
  }
}

module attributes {stable_mosaic.version = 11 : i64} {
  func.func @kernel(%arg0: i32, %arg1: memref<32x1152xbf16, #tpu.memory_space<vmem>>, %arg2: memref<1152x32xbf16, #tpu.memory_space<vmem>>, %arg3: memref<32x32xbf16, #tpu.memory_space<vmem>>) attributes {dimension_semantics = [#tpu.dimension_semantics<parallel>], iteration_bounds = array<i64: 1>, scalar_prefetch = 0 : i64, scratch_operands = 0 : i64, tpu.core_type = #tpu.core_type<tc>, window_params = [{transform_indices = @transform_0, window_bounds = array<i64: 32, 1152>}, {pipeline_mode = #tpu.pipeline_mode<synchronous>, transform_indices = @transform_1, window_bounds = array<i64: 1152, 32>}, {transform_indices = @transform_2, window_bounds = array<i64: 32, 32>}]} {
    %c0 = arith.constant 0 : index
    %c0_0 = arith.constant 0 : index
    %0 = vector.load %arg1[%c0, %c0_0] : memref<32x1152xbf16, #tpu.memory_space<vmem>>, vector<32x1152xbf16>
    %c0_1 = arith.constant 0 : index
    %c0_2 = arith.constant 0 : index
    %1 = vector.load %arg2[%c0_1, %c0_2] : memref<1152x32xbf16, #tpu.memory_space<vmem>>, vector<1152x32xbf16>
    %cst = arith.constant dense<0.000000e+00> : vector<32x32xf32>
    %2 = tpu.matmul %0, %1, %cst {dimension_numbers = #tpu.dot_dimension_numbers<[1], [0], [0], [1], [0, 0, 1, 1], [], []>} : vector<32x1152xbf16>, vector<1152x32xbf16>, vector<32x32xf32> -> vector<32x32xf32>
    %3 = arith.truncf %2 : vector<32x32xf32> to vector<32x32xbf16>
    %c0_3 = arith.constant 0 : index
    %c0_4 = arith.constant 0 : index
    %4 = vector.load %arg3[%c0_3, %c0_4] : memref<32x32xbf16, #tpu.memory_space<vmem>>, vector<32x32xbf16>
    tpu.vector_store %arg3[%c0_3, %c0_4], %3 {strides = array<i32>} : memref<32x32xbf16, #tpu.memory_space<vmem>>, vector<32x32xbf16>,
    return
  }
  func.func @transform_0(%arg0: i32) -> (i32, i32) {
    %c0_i32 = arith.constant 0 : i32
    %c0_i32_0 = arith.constant 0 : i32
    return %arg0, %c0_i32 : i32, i32
  }
  func.func @transform_1(%arg0: i32) -> (i32, i32) {
    %c0_i32 = arith.constant 0 : i32
    %c0_i32_0 = arith.constant 0 : i32
    %c0_i32_1 = arith.constant 0 : i32
    return %c0_i32, %c0_i32_0 : i32, i32
  }
  func.func @transform_2(%arg0: i32) -> (i32, i32) {
    %c0_i32 = arith.constant 0 : i32
    %c0_i32_0 = arith.constant 0 : i32
    return %arg0, %c0_i32 : i32, i32
  }
}

module attributes {stable_mosaic.version = 11 : i64} {
  func.func @kernel(%arg0: i32, %arg1: memref<32x512xbf16, #tpu.memory_space<vmem>>, %arg2: memref<1x512xbf16, #tpu.memory_space<vmem>>, %arg3: memref<1x512xbf16, #tpu.memory_space<vmem>>, %arg4: memref<512x256xbf16, #tpu.memory_space<vmem>>, %arg5: memref<32x256xbf16, #tpu.memory_space<vmem>>) attributes {dimension_semantics = [#tpu.dimension_semantics<parallel>], iteration_bounds = array<i64: 1>, scalar_prefetch = 0 : i64, scratch_operands = 0 : i64, tpu.core_type = #tpu.core_type<tc>, window_params = [{transform_indices = @transform_0, window_bounds = array<i64: 32, 512>}, {pipeline_mode = #tpu.pipeline_mode<synchronous>, transform_indices = @transform_1, window_bounds = array<i64: 1, 512>}, {pipeline_mode = #tpu.pipeline_mode<synchronous>, transform_indices = @transform_2, window_bounds = array<i64: 1, 512>}, {pipeline_mode = #tpu.pipeline_mode<synchronous>, transform_indices = @transform_3, window_bounds = array<i64: 512, 256>}, {transform_indices = @transform_4, window_bounds = array<i64: 32, 256>}]} {
    %c0 = arith.constant 0 : index
    %c0_0 = arith.constant 0 : index
    %0 = vector.load %arg1[%c0, %c0_0] : memref<32x512xbf16, #tpu.memory_space<vmem>>, vector<32x512xbf16>
    %c0_1 = arith.constant 0 : index
    %c0_2 = arith.constant 0 : index
    %1 = vector.load %arg4[%c0_1, %c0_2] : memref<512x256xbf16, #tpu.memory_space<vmem>>, vector<512x256xbf16>
    %c0_3 = arith.constant 0 : index
    %c0_4 = arith.constant 0 : index
    %2 = vector.load %arg2[%c0_3, %c0_4] : memref<1x512xbf16, #tpu.memory_space<vmem>>, vector<1x512xbf16>
    %3 = vector.broadcast %2 : vector<1x512xbf16> to vector<32x512xbf16>
    %4 = arith.mulf %0, %3 : vector<32x512xbf16>
    %c0_5 = arith.constant 0 : index
    %c0_6 = arith.constant 0 : index
    %5 = vector.load %arg3[%c0_5, %c0_6] : memref<1x512xbf16, #tpu.memory_space<vmem>>, vector<1x512xbf16>
    %6 = vector.broadcast %5 : vector<1x512xbf16> to vector<32x512xbf16>
    %7 = arith.addf %4, %6 : vector<32x512xbf16>
    %cst = arith.constant 0.000000e+00 : bf16
    %8 = vector.broadcast %cst : bf16 to vector<32x512xbf16>
    %9 = arith.maximumf %7, %8 : vector<32x512xbf16>
    %cst_7 = arith.constant dense<0.000000e+00> : vector<32x256xf32>
    %10 = tpu.matmul %9, %1, %cst_7 {dimension_numbers = #tpu.dot_dimension_numbers<[1], [0], [0], [1], [0, 0, 1, 1], [], []>} : vector<32x512xbf16>, vector<512x256xbf16>, vector<32x256xf32> -> vector<32x256xf32>
    %11 = arith.truncf %10 : vector<32x256xf32> to vector<32x256xbf16>
    %c0_8 = arith.constant 0 : index
    %c0_9 = arith.constant 0 : index
    %12 = vector.load %arg5[%c0_8, %c0_9] : memref<32x256xbf16, #tpu.memory_space<vmem>>, vector<32x256xbf16>
    tpu.vector_store %arg5[%c0_8, %c0_9], %11 {strides = array<i32>} : memref<32x256xbf16, #tpu.memory_space<vmem>>, vector<32x256xbf16>,
    return
  }
  func.func @transform_0(%arg0: i32) -> (i32, i32) {
    %c0_i32 = arith.constant 0 : i32
    %c0_i32_0 = arith.constant 0 : i32
    return %arg0, %c0_i32 : i32, i32
  }
  func.func @transform_1(%arg0: i32) -> (i32, i32) {
    %c0_i32 = arith.constant 0 : i32
    %c0_i32_0 = arith.constant 0 : i32
    %c0_i32_1 = arith.constant 0 : i32
    return %c0_i32, %c0_i32_0 : i32, i32
  }
  func.func @transform_2(%arg0: i32) -> (i32, i32) {
    %c0_i32 = arith.constant 0 : i32
    %c0_i32_0 = arith.constant 0 : i32
    %c0_i32_1 = arith.constant 0 : i32
    return %c0_i32, %c0_i32_0 : i32, i32
  }
  func.func @transform_3(%arg0: i32) -> (i32, i32) {
    %c0_i32 = arith.constant 0 : i32
    %c0_i32_0 = arith.constant 0 : i32
    %c0_i32_1 = arith.constant 0 : i32
    return %c0_i32, %c0_i32_0 : i32, i32
  }
  func.func @transform_4(%arg0: i32) -> (i32, i32) {
    %c0_i32 = arith.constant 0 : i32
    %c0_i32_0 = arith.constant 0 : i32
    return %arg0, %c0_i32 : i32, i32
  }
}

module attributes {stable_mosaic.version = 11 : i64} {
  func.func @kernel(%arg0: i32, %arg1: memref<8x1024xbf16, #tpu.memory_space<vmem>>, %arg2: memref<1x1024xbf16, #tpu.memory_space<vmem>>, %arg3: memref<1x1024xbf16, #tpu.memory_space<vmem>>, %arg4: memref<1024x128xbf16, #tpu.memory_space<vmem>>, %arg5: memref<1x128xf32, #tpu.memory_space<vmem>>, %arg6: memref<1x128xf32, #tpu.memory_space<vmem>>, %arg7: memref<8x128xbf16, #tpu.memory_space<vmem>>) attributes {dimension_semantics = [#tpu.dimension_semantics<parallel>], iteration_bounds = array<i64: 1>, scalar_prefetch = 0 : i64, scratch_operands = 0 : i64, tpu.core_type = #tpu.core_type<tc>, window_params = [{transform_indices = @transform_0, window_bounds = array<i64: 8, 1024>}, {pipeline_mode = #tpu.pipeline_mode<synchronous>, transform_indices = @transform_1, window_bounds = array<i64: 1, 1024>}, {pipeline_mode = #tpu.pipeline_mode<synchronous>, transform_indices = @transform_2, window_bounds = array<i64: 1, 1024>}, {pipeline_mode = #tpu.pipeline_mode<synchronous>, transform_indices = @transform_3, window_bounds = array<i64: 1024, 128>}, {pipeline_mode = #tpu.pipeline_mode<synchronous>, transform_indices = @transform_4, window_bounds = array<i64: 1, 128>}, {pipeline_mode = #tpu.pipeline_mode<synchronous>, transform_indices = @transform_5, window_bounds = array<i64: 1, 128>}, {transform_indices = @transform_6, window_bounds = array<i64: 8, 128>}]} {
    %c0 = arith.constant 0 : index
    %c0_0 = arith.constant 0 : index
    %0 = vector.load %arg1[%c0, %c0_0] : memref<8x1024xbf16, #tpu.memory_space<vmem>>, vector<8x1024xbf16>
    %c0_1 = arith.constant 0 : index
    %c0_2 = arith.constant 0 : index
    %1 = vector.load %arg4[%c0_1, %c0_2] : memref<1024x128xbf16, #tpu.memory_space<vmem>>, vector<1024x128xbf16>
    %c0_3 = arith.constant 0 : index
    %c0_4 = arith.constant 0 : index
    %2 = vector.load %arg2[%c0_3, %c0_4] : memref<1x1024xbf16, #tpu.memory_space<vmem>>, vector<1x1024xbf16>
    %3 = vector.broadcast %2 : vector<1x1024xbf16> to vector<8x1024xbf16>
    %4 = arith.mulf %0, %3 : vector<8x1024xbf16>
    %c0_5 = arith.constant 0 : index
    %c0_6 = arith.constant 0 : index
    %5 = vector.load %arg3[%c0_5, %c0_6] : memref<1x1024xbf16, #tpu.memory_space<vmem>>, vector<1x1024xbf16>
    %6 = vector.broadcast %5 : vector<1x1024xbf16> to vector<8x1024xbf16>
    %7 = arith.addf %4, %6 : vector<8x1024xbf16>
    %cst = arith.constant 0.000000e+00 : bf16
    %8 = vector.broadcast %cst : bf16 to vector<8x1024xbf16>
    %9 = arith.maximumf %7, %8 : vector<8x1024xbf16>
    %cst_7 = arith.constant dense<0.000000e+00> : vector<8x128xf32>
    %10 = tpu.matmul %9, %1, %cst_7 {dimension_numbers = #tpu.dot_dimension_numbers<[1], [0], [0], [1], [0, 0, 1, 1], [], []>} : vector<8x1024xbf16>, vector<1024x128xbf16>, vector<8x128xf32> -> vector<8x128xf32>
    %c0_8 = arith.constant 0 : index
    %c0_9 = arith.constant 0 : index
    %11 = vector.load %arg5[%c0_8, %c0_9] : memref<1x128xf32, #tpu.memory_space<vmem>>, vector<1x128xf32>
    %12 = vector.broadcast %11 : vector<1x128xf32> to vector<8x128xf32>
    %13 = arith.mulf %10, %12 : vector<8x128xf32>
    %c0_10 = arith.constant 0 : index
    %c0_11 = arith.constant 0 : index
    %14 = vector.load %arg6[%c0_10, %c0_11] : memref<1x128xf32, #tpu.memory_space<vmem>>, vector<1x128xf32>
    %15 = vector.broadcast %14 : vector<1x128xf32> to vector<8x128xf32>
    %16 = arith.addf %13, %15 : vector<8x128xf32>
    %cst_12 = arith.constant 0.000000e+00 : f32
    %17 = vector.broadcast %cst_12 : f32 to vector<8x128xf32>
    %18 = arith.maximumf %16, %17 : vector<8x128xf32>
    %19 = arith.truncf %18 : vector<8x128xf32> to vector<8x128xbf16>
    %c0_13 = arith.constant 0 : index
    %c0_14 = arith.constant 0 : index
    %20 = vector.load %arg7[%c0_13, %c0_14] : memref<8x128xbf16, #tpu.memory_space<vmem>>, vector<8x128xbf16>
    tpu.vector_store %arg7[%c0_13, %c0_14], %19 {strides = array<i32>} : memref<8x128xbf16, #tpu.memory_space<vmem>>, vector<8x128xbf16>,
    return
  }
  func.func @transform_0(%arg0: i32) -> (i32, i32) {
    %c0_i32 = arith.constant 0 : i32
    %c0_i32_0 = arith.constant 0 : i32
    return %arg0, %c0_i32 : i32, i32
  }
  func.func @transform_1(%arg0: i32) -> (i32, i32) {
    %c0_i32 = arith.constant 0 : i32
    %c0_i32_0 = arith.constant 0 : i32
    %c0_i32_1 = arith.constant 0 : i32
    return %c0_i32, %c0_i32_0 : i32, i32
  }
  func.func @transform_2(%arg0: i32) -> (i32, i32) {
    %c0_i32 = arith.constant 0 : i32
    %c0_i32_0 = arith.constant 0 : i32
    %c0_i32_1 = arith.constant 0 : i32
    return %c0_i32, %c0_i32_0 : i32, i32
  }
  func.func @transform_3(%arg0: i32) -> (i32, i32) {
    %c0_i32 = arith.constant 0 : i32
    %c0_i32_0 = arith.constant 0 : i32
    %c0_i32_1 = arith.constant 0 : i32
    return %c0_i32, %c0_i32_0 : i32, i32
  }
  func.func @transform_4(%arg0: i32) -> (i32, i32) {
    %c0_i32 = arith.constant 0 : i32
    %c0_i32_0 = arith.constant 0 : i32
    %c0_i32_1 = arith.constant 0 : i32
    return %c0_i32, %c0_i32_0 : i32, i32
  }
  func.func @transform_5(%arg0: i32) -> (i32, i32) {
    %c0_i32 = arith.constant 0 : i32
    %c0_i32_0 = arith.constant 0 : i32
    %c0_i32_1 = arith.constant 0 : i32
    return %c0_i32, %c0_i32_0 : i32, i32
  }
  func.func @transform_6(%arg0: i32) -> (i32, i32) {
    %c0_i32 = arith.constant 0 : i32
    %c0_i32_0 = arith.constant 0 : i32
    return %arg0, %c0_i32 : i32, i32
  }
}

module attributes {stable_mosaic.version = 11 : i64} {
  func.func @kernel(%arg0: i32, %arg1: memref<8x1152xbf16, #tpu.memory_space<vmem>>, %arg2: memref<1152x32xbf16, #tpu.memory_space<vmem>>, %arg3: memref<8x32xbf16, #tpu.memory_space<vmem>>) attributes {dimension_semantics = [#tpu.dimension_semantics<parallel>], iteration_bounds = array<i64: 1>, scalar_prefetch = 0 : i64, scratch_operands = 0 : i64, tpu.core_type = #tpu.core_type<tc>, window_params = [{transform_indices = @transform_0, window_bounds = array<i64: 8, 1152>}, {pipeline_mode = #tpu.pipeline_mode<synchronous>, transform_indices = @transform_1, window_bounds = array<i64: 1152, 32>}, {transform_indices = @transform_2, window_bounds = array<i64: 8, 32>}]} {
    %c0 = arith.constant 0 : index
    %c0_0 = arith.constant 0 : index
    %0 = vector.load %arg1[%c0, %c0_0] : memref<8x1152xbf16, #tpu.memory_space<vmem>>, vector<8x1152xbf16>
    %c0_1 = arith.constant 0 : index
    %c0_2 = arith.constant 0 : index
    %1 = vector.load %arg2[%c0_1, %c0_2] : memref<1152x32xbf16, #tpu.memory_space<vmem>>, vector<1152x32xbf16>
    %cst = arith.constant dense<0.000000e+00> : vector<8x32xf32>
    %2 = tpu.matmul %0, %1, %cst {dimension_numbers = #tpu.dot_dimension_numbers<[1], [0], [0], [1], [0, 0, 1, 1], [], []>} : vector<8x1152xbf16>, vector<1152x32xbf16>, vector<8x32xf32> -> vector<8x32xf32>
    %3 = arith.truncf %2 : vector<8x32xf32> to vector<8x32xbf16>
    %c0_3 = arith.constant 0 : index
    %c0_4 = arith.constant 0 : index
    %4 = vector.load %arg3[%c0_3, %c0_4] : memref<8x32xbf16, #tpu.memory_space<vmem>>, vector<8x32xbf16>
    tpu.vector_store %arg3[%c0_3, %c0_4], %3 {strides = array<i32>} : memref<8x32xbf16, #tpu.memory_space<vmem>>, vector<8x32xbf16>,
    return
  }
  func.func @transform_0(%arg0: i32) -> (i32, i32) {
    %c0_i32 = arith.constant 0 : i32
    %c0_i32_0 = arith.constant 0 : i32
    return %arg0, %c0_i32 : i32, i32
  }
  func.func @transform_1(%arg0: i32) -> (i32, i32) {
    %c0_i32 = arith.constant 0 : i32
    %c0_i32_0 = arith.constant 0 : i32
    %c0_i32_1 = arith.constant 0 : i32
    return %c0_i32, %c0_i32_0 : i32, i32
  }
  func.func @transform_2(%arg0: i32) -> (i32, i32) {
    %c0_i32 = arith.constant 0 : i32
    %c0_i32_0 = arith.constant 0 : i32
    return %arg0, %c0_i32 : i32, i32
  }
}

module attributes {stable_mosaic.version = 11 : i64} {
  func.func @kernel(%arg0: i32, %arg1: memref<8x1024xbf16, #tpu.memory_space<vmem>>, %arg2: memref<1x1024xbf16, #tpu.memory_space<vmem>>, %arg3: memref<1x1024xbf16, #tpu.memory_space<vmem>>, %arg4: memref<1024x512xbf16, #tpu.memory_space<vmem>>, %arg5: memref<8x512xbf16, #tpu.memory_space<vmem>>) attributes {dimension_semantics = [#tpu.dimension_semantics<parallel>], iteration_bounds = array<i64: 1>, scalar_prefetch = 0 : i64, scratch_operands = 0 : i64, tpu.core_type = #tpu.core_type<tc>, window_params = [{transform_indices = @transform_0, window_bounds = array<i64: 8, 1024>}, {pipeline_mode = #tpu.pipeline_mode<synchronous>, transform_indices = @transform_1, window_bounds = array<i64: 1, 1024>}, {pipeline_mode = #tpu.pipeline_mode<synchronous>, transform_indices = @transform_2, window_bounds = array<i64: 1, 1024>}, {pipeline_mode = #tpu.pipeline_mode<synchronous>, transform_indices = @transform_3, window_bounds = array<i64: 1024, 512>}, {transform_indices = @transform_4, window_bounds = array<i64: 8, 512>}]} {
    %c0 = arith.constant 0 : index
    %c0_0 = arith.constant 0 : index
    %0 = vector.load %arg1[%c0, %c0_0] : memref<8x1024xbf16, #tpu.memory_space<vmem>>, vector<8x1024xbf16>
    %c0_1 = arith.constant 0 : index
    %c0_2 = arith.constant 0 : index
    %1 = vector.load %arg4[%c0_1, %c0_2] : memref<1024x512xbf16, #tpu.memory_space<vmem>>, vector<1024x512xbf16>
    %c0_3 = arith.constant 0 : index
    %c0_4 = arith.constant 0 : index
    %2 = vector.load %arg2[%c0_3, %c0_4] : memref<1x1024xbf16, #tpu.memory_space<vmem>>, vector<1x1024xbf16>
    %3 = vector.broadcast %2 : vector<1x1024xbf16> to vector<8x1024xbf16>
    %4 = arith.mulf %0, %3 : vector<8x1024xbf16>
    %c0_5 = arith.constant 0 : index
    %c0_6 = arith.constant 0 : index
    %5 = vector.load %arg3[%c0_5, %c0_6] : memref<1x1024xbf16, #tpu.memory_space<vmem>>, vector<1x1024xbf16>
    %6 = vector.broadcast %5 : vector<1x1024xbf16> to vector<8x1024xbf16>
    %7 = arith.addf %4, %6 : vector<8x1024xbf16>
    %cst = arith.constant 0.000000e+00 : bf16
    %8 = vector.broadcast %cst : bf16 to vector<8x1024xbf16>
    %9 = arith.maximumf %7, %8 : vector<8x1024xbf16>
    %cst_7 = arith.constant dense<0.000000e+00> : vector<8x512xf32>
    %10 = tpu.matmul %9, %1, %cst_7 {dimension_numbers = #tpu.dot_dimension_numbers<[1], [0], [0], [1], [0, 0, 1, 1], [], []>} : vector<8x1024xbf16>, vector<1024x512xbf16>, vector<8x512xf32> -> vector<8x512xf32>
    %11 = arith.truncf %10 : vector<8x512xf32> to vector<8x512xbf16>
    %c0_8 = arith.constant 0 : index
    %c0_9 = arith.constant 0 : index
    %12 = vector.load %arg5[%c0_8, %c0_9] : memref<8x512xbf16, #tpu.memory_space<vmem>>, vector<8x512xbf16>
    tpu.vector_store %arg5[%c0_8, %c0_9], %11 {strides = array<i32>} : memref<8x512xbf16, #tpu.memory_space<vmem>>, vector<8x512xbf16>,
    return
  }
  func.func @transform_0(%arg0: i32) -> (i32, i32) {
    %c0_i32 = arith.constant 0 : i32
    %c0_i32_0 = arith.constant 0 : i32
    return %arg0, %c0_i32 : i32, i32
  }
  func.func @transform_1(%arg0: i32) -> (i32, i32) {
    %c0_i32 = arith.constant 0 : i32
    %c0_i32_0 = arith.constant 0 : i32
    %c0_i32_1 = arith.constant 0 : i32
    return %c0_i32, %c0_i32_0 : i32, i32
  }
  func.func @transform_2(%arg0: i32) -> (i32, i32) {
    %c0_i32 = arith.constant 0 : i32
    %c0_i32_0 = arith.constant 0 : i32
    %c0_i32_1 = arith.constant 0 : i32
    return %c0_i32, %c0_i32_0 : i32, i32
  }
  func.func @transform_3(%arg0: i32) -> (i32, i32) {
    %c0_i32 = arith.constant 0 : i32
    %c0_i32_0 = arith.constant 0 : i32
    %c0_i32_1 = arith.constant 0 : i32
    return %c0_i32, %c0_i32_0 : i32, i32
  }
  func.func @transform_4(%arg0: i32) -> (i32, i32) {
    %c0_i32 = arith.constant 0 : i32
    %c0_i32_0 = arith.constant 0 : i32
    return %arg0, %c0_i32 : i32, i32
  }
}

module attributes {stable_mosaic.version = 11 : i64} {
  func.func @kernel(%arg0: i32, %arg1: memref<2x1024xbf16, #tpu.memory_space<vmem>>, %arg2: memref<1x1024xbf16, #tpu.memory_space<vmem>>, %arg3: memref<1x1024xbf16, #tpu.memory_space<vmem>>, %arg4: memref<1024x128xbf16, #tpu.memory_space<vmem>>, %arg5: memref<1x128xf32, #tpu.memory_space<vmem>>, %arg6: memref<1x128xf32, #tpu.memory_space<vmem>>, %arg7: memref<2x128xbf16, #tpu.memory_space<vmem>>) attributes {dimension_semantics = [#tpu.dimension_semantics<parallel>], iteration_bounds = array<i64: 1>, scalar_prefetch = 0 : i64, scratch_operands = 0 : i64, tpu.core_type = #tpu.core_type<tc>, window_params = [{transform_indices = @transform_0, window_bounds = array<i64: 2, 1024>}, {pipeline_mode = #tpu.pipeline_mode<synchronous>, transform_indices = @transform_1, window_bounds = array<i64: 1, 1024>}, {pipeline_mode = #tpu.pipeline_mode<synchronous>, transform_indices = @transform_2, window_bounds = array<i64: 1, 1024>}, {pipeline_mode = #tpu.pipeline_mode<synchronous>, transform_indices = @transform_3, window_bounds = array<i64: 1024, 128>}, {pipeline_mode = #tpu.pipeline_mode<synchronous>, transform_indices = @transform_4, window_bounds = array<i64: 1, 128>}, {pipeline_mode = #tpu.pipeline_mode<synchronous>, transform_indices = @transform_5, window_bounds = array<i64: 1, 128>}, {transform_indices = @transform_6, window_bounds = array<i64: 2, 128>}]} {
    %c0 = arith.constant 0 : index
    %c0_0 = arith.constant 0 : index
    %0 = vector.load %arg1[%c0, %c0_0] : memref<2x1024xbf16, #tpu.memory_space<vmem>>, vector<2x1024xbf16>
    %c0_1 = arith.constant 0 : index
    %c0_2 = arith.constant 0 : index
    %1 = vector.load %arg4[%c0_1, %c0_2] : memref<1024x128xbf16, #tpu.memory_space<vmem>>, vector<1024x128xbf16>
    %c0_3 = arith.constant 0 : index
    %c0_4 = arith.constant 0 : index
    %2 = vector.load %arg2[%c0_3, %c0_4] : memref<1x1024xbf16, #tpu.memory_space<vmem>>, vector<1x1024xbf16>
    %3 = vector.broadcast %2 : vector<1x1024xbf16> to vector<2x1024xbf16>
    %4 = arith.mulf %0, %3 : vector<2x1024xbf16>
    %c0_5 = arith.constant 0 : index
    %c0_6 = arith.constant 0 : index
    %5 = vector.load %arg3[%c0_5, %c0_6] : memref<1x1024xbf16, #tpu.memory_space<vmem>>, vector<1x1024xbf16>
    %6 = vector.broadcast %5 : vector<1x1024xbf16> to vector<2x1024xbf16>
    %7 = arith.addf %4, %6 : vector<2x1024xbf16>
    %cst = arith.constant 0.000000e+00 : bf16
    %8 = vector.broadcast %cst : bf16 to vector<2x1024xbf16>
    %9 = arith.maximumf %7, %8 : vector<2x1024xbf16>
    %cst_7 = arith.constant dense<0.000000e+00> : vector<2x128xf32>
    %10 = tpu.matmul %9, %1, %cst_7 {dimension_numbers = #tpu.dot_dimension_numbers<[1], [0], [0], [1], [0, 0, 1, 1], [], []>} : vector<2x1024xbf16>, vector<1024x128xbf16>, vector<2x128xf32> -> vector<2x128xf32>
    %c0_8 = arith.constant 0 : index
    %c0_9 = arith.constant 0 : index
    %11 = vector.load %arg5[%c0_8, %c0_9] : memref<1x128xf32, #tpu.memory_space<vmem>>, vector<1x128xf32>
    %12 = vector.broadcast %11 : vector<1x128xf32> to vector<2x128xf32>
    %13 = arith.mulf %10, %12 : vector<2x128xf32>
    %c0_10 = arith.constant 0 : index
    %c0_11 = arith.constant 0 : index
    %14 = vector.load %arg6[%c0_10, %c0_11] : memref<1x128xf32, #tpu.memory_space<vmem>>, vector<1x128xf32>
    %15 = vector.broadcast %14 : vector<1x128xf32> to vector<2x128xf32>
    %16 = arith.addf %13, %15 : vector<2x128xf32>
    %cst_12 = arith.constant 0.000000e+00 : f32
    %17 = vector.broadcast %cst_12 : f32 to vector<2x128xf32>
    %18 = arith.maximumf %16, %17 : vector<2x128xf32>
    %19 = arith.truncf %18 : vector<2x128xf32> to vector<2x128xbf16>
    %c0_13 = arith.constant 0 : index
    %c0_14 = arith.constant 0 : index
    %20 = vector.load %arg7[%c0_13, %c0_14] : memref<2x128xbf16, #tpu.memory_space<vmem>>, vector<2x128xbf16>
    tpu.vector_store %arg7[%c0_13, %c0_14], %19 {strides = array<i32>} : memref<2x128xbf16, #tpu.memory_space<vmem>>, vector<2x128xbf16>,
    return
  }
  func.func @transform_0(%arg0: i32) -> (i32, i32) {
    %c0_i32 = arith.constant 0 : i32
    %c0_i32_0 = arith.constant 0 : i32
    return %arg0, %c0_i32 : i32, i32
  }
  func.func @transform_1(%arg0: i32) -> (i32, i32) {
    %c0_i32 = arith.constant 0 : i32
    %c0_i32_0 = arith.constant 0 : i32
    %c0_i32_1 = arith.constant 0 : i32
    return %c0_i32, %c0_i32_0 : i32, i32
  }
  func.func @transform_2(%arg0: i32) -> (i32, i32) {
    %c0_i32 = arith.constant 0 : i32
    %c0_i32_0 = arith.constant 0 : i32
    %c0_i32_1 = arith.constant 0 : i32
    return %c0_i32, %c0_i32_0 : i32, i32
  }
  func.func @transform_3(%arg0: i32) -> (i32, i32) {
    %c0_i32 = arith.constant 0 : i32
    %c0_i32_0 = arith.constant 0 : i32
    %c0_i32_1 = arith.constant 0 : i32
    return %c0_i32, %c0_i32_0 : i32, i32
  }
  func.func @transform_4(%arg0: i32) -> (i32, i32) {
    %c0_i32 = arith.constant 0 : i32
    %c0_i32_0 = arith.constant 0 : i32
    %c0_i32_1 = arith.constant 0 : i32
    return %c0_i32, %c0_i32_0 : i32, i32
  }
  func.func @transform_5(%arg0: i32) -> (i32, i32) {
    %c0_i32 = arith.constant 0 : i32
    %c0_i32_0 = arith.constant 0 : i32
    %c0_i32_1 = arith.constant 0 : i32
    return %c0_i32, %c0_i32_0 : i32, i32
  }
  func.func @transform_6(%arg0: i32) -> (i32, i32) {
    %c0_i32 = arith.constant 0 : i32
    %c0_i32_0 = arith.constant 0 : i32
    return %arg0, %c0_i32 : i32, i32
  }
}

module attributes {stable_mosaic.version = 11 : i64} {
  func.func @kernel(%arg0: i32, %arg1: memref<2x1152xbf16, #tpu.memory_space<vmem>>, %arg2: memref<1152x32xbf16, #tpu.memory_space<vmem>>, %arg3: memref<2x32xbf16, #tpu.memory_space<vmem>>) attributes {dimension_semantics = [#tpu.dimension_semantics<parallel>], iteration_bounds = array<i64: 1>, scalar_prefetch = 0 : i64, scratch_operands = 0 : i64, tpu.core_type = #tpu.core_type<tc>, window_params = [{transform_indices = @transform_0, window_bounds = array<i64: 2, 1152>}, {pipeline_mode = #tpu.pipeline_mode<synchronous>, transform_indices = @transform_1, window_bounds = array<i64: 1152, 32>}, {transform_indices = @transform_2, window_bounds = array<i64: 2, 32>}]} {
    %c0 = arith.constant 0 : index
    %c0_0 = arith.constant 0 : index
    %0 = vector.load %arg1[%c0, %c0_0] : memref<2x1152xbf16, #tpu.memory_space<vmem>>, vector<2x1152xbf16>
    %c0_1 = arith.constant 0 : index
    %c0_2 = arith.constant 0 : index
    %1 = vector.load %arg2[%c0_1, %c0_2] : memref<1152x32xbf16, #tpu.memory_space<vmem>>, vector<1152x32xbf16>
    %cst = arith.constant dense<0.000000e+00> : vector<2x32xf32>
    %2 = tpu.matmul %0, %1, %cst {dimension_numbers = #tpu.dot_dimension_numbers<[1], [0], [0], [1], [0, 0, 1, 1], [], []>} : vector<2x1152xbf16>, vector<1152x32xbf16>, vector<2x32xf32> -> vector<2x32xf32>
    %3 = arith.truncf %2 : vector<2x32xf32> to vector<2x32xbf16>
    %c0_3 = arith.constant 0 : index
    %c0_4 = arith.constant 0 : index
    %4 = vector.load %arg3[%c0_3, %c0_4] : memref<2x32xbf16, #tpu.memory_space<vmem>>, vector<2x32xbf16>
    tpu.vector_store %arg3[%c0_3, %c0_4], %3 {strides = array<i32>} : memref<2x32xbf16, #tpu.memory_space<vmem>>, vector<2x32xbf16>,
    return
  }
  func.func @transform_0(%arg0: i32) -> (i32, i32) {
    %c0_i32 = arith.constant 0 : i32
    %c0_i32_0 = arith.constant 0 : i32
    return %arg0, %c0_i32 : i32, i32
  }
  func.func @transform_1(%arg0: i32) -> (i32, i32) {
    %c0_i32 = arith.constant 0 : i32
    %c0_i32_0 = arith.constant 0 : i32
    %c0_i32_1 = arith.constant 0 : i32
    return %c0_i32, %c0_i32_0 : i32, i32
  }
  func.func @transform_2(%arg0: i32) -> (i32, i32) {
    %c0_i32 = arith.constant 0 : i32
    %c0_i32_0 = arith.constant 0 : i32
    return %arg0, %c0_i32 : i32, i32
  }
}

module attributes {stable_mosaic.version = 11 : i64} {
  func.func @kernel(%arg0: i32, %arg1: memref<2x1024xbf16, #tpu.memory_space<vmem>>, %arg2: memref<1x1024xf32, #tpu.memory_space<vmem>>, %arg3: memref<1x1024xf32, #tpu.memory_space<vmem>>, %arg4: memref<1024x14xf32, #tpu.memory_space<vmem>>, %arg5: memref<2x14xf32, #tpu.memory_space<vmem>>) attributes {dimension_semantics = [#tpu.dimension_semantics<parallel>], iteration_bounds = array<i64: 1>, scalar_prefetch = 0 : i64, scratch_operands = 0 : i64, tpu.core_type = #tpu.core_type<tc>, window_params = [{transform_indices = @transform_0, window_bounds = array<i64: 2, 1024>}, {pipeline_mode = #tpu.pipeline_mode<synchronous>, transform_indices = @transform_1, window_bounds = array<i64: 1, 1024>}, {pipeline_mode = #tpu.pipeline_mode<synchronous>, transform_indices = @transform_2, window_bounds = array<i64: 1, 1024>}, {pipeline_mode = #tpu.pipeline_mode<synchronous>, transform_indices = @transform_3, window_bounds = array<i64: 1024, 14>}, {transform_indices = @transform_4, window_bounds = array<i64: 2, 14>}]} {
    %c0 = arith.constant 0 : index
    %c0_0 = arith.constant 0 : index
    %0 = vector.load %arg1[%c0, %c0_0] : memref<2x1024xbf16, #tpu.memory_space<vmem>>, vector<2x1024xbf16>
    %c0_1 = arith.constant 0 : index
    %c0_2 = arith.constant 0 : index
    %1 = vector.load %arg4[%c0_1, %c0_2] : memref<1024x14xf32, #tpu.memory_space<vmem>>, vector<1024x14xf32>
    %c0_3 = arith.constant 0 : index
    %c0_4 = arith.constant 0 : index
    %2 = vector.load %arg2[%c0_3, %c0_4] : memref<1x1024xf32, #tpu.memory_space<vmem>>, vector<1x1024xf32>
    %3 = arith.extf %0 : vector<2x1024xbf16> to vector<2x1024xf32>
    %4 = vector.broadcast %2 : vector<1x1024xf32> to vector<2x1024xf32>
    %5 = arith.mulf %3, %4 : vector<2x1024xf32>
    %c0_5 = arith.constant 0 : index
    %c0_6 = arith.constant 0 : index
    %6 = vector.load %arg3[%c0_5, %c0_6] : memref<1x1024xf32, #tpu.memory_space<vmem>>, vector<1x1024xf32>
    %7 = vector.broadcast %6 : vector<1x1024xf32> to vector<2x1024xf32>
    %8 = arith.addf %5, %7 : vector<2x1024xf32>
    %cst = arith.constant 0.000000e+00 : f32
    %9 = vector.broadcast %cst : f32 to vector<2x1024xf32>
    %10 = arith.maximumf %8, %9 : vector<2x1024xf32>
    %cst_7 = arith.constant dense<0.000000e+00> : vector<2x14xf32>
    %11 = tpu.matmul %10, %1, %cst_7 {dimension_numbers = #tpu.dot_dimension_numbers<[1], [0], [0], [1], [0, 0, 1, 1], [], []>} : vector<2x1024xf32>, vector<1024x14xf32>, vector<2x14xf32> -> vector<2x14xf32>
    %c0_8 = arith.constant 0 : index
    %c0_9 = arith.constant 0 : index
    %12 = vector.load %arg5[%c0_8, %c0_9] : memref<2x14xf32, #tpu.memory_space<vmem>>, vector<2x14xf32>
    tpu.vector_store %arg5[%c0_8, %c0_9], %11 {strides = array<i32>} : memref<2x14xf32, #tpu.memory_space<vmem>>, vector<2x14xf32>,
    return
  }
  func.func @transform_0(%arg0: i32) -> (i32, i32) {
    %c0_i32 = arith.constant 0 : i32
    %c0_i32_0 = arith.constant 0 : i32
    return %arg0, %c0_i32 : i32, i32
  }
  func.func @transform_1(%arg0: i32) -> (i32, i32) {
    %c0_i32 = arith.constant 0 : i32
    %c0_i32_0 = arith.constant 0 : i32
    %c0_i32_1 = arith.constant 0 : i32
    return %c0_i32, %c0_i32_0 : i32, i32
  }
  func.func @transform_2(%arg0: i32) -> (i32, i32) {
    %c0_i32 = arith.constant 0 : i32
    %c0_i32_0 = arith.constant 0 : i32
    %c0_i32_1 = arith.constant 0 : i32
    return %c0_i32, %c0_i32_0 : i32, i32
  }
  func.func @transform_3(%arg0: i32) -> (i32, i32) {
    %c0_i32 = arith.constant 0 : i32
    %c0_i32_0 = arith.constant 0 : i32
    %c0_i32_1 = arith.constant 0 : i32
    return %c0_i32, %c0_i32_0 : i32, i32
  }
  func.func @transform_4(%arg0: i32) -> (i32, i32) {
    %c0_i32 = arith.constant 0 : i32
    %c0_i32_0 = arith.constant 0 : i32
    return %arg0, %c0_i32 : i32, i32
  }
}

</mosaic_0001>

<llo_original>
// kernel: densenet121_forward.121
$region0: #{densenet121_forward.121}
  #allocation0 [shape = 'u32[]', space=smem, size = 0x4, offset = 0x4, fixed_abs, tag = 'smem constant byte address 0x4 - core index']
  #allocation1 [shape = 'u32[72,128]{1,0:T(1,128)}', space=vmem, size = 0x9000, scoped, tag = 'internal scratch']
  %s0 = inlined_call_operand.vmem [shape: bf16[512,147], index: 0, kind: input, shape index: {}]
  %s1 = inlined_call_operand.vmem [shape: bf16[147,64], index: 1, kind: input, shape index: {}]
  %s2 = inlined_call_operand.vmem [shape: f32[1,64], index: 2, kind: input, shape index: {}]
  %s3 = inlined_call_operand.vmem [shape: f32[1,64], index: 3, kind: input, shape index: {}]
  %s4 = inlined_call_operand.vmem [shape: bf16[512,64], index: 4, kind: output, shape index: {}]
  %s5 = sld [smem:[#allocation0]]
  $region26: #{densenet121_forward.121} parent=0
    _
  %s7 = ssub.s32 1, %s5
  %s8 = scalar_select 0, %s7, %s5
  // Predicated region
  $region2: #{densenet121_forward.121} parent=0 // pred_check
    _
  $region3: #{densenet121_forward.121} parent=0 // pred_check_branch
    %10 = sbr.rel (0) target = $region5
  $region4: #{densenet121_forward.121} parent=0 // pred_region
    _
  $region5: #{densenet121_forward.121} parent=0 // pred_fallthru
    _
  // Predicated region
  $region6: #{densenet121_forward.121} parent=0 // pred_check
    _
  $region7: #{densenet121_forward.121} parent=0 // pred_check_branch
    %12 = sbr.rel (0) target = $region9
  $region8: #{densenet121_forward.121} parent=0 // pred_region
    _
  $region9: #{densenet121_forward.121} parent=0 // pred_fallthru
    _
  // Predicated region
  $region10: #{densenet121_forward.121} parent=0 // pred_check
    _
  $region11: #{densenet121_forward.121} parent=0 // pred_check_branch
    %14 = sbr.rel (0) target = $region13
  $region12: #{densenet121_forward.121} parent=0 // pred_region
    _
  $region13: #{densenet121_forward.121} parent=0 // pred_fallthru
    _
  // Predicated region
  $region14: #{densenet121_forward.121} parent=0 // pred_check
    _
  $region15: #{densenet121_forward.121} parent=0 // pred_check_branch
    %16 = sbr.rel (0) target = $region17
  $region16: #{densenet121_forward.121} parent=0 // pred_region
    _
  $region17: #{densenet121_forward.121} parent=0 // pred_fallthru
    _
  %v18 = vld [vmem:[%s0] sm:$0xff]
  %v19 = vld [vmem:[%s0 + $0x8] sm:$0xff]
  %v20 = vld [vmem:[%s0 + $0x10] sm:$0xff]
  %v21 = vld [vmem:[%s0 + $0x18] sm:$0xff]
  %v22 = vld [vmem:[%s0 + $0x20] sm:$0xff]
  %v23 = vld [vmem:[%s0 + $0x28] sm:$0xff]
  %v24 = vld [vmem:[%s0 + $0x30] sm:$0xff]
  %v25 = vld [vmem:[%s0 + $0x38] sm:$0xff]
  %v26 = vld [vmem:[%s0 + $0x40] sm:$0xff]
  %v27 = vld [vmem:[%s0 + $0x48] sm:$0xff]
  %v28 = vld [vmem:[%s0 + $0x50] sm:$0xff]
  %v29 = vld [vmem:[%s0 + $0x58] sm:$0xff]
  %v30 = vld [vmem:[%s0 + $0x60] sm:$0xff]
  %v31 = vld [vmem:[%s0 + $0x68] sm:$0xff]
  %v32 = vld [vmem:[%s0 + $0x70] sm:$0xff]
  %v33 = vld [vmem:[%s0 + $0x78] sm:$0xff]
  %v34 = vld [vmem:[%s0 + $0x80] sm:$0xff]
  %v35 = vld [vmem:[%s0 + $0x88] sm:$0xff]
  %v36 = vld [vmem:[%s0 + $0x90] sm:$0xff]
  %v37 = vld [vmem:[%s0 + $0x98] sm:$0xff]
  %v38 = vld [vmem:[%s0 + $0xa0] sm:$0xff]
  %v39 = vld [vmem:[%s0 + $0xa8] sm:$0xff]
  %v40 = vld [vmem:[%s0 + $0xb0] sm:$0xff]
  %v41 = vld [vmem:[%s0 + $0xb8] sm:$0xff]
  %v42 = vld [vmem:[%s0 + $0xc0] sm:$0xff]
  %v43 = vld [vmem:[%s0 + $0xc8] sm:$0xff]
  %v44 = vld [vmem:[%s0 + $0xd0] sm:$0xff]
  %v45 = vld [vmem:[%s0 + $0xd8] sm:$0xff]
  %v46 = vld [vmem:[%s0 + $0xe0] sm:$0xff]
  %v47 = vld [vmem:[%s0 + $0xe8] sm:$0xff]
  %v48 = vld [vmem:[%s0 + $0xf0] sm:$0xff]
  %v49 = vld [vmem:[%s0 + $0xf8] sm:$0xff]
  %v50 = vld [vmem:[%s0 + $0x100] sm:$0xff]
  %v51 = vld [vmem:[%s0 + $0x108] sm:$0xff]
  %v52 = vld [vmem:[%s0 + $0x110] sm:$0xff]
  %v53 = vld [vmem:[%s0 + $0x118] sm:$0xff]
  %v54 = vld [vmem:[%s0 + $0x120] sm:$0xff]
  %v55 = vld [vmem:[%s0 + $0x128] sm:$0xff]
  %v56 = vld [vmem:[%s0 + $0x130] sm:$0xff]
  %v57 = vld [vmem:[%s0 + $0x138] sm:$0xff]
  %v58 = vld [vmem:[%s0 + $0x140] sm:$0xff]
  %v59 = vld [vmem:[%s0 + $0x148] sm:$0xff]
  %v60 = vld [vmem:[%s0 + $0x150] sm:$0xff]
  %v61 = vld [vmem:[%s0 + $0x158] sm:$0xff]
  %v62 = vld [vmem:[%s0 + $0x160] sm:$0xff]
  %v63 = vld [vmem:[%s0 + $0x168] sm:$0xff]
  %v64 = vld [vmem:[%s0 + $0x170] sm:$0xff]
  %v65 = vld [vmem:[%s0 + $0x178] sm:$0xff]
  %v66 = vld [vmem:[%s0 + $0x180] sm:$0xff]
  %v67 = vld [vmem:[%s0 + $0x188] sm:$0xff]
  %v68 = vld [vmem:[%s0 + $0x190] sm:$0xff]
  %v69 = vld [vmem:[%s0 + $0x198] sm:$0xff]
  %v70 = vld [vmem:[%s0 + $0x1a0] sm:$0xff]
  %v71 = vld [vmem:[%s0 + $0x1a8] sm:$0xff]
  %v72 = vld [vmem:[%s0 + $0x1b0] sm:$0xff]
  %v73 = vld [vmem:[%s0 + $0x1b8] sm:$0xff]
  %v74 = vld [vmem:[%s0 + $0x1c0] sm:$0xff]
  %v75 = vld [vmem:[%s0 + $0x1c8] sm:$0xff]
  %v76 = vld [vmem:[%s0 + $0x1d0] sm:$0xff]
  %v77 = vld [vmem:[%s0 + $0x1d8] sm:$0xff]
  %v78 = vld [vmem:[%s0 + $0x1e0] sm:$0xff]
  %v79 = vld [vmem:[%s0 + $0x1e8] sm:$0xff]
  %v80 = vld [vmem:[%s0 + $0x1f0] sm:$0xff]
  %v81 = vld [vmem:[%s0 + $0x1f8] sm:$0xff]
  %v82 = vld [vmem:[%s1] sm:$0xf]
  %v83 = vld [vmem:[%s1 + $0x4] sm:$0xf]
  %v84 = vld [vmem:[%s1 + $0x8] sm:$0xf]
  %v85 = vld [vmem:[%s1 + $0xc] sm:$0xf]
  %v86 = vld [vmem:[%s1 + $0x10] sm:$0xf]
  %v87 = vld [vmem:[%s1 + $0x14] sm:$0xf]
  %v88 = vld [vmem:[%s1 + $0x18] sm:$0xf]
  %v89 = vld [vmem:[%s1 + $0x1c] sm:$0xf]
  %v90 = vld [vmem:[%s1 + $0x20] sm:$0xf]
  %v91 = vld [vmem:[%s1 + $0x24] sm:$0xf]
  %v92 = vld [vmem:[%s1 + $0x28] sm:$0xf]
  %v93 = vld [vmem:[%s1 + $0x2c] sm:$0xf]
  %v94 = vld [vmem:[%s1 + $0x30] sm:$0xf]
  %v95 = vld [vmem:[%s1 + $0x34] sm:$0xf]
  %v96 = vld [vmem:[%s1 + $0x38] sm:$0xf]
  %v97 = vld [vmem:[%s1 + $0x3c] sm:$0xf]
  %v98 = vld [vmem:[%s1 + $0x40] sm:$0xf]
  %v99 = vld [vmem:[%s1 + $0x44] sm:$0xf]
  %v100 = vld [vmem:[%s1 + $0x48] sm:$0x3]
  %v165 = vunpack.c.l.b16 %v18
  %v166 = vunpack.c.h.b16 %v18
  %v167 = vunpack.c.l.b16 %v19
  %v168 = vunpack.c.h.b16 %v19
  %v169 = vunpack.c.l.b16 %v20
  %v170 = vunpack.c.h.b16 %v20
  %v171 = vunpack.c.l.b16 %v21
  %v172 = vunpack.c.h.b16 %v21
  %v173 = vunpack.c.l.b16 %v22
  %v174 = vunpack.c.h.b16 %v22
  %v175 = vunpack.c.l.b16 %v23
  %v176 = vunpack.c.h.b16 %v23
  %v177 = vunpack.c.l.b16 %v24
  %v178 = vunpack.c.h.b16 %v24
  %v179 = vunpack.c.l.b16 %v25
  %v180 = vunpack.c.h.b16 %v25
  %v181 = vunpack.c.l.b16 %v26
  %v182 = vunpack.c.h.b16 %v26
  %v183 = vunpack.c.l.b16 %v27
  %v184 = vunpack.c.h.b16 %v27
  %v185 = vunpack.c.l.b16 %v28
  %v186 = vunpack.c.h.b16 %v28
  %v187 = vunpack.c.l.b16 %v29
  %v188 = vunpack.c.h.b16 %v29
  %v189 = vunpack.c.l.b16 %v30
  %v190 = vunpack.c.h.b16 %v30
  %v191 = vunpack.c.l.b16 %v31
  %v192 = vunpack.c.h.b16 %v31
  %v193 = vunpack.c.l.b16 %v32
  %v194 = vunpack.c.h.b16 %v32
  %v195 = vunpack.c.l.b16 %v33
  %v196 = vunpack.c.h.b16 %v33
  %v197 = vunpack.c.l.b16 %v34
  %v198 = vunpack.c.h.b16 %v34
  %v199 = vunpack.c.l.b16 %v35
  %v200 = vunpack.c.h.b16 %v35
  %v201 = vunpack.c.l.b16 %v36
  %v202 = vunpack.c.h.b16 %v36
  %v203 = vunpack.c.l.b16 %v37
  %v204 = vunpack.c.h.b16 %v37
  %v205 = vunpack.c.l.b16 %v38
  %v206 = vunpack.c.h.b16 %v38
  %v207 = vunpack.c.l.b16 %v39
  %v208 = vunpack.c.h.b16 %v39
  %v209 = vunpack.c.l.b16 %v40
  %v210 = vunpack.c.h.b16 %v40
  %v211 = vunpack.c.l.b16 %v41
  %v212 = vunpack.c.h.b16 %v41
  %v213 = vunpack.c.l.b16 %v42
  %v214 = vunpack.c.h.b16 %v42
  %v215 = vunpack.c.l.b16 %v43
  %v216 = vunpack.c.h.b16 %v43
  %v217 = vunpack.c.l.b16 %v44
  %v218 = vunpack.c.h.b16 %v44
  %v219 = vunpack.c.l.b16 %v45
  %v220 = vunpack.c.h.b16 %v45
  %v221 = vunpack.c.l.b16 %v46
  %v222 = vunpack.c.h.b16 %v46
  %v223 = vunpack.c.l.b16 %v47
  %v224 = vunpack.c.h.b16 %v47
  %v225 = vunpack.c.l.b16 %v48
  %v226 = vunpack.c.h.b16 %v48
  %v227 = vunpack.c.l.b16 %v49
  %v228 = vunpack.c.h.b16 %v49
  %v229 = vunpack.c.l.b16 %v50
  %v230 = vunpack.c.h.b16 %v50
  %v231 = vunpack.c.l.b16 %v51
  %v232 = vunpack.c.h.b16 %v51
  %v233 = vunpack.c.l.b16 %v52
  %v234 = vunpack.c.h.b16 %v52
  %v235 = vunpack.c.l.b16 %v53
  %v236 = vunpack.c.h.b16 %v53
  %v237 = vunpack.c.l.b16 %v54
  %v238 = vunpack.c.h.b16 %v54
  %v239 = vunpack.c.l.b16 %v55
  %v240 = vunpack.c.h.b16 %v55
  %v241 = vunpack.c.l.b16 %v56
  %v242 = vunpack.c.h.b16 %v56
  %v243 = vunpack.c.l.b16 %v57
  %v244 = vunpack.c.h.b16 %v57
  %v245 = vunpack.c.l.b16 %v58
  %v246 = vunpack.c.h.b16 %v58
  %v247 = vunpack.c.l.b16 %v59
  %v248 = vunpack.c.h.b16 %v59
  %v249 = vunpack.c.l.b16 %v60
  %v250 = vunpack.c.h.b16 %v60
  %v251 = vunpack.c.l.b16 %v61
  %v252 = vunpack.c.h.b16 %v61
  %v253 = vunpack.c.l.b16 %v62
  %v254 = vunpack.c.h.b16 %v62
  %v255 = vunpack.c.l.b16 %v63
  %v256 = vunpack.c.h.b16 %v63
  %v257 = vunpack.c.l.b16 %v64
  %v258 = vunpack.c.h.b16 %v64
  %v259 = vunpack.c.l.b16 %v65
  %v260 = vunpack.c.h.b16 %v65
  %v261 = vunpack.c.l.b16 %v66
  %v262 = vunpack.c.h.b16 %v66
  %v263 = vunpack.c.l.b16 %v67
  %v264 = vunpack.c.h.b16 %v67
  %v265 = vunpack.c.l.b16 %v68
  %v266 = vunpack.c.h.b16 %v68
  %v267 = vunpack.c.l.b16 %v69
  %v268 = vunpack.c.h.b16 %v69
  %v269 = vunpack.c.l.b16 %v70
  %v270 = vunpack.c.h.b16 %v70
  %v271 = vunpack.c.l.b16 %v71
  %v272 = vunpack.c.h.b16 %v71
  %v273 = vunpack.c.l.b16 %v72
  %v274 = vunpack.c.h.b16 %v72
  %v275 = vunpack.c.l.b16 %v73
  %v276 = vunpack.c.h.b16 %v73
  %v277 = vunpack.c.l.b16 %v74
  %v278 = vunpack.c.h.b16 %v74
  %v279 = vunpack.c.l.b16 %v75
  %v280 = vunpack.c.h.b16 %v75
  %v281 = vunpack.c.l.b16 %v76
  %v282 = vunpack.c.h.b16 %v76
  %v283 = vunpack.c.l.b16 %v77
  %v284 = vunpack.c.h.b16 %v77
  %v285 = vunpack.c.l.b16 %v78
  %v286 = vunpack.c.h.b16 %v78
  %v287 = vunpack.c.l.b16 %v79
  %v288 = vunpack.c.h.b16 %v79
  %v289 = vunpack.c.l.b16 %v80
  %v290 = vunpack.c.h.b16 %v80
  %v291 = vunpack.c.l.b16 %v81
  %v292 = vunpack.c.h.b16 %v81
  %v293 = vpack.c.b16 %v167, %v165
  %v294 = vpack.c.b16 %v168, %v166
  %v295 = vpack.c.b16 %v171, %v169
  %v296 = vpack.c.b16 %v172, %v170
  %v297 = vpack.c.b16 %v175, %v173
  %v298 = vpack.c.b16 %v176, %v174
  %v299 = vpack.c.b16 %v179, %v177
  %v300 = vpack.c.b16 %v180, %v178
  %v301 = vpack.c.b16 %v183, %v181
  %v302 = vpack.c.b16 %v184, %v182
  %v303 = vpack.c.b16 %v187, %v185
  %v304 = vpack.c.b16 %v188, %v186
  %v305 = vpack.c.b16 %v191, %v189
  %v306 = vpack.c.b16 %v192, %v190
  %v307 = vpack.c.b16 %v195, %v193
  %v308 = vpack.c.b16 %v196, %v194
  %v309 = vpack.c.b16 %v199, %v197
  %v310 = vpack.c.b16 %v200, %v198
  %v311 = vpack.c.b16 %v203, %v201
  %v312 = vpack.c.b16 %v204, %v202
  %v313 = vpack.c.b16 %v207, %v205
  %v314 = vpack.c.b16 %v208, %v206
  %v315 = vpack.c.b16 %v211, %v209
  %v316 = vpack.c.b16 %v212, %v210
  %v317 = vpack.c.b16 %v215, %v213
  %v318 = vpack.c.b16 %v216, %v214
  %v319 = vpack.c.b16 %v219, %v217
  %v320 = vpack.c.b16 %v220, %v218
  %v321 = vpack.c.b16 %v223, %v221
  %v322 = vpack.c.b16 %v224, %v222
  %v323 = vpack.c.b16 %v227, %v225
  %v324 = vpack.c.b16 %v228, %v226
  %v325 = vpack.c.b16 %v231, %v229
  %v326 = vpack.c.b16 %v232, %v230
  %v327 = vpack.c.b16 %v235, %v233
  %v328 = vpack.c.b16 %v236, %v234
  %v329 = vpack.c.b16 %v239, %v237
  %v330 = vpack.c.b16 %v240, %v238
  %v331 = vpack.c.b16 %v243, %v241
  %v332 = vpack.c.b16 %v244, %v242
  %v333 = vpack.c.b16 %v247, %v245
  %v334 = vpack.c.b16 %v248, %v246
  %v335 = vpack.c.b16 %v251, %v249
  %v336 = vpack.c.b16 %v252, %v250
  %v337 = vpack.c.b16 %v255, %v253
  %v338 = vpack.c.b16 %v256, %v254
  %v339 = vpack.c.b16 %v259, %v257
  %v340 = vpack.c.b16 %v260, %v258
  %v341 = vpack.c.b16 %v263, %v261
  %v342 = vpack.c.b16 %v264, %v262
  %v343 = vpack.c.b16 %v267, %v265
  %v344 = vpack.c.b16 %v268, %v266
  %v345 = vpack.c.b16 %v271, %v269
  %v346 = vpack.c.b16 %v272, %v270
  %v347 = vpack.c.b16 %v275, %v273
  %v348 = vpack.c.b16 %v276, %v274
  %v349 = vpack.c.b16 %v279, %v277
  %v350 = vpack.c.b16 %v280, %v278
  %v351 = vpack.c.b16 %v283, %v281
  %v352 = vpack.c.b16 %v284, %v282
  %v353 = vpack.c.b16 %v287, %v285
  %v354 = vpack.c.b16 %v288, %v286
  %v355 = vpack.c.b16 %v291, %v289
  %v356 = vpack.c.b16 %v292, %v290
  %v408 = vunpack.c.l.b16 %v82
  %v409 = vunpack.c.l.b16 %v83
  %v410 = vunpack.c.l.b16 %v84
  %v411 = vunpack.c.l.b16 %v85
  %v412 = vunpack.c.l.b16 %v86
  %v413 = vunpack.c.l.b16 %v87
  %v414 = vunpack.c.l.b16 %v88
  %v415 = vunpack.c.l.b16 %v89
  %v416 = vunpack.c.l.b16 %v90
  %v417 = vunpack.c.l.b16 %v91
  %v418 = vunpack.c.l.b16 %v92
  %v419 = vunpack.c.l.b16 %v93
  %v420 = vunpack.c.l.b16 %v94
  %v421 = vunpack.c.l.b16 %v95
  %v422 = vunpack.c.l.b16 %v96
  %v423 = vunpack.c.l.b16 %v97
  %v424 = vunpack.c.l.b16 %v98
  %v425 = vunpack.c.l.b16 %v99
  %v426 = vunpack.c.l.b16 %v100
  %v427 = vpack.c.b16 %v409, %v408
  %v428 = vpack.c.b16 %v411, %v410
  %v429 = vpack.c.b16 %v413, %v412
  %v430 = vpack.c.b16 %v415, %v414
  %v431 = vpack.c.b16 %v417, %v416
  %v432 = vpack.c.b16 %v419, %v418
  %v433 = vpack.c.b16 %v421, %v420
  %v434 = vpack.c.b16 %v423, %v422
  %v435 = vpack.c.b16 %v425, %v424
  %v436 = vpack.c.b16 %v426, %v426
  %vm446 = vcmask 154624
  %v448 = vsel %vm446, %v294, 0
  %v451 = vsel %vm446, %v296, 0
  %v454 = vsel %vm446, %v298, 0
  %v457 = vsel %vm446, %v300, 0
  %v460 = vsel %vm446, %v302, 0
  %v463 = vsel %vm446, %v304, 0
  %v466 = vsel %vm446, %v306, 0
  %v469 = vsel %vm446, %v308, 0
  %v472 = vsel %vm446, %v310, 0
  %v475 = vsel %vm446, %v312, 0
  %v478 = vsel %vm446, %v314, 0
  %v481 = vsel %vm446, %v316, 0
  %v484 = vsel %vm446, %v318, 0
  %v487 = vsel %vm446, %v320, 0
  %v490 = vsel %vm446, %v322, 0
  %v493 = vsel %vm446, %v324, 0
  %v496 = vsel %vm446, %v326, 0
  %v499 = vsel %vm446, %v328, 0
  %v502 = vsel %vm446, %v330, 0
  %v505 = vsel %vm446, %v332, 0
  %v508 = vsel %vm446, %v334, 0
  %v511 = vsel %vm446, %v336, 0
  %v514 = vsel %vm446, %v338, 0
  %v517 = vsel %vm446, %v340, 0
  %v520 = vsel %vm446, %v342, 0
  %v523 = vsel %vm446, %v344, 0
  %v526 = vsel %vm446, %v346, 0
  %v529 = vsel %vm446, %v348, 0
  %v532 = vsel %vm446, %v350, 0
  %v535 = vsel %vm446, %v352, 0
  %v538 = vsel %vm446, %v354, 0
  %v541 = vsel %vm446, %v356, 0
  %vm543 = vcmask 1040384
  %vm544 = vcmask 1041408
  %v545 = vsel %vm543, 4294967295, 65535
  %v546 = vsel %vm544, %v545, 0
  %v548 = vand.u32 %v436, %v546
  %550 = vmatpush.bf16.msra.mxu0 %v434
  %551 = vmatpush.bf16.msra.mxu0 %v433
  %552 = vmatpush.bf16.msra.mxu0 %v432
  %553 = vmatpush.bf16.msra.mxu0 %v431
  %554 = vmatpush.bf16.msra.mxu0 %v430
  %555 = vmatpush.bf16.msra.mxu0 %v429
  %556 = vmatpush.bf16.msra.mxu0 %v428
  %557 = vmatpush.bf16.msra.mxu0 %v427
  %558 = vmatmul.bf16.gmra.mxu0 %v293
  %v559 = vpop.f32.mrf.mxu0
  %v560 = vadd.f32 0.0, %v559
  %v561 = vpop.f32.mrf.mxu0
  %v562 = vadd.f32 0.0, %v561
  %563 = vmatmul.bf16.gmra.mxu0 %v295
  %v564 = vpop.f32.mrf.mxu0
  %v565 = vadd.f32 0.0, %v564
  %v566 = vpop.f32.mrf.mxu0
  %v567 = vadd.f32 0.0, %v566
  %568 = vmatmul.bf16.gmra.mxu0 %v297
  %v569 = vpop.f32.mrf.mxu0
  %v570 = vadd.f32 0.0, %v569
  %v571 = vpop.f32.mrf.mxu0
  %v572 = vadd.f32 0.0, %v571
  %573 = vmatmul.bf16.gmra.mxu0 %v299
  %v574 = vpop.f32.mrf.mxu0
  %v575 = vadd.f32 0.0, %v574
  %v576 = vpop.f32.mrf.mxu0
  %v577 = vadd.f32 0.0, %v576
  %578 = vmatmul.bf16.gmra.mxu0 %v301
  %v579 = vpop.f32.mrf.mxu0
  %v580 = vadd.f32 0.0, %v579
  %v581 = vpop.f32.mrf.mxu0
  %v582 = vadd.f32 0.0, %v581
  %583 = vmatmul.bf16.gmra.mxu0 %v303
  %v584 = vpop.f32.mrf.mxu0
  %v585 = vadd.f32 0.0, %v584
  %v586 = vpop.f32.mrf.mxu0
  %v587 = vadd.f32 0.0, %v586
  %588 = vmatmul.bf16.gmra.mxu0 %v305
  %v589 = vpop.f32.mrf.mxu0
  %v590 = vadd.f32 0.0, %v589
  %v591 = vpop.f32.mrf.mxu0
  %v592 = vadd.f32 0.0, %v591
  %593 = vmatmul.bf16.gmra.mxu0 %v307
  %v594 = vpop.f32.mrf.mxu0
  %v595 = vadd.f32 0.0, %v594
  %v596 = vpop.f32.mrf.mxu0
  %v597 = vadd.f32 0.0, %v596
  %598 = vmatmul.bf16.gmra.mxu0 %v309
  %v599 = vpop.f32.mrf.mxu0
  %v600 = vadd.f32 0.0, %v599
  %v601 = vpop.f32.mrf.mxu0
  %v602 = vadd.f32 0.0, %v601
  %603 = vmatmul.bf16.gmra.mxu0 %v311
  %v604 = vpop.f32.mrf.mxu0
  %v605 = vadd.f32 0.0, %v604
  %v606 = vpop.f32.mrf.mxu0
  %v607 = vadd.f32 0.0, %v606
  %608 = vmatmul.bf16.gmra.mxu0 %v313
  %v609 = vpop.f32.mrf.mxu0
  %v610 = vadd.f32 0.0, %v609
  %v611 = vpop.f32.mrf.mxu0
  %v612 = vadd.f32 0.0, %v611
  %613 = vmatmul.bf16.gmra.mxu0 %v315
  %v614 = vpop.f32.mrf.mxu0
  %v615 = vadd.f32 0.0, %v614
  %v616 = vpop.f32.mrf.mxu0
  %v617 = vadd.f32 0.0, %v616
  %618 = vmatmul.bf16.gmra.mxu0 %v317
  %v619 = vpop.f32.mrf.mxu0
  %v620 = vadd.f32 0.0, %v619
  %v621 = vpop.f32.mrf.mxu0
  %v622 = vadd.f32 0.0, %v621
  %623 = vmatmul.bf16.gmra.mxu0 %v319
  %v624 = vpop.f32.mrf.mxu0
  %v625 = vadd.f32 0.0, %v624
  %v626 = vpop.f32.mrf.mxu0
  %v627 = vadd.f32 0.0, %v626
  %628 = vmatmul.bf16.gmra.mxu0 %v321
  %v629 = vpop.f32.mrf.mxu0
  %v630 = vadd.f32 0.0, %v629
  %v631 = vpop.f32.mrf.mxu0
  %v632 = vadd.f32 0.0, %v631
  %633 = vmatmul.bf16.gmra.mxu0 %v323
  %v634 = vpop.f32.mrf.mxu0
  %v635 = vadd.f32 0.0, %v634
  %v636 = vpop.f32.mrf.mxu0
  %v637 = vadd.f32 0.0, %v636
  %638 = vmatmul.bf16.gmra.mxu0 %v325
  %v639 = vpop.f32.mrf.mxu0
  %v640 = vadd.f32 0.0, %v639
  %v641 = vpop.f32.mrf.mxu0
  %v642 = vadd.f32 0.0, %v641
  %643 = vmatmul.bf16.gmra.mxu0 %v327
  %v644 = vpop.f32.mrf.mxu0
  %v645 = vadd.f32 0.0, %v644
  %v646 = vpop.f32.mrf.mxu0
  %v647 = vadd.f32 0.0, %v646
  %648 = vmatmul.bf16.gmra.mxu0 %v329
  %v649 = vpop.f32.mrf.mxu0
  %v650 = vadd.f32 0.0, %v649
  %v651 = vpop.f32.mrf.mxu0
  %v652 = vadd.f32 0.0, %v651
  %653 = vmatmul.bf16.gmra.mxu0 %v331
  %v654 = vpop.f32.mrf.mxu0
  %v655 = vadd.f32 0.0, %v654
  %v656 = vpop.f32.mrf.mxu0
  %v657 = vadd.f32 0.0, %v656
  %658 = vmatmul.bf16.gmra.mxu0 %v333
  %v659 = vpop.f32.mrf.mxu0
  %v660 = vadd.f32 0.0, %v659
  %v661 = vpop.f32.mrf.mxu0
  %v662 = vadd.f32 0.0, %v661
  %663 = vmatmul.bf16.gmra.mxu0 %v335
  %v664 = vpop.f32.mrf.mxu0
  %v665 = vadd.f32 0.0, %v664
  %v666 = vpop.f32.mrf.mxu0
  %v667 = vadd.f32 0.0, %v666
  %668 = vmatmul.bf16.gmra.mxu0 %v337
  %v669 = vpop.f32.mrf.mxu0
  %v670 = vadd.f32 0.0, %v669
  %v671 = vpop.f32.mrf.mxu0
  %v672 = vadd.f32 0.0, %v671
  %673 = vmatmul.bf16.gmra.mxu0 %v339
  %v674 = vpop.f32.mrf.mxu0
  %v675 = vadd.f32 0.0, %v674
  %v676 = vpop.f32.mrf.mxu0
  %v677 = vadd.f32 0.0, %v676
  %678 = vmatmul.bf16.gmra.mxu0 %v341
  %v679 = vpop.f32.mrf.mxu0
  %v680 = vadd.f32 0.0, %v679
  %v681 = vpop.f32.mrf.mxu0
  %v682 = vadd.f32 0.0, %v681
  %683 = vmatmul.bf16.gmra.mxu0 %v343
  %v684 = vpop.f32.mrf.mxu0
  %v685 = vadd.f32 0.0, %v684
  %v686 = vpop.f32.mrf.mxu0
  %v687 = vadd.f32 0.0, %v686
  %688 = vmatmul.bf16.gmra.mxu0 %v345
  %v689 = vpop.f32.mrf.mxu0
  %v690 = vadd.f32 0.0, %v689
  %v691 = vpop.f32.mrf.mxu0
  %v692 = vadd.f32 0.0, %v691
  %693 = vmatmul.bf16.gmra.mxu0 %v347
  %v694 = vpop.f32.mrf.mxu0
  %v695 = vadd.f32 0.0, %v694
  %v696 = vpop.f32.mrf.mxu0
  %v697 = vadd.f32 0.0, %v696
  %698 = vmatmul.bf16.gmra.mxu0 %v349
  %v699 = vpop.f32.mrf.mxu0
  %v700 = vadd.f32 0.0, %v699
  %v701 = vpop.f32.mrf.mxu0
  %v702 = vadd.f32 0.0, %v701
  %703 = vmatmul.bf16.gmra.mxu0 %v351
  %v704 = vpop.f32.mrf.mxu0
  %v705 = vadd.f32 0.0, %v704
  %v706 = vpop.f32.mrf.mxu0
  %v707 = vadd.f32 0.0, %v706
  %708 = vmatmul.bf16.gmra.mxu0 %v353
  %v709 = vpop.f32.mrf.mxu0
  %v710 = vadd.f32 0.0, %v709
  %v711 = vpop.f32.mrf.mxu0
  %v712 = vadd.f32 0.0, %v711
  %713 = vmatmul.bf16.gmra.mxu0 %v355
  %v714 = vpop.f32.mrf.mxu0
  %v715 = vadd.f32 0.0, %v714
  %v716 = vpop.f32.mrf.mxu0
  %v717 = vadd.f32 0.0, %v716
  %718 = vdwg.mxu0
  %719 = vmatpush.bf16.msra.mxu0 0
  %720 = vmatpush.bf16.msra.mxu0 0
  %721 = vmatpush.bf16.msra.mxu0 0
  %722 = vmatpush.bf16.msra.mxu0 0
  %723 = vmatpush.bf16.msra.mxu0 0
  %724 = vmatpush.bf16.msra.mxu0 0
  %725 = vmatpush.bf16.msra.mxu0 %v548
  %726 = vmatpush.bf16.msra.mxu0 %v435
  %727 = vmatmul.bf16.gmra.mxu0 %v448
  %v728 = vpop.f32.mrf.mxu0
  %v729 = vadd.f32 %v560, %v728
  %v730 = vpop.f32.mrf.mxu0
  %v731 = vadd.f32 %v562, %v730
  %732 = vmatmul.bf16.gmra.mxu0 %v451
  %v733 = vpop.f32.mrf.mxu0
  %v734 = vadd.f32 %v565, %v733
  %v735 = vpop.f32.mrf.mxu0
  %v736 = vadd.f32 %v567, %v735
  %737 = vmatmul.bf16.gmra.mxu0 %v454
  %v738 = vpop.f32.mrf.mxu0
  %v739 = vadd.f32 %v570, %v738
  %v740 = vpop.f32.mrf.mxu0
  %v741 = vadd.f32 %v572, %v740
  %742 = vmatmul.bf16.gmra.mxu0 %v457
  %v743 = vpop.f32.mrf.mxu0
  %v744 = vadd.f32 %v575, %v743
  %v745 = vpop.f32.mrf.mxu0
  %v746 = vadd.f32 %v577, %v745
  %747 = vmatmul.bf16.gmra.mxu0 %v460
  %v748 = vpop.f32.mrf.mxu0
  %v749 = vadd.f32 %v580, %v748
  %v750 = vpop.f32.mrf.mxu0
  %v751 = vadd.f32 %v582, %v750
  %752 = vmatmul.bf16.gmra.mxu0 %v463
  %v753 = vpop.f32.mrf.mxu0
  %v754 = vadd.f32 %v585, %v753
  %v755 = vpop.f32.mrf.mxu0
  %v756 = vadd.f32 %v587, %v755
  %757 = vmatmul.bf16.gmra.mxu0 %v466
  %v758 = vpop.f32.mrf.mxu0
  %v759 = vadd.f32 %v590, %v758
  %v760 = vpop.f32.mrf.mxu0
  %v761 = vadd.f32 %v592, %v760
  %762 = vmatmul.bf16.gmra.mxu0 %v469
  %v763 = vpop.f32.mrf.mxu0
  %v764 = vadd.f32 %v595, %v763
  %v765 = vpop.f32.mrf.mxu0
  %v766 = vadd.f32 %v597, %v765
  %767 = vmatmul.bf16.gmra.mxu0 %v472
  %v768 = vpop.f32.mrf.mxu0
  %v769 = vadd.f32 %v600, %v768
  %v770 = vpop.f32.mrf.mxu0
  %v771 = vadd.f32 %v602, %v770
  %772 = vmatmul.bf16.gmra.mxu0 %v475
  %v773 = vpop.f32.mrf.mxu0
  %v774 = vadd.f32 %v605, %v773
  %v775 = vpop.f32.mrf.mxu0
  %v776 = vadd.f32 %v607, %v775
  %777 = vmatmul.bf16.gmra.mxu0 %v478
  %v778 = vpop.f32.mrf.mxu0
  %v779 = vadd.f32 %v610, %v778
  %v780 = vpop.f32.mrf.mxu0
  %v781 = vadd.f32 %v612, %v780
  %782 = vmatmul.bf16.gmra.mxu0 %v481
  %v783 = vpop.f32.mrf.mxu0
  %v784 = vadd.f32 %v615, %v783
  %v785 = vpop.f32.mrf.mxu0
  %v786 = vadd.f32 %v617, %v785
  %787 = vmatmul.bf16.gmra.mxu0 %v484
  %v788 = vpop.f32.mrf.mxu0
  %v789 = vadd.f32 %v620, %v788
  %v790 = vpop.f32.mrf.mxu0
  %v791 = vadd.f32 %v622, %v790
  %792 = vmatmul.bf16.gmra.mxu0 %v487
  %v793 = vpop.f32.mrf.mxu0
  %v794 = vadd.f32 %v625, %v793
  %v795 = vpop.f32.mrf.mxu0
  %v796 = vadd.f32 %v627, %v795
  %797 = vmatmul.bf16.gmra.mxu0 %v490
  %v798 = vpop.f32.mrf.mxu0
  %v799 = vadd.f32 %v630, %v798
  %v800 = vpop.f32.mrf.mxu0
  %v801 = vadd.f32 %v632, %v800
  %802 = vmatmul.bf16.gmra.mxu0 %v493
  %v803 = vpop.f32.mrf.mxu0
  %v804 = vadd.f32 %v635, %v803
  %v805 = vpop.f32.mrf.mxu0
  %v806 = vadd.f32 %v637, %v805
  %807 = vmatmul.bf16.gmra.mxu0 %v496
  %v808 = vpop.f32.mrf.mxu0
  %v809 = vadd.f32 %v640, %v808
  %v810 = vpop.f32.mrf.mxu0
  %v811 = vadd.f32 %v642, %v810
  %812 = vmatmul.bf16.gmra.mxu0 %v499
  %v813 = vpop.f32.mrf.mxu0
  %v814 = vadd.f32 %v645, %v813
  %v815 = vpop.f32.mrf.mxu0
  %v816 = vadd.f32 %v647, %v815
  %817 = vmatmul.bf16.gmra.mxu0 %v502
  %v818 = vpop.f32.mrf.mxu0
  %v819 = vadd.f32 %v650, %v818
  %v820 = vpop.f32.mrf.mxu0
  %v821 = vadd.f32 %v652, %v820
  %822 = vmatmul.bf16.gmra.mxu0 %v505
  %v823 = vpop.f32.mrf.mxu0
  %v824 = vadd.f32 %v655, %v823
  %v825 = vpop.f32.mrf.mxu0
  %v826 = vadd.f32 %v657, %v825
  %827 = vmatmul.bf16.gmra.mxu0 %v508
  %v828 = vpop.f32.mrf.mxu0
  %v829 = vadd.f32 %v660, %v828
  %v830 = vpop.f32.mrf.mxu0
  %v831 = vadd.f32 %v662, %v830
  %832 = vmatmul.bf16.gmra.mxu0 %v511
  %v833 = vpop.f32.mrf.mxu0
  %v834 = vadd.f32 %v665, %v833
  %v835 = vpop.f32.mrf.mxu0
  %v836 = vadd.f32 %v667, %v835
  %837 = vmatmul.bf16.gmra.mxu0 %v514
  %v838 = vpop.f32.mrf.mxu0
  %v839 = vadd.f32 %v670, %v838
  %v840 = vpop.f32.mrf.mxu0
  %v841 = vadd.f32 %v672, %v840
  %842 = vmatmul.bf16.gmra.mxu0 %v517
  %v843 = vpop.f32.mrf.mxu0
  %v844 = vadd.f32 %v675, %v843
  %v845 = vpop.f32.mrf.mxu0
  %v846 = vadd.f32 %v677, %v845
  %847 = vmatmul.bf16.gmra.mxu0 %v520
  %v848 = vpop.f32.mrf.mxu0
  %v849 = vadd.f32 %v680, %v848
  %v850 = vpop.f32.mrf.mxu0
  %v851 = vadd.f32 %v682, %v850
  %852 = vmatmul.bf16.gmra.mxu0 %v523
  %v853 = vpop.f32.mrf.mxu0
  %v854 = vadd.f32 %v685, %v853
  %v855 = vpop.f32.mrf.mxu0
  %v856 = vadd.f32 %v687, %v855
  %857 = vmatmul.bf16.gmra.mxu0 %v526
  %v858 = vpop.f32.mrf.mxu0
  %v859 = vadd.f32 %v690, %v858
  %v860 = vpop.f32.mrf.mxu0
  %v861 = vadd.f32 %v692, %v860
  %862 = vmatmul.bf16.gmra.mxu0 %v529
  %v863 = vpop.f32.mrf.mxu0
  %v864 = vadd.f32 %v695, %v863
  %v865 = vpop.f32.mrf.mxu0
  %v866 = vadd.f32 %v697, %v865
  %867 = vmatmul.bf16.gmra.mxu0 %v532
  %v868 = vpop.f32.mrf.mxu0
  %v869 = vadd.f32 %v700, %v868
  %v870 = vpop.f32.mrf.mxu0
  %v871 = vadd.f32 %v702, %v870
  %872 = vmatmul.bf16.gmra.mxu0 %v535
  %v873 = vpop.f32.mrf.mxu0
  %v874 = vadd.f32 %v705, %v873
  %v875 = vpop.f32.mrf.mxu0
  %v876 = vadd.f32 %v707, %v875
  %877 = vmatmul.bf16.gmra.mxu0 %v538
  %v878 = vpop.f32.mrf.mxu0
  %v879 = vadd.f32 %v710, %v878
  %v880 = vpop.f32.mrf.mxu0
  %v881 = vadd.f32 %v712, %v880
  %882 = vmatmul.bf16.gmra.mxu0 %v541
  %v883 = vpop.f32.mrf.mxu0
  %v884 = vadd.f32 %v715, %v883
  %v885 = vpop.f32.mrf.mxu0
  %v886 = vadd.f32 %v717, %v885
  %887 = vdwg.mxu0
  %v888 = vld [vmem:[%s2] sm:$0x1]
  %v890 = vperm.slane %v888, 0
  %v892 = vmul.f32 %v729, %v890
  %v893 = vmul.f32 %v731, %v890
  %v894 = vmul.f32 %v734, %v890
  %v895 = vmul.f32 %v736, %v890
  %v896 = vmul.f32 %v739, %v890
  %v897 = vmul.f32 %v741, %v890
  %v898 = vmul.f32 %v744, %v890
  %v899 = vmul.f32 %v746, %v890
  %v900 = vmul.f32 %v749, %v890
  %v901 = vmul.f32 %v751, %v890
  %v902 = vmul.f32 %v754, %v890
  %v903 = vmul.f32 %v756, %v890
  %v904 = vmul.f32 %v759, %v890
  %v905 = vmul.f32 %v761, %v890
  %v906 = vmul.f32 %v764, %v890
  %v907 = vmul.f32 %v766, %v890
  %v908 = vmul.f32 %v769, %v890
  %v909 = vmul.f32 %v771, %v890
  %v910 = vmul.f32 %v774, %v890
  %v911 = vmul.f32 %v776, %v890
  %v912 = vmul.f32 %v779, %v890
  %v913 = vmul.f32 %v781, %v890
  %v914 = vmul.f32 %v784, %v890
  %v915 = vmul.f32 %v786, %v890
  %v916 = vmul.f32 %v789, %v890
  %v917 = vmul.f32 %v791, %v890
  %v918 = vmul.f32 %v794, %v890
  %v919 = vmul.f32 %v796, %v890
  %v920 = vmul.f32 %v799, %v890
  %v921 = vmul.f32 %v801, %v890
  %v922 = vmul.f32 %v804, %v890
  %v923 = vmul.f32 %v806, %v890
  %v924 = vmul.f32 %v809, %v890
  %v925 = vmul.f32 %v811, %v890
  %v926 = vmul.f32 %v814, %v890
  %v927 = vmul.f32 %v816, %v890
  %v928 = vmul.f32 %v819, %v890
  %v929 = vmul.f32 %v821, %v890
  %v930 = vmul.f32 %v824, %v890
  %v931 = vmul.f32 %v826, %v890
  %v932 = vmul.f32 %v829, %v890
  %v933 = vmul.f32 %v831, %v890
  %v934 = vmul.f32 %v834, %v890
  %v935 = vmul.f32 %v836, %v890
  %v936 = vmul.f32 %v839, %v890
  %v937 = vmul.f32 %v841, %v890
  %v938 = vmul.f32 %v844, %v890
  %v939 = vmul.f32 %v846, %v890
  %v940 = vmul.f32 %v849, %v890
  %v941 = vmul.f32 %v851, %v890
  %v942 = vmul.f32 %v854, %v890
  %v943 = vmul.f32 %v856, %v890
  %v944 = vmul.f32 %v859, %v890
  %v945 = vmul.f32 %v861, %v890
  %v946 = vmul.f32 %v864, %v890
  %v947 = vmul.f32 %v866, %v890
  %v948 = vmul.f32 %v869, %v890
  %v949 = vmul.f32 %v871, %v890
  %v950 = vmul.f32 %v874, %v890
  %v951 = vmul.f32 %v876, %v890
  %v952 = vmul.f32 %v879, %v890
  %v953 = vmul.f32 %v881, %v890
  %v954 = vmul.f32 %v884, %v890
  %v955 = vmul.f32 %v886, %v890
  %v956 = vld [vmem:[%s3] sm:$0x1]
  %v958 = vperm.slane %v956, 0
  %v960 = vadd.f32 %v892, %v958
  %v961 = vadd.f32 %v893, %v958
  %v962 = vadd.f32 %v894, %v958
  %v963 = vadd.f32 %v895, %v958
  %v964 = vadd.f32 %v896, %v958
  %v965 = vadd.f32 %v897, %v958
  %v966 = vadd.f32 %v898, %v958
  %v967 = vadd.f32 %v899, %v958
  %v968 = vadd.f32 %v900, %v958
  %v969 = vadd.f32 %v901, %v958
  %v970 = vadd.f32 %v902, %v958
  %v971 = vadd.f32 %v903, %v958
  %v972 = vadd.f32 %v904, %v958
  %v973 = vadd.f32 %v905, %v958
  %v974 = vadd.f32 %v906, %v958
  %v975 = vadd.f32 %v907, %v958
  %v976 = vadd.f32 %v908, %v958
  %v977 = vadd.f32 %v909, %v958
  %v978 = vadd.f32 %v910, %v958
  %v979 = vadd.f32 %v911, %v958
  %v980 = vadd.f32 %v912, %v958
  %v981 = vadd.f32 %v913, %v958
  %v982 = vadd.f32 %v914, %v958
  %v983 = vadd.f32 %v915, %v958
  %v984 = vadd.f32 %v916, %v958
  %v985 = vadd.f32 %v917, %v958
  %v986 = vadd.f32 %v918, %v958
  %v987 = vadd.f32 %v919, %v958
  %v988 = vadd.f32 %v920, %v958
  %v989 = vadd.f32 %v921, %v958
  %v990 = vadd.f32 %v922, %v958
  %v991 = vadd.f32 %v923, %v958
  %v992 = vadd.f32 %v924, %v958
  %v993 = vadd.f32 %v925, %v958
  %v994 = vadd.f32 %v926, %v958
  %v995 = vadd.f32 %v927, %v958
  %v996 = vadd.f32 %v928, %v958
  %v997 = vadd.f32 %v929, %v958
  %v998 = vadd.f32 %v930, %v958
  %v999 = vadd.f32 %v931, %v958
  %v1000 = vadd.f32 %v932, %v958
  %v1001 = vadd.f32 %v933, %v958
  %v1002 = vadd.f32 %v934, %v958
  %v1003 = vadd.f32 %v935, %v958
  %v1004 = vadd.f32 %v936, %v958
  %v1005 = vadd.f32 %v937, %v958
  %v1006 = vadd.f32 %v938, %v958
  %v1007 = vadd.f32 %v939, %v958
  %v1008 = vadd.f32 %v940, %v958
  %v1009 = vadd.f32 %v941, %v958
  %v1010 = vadd.f32 %v942, %v958
  %v1011 = vadd.f32 %v943, %v958
  %v1012 = vadd.f32 %v944, %v958
  %v1013 = vadd.f32 %v945, %v958
  %v1014 = vadd.f32 %v946, %v958
  %v1015 = vadd.f32 %v947, %v958
  %v1016 = vadd.f32 %v948, %v958
  %v1017 = vadd.f32 %v949, %v958
  %v1018 = vadd.f32 %v950, %v958
  %v1019 = vadd.f32 %v951, %v958
  %v1020 = vadd.f32 %v952, %v958
  %v1021 = vadd.f32 %v953, %v958
  %v1022 = vadd.f32 %v954, %v958
  %v1023 = vadd.f32 %v955, %v958
  %v1024 = vmax.f32 %v960, 0.0
  %v1025 = vmax.f32 %v961, 0.0
  %v1026 = vmax.f32 %v962, 0.0
  %v1027 = vmax.f32 %v963, 0.0
  %v1028 = vmax.f32 %v964, 0.0
  %v1029 = vmax.f32 %v965, 0.0
  %v1030 = vmax.f32 %v966, 0.0
  %v1031 = vmax.f32 %v967, 0.0
  %v1032 = vmax.f32 %v968, 0.0
  %v1033 = vmax.f32 %v969, 0.0
  %v1034 = vmax.f32 %v970, 0.0
  %v1035 = vmax.f32 %v971, 0.0
  %v1036 = vmax.f32 %v972, 0.0
  %v1037 = vmax.f32 %v973, 0.0
  %v1038 = vmax.f32 %v974, 0.0
  %v1039 = vmax.f32 %v975, 0.0
  %v1040 = vmax.f32 %v976, 0.0
  %v1041 = vmax.f32 %v977, 0.0
  %v1042 = vmax.f32 %v978, 0.0
  %v1043 = vmax.f32 %v979, 0.0
  %v1044 = vmax.f32 %v980, 0.0
  %v1045 = vmax.f32 %v981, 0.0
  %v1046 = vmax.f32 %v982, 0.0
  %v1047 = vmax.f32 %v983, 0.0
  %v1048 = vmax.f32 %v984, 0.0
  %v1049 = vmax.f32 %v985, 0.0
  %v1050 = vmax.f32 %v986, 0.0
  %v1051 = vmax.f32 %v987, 0.0
  %v1052 = vmax.f32 %v988, 0.0
  %v1053 = vmax.f32 %v989, 0.0
  %v1054 = vmax.f32 %v990, 0.0
  %v1055 = vmax.f32 %v991, 0.0
  %v1056 = vmax.f32 %v992, 0.0
  %v1057 = vmax.f32 %v993, 0.0
  %v1058 = vmax.f32 %v994, 0.0
  %v1059 = vmax.f32 %v995, 0.0
  %v1060 = vmax.f32 %v996, 0.0
  %v1061 = vmax.f32 %v997, 0.0
  %v1062 = vmax.f32 %v998, 0.0
  %v1063 = vmax.f32 %v999, 0.0
  %v1064 = vmax.f32 %v1000, 0.0
  %v1065 = vmax.f32 %v1001, 0.0
  %v1066 = vmax.f32 %v1002, 0.0
  %v1067 = vmax.f32 %v1003, 0.0
  %v1068 = vmax.f32 %v1004, 0.0
  %v1069 = vmax.f32 %v1005, 0.0
  %v1070 = vmax.f32 %v1006, 0.0
  %v1071 = vmax.f32 %v1007, 0.0
  %v1072 = vmax.f32 %v1008, 0.0
  %v1073 = vmax.f32 %v1009, 0.0
  %v1074 = vmax.f32 %v1010, 0.0
  %v1075 = vmax.f32 %v1011, 0.0
  %v1076 = vmax.f32 %v1012, 0.0
  %v1077 = vmax.f32 %v1013, 0.0
  %v1078 = vmax.f32 %v1014, 0.0
  %v1079 = vmax.f32 %v1015, 0.0
  %v1080 = vmax.f32 %v1016, 0.0
  %v1081 = vmax.f32 %v1017, 0.0
  %v1082 = vmax.f32 %v1018, 0.0
  %v1083 = vmax.f32 %v1019, 0.0
  %v1084 = vmax.f32 %v1020, 0.0
  %v1085 = vmax.f32 %v1021, 0.0
  %v1086 = vmax.f32 %v1022, 0.0
  %v1087 = vmax.f32 %v1023, 0.0
  %v1088 = vpack.c.bf16 %v1024, %v1024
  %v1089 = vpack.c.bf16 %v1025, %v1025
  %v1090 = vpack.c.bf16 %v1026, %v1026
  %v1091 = vpack.c.bf16 %v1027, %v1027
  %v1092 = vpack.c.bf16 %v1028, %v1028
  %v1093 = vpack.c.bf16 %v1029, %v1029
  %v1094 = vpack.c.bf16 %v1030, %v1030
  %v1095 = vpack.c.bf16 %v1031, %v1031
  %v1096 = vpack.c.bf16 %v1032, %v1032
  %v1097 = vpack.c.bf16 %v1033, %v1033
  %v1098 = vpack.c.bf16 %v1034, %v1034
  %v1099 = vpack.c.bf16 %v1035, %v1035
  %v1100 = vpack.c.bf16 %v1036, %v1036
  %v1101 = vpack.c.bf16 %v1037, %v1037
  %v1102 = vpack.c.bf16 %v1038, %v1038
  %v1103 = vpack.c.bf16 %v1039, %v1039
  %v1104 = vpack.c.bf16 %v1040, %v1040
  %v1105 = vpack.c.bf16 %v1041, %v1041
  %v1106 = vpack.c.bf16 %v1042, %v1042
  %v1107 = vpack.c.bf16 %v1043, %v1043
  %v1108 = vpack.c.bf16 %v1044, %v1044
  %v1109 = vpack.c.bf16 %v1045, %v1045
  %v1110 = vpack.c.bf16 %v1046, %v1046
  %v1111 = vpack.c.bf16 %v1047, %v1047
  %v1112 = vpack.c.bf16 %v1048, %v1048
  %v1113 = vpack.c.bf16 %v1049, %v1049
  %v1114 = vpack.c.bf16 %v1050, %v1050
  %v1115 = vpack.c.bf16 %v1051, %v1051
  %v1116 = vpack.c.bf16 %v1052, %v1052
  %v1117 = vpack.c.bf16 %v1053, %v1053
  %v1118 = vpack.c.bf16 %v1054, %v1054
  %v1119 = vpack.c.bf16 %v1055, %v1055
  %v1120 = vpack.c.bf16 %v1056, %v1056
  %v1121 = vpack.c.bf16 %v1057, %v1057
  %v1122 = vpack.c.bf16 %v1058, %v1058
  %v1123 = vpack.c.bf16 %v1059, %v1059
  %v1124 = vpack.c.bf16 %v1060, %v1060
  %v1125 = vpack.c.bf16 %v1061, %v1061
  %v1126 = vpack.c.bf16 %v1062, %v1062
  %v1127 = vpack.c.bf16 %v1063, %v1063
  %v1128 = vpack.c.bf16 %v1064, %v1064
  %v1129 = vpack.c.bf16 %v1065, %v1065
  %v1130 = vpack.c.bf16 %v1066, %v1066
  %v1131 = vpack.c.bf16 %v1067, %v1067
  %v1132 = vpack.c.bf16 %v1068, %v1068
  %v1133 = vpack.c.bf16 %v1069, %v1069
  %v1134 = vpack.c.bf16 %v1070, %v1070
  %v1135 = vpack.c.bf16 %v1071, %v1071
  %v1136 = vpack.c.bf16 %v1072, %v1072
  %v1137 = vpack.c.bf16 %v1073, %v1073
  %v1138 = vpack.c.bf16 %v1074, %v1074
  %v1139 = vpack.c.bf16 %v1075, %v1075
  %v1140 = vpack.c.bf16 %v1076, %v1076
  %v1141 = vpack.c.bf16 %v1077, %v1077
  %v1142 = vpack.c.bf16 %v1078, %v1078
  %v1143 = vpack.c.bf16 %v1079, %v1079
  %v1144 = vpack.c.bf16 %v1080, %v1080
  %v1145 = vpack.c.bf16 %v1081, %v1081
  %v1146 = vpack.c.bf16 %v1082, %v1082
  %v1147 = vpack.c.bf16 %v1083, %v1083
  %v1148 = vpack.c.bf16 %v1084, %v1084
  %v1149 = vpack.c.bf16 %v1085, %v1085
  %v1150 = vpack.c.bf16 %v1086, %v1086
  %v1151 = vpack.c.bf16 %v1087, %v1087
  %vm1152 = vcmask 519168
  %1153 = vst.msk [vmem:[%s4] sm:$0xf] %vm1152, %v1088
  %1154 = vst.msk [vmem:[%s4 + $0x4] sm:$0xf] %vm1152, %v1089
  %1155 = vst.msk [vmem:[%s4 + $0x8] sm:$0xf] %vm1152, %v1090
  %1156 = vst.msk [vmem:[%s4 + $0xc] sm:$0xf] %vm1152, %v1091
  %1157 = vst.msk [vmem:[%s4 + $0x10] sm:$0xf] %vm1152, %v1092
  %1158 = vst.msk [vmem:[%s4 + $0x14] sm:$0xf] %vm1152, %v1093
  %1159 = vst.msk [vmem:[%s4 + $0x18] sm:$0xf] %vm1152, %v1094
  %1160 = vst.msk [vmem:[%s4 + $0x1c] sm:$0xf] %vm1152, %v1095
  %1161 = vst.msk [vmem:[%s4 + $0x20] sm:$0xf] %vm1152, %v1096
  %1162 = vst.msk [vmem:[%s4 + $0x24] sm:$0xf] %vm1152, %v1097
  %1163 = vst.msk [vmem:[%s4 + $0x28] sm:$0xf] %vm1152, %v1098
  %1164 = vst.msk [vmem:[%s4 + $0x2c] sm:$0xf] %vm1152, %v1099
  %1165 = vst.msk [vmem:[%s4 + $0x30] sm:$0xf] %vm1152, %v1100
  %1166 = vst.msk [vmem:[%s4 + $0x34] sm:$0xf] %vm1152, %v1101
  %1167 = vst.msk [vmem:[%s4 + $0x38] sm:$0xf] %vm1152, %v1102
  %1168 = vst.msk [vmem:[%s4 + $0x3c] sm:$0xf] %vm1152, %v1103
  %1169 = vst.msk [vmem:[%s4 + $0x40] sm:$0xf] %vm1152, %v1104
  %1170 = vst.msk [vmem:[%s4 + $0x44] sm:$0xf] %vm1152, %v1105
  %1171 = vst.msk [vmem:[%s4 + $0x48] sm:$0xf] %vm1152, %v1106
  %1172 = vst.msk [vmem:[%s4 + $0x4c] sm:$0xf] %vm1152, %v1107
  %1173 = vst.msk [vmem:[%s4 + $0x50] sm:$0xf] %vm1152, %v1108
  %1174 = vst.msk [vmem:[%s4 + $0x54] sm:$0xf] %vm1152, %v1109
  %1175 = vst.msk [vmem:[%s4 + $0x58] sm:$0xf] %vm1152, %v1110
  %1176 = vst.msk [vmem:[%s4 + $0x5c] sm:$0xf] %vm1152, %v1111
  %1177 = vst.msk [vmem:[%s4 + $0x60] sm:$0xf] %vm1152, %v1112
  %1178 = vst.msk [vmem:[%s4 + $0x64] sm:$0xf] %vm1152, %v1113
  %1179 = vst.msk [vmem:[%s4 + $0x68] sm:$0xf] %vm1152, %v1114
  %1180 = vst.msk [vmem:[%s4 + $0x6c] sm:$0xf] %vm1152, %v1115
  %1181 = vst.msk [vmem:[%s4 + $0x70] sm:$0xf] %vm1152, %v1116
  %1182 = vst.msk [vmem:[%s4 + $0x74] sm:$0xf] %vm1152, %v1117
  %1183 = vst.msk [vmem:[%s4 + $0x78] sm:$0xf] %vm1152, %v1118
  %1184 = vst.msk [vmem:[%s4 + $0x7c] sm:$0xf] %vm1152, %v1119
  %1185 = vst.msk [vmem:[%s4 + $0x80] sm:$0xf] %vm1152, %v1120
  %1186 = vst.msk [vmem:[%s4 + $0x84] sm:$0xf] %vm1152, %v1121
  %1187 = vst.msk [vmem:[%s4 + $0x88] sm:$0xf] %vm1152, %v1122
  %1188 = vst.msk [vmem:[%s4 + $0x8c] sm:$0xf] %vm1152, %v1123
  %1189 = vst.msk [vmem:[%s4 + $0x90] sm:$0xf] %vm1152, %v1124
  %1190 = vst.msk [vmem:[%s4 + $0x94] sm:$0xf] %vm1152, %v1125
  %1191 = vst.msk [vmem:[%s4 + $0x98] sm:$0xf] %vm1152, %v1126
  %1192 = vst.msk [vmem:[%s4 + $0x9c] sm:$0xf] %vm1152, %v1127
  %1193 = vst.msk [vmem:[%s4 + $0xa0] sm:$0xf] %vm1152, %v1128
  %1194 = vst.msk [vmem:[%s4 + $0xa4] sm:$0xf] %vm1152, %v1129
  %1195 = vst.msk [vmem:[%s4 + $0xa8] sm:$0xf] %vm1152, %v1130
  %1196 = vst.msk [vmem:[%s4 + $0xac] sm:$0xf] %vm1152, %v1131
  %1197 = vst.msk [vmem:[%s4 + $0xb0] sm:$0xf] %vm1152, %v1132
  %1198 = vst.msk [vmem:[%s4 + $0xb4] sm:$0xf] %vm1152, %v1133
  %1199 = vst.msk [vmem:[%s4 + $0xb8] sm:$0xf] %vm1152, %v1134
  %1200 = vst.msk [vmem:[%s4 + $0xbc] sm:$0xf] %vm1152, %v1135
  %1201 = vst.msk [vmem:[%s4 + $0xc0] sm:$0xf] %vm1152, %v1136
  %1202 = vst.msk [vmem:[%s4 + $0xc4] sm:$0xf] %vm1152, %v1137
  %1203 = vst.msk [vmem:[%s4 + $0xc8] sm:$0xf] %vm1152, %v1138
  %1204 = vst.msk [vmem:[%s4 + $0xcc] sm:$0xf] %vm1152, %v1139
  %1205 = vst.msk [vmem:[%s4 + $0xd0] sm:$0xf] %vm1152, %v1140
  %1206 = vst.msk [vmem:[%s4 + $0xd4] sm:$0xf] %vm1152, %v1141
  %1207 = vst.msk [vmem:[%s4 + $0xd8] sm:$0xf] %vm1152, %v1142
  %1208 = vst.msk [vmem:[%s4 + $0xdc] sm:$0xf] %vm1152, %v1143
  %1209 = vst.msk [vmem:[%s4 + $0xe0] sm:$0xf] %vm1152, %v1144
  %1210 = vst.msk [vmem:[%s4 + $0xe4] sm:$0xf] %vm1152, %v1145
  %1211 = vst.msk [vmem:[%s4 + $0xe8] sm:$0xf] %vm1152, %v1146
  %1212 = vst.msk [vmem:[%s4 + $0xec] sm:$0xf] %vm1152, %v1147
  %1213 = vst.msk [vmem:[%s4 + $0xf0] sm:$0xf] %vm1152, %v1148
  %1214 = vst.msk [vmem:[%s4 + $0xf4] sm:$0xf] %vm1152, %v1149
  %1215 = vst.msk [vmem:[%s4 + $0xf8] sm:$0xf] %vm1152, %v1150
  %1216 = vst.msk [vmem:[%s4 + $0xfc] sm:$0xf] %vm1152, %v1151
  // Predicated region
  $region18: #{densenet121_forward.121} parent=0 // pred_check
    _
  $region19: #{densenet121_forward.121} parent=0 // pred_check_branch
    %1218 = sbr.rel (0) target = $region21
  $region20: #{densenet121_forward.121} parent=0 // pred_region
    _
  $region21: #{densenet121_forward.121} parent=0 // pred_fallthru
    _
  // Predicated region
  $region22: #{densenet121_forward.121} parent=0 // pred_check
    _
  $region23: #{densenet121_forward.121} parent=0 // pred_check_branch
    %1220 = sbr.rel (0) target = $region25
  $region24: #{densenet121_forward.121} parent=0 // pred_region
    _
  $region25: #{densenet121_forward.121} parent=0 // pred_fallthru
    _

// kernel: densenet121_forward.122
$region0: #{densenet121_forward.122}
  #allocation0 [shape = 'u32[]', space=smem, size = 0x4, offset = 0x4, fixed_abs, tag = 'smem constant byte address 0x4 - core index']
  #allocation1 [shape = 'u32[72,128]{1,0:T(1,128)}', space=vmem, size = 0x9000, scoped, tag = 'internal scratch']
  %s0 = inlined_call_operand.vmem [shape: bf16[128,256], index: 0, kind: input, shape index: {}]
  %s1 = inlined_call_operand.vmem [shape: bf16[1,256], index: 1, kind: input, shape index: {}]
  %s2 = inlined_call_operand.vmem [shape: bf16[1,256], index: 2, kind: input, shape index: {}]
  %s3 = inlined_call_operand.vmem [shape: bf16[256,128], index: 3, kind: input, shape index: {}]
  %s4 = inlined_call_operand.vmem [shape: f32[1,128], index: 4, kind: input, shape index: {}]
  %s5 = inlined_call_operand.vmem [shape: f32[1,128], index: 5, kind: input, shape index: {}]
  %s6 = inlined_call_operand.vmem [shape: bf16[128,128], index: 6, kind: output, shape index: {}]
  %s7 = sld [smem:[#allocation0]]
  $region34: #{densenet121_forward.122} parent=0
    _
  %s9 = ssub.s32 1, %s7
  %s10 = scalar_select 0, %s9, %s7
  // Predicated region
  $region2: #{densenet121_forward.122} parent=0 // pred_check
    _
  $region3: #{densenet121_forward.122} parent=0 // pred_check_branch
    %12 = sbr.rel (0) target = $region5
  $region4: #{densenet121_forward.122} parent=0 // pred_region
    _
  $region5: #{densenet121_forward.122} parent=0 // pred_fallthru
    _
  // Predicated region
  $region6: #{densenet121_forward.122} parent=0 // pred_check
    _
  $region7: #{densenet121_forward.122} parent=0 // pred_check_branch
    %14 = sbr.rel (0) target = $region9
  $region8: #{densenet121_forward.122} parent=0 // pred_region
    _
  $region9: #{densenet121_forward.122} parent=0 // pred_fallthru
    _
  // Predicated region
  $region10: #{densenet121_forward.122} parent=0 // pred_check
    _
  $region11: #{densenet121_forward.122} parent=0 // pred_check_branch
    %16 = sbr.rel (0) target = $region13
  $region12: #{densenet121_forward.122} parent=0 // pred_region
    _
  $region13: #{densenet121_forward.122} parent=0 // pred_fallthru
    _
  // Predicated region
  $region14: #{densenet121_forward.122} parent=0 // pred_check
    _
  $region15: #{densenet121_forward.122} parent=0 // pred_check_branch
    %18 = sbr.rel (0) target = $region17
  $region16: #{densenet121_forward.122} parent=0 // pred_region
    _
  $region17: #{densenet121_forward.122} parent=0 // pred_fallthru
    _
  // Predicated region
  $region18: #{densenet121_forward.122} parent=0 // pred_check
    _
  $region19: #{densenet121_forward.122} parent=0 // pred_check_branch
    %20 = sbr.rel (0) target = $region21
  $region20: #{densenet121_forward.122} parent=0 // pred_region
    _
  $region21: #{densenet121_forward.122} parent=0 // pred_fallthru
    _
  // Predicated region
  $region22: #{densenet121_forward.122} parent=0 // pred_check
    _
  $region23: #{densenet121_forward.122} parent=0 // pred_check_branch
    %22 = sbr.rel (0) target = $region25
  $region24: #{densenet121_forward.122} parent=0 // pred_region
    _
  $region25: #{densenet121_forward.122} parent=0 // pred_fallthru
    _
  %v23 = vld [vmem:[%s0] sm:$0xff]
  %v24 = vld [vmem:[%s0 + $0x8] sm:$0xff]
  %v25 = vld [vmem:[%s0 + $0x10] sm:$0xff]
  %v26 = vld [vmem:[%s0 + $0x18] sm:$0xff]
  %v27 = vld [vmem:[%s0 + $0x20] sm:$0xff]
  %v28 = vld [vmem:[%s0 + $0x28] sm:$0xff]
  %v29 = vld [vmem:[%s0 + $0x30] sm:$0xff]
  %v30 = vld [vmem:[%s0 + $0x38] sm:$0xff]
  %v31 = vld [vmem:[%s0 + $0x40] sm:$0xff]
  %v32 = vld [vmem:[%s0 + $0x48] sm:$0xff]
  %v33 = vld [vmem:[%s0 + $0x50] sm:$0xff]
  %v34 = vld [vmem:[%s0 + $0x58] sm:$0xff]
  %v35 = vld [vmem:[%s0 + $0x60] sm:$0xff]
  %v36 = vld [vmem:[%s0 + $0x68] sm:$0xff]
  %v37 = vld [vmem:[%s0 + $0x70] sm:$0xff]
  %v38 = vld [vmem:[%s0 + $0x78] sm:$0xff]
  %v39 = vld [vmem:[%s3] sm:$0xf]
  %v40 = vld [vmem:[%s3 + $0x4] sm:$0xf]
  %v41 = vld [vmem:[%s3 + $0x8] sm:$0xf]
  %v42 = vld [vmem:[%s3 + $0xc] sm:$0xf]
  %v43 = vld [vmem:[%s3 + $0x10] sm:$0xf]
  %v44 = vld [vmem:[%s3 + $0x14] sm:$0xf]
  %v45 = vld [vmem:[%s3 + $0x18] sm:$0xf]
  %v46 = vld [vmem:[%s3 + $0x1c] sm:$0xf]
  %v47 = vld [vmem:[%s3 + $0x20] sm:$0xf]
  %v48 = vld [vmem:[%s3 + $0x24] sm:$0xf]
  %v49 = vld [vmem:[%s3 + $0x28] sm:$0xf]
  %v50 = vld [vmem:[%s3 + $0x2c] sm:$0xf]
  %v51 = vld [vmem:[%s3 + $0x30] sm:$0xf]
  %v52 = vld [vmem:[%s3 + $0x34] sm:$0xf]
  %v53 = vld [vmem:[%s3 + $0x38] sm:$0xf]
  %v54 = vld [vmem:[%s3 + $0x3c] sm:$0xf]
  %v55 = vld [vmem:[%s3 + $0x40] sm:$0xf]
  %v56 = vld [vmem:[%s3 + $0x44] sm:$0xf]
  %v57 = vld [vmem:[%s3 + $0x48] sm:$0xf]
  %v58 = vld [vmem:[%s3 + $0x4c] sm:$0xf]
  %v59 = vld [vmem:[%s3 + $0x50] sm:$0xf]
  %v60 = vld [vmem:[%s3 + $0x54] sm:$0xf]
  %v61 = vld [vmem:[%s3 + $0x58] sm:$0xf]
  %v62 = vld [vmem:[%s3 + $0x5c] sm:$0xf]
  %v63 = vld [vmem:[%s3 + $0x60] sm:$0xf]
  %v64 = vld [vmem:[%s3 + $0x64] sm:$0xf]
  %v65 = vld [vmem:[%s3 + $0x68] sm:$0xf]
  %v66 = vld [vmem:[%s3 + $0x6c] sm:$0xf]
  %v67 = vld [vmem:[%s3 + $0x70] sm:$0xf]
  %v68 = vld [vmem:[%s3 + $0x74] sm:$0xf]
  %v69 = vld [vmem:[%s3 + $0x78] sm:$0xf]
  %v70 = vld [vmem:[%s3 + $0x7c] sm:$0xf]
  %v71 = vld [vmem:[%s1] sm:$0x3]
  %73 = vst [vmem:[#allocation1] ss:$9 sm:$0xff] %v71
  %v74 = vld [vmem:[#allocation1] sm:$0xff]
  %v75 = vld [vmem:[#allocation1 + $0x9] sm:$0xff]
  %v76 = vpack.i.b16 %v74, %v74
  %v78 = vperm.slane %v76, 0
  %v79 = vpack.i.b16 %v75, %v75
  %v81 = vperm.slane %v79, 0
  %v82 = vunpack.c.l.bf16 %v23
  %v83 = vunpack.c.h.bf16 %v23
  %v84 = vunpack.c.l.bf16 %v24
  %v85 = vunpack.c.h.bf16 %v24
  %v86 = vunpack.c.l.bf16 %v25
  %v87 = vunpack.c.h.bf16 %v25
  %v88 = vunpack.c.l.bf16 %v26
  %v89 = vunpack.c.h.bf16 %v26
  %v90 = vunpack.c.l.bf16 %v27
  %v91 = vunpack.c.h.bf16 %v27
  %v92 = vunpack.c.l.bf16 %v28
  %v93 = vunpack.c.h.bf16 %v28
  %v94 = vunpack.c.l.bf16 %v29
  %v95 = vunpack.c.h.bf16 %v29
  %v96 = vunpack.c.l.bf16 %v30
  %v97 = vunpack.c.h.bf16 %v30
  %v98 = vunpack.c.l.bf16 %v31
  %v99 = vunpack.c.h.bf16 %v31
  %v100 = vunpack.c.l.bf16 %v32
  %v101 = vunpack.c.h.bf16 %v32
  %v102 = vunpack.c.l.bf16 %v33
  %v103 = vunpack.c.h.bf16 %v33
  %v104 = vunpack.c.l.bf16 %v34
  %v105 = vunpack.c.h.bf16 %v34
  %v106 = vunpack.c.l.bf16 %v35
  %v107 = vunpack.c.h.bf16 %v35
  %v108 = vunpack.c.l.bf16 %v36
  %v109 = vunpack.c.h.bf16 %v36
  %v110 = vunpack.c.l.bf16 %v37
  %v111 = vunpack.c.h.bf16 %v37
  %v112 = vunpack.c.l.bf16 %v38
  %v113 = vunpack.c.h.bf16 %v38
  %v114 = vunpack.c.l.bf16 %v78
  %v115 = vunpack.c.l.bf16 %v81
  %v116 = vmul.f32 %v82, %v114
  %v117 = vmul.f32 %v83, %v115
  %v118 = vmul.f32 %v84, %v114
  %v119 = vmul.f32 %v85, %v115
  %v120 = vmul.f32 %v86, %v114
  %v121 = vmul.f32 %v87, %v115
  %v122 = vmul.f32 %v88, %v114
  %v123 = vmul.f32 %v89, %v115
  %v124 = vmul.f32 %v90, %v114
  %v125 = vmul.f32 %v91, %v115
  %v126 = vmul.f32 %v92, %v114
  %v127 = vmul.f32 %v93, %v115
  %v128 = vmul.f32 %v94, %v114
  %v129 = vmul.f32 %v95, %v115
  %v130 = vmul.f32 %v96, %v114
  %v131 = vmul.f32 %v97, %v115
  %v132 = vmul.f32 %v98, %v114
  %v133 = vmul.f32 %v99, %v115
  %v134 = vmul.f32 %v100, %v114
  %v135 = vmul.f32 %v101, %v115
  %v136 = vmul.f32 %v102, %v114
  %v137 = vmul.f32 %v103, %v115
  %v138 = vmul.f32 %v104, %v114
  %v139 = vmul.f32 %v105, %v115
  %v140 = vmul.f32 %v106, %v114
  %v141 = vmul.f32 %v107, %v115
  %v142 = vmul.f32 %v108, %v114
  %v143 = vmul.f32 %v109, %v115
  %v144 = vmul.f32 %v110, %v114
  %v145 = vmul.f32 %v111, %v115
  %v146 = vmul.f32 %v112, %v114
  %v147 = vmul.f32 %v113, %v115
  %v148 = vpack.c.bf16 %v117, %v116
  %v149 = vpack.c.bf16 %v119, %v118
  %v150 = vpack.c.bf16 %v121, %v120
  %v151 = vpack.c.bf16 %v123, %v122
  %v152 = vpack.c.bf16 %v125, %v124
  %v153 = vpack.c.bf16 %v127, %v126
  %v154 = vpack.c.bf16 %v129, %v128
  %v155 = vpack.c.bf16 %v131, %v130
  %v156 = vpack.c.bf16 %v133, %v132
  %v157 = vpack.c.bf16 %v135, %v134
  %v158 = vpack.c.bf16 %v137, %v136
  %v159 = vpack.c.bf16 %v139, %v138
  %v160 = vpack.c.bf16 %v141, %v140
  %v161 = vpack.c.bf16 %v143, %v142
  %v162 = vpack.c.bf16 %v145, %v144
  %v163 = vpack.c.bf16 %v147, %v146
  %v164 = vld [vmem:[%s2] sm:$0x3]
  %166 = vst [vmem:[#allocation1] ss:$9 sm:$0xff] %v164
  %v167 = vld [vmem:[#allocation1] sm:$0xff]
  %v168 = vld [vmem:[#allocation1 + $0x9] sm:$0xff]
  %v169 = vpack.i.b16 %v167, %v167
  %v171 = vperm.slane %v169, 0
  %v172 = vpack.i.b16 %v168, %v168
  %v174 = vperm.slane %v172, 0
  %v175 = vunpack.c.l.bf16 %v148
  %v176 = vunpack.c.h.bf16 %v148
  %v177 = vunpack.c.l.bf16 %v149
  %v178 = vunpack.c.h.bf16 %v149
  %v179 = vunpack.c.l.bf16 %v150
  %v180 = vunpack.c.h.bf16 %v150
  %v181 = vunpack.c.l.bf16 %v151
  %v182 = vunpack.c.h.bf16 %v151
  %v183 = vunpack.c.l.bf16 %v152
  %v184 = vunpack.c.h.bf16 %v152
  %v185 = vunpack.c.l.bf16 %v153
  %v186 = vunpack.c.h.bf16 %v153
  %v187 = vunpack.c.l.bf16 %v154
  %v188 = vunpack.c.h.bf16 %v154
  %v189 = vunpack.c.l.bf16 %v155
  %v190 = vunpack.c.h.bf16 %v155
  %v191 = vunpack.c.l.bf16 %v156
  %v192 = vunpack.c.h.bf16 %v156
  %v193 = vunpack.c.l.bf16 %v157
  %v194 = vunpack.c.h.bf16 %v157
  %v195 = vunpack.c.l.bf16 %v158
  %v196 = vunpack.c.h.bf16 %v158
  %v197 = vunpack.c.l.bf16 %v159
  %v198 = vunpack.c.h.bf16 %v159
  %v199 = vunpack.c.l.bf16 %v160
  %v200 = vunpack.c.h.bf16 %v160
  %v201 = vunpack.c.l.bf16 %v161
  %v202 = vunpack.c.h.bf16 %v161
  %v203 = vunpack.c.l.bf16 %v162
  %v204 = vunpack.c.h.bf16 %v162
  %v205 = vunpack.c.l.bf16 %v163
  %v206 = vunpack.c.h.bf16 %v163
  %v207 = vunpack.c.l.bf16 %v171
  %v208 = vunpack.c.l.bf16 %v174
  %v209 = vadd.f32 %v175, %v207
  %v210 = vadd.f32 %v176, %v208
  %v211 = vadd.f32 %v177, %v207
  %v212 = vadd.f32 %v178, %v208
  %v213 = vadd.f32 %v179, %v207
  %v214 = vadd.f32 %v180, %v208
  %v215 = vadd.f32 %v181, %v207
  %v216 = vadd.f32 %v182, %v208
  %v217 = vadd.f32 %v183, %v207
  %v218 = vadd.f32 %v184, %v208
  %v219 = vadd.f32 %v185, %v207
  %v220 = vadd.f32 %v186, %v208
  %v221 = vadd.f32 %v187, %v207
  %v222 = vadd.f32 %v188, %v208
  %v223 = vadd.f32 %v189, %v207
  %v224 = vadd.f32 %v190, %v208
  %v225 = vadd.f32 %v191, %v207
  %v226 = vadd.f32 %v192, %v208
  %v227 = vadd.f32 %v193, %v207
  %v228 = vadd.f32 %v194, %v208
  %v229 = vadd.f32 %v195, %v207
  %v230 = vadd.f32 %v196, %v208
  %v231 = vadd.f32 %v197, %v207
  %v232 = vadd.f32 %v198, %v208
  %v233 = vadd.f32 %v199, %v207
  %v234 = vadd.f32 %v200, %v208
  %v235 = vadd.f32 %v201, %v207
  %v236 = vadd.f32 %v202, %v208
  %v237 = vadd.f32 %v203, %v207
  %v238 = vadd.f32 %v204, %v208
  %v239 = vadd.f32 %v205, %v207
  %v240 = vadd.f32 %v206, %v208
  %v241 = vpack.c.bf16 %v210, %v209
  %v242 = vpack.c.bf16 %v212, %v211
  %v243 = vpack.c.bf16 %v214, %v213
  %v244 = vpack.c.bf16 %v216, %v215
  %v245 = vpack.c.bf16 %v218, %v217
  %v246 = vpack.c.bf16 %v220, %v219
  %v247 = vpack.c.bf16 %v222, %v221
  %v248 = vpack.c.bf16 %v224, %v223
  %v249 = vpack.c.bf16 %v226, %v225
  %v250 = vpack.c.bf16 %v228, %v227
  %v251 = vpack.c.bf16 %v230, %v229
  %v252 = vpack.c.bf16 %v232, %v231
  %v253 = vpack.c.bf16 %v234, %v233
  %v254 = vpack.c.bf16 %v236, %v235
  %v255 = vpack.c.bf16 %v238, %v237
  %v256 = vpack.c.bf16 %v240, %v239
  %v257 = vunpack.c.l.bf16 %v241
  %v258 = vunpack.c.h.bf16 %v241
  %v259 = vunpack.c.l.bf16 %v242
  %v260 = vunpack.c.h.bf16 %v242
  %v261 = vunpack.c.l.bf16 %v243
  %v262 = vunpack.c.h.bf16 %v243
  %v263 = vunpack.c.l.bf16 %v244
  %v264 = vunpack.c.h.bf16 %v244
  %v265 = vunpack.c.l.bf16 %v245
  %v266 = vunpack.c.h.bf16 %v245
  %v267 = vunpack.c.l.bf16 %v246
  %v268 = vunpack.c.h.bf16 %v246
  %v269 = vunpack.c.l.bf16 %v247
  %v270 = vunpack.c.h.bf16 %v247
  %v271 = vunpack.c.l.bf16 %v248
  %v272 = vunpack.c.h.bf16 %v248
  %v273 = vunpack.c.l.bf16 %v249
  %v274 = vunpack.c.h.bf16 %v249
  %v275 = vunpack.c.l.bf16 %v250
  %v276 = vunpack.c.h.bf16 %v250
  %v277 = vunpack.c.l.bf16 %v251
  %v278 = vunpack.c.h.bf16 %v251
  %v279 = vunpack.c.l.bf16 %v252
  %v280 = vunpack.c.h.bf16 %v252
  %v281 = vunpack.c.l.bf16 %v253
  %v282 = vunpack.c.h.bf16 %v253
  %v283 = vunpack.c.l.bf16 %v254
  %v284 = vunpack.c.h.bf16 %v254
  %v285 = vunpack.c.l.bf16 %v255
  %v286 = vunpack.c.h.bf16 %v255
  %v287 = vunpack.c.l.bf16 %v256
  %v288 = vunpack.c.h.bf16 %v256
  %v289 = vmax.f32 %v257, 0.0
  %v290 = vmax.f32 %v258, 0.0
  %v291 = vmax.f32 %v259, 0.0
  %v292 = vmax.f32 %v260, 0.0
  %v293 = vmax.f32 %v261, 0.0
  %v294 = vmax.f32 %v262, 0.0
  %v295 = vmax.f32 %v263, 0.0
  %v296 = vmax.f32 %v264, 0.0
  %v297 = vmax.f32 %v265, 0.0
  %v298 = vmax.f32 %v266, 0.0
  %v299 = vmax.f32 %v267, 0.0
  %v300 = vmax.f32 %v268, 0.0
  %v301 = vmax.f32 %v269, 0.0
  %v302 = vmax.f32 %v270, 0.0
  %v303 = vmax.f32 %v271, 0.0
  %v304 = vmax.f32 %v272, 0.0
  %v305 = vmax.f32 %v273, 0.0
  %v306 = vmax.f32 %v274, 0.0
  %v307 = vmax.f32 %v275, 0.0
  %v308 = vmax.f32 %v276, 0.0
  %v309 = vmax.f32 %v277, 0.0
  %v310 = vmax.f32 %v278, 0.0
  %v311 = vmax.f32 %v279, 0.0
  %v312 = vmax.f32 %v280, 0.0
  %v313 = vmax.f32 %v281, 0.0
  %v314 = vmax.f32 %v282, 0.0
  %v315 = vmax.f32 %v283, 0.0
  %v316 = vmax.f32 %v284, 0.0
  %v317 = vmax.f32 %v285, 0.0
  %v318 = vmax.f32 %v286, 0.0
  %v319 = vmax.f32 %v287, 0.0
  %v320 = vmax.f32 %v288, 0.0
  %v321 = vpack.c.bf16 %v291, %v289
  %v322 = vpack.c.bf16 %v292, %v290
  %v323 = vpack.c.bf16 %v295, %v293
  %v324 = vpack.c.bf16 %v296, %v294
  %v325 = vpack.c.bf16 %v299, %v297
  %v326 = vpack.c.bf16 %v300, %v298
  %v327 = vpack.c.bf16 %v303, %v301
  %v328 = vpack.c.bf16 %v304, %v302
  %v329 = vpack.c.bf16 %v307, %v305
  %v330 = vpack.c.bf16 %v308, %v306
  %v331 = vpack.c.bf16 %v311, %v309
  %v332 = vpack.c.bf16 %v312, %v310
  %v333 = vpack.c.bf16 %v315, %v313
  %v334 = vpack.c.bf16 %v316, %v314
  %v335 = vpack.c.bf16 %v319, %v317
  %v336 = vpack.c.bf16 %v320, %v318
  %v369 = vunpack.c.l.b16 %v39
  %v370 = vunpack.c.l.b16 %v40
  %v371 = vunpack.c.l.b16 %v41
  %v372 = vunpack.c.l.b16 %v42
  %v373 = vunpack.c.l.b16 %v43
  %v374 = vunpack.c.l.b16 %v44
  %v375 = vunpack.c.l.b16 %v45
  %v376 = vunpack.c.l.b16 %v46
  %v377 = vunpack.c.l.b16 %v47
  %v378 = vunpack.c.l.b16 %v48
  %v379 = vunpack.c.l.b16 %v49
  %v380 = vunpack.c.l.b16 %v50
  %v381 = vunpack.c.l.b16 %v51
  %v382 = vunpack.c.l.b16 %v52
  %v383 = vunpack.c.l.b16 %v53
  %v384 = vunpack.c.l.b16 %v54
  %v385 = vunpack.c.l.b16 %v55
  %v386 = vunpack.c.l.b16 %v56
  %v387 = vunpack.c.l.b16 %v57
  %v388 = vunpack.c.l.b16 %v58
  %v389 = vunpack.c.l.b16 %v59
  %v390 = vunpack.c.l.b16 %v60
  %v391 = vunpack.c.l.b16 %v61
  %v392 = vunpack.c.l.b16 %v62
  %v393 = vunpack.c.l.b16 %v63
  %v394 = vunpack.c.l.b16 %v64
  %v395 = vunpack.c.l.b16 %v65
  %v396 = vunpack.c.l.b16 %v66
  %v397 = vunpack.c.l.b16 %v67
  %v398 = vunpack.c.l.b16 %v68
  %v399 = vunpack.c.l.b16 %v69
  %v400 = vunpack.c.l.b16 %v70
  %v401 = vpack.c.b16 %v370, %v369
  %v402 = vpack.c.b16 %v372, %v371
  %v403 = vpack.c.b16 %v374, %v373
  %v404 = vpack.c.b16 %v376, %v375
  %v405 = vpack.c.b16 %v378, %v377
  %v406 = vpack.c.b16 %v380, %v379
  %v407 = vpack.c.b16 %v382, %v381
  %v408 = vpack.c.b16 %v384, %v383
  %v409 = vpack.c.b16 %v386, %v385
  %v410 = vpack.c.b16 %v388, %v387
  %v411 = vpack.c.b16 %v390, %v389
  %v412 = vpack.c.b16 %v392, %v391
  %v413 = vpack.c.b16 %v394, %v393
  %v414 = vpack.c.b16 %v396, %v395
  %v415 = vpack.c.b16 %v398, %v397
  %v416 = vpack.c.b16 %v400, %v399
  %433 = vmatpush.bf16.msra.mxu0 %v408
  %434 = vmatpush.bf16.msra.mxu0 %v407
  %435 = vmatpush.bf16.msra.mxu0 %v406
  %436 = vmatpush.bf16.msra.mxu0 %v405
  %437 = vmatpush.bf16.msra.mxu0 %v404
  %438 = vmatpush.bf16.msra.mxu0 %v403
  %439 = vmatpush.bf16.msra.mxu0 %v402
  %440 = vmatpush.bf16.msra.mxu0 %v401
  %441 = vmatmul.bf16.gmra.mxu0 %v321
  %v442 = vpop.f32.mrf.mxu0
  %v443 = vadd.f32 0.0, %v442
  %v444 = vpop.f32.mrf.mxu0
  %v445 = vadd.f32 0.0, %v444
  %446 = vmatmul.bf16.gmra.mxu0 %v323
  %v447 = vpop.f32.mrf.mxu0
  %v448 = vadd.f32 0.0, %v447
  %v449 = vpop.f32.mrf.mxu0
  %v450 = vadd.f32 0.0, %v449
  %451 = vmatmul.bf16.gmra.mxu0 %v325
  %v452 = vpop.f32.mrf.mxu0
  %v453 = vadd.f32 0.0, %v452
  %v454 = vpop.f32.mrf.mxu0
  %v455 = vadd.f32 0.0, %v454
  %456 = vmatmul.bf16.gmra.mxu0 %v327
  %v457 = vpop.f32.mrf.mxu0
  %v458 = vadd.f32 0.0, %v457
  %v459 = vpop.f32.mrf.mxu0
  %v460 = vadd.f32 0.0, %v459
  %461 = vmatmul.bf16.gmra.mxu0 %v329
  %v462 = vpop.f32.mrf.mxu0
  %v463 = vadd.f32 0.0, %v462
  %v464 = vpop.f32.mrf.mxu0
  %v465 = vadd.f32 0.0, %v464
  %466 = vmatmul.bf16.gmra.mxu0 %v331
  %v467 = vpop.f32.mrf.mxu0
  %v468 = vadd.f32 0.0, %v467
  %v469 = vpop.f32.mrf.mxu0
  %v470 = vadd.f32 0.0, %v469
  %471 = vmatmul.bf16.gmra.mxu0 %v333
  %v472 = vpop.f32.mrf.mxu0
  %v473 = vadd.f32 0.0, %v472
  %v474 = vpop.f32.mrf.mxu0
  %v475 = vadd.f32 0.0, %v474
  %476 = vmatmul.bf16.gmra.mxu0 %v335
  %v477 = vpop.f32.mrf.mxu0
  %v478 = vadd.f32 0.0, %v477
  %v479 = vpop.f32.mrf.mxu0
  %v480 = vadd.f32 0.0, %v479
  %481 = vdwg.mxu0
  %482 = vmatpush.bf16.msra.mxu0 %v416
  %483 = vmatpush.bf16.msra.mxu0 %v415
  %484 = vmatpush.bf16.msra.mxu0 %v414
  %485 = vmatpush.bf16.msra.mxu0 %v413
  %486 = vmatpush.bf16.msra.mxu0 %v412
  %487 = vmatpush.bf16.msra.mxu0 %v411
  %488 = vmatpush.bf16.msra.mxu0 %v410
  %489 = vmatpush.bf16.msra.mxu0 %v409
  %490 = vmatmul.bf16.gmra.mxu0 %v322
  %v491 = vpop.f32.mrf.mxu0
  %v492 = vadd.f32 %v443, %v491
  %v493 = vpop.f32.mrf.mxu0
  %v494 = vadd.f32 %v445, %v493
  %495 = vmatmul.bf16.gmra.mxu0 %v324
  %v496 = vpop.f32.mrf.mxu0
  %v497 = vadd.f32 %v448, %v496
  %v498 = vpop.f32.mrf.mxu0
  %v499 = vadd.f32 %v450, %v498
  %500 = vmatmul.bf16.gmra.mxu0 %v326
  %v501 = vpop.f32.mrf.mxu0
  %v502 = vadd.f32 %v453, %v501
  %v503 = vpop.f32.mrf.mxu0
  %v504 = vadd.f32 %v455, %v503
  %505 = vmatmul.bf16.gmra.mxu0 %v328
  %v506 = vpop.f32.mrf.mxu0
  %v507 = vadd.f32 %v458, %v506
  %v508 = vpop.f32.mrf.mxu0
  %v509 = vadd.f32 %v460, %v508
  %510 = vmatmul.bf16.gmra.mxu0 %v330
  %v511 = vpop.f32.mrf.mxu0
  %v512 = vadd.f32 %v463, %v511
  %v513 = vpop.f32.mrf.mxu0
  %v514 = vadd.f32 %v465, %v513
  %515 = vmatmul.bf16.gmra.mxu0 %v332
  %v516 = vpop.f32.mrf.mxu0
  %v517 = vadd.f32 %v468, %v516
  %v518 = vpop.f32.mrf.mxu0
  %v519 = vadd.f32 %v470, %v518
  %520 = vmatmul.bf16.gmra.mxu0 %v334
  %v521 = vpop.f32.mrf.mxu0
  %v522 = vadd.f32 %v473, %v521
  %v523 = vpop.f32.mrf.mxu0
  %v524 = vadd.f32 %v475, %v523
  %525 = vmatmul.bf16.gmra.mxu0 %v336
  %v526 = vpop.f32.mrf.mxu0
  %v527 = vadd.f32 %v478, %v526
  %v528 = vpop.f32.mrf.mxu0
  %v529 = vadd.f32 %v480, %v528
  %530 = vdwg.mxu0
  %v531 = vld [vmem:[%s4] sm:$0x1]
  %v533 = vperm.slane %v531, 0
  %v535 = vmul.f32 %v492, %v533
  %v536 = vmul.f32 %v494, %v533
  %v537 = vmul.f32 %v497, %v533
  %v538 = vmul.f32 %v499, %v533
  %v539 = vmul.f32 %v502, %v533
  %v540 = vmul.f32 %v504, %v533
  %v541 = vmul.f32 %v507, %v533
  %v542 = vmul.f32 %v509, %v533
  %v543 = vmul.f32 %v512, %v533
  %v544 = vmul.f32 %v514, %v533
  %v545 = vmul.f32 %v517, %v533
  %v546 = vmul.f32 %v519, %v533
  %v547 = vmul.f32 %v522, %v533
  %v548 = vmul.f32 %v524, %v533
  %v549 = vmul.f32 %v527, %v533
  %v550 = vmul.f32 %v529, %v533
  %v551 = vld [vmem:[%s5] sm:$0x1]
  %v553 = vperm.slane %v551, 0
  %v555 = vadd.f32 %v535, %v553
  %v556 = vadd.f32 %v536, %v553
  %v557 = vadd.f32 %v537, %v553
  %v558 = vadd.f32 %v538, %v553
  %v559 = vadd.f32 %v539, %v553
  %v560 = vadd.f32 %v540, %v553
  %v561 = vadd.f32 %v541, %v553
  %v562 = vadd.f32 %v542, %v553
  %v563 = vadd.f32 %v543, %v553
  %v564 = vadd.f32 %v544, %v553
  %v565 = vadd.f32 %v545, %v553
  %v566 = vadd.f32 %v546, %v553
  %v567 = vadd.f32 %v547, %v553
  %v568 = vadd.f32 %v548, %v553
  %v569 = vadd.f32 %v549, %v553
  %v570 = vadd.f32 %v550, %v553
  %v571 = vmax.f32 %v555, 0.0
  %v572 = vmax.f32 %v556, 0.0
  %v573 = vmax.f32 %v557, 0.0
  %v574 = vmax.f32 %v558, 0.0
  %v575 = vmax.f32 %v559, 0.0
  %v576 = vmax.f32 %v560, 0.0
  %v577 = vmax.f32 %v561, 0.0
  %v578 = vmax.f32 %v562, 0.0
  %v579 = vmax.f32 %v563, 0.0
  %v580 = vmax.f32 %v564, 0.0
  %v581 = vmax.f32 %v565, 0.0
  %v582 = vmax.f32 %v566, 0.0
  %v583 = vmax.f32 %v567, 0.0
  %v584 = vmax.f32 %v568, 0.0
  %v585 = vmax.f32 %v569, 0.0
  %v586 = vmax.f32 %v570, 0.0
  %v587 = vpack.c.bf16 %v571, %v571
  %v588 = vpack.c.bf16 %v572, %v572
  %v589 = vpack.c.bf16 %v573, %v573
  %v590 = vpack.c.bf16 %v574, %v574
  %v591 = vpack.c.bf16 %v575, %v575
  %v592 = vpack.c.bf16 %v576, %v576
  %v593 = vpack.c.bf16 %v577, %v577
  %v594 = vpack.c.bf16 %v578, %v578
  %v595 = vpack.c.bf16 %v579, %v579
  %v596 = vpack.c.bf16 %v580, %v580
  %v597 = vpack.c.bf16 %v581, %v581
  %v598 = vpack.c.bf16 %v582, %v582
  %v599 = vpack.c.bf16 %v583, %v583
  %v600 = vpack.c.bf16 %v584, %v584
  %v601 = vpack.c.bf16 %v585, %v585
  %v602 = vpack.c.bf16 %v586, %v586
  %603 = vst [vmem:[%s6] sm:$0xf] %v587
  %604 = vst [vmem:[%s6 + $0x4] sm:$0xf] %v588
  %605 = vst [vmem:[%s6 + $0x8] sm:$0xf] %v589
  %606 = vst [vmem:[%s6 + $0xc] sm:$0xf] %v590
  %607 = vst [vmem:[%s6 + $0x10] sm:$0xf] %v591
  %608 = vst [vmem:[%s6 + $0x14] sm:$0xf] %v592
  %609 = vst [vmem:[%s6 + $0x18] sm:$0xf] %v593
  %610 = vst [vmem:[%s6 + $0x1c] sm:$0xf] %v594
  %611 = vst [vmem:[%s6 + $0x20] sm:$0xf] %v595
  %612 = vst [vmem:[%s6 + $0x24] sm:$0xf] %v596
  %613 = vst [vmem:[%s6 + $0x28] sm:$0xf] %v597
  %614 = vst [vmem:[%s6 + $0x2c] sm:$0xf] %v598
  %615 = vst [vmem:[%s6 + $0x30] sm:$0xf] %v599
  %616 = vst [vmem:[%s6 + $0x34] sm:$0xf] %v600
  %617 = vst [vmem:[%s6 + $0x38] sm:$0xf] %v601
  %618 = vst [vmem:[%s6 + $0x3c] sm:$0xf] %v602
  // Predicated region
  $region26: #{densenet121_forward.122} parent=0 // pred_check
    _
  $region27: #{densenet121_forward.122} parent=0 // pred_check_branch
    %620 = sbr.rel (0) target = $region29
  $region28: #{densenet121_forward.122} parent=0 // pred_region
    _
  $region29: #{densenet121_forward.122} parent=0 // pred_fallthru
    _
  // Predicated region
  $region30: #{densenet121_forward.122} parent=0 // pred_check
    _
  $region31: #{densenet121_forward.122} parent=0 // pred_check_branch
    %622 = sbr.rel (0) target = $region33
  $region32: #{densenet121_forward.122} parent=0 // pred_region
    _
  $region33: #{densenet121_forward.122} parent=0 // pred_fallthru
    _

// kernel: densenet121_forward.123
$region0: #{densenet121_forward.123}
  #allocation0 [shape = 'u32[]', space=smem, size = 0x4, offset = 0x4, fixed_abs, tag = 'smem constant byte address 0x4 - core index']
  #allocation1 [shape = 'u32[72,128]{1,0:T(1,128)}', space=vmem, size = 0x9000, scoped, tag = 'internal scratch']
  %s0 = inlined_call_operand.vmem [shape: bf16[128,1152], index: 0, kind: input, shape index: {}]
  %s1 = inlined_call_operand.vmem [shape: bf16[1152,32], index: 1, kind: input, shape index: {}]
  %s2 = inlined_call_operand.vmem [shape: bf16[128,32], index: 2, kind: output, shape index: {}]
  %s3 = sld [smem:[#allocation0]]
  $region18: #{densenet121_forward.123} parent=0
    _
  %s5 = ssub.s32 1, %s3
  %s6 = scalar_select 0, %s5, %s3
  // Predicated region
  $region2: #{densenet121_forward.123} parent=0 // pred_check
    _
  $region3: #{densenet121_forward.123} parent=0 // pred_check_branch
    %8 = sbr.rel (0) target = $region5
  $region4: #{densenet121_forward.123} parent=0 // pred_region
    _
  $region5: #{densenet121_forward.123} parent=0 // pred_fallthru
    _
  // Predicated region
  $region6: #{densenet121_forward.123} parent=0 // pred_check
    _
  $region7: #{densenet121_forward.123} parent=0 // pred_check_branch
    %10 = sbr.rel (0) target = $region9
  $region8: #{densenet121_forward.123} parent=0 // pred_region
    _
  $region9: #{densenet121_forward.123} parent=0 // pred_fallthru
    _
  %v11 = vld [vmem:[%s0] sm:$0xff]
  %v12 = vld [vmem:[%s0 + $0x8] sm:$0xff]
  %v13 = vld [vmem:[%s0 + $0x10] sm:$0xff]
  %v14 = vld [vmem:[%s0 + $0x18] sm:$0xff]
  %v15 = vld [vmem:[%s0 + $0x20] sm:$0xf]
  %v16 = vld [vmem:[%s0 + $0x24] sm:$0xff]
  %v17 = vld [vmem:[%s0 + $0x2c] sm:$0xff]
  %v18 = vld [vmem:[%s0 + $0x34] sm:$0xff]
  %v19 = vld [vmem:[%s0 + $0x3c] sm:$0xff]
  %v20 = vld [vmem:[%s0 + $0x44] sm:$0xf]
  %v21 = vld [vmem:[%s0 + $0x48] sm:$0xff]
  %v22 = vld [vmem:[%s0 + $0x50] sm:$0xff]
  %v23 = vld [vmem:[%s0 + $0x58] sm:$0xff]
  %v24 = vld [vmem:[%s0 + $0x60] sm:$0xff]
  %v25 = vld [vmem:[%s0 + $0x68] sm:$0xf]
  %v26 = vld [vmem:[%s0 + $0x6c] sm:$0xff]
  %v27 = vld [vmem:[%s0 + $0x74] sm:$0xff]
  %v28 = vld [vmem:[%s0 + $0x7c] sm:$0xff]
  %v29 = vld [vmem:[%s0 + $0x84] sm:$0xff]
  %v30 = vld [vmem:[%s0 + $0x8c] sm:$0xf]
  %v31 = vld [vmem:[%s0 + $0x90] sm:$0xff]
  %v32 = vld [vmem:[%s0 + $0x98] sm:$0xff]
  %v33 = vld [vmem:[%s0 + $0xa0] sm:$0xff]
  %v34 = vld [vmem:[%s0 + $0xa8] sm:$0xff]
  %v35 = vld [vmem:[%s0 + $0xb0] sm:$0xf]
  %v36 = vld [vmem:[%s0 + $0xb4] sm:$0xff]
  %v37 = vld [vmem:[%s0 + $0xbc] sm:$0xff]
  %v38 = vld [vmem:[%s0 + $0xc4] sm:$0xff]
  %v39 = vld [vmem:[%s0 + $0xcc] sm:$0xff]
  %v40 = vld [vmem:[%s0 + $0xd4] sm:$0xf]
  %v41 = vld [vmem:[%s0 + $0xd8] sm:$0xff]
  %v42 = vld [vmem:[%s0 + $0xe0] sm:$0xff]
  %v43 = vld [vmem:[%s0 + $0xe8] sm:$0xff]
  %v44 = vld [vmem:[%s0 + $0xf0] sm:$0xff]
  %v45 = vld [vmem:[%s0 + $0xf8] sm:$0xf]
  %v46 = vld [vmem:[%s0 + $0xfc] sm:$0xff]
  %v47 = vld [vmem:[%s0 + $0x104] sm:$0xff]
  %v48 = vld [vmem:[%s0 + $0x10c] sm:$0xff]
  %v49 = vld [vmem:[%s0 + $0x114] sm:$0xff]
  %v50 = vld [vmem:[%s0 + $0x11c] sm:$0xf]
  %v51 = vld [vmem:[%s0 + $0x120] sm:$0xff]
  %v52 = vld [vmem:[%s0 + $0x128] sm:$0xff]
  %v53 = vld [vmem:[%s0 + $0x130] sm:$0xff]
  %v54 = vld [vmem:[%s0 + $0x138] sm:$0xff]
  %v55 = vld [vmem:[%s0 + $0x140] sm:$0xf]
  %v56 = vld [vmem:[%s0 + $0x144] sm:$0xff]
  %v57 = vld [vmem:[%s0 + $0x14c] sm:$0xff]
  %v58 = vld [vmem:[%s0 + $0x154] sm:$0xff]
  %v59 = vld [vmem:[%s0 + $0x15c] sm:$0xff]
  %v60 = vld [vmem:[%s0 + $0x164] sm:$0xf]
  %v61 = vld [vmem:[%s0 + $0x168] sm:$0xff]
  %v62 = vld [vmem:[%s0 + $0x170] sm:$0xff]
  %v63 = vld [vmem:[%s0 + $0x178] sm:$0xff]
  %v64 = vld [vmem:[%s0 + $0x180] sm:$0xff]
  %v65 = vld [vmem:[%s0 + $0x188] sm:$0xf]
  %v66 = vld [vmem:[%s0 + $0x18c] sm:$0xff]
  %v67 = vld [vmem:[%s0 + $0x194] sm:$0xff]
  %v68 = vld [vmem:[%s0 + $0x19c] sm:$0xff]
  %v69 = vld [vmem:[%s0 + $0x1a4] sm:$0xff]
  %v70 = vld [vmem:[%s0 + $0x1ac] sm:$0xf]
  %v71 = vld [vmem:[%s0 + $0x1b0] sm:$0xff]
  %v72 = vld [vmem:[%s0 + $0x1b8] sm:$0xff]
  %v73 = vld [vmem:[%s0 + $0x1c0] sm:$0xff]
  %v74 = vld [vmem:[%s0 + $0x1c8] sm:$0xff]
  %v75 = vld [vmem:[%s0 + $0x1d0] sm:$0xf]
  %v76 = vld [vmem:[%s0 + $0x1d4] sm:$0xff]
  %v77 = vld [vmem:[%s0 + $0x1dc] sm:$0xff]
  %v78 = vld [vmem:[%s0 + $0x1e4] sm:$0xff]
  %v79 = vld [vmem:[%s0 + $0x1ec] sm:$0xff]
  %v80 = vld [vmem:[%s0 + $0x1f4] sm:$0xf]
  %v81 = vld [vmem:[%s0 + $0x1f8] sm:$0xff]
  %v82 = vld [vmem:[%s0 + $0x200] sm:$0xff]
  %v83 = vld [vmem:[%s0 + $0x208] sm:$0xff]
  %v84 = vld [vmem:[%s0 + $0x210] sm:$0xff]
  %v85 = vld [vmem:[%s0 + $0x218] sm:$0xf]
  %v86 = vld [vmem:[%s0 + $0x21c] sm:$0xff]
  %v87 = vld [vmem:[%s0 + $0x224] sm:$0xff]
  %v88 = vld [vmem:[%s0 + $0x22c] sm:$0xff]
  %v89 = vld [vmem:[%s0 + $0x234] sm:$0xff]
  %v90 = vld [vmem:[%s0 + $0x23c] sm:$0xf]
  %v91 = vld [vmem:[%s1] sm:$0xf]
  %v92 = vld [vmem:[%s1 + $0x4] sm:$0xf]
  %v93 = vld [vmem:[%s1 + $0x8] sm:$0xf]
  %v94 = vld [vmem:[%s1 + $0xc] sm:$0xf]
  %v95 = vld [vmem:[%s1 + $0x10] sm:$0xf]
  %v96 = vld [vmem:[%s1 + $0x14] sm:$0xf]
  %v97 = vld [vmem:[%s1 + $0x18] sm:$0xf]
  %v98 = vld [vmem:[%s1 + $0x1c] sm:$0xf]
  %v99 = vld [vmem:[%s1 + $0x20] sm:$0xf]
  %v100 = vld [vmem:[%s1 + $0x24] sm:$0xf]
  %v101 = vld [vmem:[%s1 + $0x28] sm:$0xf]
  %v102 = vld [vmem:[%s1 + $0x2c] sm:$0xf]
  %v103 = vld [vmem:[%s1 + $0x30] sm:$0xf]
  %v104 = vld [vmem:[%s1 + $0x34] sm:$0xf]
  %v105 = vld [vmem:[%s1 + $0x38] sm:$0xf]
  %v106 = vld [vmem:[%s1 + $0x3c] sm:$0xf]
  %v107 = vld [vmem:[%s1 + $0x40] sm:$0xf]
  %v108 = vld [vmem:[%s1 + $0x44] sm:$0xf]
  %v109 = vld [vmem:[%s1 + $0x48] sm:$0xf]
  %v110 = vld [vmem:[%s1 + $0x4c] sm:$0xf]
  %v111 = vld [vmem:[%s1 + $0x50] sm:$0xf]
  %v112 = vld [vmem:[%s1 + $0x54] sm:$0xf]
  %v113 = vld [vmem:[%s1 + $0x58] sm:$0xf]
  %v114 = vld [vmem:[%s1 + $0x5c] sm:$0xf]
  %v115 = vld [vmem:[%s1 + $0x60] sm:$0xf]
  %v116 = vld [vmem:[%s1 + $0x64] sm:$0xf]
  %v117 = vld [vmem:[%s1 + $0x68] sm:$0xf]
  %v118 = vld [vmem:[%s1 + $0x6c] sm:$0xf]
  %v119 = vld [vmem:[%s1 + $0x70] sm:$0xf]
  %v120 = vld [vmem:[%s1 + $0x74] sm:$0xf]
  %v121 = vld [vmem:[%s1 + $0x78] sm:$0xf]
  %v122 = vld [vmem:[%s1 + $0x7c] sm:$0xf]
  %v123 = vld [vmem:[%s1 + $0x80] sm:$0xf]
  %v124 = vld [vmem:[%s1 + $0x84] sm:$0xf]
  %v125 = vld [vmem:[%s1 + $0x88] sm:$0xf]
  %v126 = vld [vmem:[%s1 + $0x8c] sm:$0xf]
  %v127 = vld [vmem:[%s1 + $0x90] sm:$0xf]
  %v128 = vld [vmem:[%s1 + $0x94] sm:$0xf]
  %v129 = vld [vmem:[%s1 + $0x98] sm:$0xf]
  %v130 = vld [vmem:[%s1 + $0x9c] sm:$0xf]
  %v131 = vld [vmem:[%s1 + $0xa0] sm:$0xf]
  %v132 = vld [vmem:[%s1 + $0xa4] sm:$0xf]
  %v133 = vld [vmem:[%s1 + $0xa8] sm:$0xf]
  %v134 = vld [vmem:[%s1 + $0xac] sm:$0xf]
  %v135 = vld [vmem:[%s1 + $0xb0] sm:$0xf]
  %v136 = vld [vmem:[%s1 + $0xb4] sm:$0xf]
  %v137 = vld [vmem:[%s1 + $0xb8] sm:$0xf]
  %v138 = vld [vmem:[%s1 + $0xbc] sm:$0xf]
  %v139 = vld [vmem:[%s1 + $0xc0] sm:$0xf]
  %v140 = vld [vmem:[%s1 + $0xc4] sm:$0xf]
  %v141 = vld [vmem:[%s1 + $0xc8] sm:$0xf]
  %v142 = vld [vmem:[%s1 + $0xcc] sm:$0xf]
  %v143 = vld [vmem:[%s1 + $0xd0] sm:$0xf]
  %v144 = vld [vmem:[%s1 + $0xd4] sm:$0xf]
  %v145 = vld [vmem:[%s1 + $0xd8] sm:$0xf]
  %v146 = vld [vmem:[%s1 + $0xdc] sm:$0xf]
  %v147 = vld [vmem:[%s1 + $0xe0] sm:$0xf]
  %v148 = vld [vmem:[%s1 + $0xe4] sm:$0xf]
  %v149 = vld [vmem:[%s1 + $0xe8] sm:$0xf]
  %v150 = vld [vmem:[%s1 + $0xec] sm:$0xf]
  %v151 = vld [vmem:[%s1 + $0xf0] sm:$0xf]
  %v152 = vld [vmem:[%s1 + $0xf4] sm:$0xf]
  %v153 = vld [vmem:[%s1 + $0xf8] sm:$0xf]
  %v154 = vld [vmem:[%s1 + $0xfc] sm:$0xf]
  %v155 = vld [vmem:[%s1 + $0x100] sm:$0xf]
  %v156 = vld [vmem:[%s1 + $0x104] sm:$0xf]
  %v157 = vld [vmem:[%s1 + $0x108] sm:$0xf]
  %v158 = vld [vmem:[%s1 + $0x10c] sm:$0xf]
  %v159 = vld [vmem:[%s1 + $0x110] sm:$0xf]
  %v160 = vld [vmem:[%s1 + $0x114] sm:$0xf]
  %v161 = vld [vmem:[%s1 + $0x118] sm:$0xf]
  %v162 = vld [vmem:[%s1 + $0x11c] sm:$0xf]
  %v163 = vld [vmem:[%s1 + $0x120] sm:$0xf]
  %v164 = vld [vmem:[%s1 + $0x124] sm:$0xf]
  %v165 = vld [vmem:[%s1 + $0x128] sm:$0xf]
  %v166 = vld [vmem:[%s1 + $0x12c] sm:$0xf]
  %v167 = vld [vmem:[%s1 + $0x130] sm:$0xf]
  %v168 = vld [vmem:[%s1 + $0x134] sm:$0xf]
  %v169 = vld [vmem:[%s1 + $0x138] sm:$0xf]
  %v170 = vld [vmem:[%s1 + $0x13c] sm:$0xf]
  %v171 = vld [vmem:[%s1 + $0x140] sm:$0xf]
  %v172 = vld [vmem:[%s1 + $0x144] sm:$0xf]
  %v173 = vld [vmem:[%s1 + $0x148] sm:$0xf]
  %v174 = vld [vmem:[%s1 + $0x14c] sm:$0xf]
  %v175 = vld [vmem:[%s1 + $0x150] sm:$0xf]
  %v176 = vld [vmem:[%s1 + $0x154] sm:$0xf]
  %v177 = vld [vmem:[%s1 + $0x158] sm:$0xf]
  %v178 = vld [vmem:[%s1 + $0x15c] sm:$0xf]
  %v179 = vld [vmem:[%s1 + $0x160] sm:$0xf]
  %v180 = vld [vmem:[%s1 + $0x164] sm:$0xf]
  %v181 = vld [vmem:[%s1 + $0x168] sm:$0xf]
  %v182 = vld [vmem:[%s1 + $0x16c] sm:$0xf]
  %v183 = vld [vmem:[%s1 + $0x170] sm:$0xf]
  %v184 = vld [vmem:[%s1 + $0x174] sm:$0xf]
  %v185 = vld [vmem:[%s1 + $0x178] sm:$0xf]
  %v186 = vld [vmem:[%s1 + $0x17c] sm:$0xf]
  %v187 = vld [vmem:[%s1 + $0x180] sm:$0xf]
  %v188 = vld [vmem:[%s1 + $0x184] sm:$0xf]
  %v189 = vld [vmem:[%s1 + $0x188] sm:$0xf]
  %v190 = vld [vmem:[%s1 + $0x18c] sm:$0xf]
  %v191 = vld [vmem:[%s1 + $0x190] sm:$0xf]
  %v192 = vld [vmem:[%s1 + $0x194] sm:$0xf]
  %v193 = vld [vmem:[%s1 + $0x198] sm:$0xf]
  %v194 = vld [vmem:[%s1 + $0x19c] sm:$0xf]
  %v195 = vld [vmem:[%s1 + $0x1a0] sm:$0xf]
  %v196 = vld [vmem:[%s1 + $0x1a4] sm:$0xf]
  %v197 = vld [vmem:[%s1 + $0x1a8] sm:$0xf]
  %v198 = vld [vmem:[%s1 + $0x1ac] sm:$0xf]
  %v199 = vld [vmem:[%s1 + $0x1b0] sm:$0xf]
  %v200 = vld [vmem:[%s1 + $0x1b4] sm:$0xf]
  %v201 = vld [vmem:[%s1 + $0x1b8] sm:$0xf]
  %v202 = vld [vmem:[%s1 + $0x1bc] sm:$0xf]
  %v203 = vld [vmem:[%s1 + $0x1c0] sm:$0xf]
  %v204 = vld [vmem:[%s1 + $0x1c4] sm:$0xf]
  %v205 = vld [vmem:[%s1 + $0x1c8] sm:$0xf]
  %v206 = vld [vmem:[%s1 + $0x1cc] sm:$0xf]
  %v207 = vld [vmem:[%s1 + $0x1d0] sm:$0xf]
  %v208 = vld [vmem:[%s1 + $0x1d4] sm:$0xf]
  %v209 = vld [vmem:[%s1 + $0x1d8] sm:$0xf]
  %v210 = vld [vmem:[%s1 + $0x1dc] sm:$0xf]
  %v211 = vld [vmem:[%s1 + $0x1e0] sm:$0xf]
  %v212 = vld [vmem:[%s1 + $0x1e4] sm:$0xf]
  %v213 = vld [vmem:[%s1 + $0x1e8] sm:$0xf]
  %v214 = vld [vmem:[%s1 + $0x1ec] sm:$0xf]
  %v215 = vld [vmem:[%s1 + $0x1f0] sm:$0xf]
  %v216 = vld [vmem:[%s1 + $0x1f4] sm:$0xf]
  %v217 = vld [vmem:[%s1 + $0x1f8] sm:$0xf]
  %v218 = vld [vmem:[%s1 + $0x1fc] sm:$0xf]
  %v219 = vld [vmem:[%s1 + $0x200] sm:$0xf]
  %v220 = vld [vmem:[%s1 + $0x204] sm:$0xf]
  %v221 = vld [vmem:[%s1 + $0x208] sm:$0xf]
  %v222 = vld [vmem:[%s1 + $0x20c] sm:$0xf]
  %v223 = vld [vmem:[%s1 + $0x210] sm:$0xf]
  %v224 = vld [vmem:[%s1 + $0x214] sm:$0xf]
  %v225 = vld [vmem:[%s1 + $0x218] sm:$0xf]
  %v226 = vld [vmem:[%s1 + $0x21c] sm:$0xf]
  %v227 = vld [vmem:[%s1 + $0x220] sm:$0xf]
  %v228 = vld [vmem:[%s1 + $0x224] sm:$0xf]
  %v229 = vld [vmem:[%s1 + $0x228] sm:$0xf]
  %v230 = vld [vmem:[%s1 + $0x22c] sm:$0xf]
  %v231 = vld [vmem:[%s1 + $0x230] sm:$0xf]
  %v232 = vld [vmem:[%s1 + $0x234] sm:$0xf]
  %v233 = vld [vmem:[%s1 + $0x238] sm:$0xf]
  %v234 = vld [vmem:[%s1 + $0x23c] sm:$0xf]
  %v315 = vunpack.c.l.b16 %v11
  %v316 = vunpack.c.h.b16 %v11
  %v317 = vunpack.c.l.b16 %v12
  %v318 = vunpack.c.h.b16 %v12
  %v319 = vunpack.c.l.b16 %v13
  %v320 = vunpack.c.h.b16 %v13
  %v321 = vunpack.c.l.b16 %v14
  %v322 = vunpack.c.h.b16 %v14
  %v323 = vunpack.c.l.b16 %v15
  %v324 = vunpack.c.l.b16 %v16
  %v325 = vunpack.c.h.b16 %v16
  %v326 = vunpack.c.l.b16 %v17
  %v327 = vunpack.c.h.b16 %v17
  %v328 = vunpack.c.l.b16 %v18
  %v329 = vunpack.c.h.b16 %v18
  %v330 = vunpack.c.l.b16 %v19
  %v331 = vunpack.c.h.b16 %v19
  %v332 = vunpack.c.l.b16 %v20
  %v333 = vunpack.c.l.b16 %v21
  %v334 = vunpack.c.h.b16 %v21
  %v335 = vunpack.c.l.b16 %v22
  %v336 = vunpack.c.h.b16 %v22
  %v337 = vunpack.c.l.b16 %v23
  %v338 = vunpack.c.h.b16 %v23
  %v339 = vunpack.c.l.b16 %v24
  %v340 = vunpack.c.h.b16 %v24
  %v341 = vunpack.c.l.b16 %v25
  %v342 = vunpack.c.l.b16 %v26
  %v343 = vunpack.c.h.b16 %v26
  %v344 = vunpack.c.l.b16 %v27
  %v345 = vunpack.c.h.b16 %v27
  %v346 = vunpack.c.l.b16 %v28
  %v347 = vunpack.c.h.b16 %v28
  %v348 = vunpack.c.l.b16 %v29
  %v349 = vunpack.c.h.b16 %v29
  %v350 = vunpack.c.l.b16 %v30
  %v351 = vunpack.c.l.b16 %v31
  %v352 = vunpack.c.h.b16 %v31
  %v353 = vunpack.c.l.b16 %v32
  %v354 = vunpack.c.h.b16 %v32
  %v355 = vunpack.c.l.b16 %v33
  %v356 = vunpack.c.h.b16 %v33
  %v357 = vunpack.c.l.b16 %v34
  %v358 = vunpack.c.h.b16 %v34
  %v359 = vunpack.c.l.b16 %v35
  %v360 = vunpack.c.l.b16 %v36
  %v361 = vunpack.c.h.b16 %v36
  %v362 = vunpack.c.l.b16 %v37
  %v363 = vunpack.c.h.b16 %v37
  %v364 = vunpack.c.l.b16 %v38
  %v365 = vunpack.c.h.b16 %v38
  %v366 = vunpack.c.l.b16 %v39
  %v367 = vunpack.c.h.b16 %v39
  %v368 = vunpack.c.l.b16 %v40
  %v369 = vunpack.c.l.b16 %v41
  %v370 = vunpack.c.h.b16 %v41
  %v371 = vunpack.c.l.b16 %v42
  %v372 = vunpack.c.h.b16 %v42
  %v373 = vunpack.c.l.b16 %v43
  %v374 = vunpack.c.h.b16 %v43
  %v375 = vunpack.c.l.b16 %v44
  %v376 = vunpack.c.h.b16 %v44
  %v377 = vunpack.c.l.b16 %v45
  %v378 = vunpack.c.l.b16 %v46
  %v379 = vunpack.c.h.b16 %v46
  %v380 = vunpack.c.l.b16 %v47
  %v381 = vunpack.c.h.b16 %v47
  %v382 = vunpack.c.l.b16 %v48
  %v383 = vunpack.c.h.b16 %v48
  %v384 = vunpack.c.l.b16 %v49
  %v385 = vunpack.c.h.b16 %v49
  %v386 = vunpack.c.l.b16 %v50
  %v387 = vunpack.c.l.b16 %v51
  %v388 = vunpack.c.h.b16 %v51
  %v389 = vunpack.c.l.b16 %v52
  %v390 = vunpack.c.h.b16 %v52
  %v391 = vunpack.c.l.b16 %v53
  %v392 = vunpack.c.h.b16 %v53
  %v393 = vunpack.c.l.b16 %v54
  %v394 = vunpack.c.h.b16 %v54
  %v395 = vunpack.c.l.b16 %v55
  %v396 = vunpack.c.l.b16 %v56
  %v397 = vunpack.c.h.b16 %v56
  %v398 = vunpack.c.l.b16 %v57
  %v399 = vunpack.c.h.b16 %v57
  %v400 = vunpack.c.l.b16 %v58
  %v401 = vunpack.c.h.b16 %v58
  %v402 = vunpack.c.l.b16 %v59
  %v403 = vunpack.c.h.b16 %v59
  %v404 = vunpack.c.l.b16 %v60
  %v405 = vunpack.c.l.b16 %v61
  %v406 = vunpack.c.h.b16 %v61
  %v407 = vunpack.c.l.b16 %v62
  %v408 = vunpack.c.h.b16 %v62
  %v409 = vunpack.c.l.b16 %v63
  %v410 = vunpack.c.h.b16 %v63
  %v411 = vunpack.c.l.b16 %v64
  %v412 = vunpack.c.h.b16 %v64
  %v413 = vunpack.c.l.b16 %v65
  %v414 = vunpack.c.l.b16 %v66
  %v415 = vunpack.c.h.b16 %v66
  %v416 = vunpack.c.l.b16 %v67
  %v417 = vunpack.c.h.b16 %v67
  %v418 = vunpack.c.l.b16 %v68
  %v419 = vunpack.c.h.b16 %v68
  %v420 = vunpack.c.l.b16 %v69
  %v421 = vunpack.c.h.b16 %v69
  %v422 = vunpack.c.l.b16 %v70
  %v423 = vunpack.c.l.b16 %v71
  %v424 = vunpack.c.h.b16 %v71
  %v425 = vunpack.c.l.b16 %v72
  %v426 = vunpack.c.h.b16 %v72
  %v427 = vunpack.c.l.b16 %v73
  %v428 = vunpack.c.h.b16 %v73
  %v429 = vunpack.c.l.b16 %v74
  %v430 = vunpack.c.h.b16 %v74
  %v431 = vunpack.c.l.b16 %v75
  %v432 = vunpack.c.l.b16 %v76
  %v433 = vunpack.c.h.b16 %v76
  %v434 = vunpack.c.l.b16 %v77
  %v435 = vunpack.c.h.b16 %v77
  %v436 = vunpack.c.l.b16 %v78
  %v437 = vunpack.c.h.b16 %v78
  %v438 = vunpack.c.l.b16 %v79
  %v439 = vunpack.c.h.b16 %v79
  %v440 = vunpack.c.l.b16 %v80
  %v441 = vunpack.c.l.b16 %v81
  %v442 = vunpack.c.h.b16 %v81
  %v443 = vunpack.c.l.b16 %v82
  %v444 = vunpack.c.h.b16 %v82
  %v445 = vunpack.c.l.b16 %v83
  %v446 = vunpack.c.h.b16 %v83
  %v447 = vunpack.c.l.b16 %v84
  %v448 = vunpack.c.h.b16 %v84
  %v449 = vunpack.c.l.b16 %v85
  %v450 = vunpack.c.l.b16 %v86
  %v451 = vunpack.c.h.b16 %v86
  %v452 = vunpack.c.l.b16 %v87
  %v453 = vunpack.c.h.b16 %v87
  %v454 = vunpack.c.l.b16 %v88
  %v455 = vunpack.c.h.b16 %v88
  %v456 = vunpack.c.l.b16 %v89
  %v457 = vunpack.c.h.b16 %v89
  %v458 = vunpack.c.l.b16 %v90
  %v459 = vpack.c.b16 %v324, %v315
  %v460 = vpack.c.b16 %v325, %v316
  %v461 = vpack.c.b16 %v326, %v317
  %v462 = vpack.c.b16 %v327, %v318
  %v463 = vpack.c.b16 %v328, %v319
  %v464 = vpack.c.b16 %v329, %v320
  %v465 = vpack.c.b16 %v330, %v321
  %v466 = vpack.c.b16 %v331, %v322
  %v467 = vpack.c.b16 %v332, %v323
  %v468 = vpack.c.b16 %v342, %v333
  %v469 = vpack.c.b16 %v343, %v334
  %v470 = vpack.c.b16 %v344, %v335
  %v471 = vpack.c.b16 %v345, %v336
  %v472 = vpack.c.b16 %v346, %v337
  %v473 = vpack.c.b16 %v347, %v338
  %v474 = vpack.c.b16 %v348, %v339
  %v475 = vpack.c.b16 %v349, %v340
  %v476 = vpack.c.b16 %v350, %v341
  %v477 = vpack.c.b16 %v360, %v351
  %v478 = vpack.c.b16 %v361, %v352
  %v479 = vpack.c.b16 %v362, %v353
  %v480 = vpack.c.b16 %v363, %v354
  %v481 = vpack.c.b16 %v364, %v355
  %v482 = vpack.c.b16 %v365, %v356
  %v483 = vpack.c.b16 %v366, %v357
  %v484 = vpack.c.b16 %v367, %v358
  %v485 = vpack.c.b16 %v368, %v359
  %v486 = vpack.c.b16 %v378, %v369
  %v487 = vpack.c.b16 %v379, %v370
  %v488 = vpack.c.b16 %v380, %v371
  %v489 = vpack.c.b16 %v381, %v372
  %v490 = vpack.c.b16 %v382, %v373
  %v491 = vpack.c.b16 %v383, %v374
  %v492 = vpack.c.b16 %v384, %v375
  %v493 = vpack.c.b16 %v385, %v376
  %v494 = vpack.c.b16 %v386, %v377
  %v495 = vpack.c.b16 %v396, %v387
  %v496 = vpack.c.b16 %v397, %v388
  %v497 = vpack.c.b16 %v398, %v389
  %v498 = vpack.c.b16 %v399, %v390
  %v499 = vpack.c.b16 %v400, %v391
  %v500 = vpack.c.b16 %v401, %v392
  %v501 = vpack.c.b16 %v402, %v393
  %v502 = vpack.c.b16 %v403, %v394
  %v503 = vpack.c.b16 %v404, %v395
  %v504 = vpack.c.b16 %v414, %v405
  %v505 = vpack.c.b16 %v415, %v406
  %v506 = vpack.c.b16 %v416, %v407
  %v507 = vpack.c.b16 %v417, %v408
  %v508 = vpack.c.b16 %v418, %v409
  %v509 = vpack.c.b16 %v419, %v410
  %v510 = vpack.c.b16 %v420, %v411
  %v511 = vpack.c.b16 %v421, %v412
  %v512 = vpack.c.b16 %v422, %v413
  %v513 = vpack.c.b16 %v432, %v423
  %v514 = vpack.c.b16 %v433, %v424
  %v515 = vpack.c.b16 %v434, %v425
  %v516 = vpack.c.b16 %v435, %v426
  %v517 = vpack.c.b16 %v436, %v427
  %v518 = vpack.c.b16 %v437, %v428
  %v519 = vpack.c.b16 %v438, %v429
  %v520 = vpack.c.b16 %v439, %v430
  %v521 = vpack.c.b16 %v440, %v431
  %v522 = vpack.c.b16 %v450, %v441
  %v523 = vpack.c.b16 %v451, %v442
  %v524 = vpack.c.b16 %v452, %v443
  %v525 = vpack.c.b16 %v453, %v444
  %v526 = vpack.c.b16 %v454, %v445
  %v527 = vpack.c.b16 %v455, %v446
  %v528 = vpack.c.b16 %v456, %v447
  %v529 = vpack.c.b16 %v457, %v448
  %v530 = vpack.c.b16 %v458, %v449
  %v747 = vunpack.c.l.b16 %v91
  %v748 = vunpack.c.l.b16 %v92
  %v749 = vunpack.c.l.b16 %v93
  %v750 = vunpack.c.l.b16 %v94
  %v751 = vunpack.c.l.b16 %v95
  %v752 = vunpack.c.l.b16 %v96
  %v753 = vunpack.c.l.b16 %v97
  %v754 = vunpack.c.l.b16 %v98
  %v755 = vunpack.c.l.b16 %v99
  %v756 = vunpack.c.l.b16 %v100
  %v757 = vunpack.c.l.b16 %v101
  %v758 = vunpack.c.l.b16 %v102
  %v759 = vunpack.c.l.b16 %v103
  %v760 = vunpack.c.l.b16 %v104
  %v761 = vunpack.c.l.b16 %v105
  %v762 = vunpack.c.l.b16 %v106
  %v763 = vunpack.c.l.b16 %v107
  %v764 = vunpack.c.l.b16 %v108
  %v765 = vunpack.c.l.b16 %v109
  %v766 = vunpack.c.l.b16 %v110
  %v767 = vunpack.c.l.b16 %v111
  %v768 = vunpack.c.l.b16 %v112
  %v769 = vunpack.c.l.b16 %v113
  %v770 = vunpack.c.l.b16 %v114
  %v771 = vunpack.c.l.b16 %v115
  %v772 = vunpack.c.l.b16 %v116
  %v773 = vunpack.c.l.b16 %v117
  %v774 = vunpack.c.l.b16 %v118
  %v775 = vunpack.c.l.b16 %v119
  %v776 = vunpack.c.l.b16 %v120
  %v777 = vunpack.c.l.b16 %v121
  %v778 = vunpack.c.l.b16 %v122
  %v779 = vunpack.c.l.b16 %v123
  %v780 = vunpack.c.l.b16 %v124
  %v781 = vunpack.c.l.b16 %v125
  %v782 = vunpack.c.l.b16 %v126
  %v783 = vunpack.c.l.b16 %v127
  %v784 = vunpack.c.l.b16 %v128
  %v785 = vunpack.c.l.b16 %v129
  %v786 = vunpack.c.l.b16 %v130
  %v787 = vunpack.c.l.b16 %v131
  %v788 = vunpack.c.l.b16 %v132
  %v789 = vunpack.c.l.b16 %v133
  %v790 = vunpack.c.l.b16 %v134
  %v791 = vunpack.c.l.b16 %v135
  %v792 = vunpack.c.l.b16 %v136
  %v793 = vunpack.c.l.b16 %v137
  %v794 = vunpack.c.l.b16 %v138
  %v795 = vunpack.c.l.b16 %v139
  %v796 = vunpack.c.l.b16 %v140
  %v797 = vunpack.c.l.b16 %v141
  %v798 = vunpack.c.l.b16 %v142
  %v799 = vunpack.c.l.b16 %v143
  %v800 = vunpack.c.l.b16 %v144
  %v801 = vunpack.c.l.b16 %v145
  %v802 = vunpack.c.l.b16 %v146
  %v803 = vunpack.c.l.b16 %v147
  %v804 = vunpack.c.l.b16 %v148
  %v805 = vunpack.c.l.b16 %v149
  %v806 = vunpack.c.l.b16 %v150
  %v807 = vunpack.c.l.b16 %v151
  %v808 = vunpack.c.l.b16 %v152
  %v809 = vunpack.c.l.b16 %v153
  %v810 = vunpack.c.l.b16 %v154
  %v811 = vunpack.c.l.b16 %v155
  %v812 = vunpack.c.l.b16 %v156
  %v813 = vunpack.c.l.b16 %v157
  %v814 = vunpack.c.l.b16 %v158
  %v815 = vunpack.c.l.b16 %v159
  %v816 = vunpack.c.l.b16 %v160
  %v817 = vunpack.c.l.b16 %v161
  %v818 = vunpack.c.l.b16 %v162
  %v819 = vunpack.c.l.b16 %v163
  %v820 = vunpack.c.l.b16 %v164
  %v821 = vunpack.c.l.b16 %v165
  %v822 = vunpack.c.l.b16 %v166
  %v823 = vunpack.c.l.b16 %v167
  %v824 = vunpack.c.l.b16 %v168
  %v825 = vunpack.c.l.b16 %v169
  %v826 = vunpack.c.l.b16 %v170
  %v827 = vunpack.c.l.b16 %v171
  %v828 = vunpack.c.l.b16 %v172
  %v829 = vunpack.c.l.b16 %v173
  %v830 = vunpack.c.l.b16 %v174
  %v831 = vunpack.c.l.b16 %v175
  %v832 = vunpack.c.l.b16 %v176
  %v833 = vunpack.c.l.b16 %v177
  %v834 = vunpack.c.l.b16 %v178
  %v835 = vunpack.c.l.b16 %v179
  %v836 = vunpack.c.l.b16 %v180
  %v837 = vunpack.c.l.b16 %v181
  %v838 = vunpack.c.l.b16 %v182
  %v839 = vunpack.c.l.b16 %v183
  %v840 = vunpack.c.l.b16 %v184
  %v841 = vunpack.c.l.b16 %v185
  %v842 = vunpack.c.l.b16 %v186
  %v843 = vunpack.c.l.b16 %v187
  %v844 = vunpack.c.l.b16 %v188
  %v845 = vunpack.c.l.b16 %v189
  %v846 = vunpack.c.l.b16 %v190
  %v847 = vunpack.c.l.b16 %v191
  %v848 = vunpack.c.l.b16 %v192
  %v849 = vunpack.c.l.b16 %v193
  %v850 = vunpack.c.l.b16 %v194
  %v851 = vunpack.c.l.b16 %v195
  %v852 = vunpack.c.l.b16 %v196
  %v853 = vunpack.c.l.b16 %v197
  %v854 = vunpack.c.l.b16 %v198
  %v855 = vunpack.c.l.b16 %v199
  %v856 = vunpack.c.l.b16 %v200
  %v857 = vunpack.c.l.b16 %v201
  %v858 = vunpack.c.l.b16 %v202
  %v859 = vunpack.c.l.b16 %v203
  %v860 = vunpack.c.l.b16 %v204
  %v861 = vunpack.c.l.b16 %v205
  %v862 = vunpack.c.l.b16 %v206
  %v863 = vunpack.c.l.b16 %v207
  %v864 = vunpack.c.l.b16 %v208
  %v865 = vunpack.c.l.b16 %v209
  %v866 = vunpack.c.l.b16 %v210
  %v867 = vunpack.c.l.b16 %v211
  %v868 = vunpack.c.l.b16 %v212
  %v869 = vunpack.c.l.b16 %v213
  %v870 = vunpack.c.l.b16 %v214
  %v871 = vunpack.c.l.b16 %v215
  %v872 = vunpack.c.l.b16 %v216
  %v873 = vunpack.c.l.b16 %v217
  %v874 = vunpack.c.l.b16 %v218
  %v875 = vunpack.c.l.b16 %v219
  %v876 = vunpack.c.l.b16 %v220
  %v877 = vunpack.c.l.b16 %v221
  %v878 = vunpack.c.l.b16 %v222
  %v879 = vunpack.c.l.b16 %v223
  %v880 = vunpack.c.l.b16 %v224
  %v881 = vunpack.c.l.b16 %v225
  %v882 = vunpack.c.l.b16 %v226
  %v883 = vunpack.c.l.b16 %v227
  %v884 = vunpack.c.l.b16 %v228
  %v885 = vunpack.c.l.b16 %v229
  %v886 = vunpack.c.l.b16 %v230
  %v887 = vunpack.c.l.b16 %v231
  %v888 = vunpack.c.l.b16 %v232
  %v889 = vunpack.c.l.b16 %v233
  %v890 = vunpack.c.l.b16 %v234
  %v891 = vpack.c.b16 %v748, %v747
  %v892 = vpack.c.b16 %v750, %v749
  %v893 = vpack.c.b16 %v752, %v751
  %v894 = vpack.c.b16 %v754, %v753
  %v895 = vpack.c.b16 %v756, %v755
  %v896 = vpack.c.b16 %v758, %v757
  %v897 = vpack.c.b16 %v760, %v759
  %v898 = vpack.c.b16 %v762, %v761
  %v899 = vpack.c.b16 %v764, %v763
  %v900 = vpack.c.b16 %v766, %v765
  %v901 = vpack.c.b16 %v768, %v767
  %v902 = vpack.c.b16 %v770, %v769
  %v903 = vpack.c.b16 %v772, %v771
  %v904 = vpack.c.b16 %v774, %v773
  %v905 = vpack.c.b16 %v776, %v775
  %v906 = vpack.c.b16 %v778, %v777
  %v907 = vpack.c.b16 %v780, %v779
  %v908 = vpack.c.b16 %v782, %v781
  %v909 = vpack.c.b16 %v784, %v783
  %v910 = vpack.c.b16 %v786, %v785
  %v911 = vpack.c.b16 %v788, %v787
  %v912 = vpack.c.b16 %v790, %v789
  %v913 = vpack.c.b16 %v792, %v791
  %v914 = vpack.c.b16 %v794, %v793
  %v915 = vpack.c.b16 %v796, %v795
  %v916 = vpack.c.b16 %v798, %v797
  %v917 = vpack.c.b16 %v800, %v799
  %v918 = vpack.c.b16 %v802, %v801
  %v919 = vpack.c.b16 %v804, %v803
  %v920 = vpack.c.b16 %v806, %v805
  %v921 = vpack.c.b16 %v808, %v807
  %v922 = vpack.c.b16 %v810, %v809
  %v923 = vpack.c.b16 %v812, %v811
  %v924 = vpack.c.b16 %v814, %v813
  %v925 = vpack.c.b16 %v816, %v815
  %v926 = vpack.c.b16 %v818, %v817
  %v927 = vpack.c.b16 %v820, %v819
  %v928 = vpack.c.b16 %v822, %v821
  %v929 = vpack.c.b16 %v824, %v823
  %v930 = vpack.c.b16 %v826, %v825
  %v931 = vpack.c.b16 %v828, %v827
  %v932 = vpack.c.b16 %v830, %v829
  %v933 = vpack.c.b16 %v832, %v831
  %v934 = vpack.c.b16 %v834, %v833
  %v935 = vpack.c.b16 %v836, %v835
  %v936 = vpack.c.b16 %v838, %v837
  %v937 = vpack.c.b16 %v840, %v839
  %v938 = vpack.c.b16 %v842, %v841
  %v939 = vpack.c.b16 %v844, %v843
  %v940 = vpack.c.b16 %v846, %v845
  %v941 = vpack.c.b16 %v848, %v847
  %v942 = vpack.c.b16 %v850, %v849
  %v943 = vpack.c.b16 %v852, %v851
  %v944 = vpack.c.b16 %v854, %v853
  %v945 = vpack.c.b16 %v856, %v855
  %v946 = vpack.c.b16 %v858, %v857
  %v947 = vpack.c.b16 %v860, %v859
  %v948 = vpack.c.b16 %v862, %v861
  %v949 = vpack.c.b16 %v864, %v863
  %v950 = vpack.c.b16 %v866, %v865
  %v951 = vpack.c.b16 %v868, %v867
  %v952 = vpack.c.b16 %v870, %v869
  %v953 = vpack.c.b16 %v872, %v871
  %v954 = vpack.c.b16 %v874, %v873
  %v955 = vpack.c.b16 %v876, %v875
  %v956 = vpack.c.b16 %v878, %v877
  %v957 = vpack.c.b16 %v880, %v879
  %v958 = vpack.c.b16 %v882, %v881
  %v959 = vpack.c.b16 %v884, %v883
  %v960 = vpack.c.b16 %v886, %v885
  %v961 = vpack.c.b16 %v888, %v887
  %v962 = vpack.c.b16 %v890, %v889
  %1035 = vmatpush.bf16.msra.mxu0 %v898
  %1036 = vmatpush.bf16.msra.mxu0 %v897
  %1037 = vmatpush.bf16.msra.mxu0 %v896
  %1038 = vmatpush.bf16.msra.mxu0 %v895
  %1039 = vmatpush.bf16.msra.mxu0 %v894
  %1040 = vmatpush.bf16.msra.mxu0 %v893
  %1041 = vmatpush.bf16.msra.mxu0 %v892
  %1042 = vmatpush.bf16.msra.mxu0 %v891
  %1043 = vmatmul.bf16.gmra.mxu0 %v459
  %v1044 = vpop.f32.mrf.mxu0
  %v1045 = vadd.f32 0.0, %v1044
  %v1046 = vpop.f32.mrf.mxu0
  %v1047 = vadd.f32 0.0, %v1046
  %1048 = vmatmul.bf16.gmra.mxu0 %v468
  %v1049 = vpop.f32.mrf.mxu0
  %v1050 = vadd.f32 0.0, %v1049
  %v1051 = vpop.f32.mrf.mxu0
  %v1052 = vadd.f32 0.0, %v1051
  %1053 = vmatmul.bf16.gmra.mxu0 %v477
  %v1054 = vpop.f32.mrf.mxu0
  %v1055 = vadd.f32 0.0, %v1054
  %v1056 = vpop.f32.mrf.mxu0
  %v1057 = vadd.f32 0.0, %v1056
  %1058 = vmatmul.bf16.gmra.mxu0 %v486
  %v1059 = vpop.f32.mrf.mxu0
  %v1060 = vadd.f32 0.0, %v1059
  %v1061 = vpop.f32.mrf.mxu0
  %v1062 = vadd.f32 0.0, %v1061
  %1063 = vmatmul.bf16.gmra.mxu0 %v495
  %v1064 = vpop.f32.mrf.mxu0
  %v1065 = vadd.f32 0.0, %v1064
  %v1066 = vpop.f32.mrf.mxu0
  %v1067 = vadd.f32 0.0, %v1066
  %1068 = vmatmul.bf16.gmra.mxu0 %v504
  %v1069 = vpop.f32.mrf.mxu0
  %v1070 = vadd.f32 0.0, %v1069
  %v1071 = vpop.f32.mrf.mxu0
  %v1072 = vadd.f32 0.0, %v1071
  %1073 = vmatmul.bf16.gmra.mxu0 %v513
  %v1074 = vpop.f32.mrf.mxu0
  %v1075 = vadd.f32 0.0, %v1074
  %v1076 = vpop.f32.mrf.mxu0
  %v1077 = vadd.f32 0.0, %v1076
  %1078 = vmatmul.bf16.gmra.mxu0 %v522
  %v1079 = vpop.f32.mrf.mxu0
  %v1080 = vadd.f32 0.0, %v1079
  %v1081 = vpop.f32.mrf.mxu0
  %v1082 = vadd.f32 0.0, %v1081
  %1083 = vdwg.mxu0
  %1084 = vmatpush.bf16.msra.mxu0 %v906
  %1085 = vmatpush.bf16.msra.mxu0 %v905
  %1086 = vmatpush.bf16.msra.mxu0 %v904
  %1087 = vmatpush.bf16.msra.mxu0 %v903
  %1088 = vmatpush.bf16.msra.mxu0 %v902
  %1089 = vmatpush.bf16.msra.mxu0 %v901
  %1090 = vmatpush.bf16.msra.mxu0 %v900
  %1091 = vmatpush.bf16.msra.mxu0 %v899
  %1092 = vmatmul.bf16.gmra.mxu0 %v460
  %v1093 = vpop.f32.mrf.mxu0
  %v1094 = vadd.f32 %v1045, %v1093
  %v1095 = vpop.f32.mrf.mxu0
  %v1096 = vadd.f32 %v1047, %v1095
  %1097 = vmatmul.bf16.gmra.mxu0 %v469
  %v1098 = vpop.f32.mrf.mxu0
  %v1099 = vadd.f32 %v1050, %v1098
  %v1100 = vpop.f32.mrf.mxu0
  %v1101 = vadd.f32 %v1052, %v1100
  %1102 = vmatmul.bf16.gmra.mxu0 %v478
  %v1103 = vpop.f32.mrf.mxu0
  %v1104 = vadd.f32 %v1055, %v1103
  %v1105 = vpop.f32.mrf.mxu0
  %v1106 = vadd.f32 %v1057, %v1105
  %1107 = vmatmul.bf16.gmra.mxu0 %v487
  %v1108 = vpop.f32.mrf.mxu0
  %v1109 = vadd.f32 %v1060, %v1108
  %v1110 = vpop.f32.mrf.mxu0
  %v1111 = vadd.f32 %v1062, %v1110
  %1112 = vmatmul.bf16.gmra.mxu0 %v496
  %v1113 = vpop.f32.mrf.mxu0
  %v1114 = vadd.f32 %v1065, %v1113
  %v1115 = vpop.f32.mrf.mxu0
  %v1116 = vadd.f32 %v1067, %v1115
  %1117 = vmatmul.bf16.gmra.mxu0 %v505
  %v1118 = vpop.f32.mrf.mxu0
  %v1119 = vadd.f32 %v1070, %v1118
  %v1120 = vpop.f32.mrf.mxu0
  %v1121 = vadd.f32 %v1072, %v1120
  %1122 = vmatmul.bf16.gmra.mxu0 %v514
  %v1123 = vpop.f32.mrf.mxu0
  %v1124 = vadd.f32 %v1075, %v1123
  %v1125 = vpop.f32.mrf.mxu0
  %v1126 = vadd.f32 %v1077, %v1125
  %1127 = vmatmul.bf16.gmra.mxu0 %v523
  %v1128 = vpop.f32.mrf.mxu0
  %v1129 = vadd.f32 %v1080, %v1128
  %v1130 = vpop.f32.mrf.mxu0
  %v1131 = vadd.f32 %v1082, %v1130
  %1132 = vdwg.mxu0
  %1133 = vmatpush.bf16.msra.mxu0 %v914
  %1134 = vmatpush.bf16.msra.mxu0 %v913
  %1135 = vmatpush.bf16.msra.mxu0 %v912
  %1136 = vmatpush.bf16.msra.mxu0 %v911
  %1137 = vmatpush.bf16.msra.mxu0 %v910
  %1138 = vmatpush.bf16.msra.mxu0 %v909
  %1139 = vmatpush.bf16.msra.mxu0 %v908
  %1140 = vmatpush.bf16.msra.mxu0 %v907
  %1141 = vmatmul.bf16.gmra.mxu0 %v461
  %v1142 = vpop.f32.mrf.mxu0
  %v1143 = vadd.f32 %v1094, %v1142
  %v1144 = vpop.f32.mrf.mxu0
  %v1145 = vadd.f32 %v1096, %v1144
  %1146 = vmatmul.bf16.gmra.mxu0 %v470
  %v1147 = vpop.f32.mrf.mxu0
  %v1148 = vadd.f32 %v1099, %v1147
  %v1149 = vpop.f32.mrf.mxu0
  %v1150 = vadd.f32 %v1101, %v1149
  %1151 = vmatmul.bf16.gmra.mxu0 %v479
  %v1152 = vpop.f32.mrf.mxu0
  %v1153 = vadd.f32 %v1104, %v1152
  %v1154 = vpop.f32.mrf.mxu0
  %v1155 = vadd.f32 %v1106, %v1154
  %1156 = vmatmul.bf16.gmra.mxu0 %v488
  %v1157 = vpop.f32.mrf.mxu0
  %v1158 = vadd.f32 %v1109, %v1157
  %v1159 = vpop.f32.mrf.mxu0
  %v1160 = vadd.f32 %v1111, %v1159
  %1161 = vmatmul.bf16.gmra.mxu0 %v497
  %v1162 = vpop.f32.mrf.mxu0
  %v1163 = vadd.f32 %v1114, %v1162
  %v1164 = vpop.f32.mrf.mxu0
  %v1165 = vadd.f32 %v1116, %v1164
  %1166 = vmatmul.bf16.gmra.mxu0 %v506
  %v1167 = vpop.f32.mrf.mxu0
  %v1168 = vadd.f32 %v1119, %v1167
  %v1169 = vpop.f32.mrf.mxu0
  %v1170 = vadd.f32 %v1121, %v1169
  %1171 = vmatmul.bf16.gmra.mxu0 %v515
  %v1172 = vpop.f32.mrf.mxu0
  %v1173 = vadd.f32 %v1124, %v1172
  %v1174 = vpop.f32.mrf.mxu0
  %v1175 = vadd.f32 %v1126, %v1174
  %1176 = vmatmul.bf16.gmra.mxu0 %v524
  %v1177 = vpop.f32.mrf.mxu0
  %v1178 = vadd.f32 %v1129, %v1177
  %v1179 = vpop.f32.mrf.mxu0
  %v1180 = vadd.f32 %v1131, %v1179
  %1181 = vdwg.mxu0
  %1182 = vmatpush.bf16.msra.mxu0 %v922
  %1183 = vmatpush.bf16.msra.mxu0 %v921
  %1184 = vmatpush.bf16.msra.mxu0 %v920
  %1185 = vmatpush.bf16.msra.mxu0 %v919
  %1186 = vmatpush.bf16.msra.mxu0 %v918
  %1187 = vmatpush.bf16.msra.mxu0 %v917
  %1188 = vmatpush.bf16.msra.mxu0 %v916
  %1189 = vmatpush.bf16.msra.mxu0 %v915
  %1190 = vmatmul.bf16.gmra.mxu0 %v462
  %v1191 = vpop.f32.mrf.mxu0
  %v1192 = vadd.f32 %v1143, %v1191
  %v1193 = vpop.f32.mrf.mxu0
  %v1194 = vadd.f32 %v1145, %v1193
  %1195 = vmatmul.bf16.gmra.mxu0 %v471
  %v1196 = vpop.f32.mrf.mxu0
  %v1197 = vadd.f32 %v1148, %v1196
  %v1198 = vpop.f32.mrf.mxu0
  %v1199 = vadd.f32 %v1150, %v1198
  %1200 = vmatmul.bf16.gmra.mxu0 %v480
  %v1201 = vpop.f32.mrf.mxu0
  %v1202 = vadd.f32 %v1153, %v1201
  %v1203 = vpop.f32.mrf.mxu0
  %v1204 = vadd.f32 %v1155, %v1203
  %1205 = vmatmul.bf16.gmra.mxu0 %v489
  %v1206 = vpop.f32.mrf.mxu0
  %v1207 = vadd.f32 %v1158, %v1206
  %v1208 = vpop.f32.mrf.mxu0
  %v1209 = vadd.f32 %v1160, %v1208
  %1210 = vmatmul.bf16.gmra.mxu0 %v498
  %v1211 = vpop.f32.mrf.mxu0
  %v1212 = vadd.f32 %v1163, %v1211
  %v1213 = vpop.f32.mrf.mxu0
  %v1214 = vadd.f32 %v1165, %v1213
  %1215 = vmatmul.bf16.gmra.mxu0 %v507
  %v1216 = vpop.f32.mrf.mxu0
  %v1217 = vadd.f32 %v1168, %v1216
  %v1218 = vpop.f32.mrf.mxu0
  %v1219 = vadd.f32 %v1170, %v1218
  %1220 = vmatmul.bf16.gmra.mxu0 %v516
  %v1221 = vpop.f32.mrf.mxu0
  %v1222 = vadd.f32 %v1173, %v1221
  %v1223 = vpop.f32.mrf.mxu0
  %v1224 = vadd.f32 %v1175, %v1223
  %1225 = vmatmul.bf16.gmra.mxu0 %v525
  %v1226 = vpop.f32.mrf.mxu0
  %v1227 = vadd.f32 %v1178, %v1226
  %v1228 = vpop.f32.mrf.mxu0
  %v1229 = vadd.f32 %v1180, %v1228
  %1230 = vdwg.mxu0
  %1231 = vmatpush.bf16.msra.mxu0 %v930
  %1232 = vmatpush.bf16.msra.mxu0 %v929
  %1233 = vmatpush.bf16.msra.mxu0 %v928
  %1234 = vmatpush.bf16.msra.mxu0 %v927
  %1235 = vmatpush.bf16.msra.mxu0 %v926
  %1236 = vmatpush.bf16.msra.mxu0 %v925
  %1237 = vmatpush.bf16.msra.mxu0 %v924
  %1238 = vmatpush.bf16.msra.mxu0 %v923
  %1239 = vmatmul.bf16.gmra.mxu0 %v463
  %v1240 = vpop.f32.mrf.mxu0
  %v1241 = vadd.f32 %v1192, %v1240
  %v1242 = vpop.f32.mrf.mxu0
  %v1243 = vadd.f32 %v1194, %v1242
  %1244 = vmatmul.bf16.gmra.mxu0 %v472
  %v1245 = vpop.f32.mrf.mxu0
  %v1246 = vadd.f32 %v1197, %v1245
  %v1247 = vpop.f32.mrf.mxu0
  %v1248 = vadd.f32 %v1199, %v1247
  %1249 = vmatmul.bf16.gmra.mxu0 %v481
  %v1250 = vpop.f32.mrf.mxu0
  %v1251 = vadd.f32 %v1202, %v1250
  %v1252 = vpop.f32.mrf.mxu0
  %v1253 = vadd.f32 %v1204, %v1252
  %1254 = vmatmul.bf16.gmra.mxu0 %v490
  %v1255 = vpop.f32.mrf.mxu0
  %v1256 = vadd.f32 %v1207, %v1255
  %v1257 = vpop.f32.mrf.mxu0
  %v1258 = vadd.f32 %v1209, %v1257
  %1259 = vmatmul.bf16.gmra.mxu0 %v499
  %v1260 = vpop.f32.mrf.mxu0
  %v1261 = vadd.f32 %v1212, %v1260
  %v1262 = vpop.f32.mrf.mxu0
  %v1263 = vadd.f32 %v1214, %v1262
  %1264 = vmatmul.bf16.gmra.mxu0 %v508
  %v1265 = vpop.f32.mrf.mxu0
  %v1266 = vadd.f32 %v1217, %v1265
  %v1267 = vpop.f32.mrf.mxu0
  %v1268 = vadd.f32 %v1219, %v1267
  %1269 = vmatmul.bf16.gmra.mxu0 %v517
  %v1270 = vpop.f32.mrf.mxu0
  %v1271 = vadd.f32 %v1222, %v1270
  %v1272 = vpop.f32.mrf.mxu0
  %v1273 = vadd.f32 %v1224, %v1272
  %1274 = vmatmul.bf16.gmra.mxu0 %v526
  %v1275 = vpop.f32.mrf.mxu0
  %v1276 = vadd.f32 %v1227, %v1275
  %v1277 = vpop.f32.mrf.mxu0
  %v1278 = vadd.f32 %v1229, %v1277
  %1279 = vdwg.mxu0
  %1280 = vmatpush.bf16.msra.mxu0 %v938
  %1281 = vmatpush.bf16.msra.mxu0 %v937
  %1282 = vmatpush.bf16.msra.mxu0 %v936
  %1283 = vmatpush.bf16.msra.mxu0 %v935
  %1284 = vmatpush.bf16.msra.mxu0 %v934
  %1285 = vmatpush.bf16.msra.mxu0 %v933
  %1286 = vmatpush.bf16.msra.mxu0 %v932
  %1287 = vmatpush.bf16.msra.mxu0 %v931
  %1288 = vmatmul.bf16.gmra.mxu0 %v464
  %v1289 = vpop.f32.mrf.mxu0
  %v1290 = vadd.f32 %v1241, %v1289
  %v1291 = vpop.f32.mrf.mxu0
  %v1292 = vadd.f32 %v1243, %v1291
  %1293 = vmatmul.bf16.gmra.mxu0 %v473
  %v1294 = vpop.f32.mrf.mxu0
  %v1295 = vadd.f32 %v1246, %v1294
  %v1296 = vpop.f32.mrf.mxu0
  %v1297 = vadd.f32 %v1248, %v1296
  %1298 = vmatmul.bf16.gmra.mxu0 %v482
  %v1299 = vpop.f32.mrf.mxu0
  %v1300 = vadd.f32 %v1251, %v1299
  %v1301 = vpop.f32.mrf.mxu0
  %v1302 = vadd.f32 %v1253, %v1301
  %1303 = vmatmul.bf16.gmra.mxu0 %v491
  %v1304 = vpop.f32.mrf.mxu0
  %v1305 = vadd.f32 %v1256, %v1304
  %v1306 = vpop.f32.mrf.mxu0
  %v1307 = vadd.f32 %v1258, %v1306
  %1308 = vmatmul.bf16.gmra.mxu0 %v500
  %v1309 = vpop.f32.mrf.mxu0
  %v1310 = vadd.f32 %v1261, %v1309
  %v1311 = vpop.f32.mrf.mxu0
  %v1312 = vadd.f32 %v1263, %v1311
  %1313 = vmatmul.bf16.gmra.mxu0 %v509
  %v1314 = vpop.f32.mrf.mxu0
  %v1315 = vadd.f32 %v1266, %v1314
  %v1316 = vpop.f32.mrf.mxu0
  %v1317 = vadd.f32 %v1268, %v1316
  %1318 = vmatmul.bf16.gmra.mxu0 %v518
  %v1319 = vpop.f32.mrf.mxu0
  %v1320 = vadd.f32 %v1271, %v1319
  %v1321 = vpop.f32.mrf.mxu0
  %v1322 = vadd.f32 %v1273, %v1321
  %1323 = vmatmul.bf16.gmra.mxu0 %v527
  %v1324 = vpop.f32.mrf.mxu0
  %v1325 = vadd.f32 %v1276, %v1324
  %v1326 = vpop.f32.mrf.mxu0
  %v1327 = vadd.f32 %v1278, %v1326
  %1328 = vdwg.mxu0
  %1329 = vmatpush.bf16.msra.mxu0 %v946
  %1330 = vmatpush.bf16.msra.mxu0 %v945
  %1331 = vmatpush.bf16.msra.mxu0 %v944
  %1332 = vmatpush.bf16.msra.mxu0 %v943
  %1333 = vmatpush.bf16.msra.mxu0 %v942
  %1334 = vmatpush.bf16.msra.mxu0 %v941
  %1335 = vmatpush.bf16.msra.mxu0 %v940
  %1336 = vmatpush.bf16.msra.mxu0 %v939
  %1337 = vmatmul.bf16.gmra.mxu0 %v465
  %v1338 = vpop.f32.mrf.mxu0
  %v1339 = vadd.f32 %v1290, %v1338
  %v1340 = vpop.f32.mrf.mxu0
  %v1341 = vadd.f32 %v1292, %v1340
  %1342 = vmatmul.bf16.gmra.mxu0 %v474
  %v1343 = vpop.f32.mrf.mxu0
  %v1344 = vadd.f32 %v1295, %v1343
  %v1345 = vpop.f32.mrf.mxu0
  %v1346 = vadd.f32 %v1297, %v1345
  %1347 = vmatmul.bf16.gmra.mxu0 %v483
  %v1348 = vpop.f32.mrf.mxu0
  %v1349 = vadd.f32 %v1300, %v1348
  %v1350 = vpop.f32.mrf.mxu0
  %v1351 = vadd.f32 %v1302, %v1350
  %1352 = vmatmul.bf16.gmra.mxu0 %v492
  %v1353 = vpop.f32.mrf.mxu0
  %v1354 = vadd.f32 %v1305, %v1353
  %v1355 = vpop.f32.mrf.mxu0
  %v1356 = vadd.f32 %v1307, %v1355
  %1357 = vmatmul.bf16.gmra.mxu0 %v501
  %v1358 = vpop.f32.mrf.mxu0
  %v1359 = vadd.f32 %v1310, %v1358
  %v1360 = vpop.f32.mrf.mxu0
  %v1361 = vadd.f32 %v1312, %v1360
  %1362 = vmatmul.bf16.gmra.mxu0 %v510
  %v1363 = vpop.f32.mrf.mxu0
  %v1364 = vadd.f32 %v1315, %v1363
  %v1365 = vpop.f32.mrf.mxu0
  %v1366 = vadd.f32 %v1317, %v1365
  %1367 = vmatmul.bf16.gmra.mxu0 %v519
  %v1368 = vpop.f32.mrf.mxu0
  %v1369 = vadd.f32 %v1320, %v1368
  %v1370 = vpop.f32.mrf.mxu0
  %v1371 = vadd.f32 %v1322, %v1370
  %1372 = vmatmul.bf16.gmra.mxu0 %v528
  %v1373 = vpop.f32.mrf.mxu0
  %v1374 = vadd.f32 %v1325, %v1373
  %v1375 = vpop.f32.mrf.mxu0
  %v1376 = vadd.f32 %v1327, %v1375
  %1377 = vdwg.mxu0
  %1378 = vmatpush.bf16.msra.mxu0 %v954
  %1379 = vmatpush.bf16.msra.mxu0 %v953
  %1380 = vmatpush.bf16.msra.mxu0 %v952
  %1381 = vmatpush.bf16.msra.mxu0 %v951
  %1382 = vmatpush.bf16.msra.mxu0 %v950
  %1383 = vmatpush.bf16.msra.mxu0 %v949
  %1384 = vmatpush.bf16.msra.mxu0 %v948
  %1385 = vmatpush.bf16.msra.mxu0 %v947
  %1386 = vmatmul.bf16.gmra.mxu0 %v466
  %v1387 = vpop.f32.mrf.mxu0
  %v1388 = vadd.f32 %v1339, %v1387
  %v1389 = vpop.f32.mrf.mxu0
  %v1390 = vadd.f32 %v1341, %v1389
  %1391 = vmatmul.bf16.gmra.mxu0 %v475
  %v1392 = vpop.f32.mrf.mxu0
  %v1393 = vadd.f32 %v1344, %v1392
  %v1394 = vpop.f32.mrf.mxu0
  %v1395 = vadd.f32 %v1346, %v1394
  %1396 = vmatmul.bf16.gmra.mxu0 %v484
  %v1397 = vpop.f32.mrf.mxu0
  %v1398 = vadd.f32 %v1349, %v1397
  %v1399 = vpop.f32.mrf.mxu0
  %v1400 = vadd.f32 %v1351, %v1399
  %1401 = vmatmul.bf16.gmra.mxu0 %v493
  %v1402 = vpop.f32.mrf.mxu0
  %v1403 = vadd.f32 %v1354, %v1402
  %v1404 = vpop.f32.mrf.mxu0
  %v1405 = vadd.f32 %v1356, %v1404
  %1406 = vmatmul.bf16.gmra.mxu0 %v502
  %v1407 = vpop.f32.mrf.mxu0
  %v1408 = vadd.f32 %v1359, %v1407
  %v1409 = vpop.f32.mrf.mxu0
  %v1410 = vadd.f32 %v1361, %v1409
  %1411 = vmatmul.bf16.gmra.mxu0 %v511
  %v1412 = vpop.f32.mrf.mxu0
  %v1413 = vadd.f32 %v1364, %v1412
  %v1414 = vpop.f32.mrf.mxu0
  %v1415 = vadd.f32 %v1366, %v1414
  %1416 = vmatmul.bf16.gmra.mxu0 %v520
  %v1417 = vpop.f32.mrf.mxu0
  %v1418 = vadd.f32 %v1369, %v1417
  %v1419 = vpop.f32.mrf.mxu0
  %v1420 = vadd.f32 %v1371, %v1419
  %1421 = vmatmul.bf16.gmra.mxu0 %v529
  %v1422 = vpop.f32.mrf.mxu0
  %v1423 = vadd.f32 %v1374, %v1422
  %v1424 = vpop.f32.mrf.mxu0
  %v1425 = vadd.f32 %v1376, %v1424
  %1426 = vdwg.mxu0
  %1427 = vmatpush.bf16.msra.mxu0 %v962
  %1428 = vmatpush.bf16.msra.mxu0 %v961
  %1429 = vmatpush.bf16.msra.mxu0 %v960
  %1430 = vmatpush.bf16.msra.mxu0 %v959
  %1431 = vmatpush.bf16.msra.mxu0 %v958
  %1432 = vmatpush.bf16.msra.mxu0 %v957
  %1433 = vmatpush.bf16.msra.mxu0 %v956
  %1434 = vmatpush.bf16.msra.mxu0 %v955
  %1435 = vmatmul.bf16.gmra.mxu0 %v467
  %v1436 = vpop.f32.mrf.mxu0
  %v1437 = vadd.f32 %v1388, %v1436
  %v1438 = vpop.f32.mrf.mxu0
  %v1439 = vadd.f32 %v1390, %v1438
  %1440 = vmatmul.bf16.gmra.mxu0 %v476
  %v1441 = vpop.f32.mrf.mxu0
  %v1442 = vadd.f32 %v1393, %v1441
  %v1443 = vpop.f32.mrf.mxu0
  %v1444 = vadd.f32 %v1395, %v1443
  %1445 = vmatmul.bf16.gmra.mxu0 %v485
  %v1446 = vpop.f32.mrf.mxu0
  %v1447 = vadd.f32 %v1398, %v1446
  %v1448 = vpop.f32.mrf.mxu0
  %v1449 = vadd.f32 %v1400, %v1448
  %1450 = vmatmul.bf16.gmra.mxu0 %v494
  %v1451 = vpop.f32.mrf.mxu0
  %v1452 = vadd.f32 %v1403, %v1451
  %v1453 = vpop.f32.mrf.mxu0
  %v1454 = vadd.f32 %v1405, %v1453
  %1455 = vmatmul.bf16.gmra.mxu0 %v503
  %v1456 = vpop.f32.mrf.mxu0
  %v1457 = vadd.f32 %v1408, %v1456
  %v1458 = vpop.f32.mrf.mxu0
  %v1459 = vadd.f32 %v1410, %v1458
  %1460 = vmatmul.bf16.gmra.mxu0 %v512
  %v1461 = vpop.f32.mrf.mxu0
  %v1462 = vadd.f32 %v1413, %v1461
  %v1463 = vpop.f32.mrf.mxu0
  %v1464 = vadd.f32 %v1415, %v1463
  %1465 = vmatmul.bf16.gmra.mxu0 %v521
  %v1466 = vpop.f32.mrf.mxu0
  %v1467 = vadd.f32 %v1418, %v1466
  %v1468 = vpop.f32.mrf.mxu0
  %v1469 = vadd.f32 %v1420, %v1468
  %1470 = vmatmul.bf16.gmra.mxu0 %v530
  %v1471 = vpop.f32.mrf.mxu0
  %v1472 = vadd.f32 %v1423, %v1471
  %v1473 = vpop.f32.mrf.mxu0
  %v1474 = vadd.f32 %v1425, %v1473
  %1475 = vdwg.mxu0
  %v1476 = vpack.c.bf16 %v1437, %v1437
  %v1477 = vpack.c.bf16 %v1439, %v1439
  %v1478 = vpack.c.bf16 %v1442, %v1442
  %v1479 = vpack.c.bf16 %v1444, %v1444
  %v1480 = vpack.c.bf16 %v1447, %v1447
  %v1481 = vpack.c.bf16 %v1449, %v1449
  %v1482 = vpack.c.bf16 %v1452, %v1452
  %v1483 = vpack.c.bf16 %v1454, %v1454
  %v1484 = vpack.c.bf16 %v1457, %v1457
  %v1485 = vpack.c.bf16 %v1459, %v1459
  %v1486 = vpack.c.bf16 %v1462, %v1462
  %v1487 = vpack.c.bf16 %v1464, %v1464
  %v1488 = vpack.c.bf16 %v1467, %v1467
  %v1489 = vpack.c.bf16 %v1469, %v1469
  %v1490 = vpack.c.bf16 %v1472, %v1472
  %v1491 = vpack.c.bf16 %v1474, %v1474
  %vm1492 = vcmask 257024
  %1493 = vst.msk [vmem:[%s2] sm:$0xf] %vm1492, %v1476
  %1494 = vst.msk [vmem:[%s2 + $0x4] sm:$0xf] %vm1492, %v1477
  %1495 = vst.msk [vmem:[%s2 + $0x8] sm:$0xf] %vm1492, %v1478
  %1496 = vst.msk [vmem:[%s2 + $0xc] sm:$0xf] %vm1492, %v1479
  %1497 = vst.msk [vmem:[%s2 + $0x10] sm:$0xf] %vm1492, %v1480
  %1498 = vst.msk [vmem:[%s2 + $0x14] sm:$0xf] %vm1492, %v1481
  %1499 = vst.msk [vmem:[%s2 + $0x18] sm:$0xf] %vm1492, %v1482
  %1500 = vst.msk [vmem:[%s2 + $0x1c] sm:$0xf] %vm1492, %v1483
  %1501 = vst.msk [vmem:[%s2 + $0x20] sm:$0xf] %vm1492, %v1484
  %1502 = vst.msk [vmem:[%s2 + $0x24] sm:$0xf] %vm1492, %v1485
  %1503 = vst.msk [vmem:[%s2 + $0x28] sm:$0xf] %vm1492, %v1486
  %1504 = vst.msk [vmem:[%s2 + $0x2c] sm:$0xf] %vm1492, %v1487
  %1505 = vst.msk [vmem:[%s2 + $0x30] sm:$0xf] %vm1492, %v1488
  %1506 = vst.msk [vmem:[%s2 + $0x34] sm:$0xf] %vm1492, %v1489
  %1507 = vst.msk [vmem:[%s2 + $0x38] sm:$0xf] %vm1492, %v1490
  %1508 = vst.msk [vmem:[%s2 + $0x3c] sm:$0xf] %vm1492, %v1491
  // Predicated region
  $region10: #{densenet121_forward.123} parent=0 // pred_check
    _
  $region11: #{densenet121_forward.123} parent=0 // pred_check_branch
    %1510 = sbr.rel (0) target = $region13
  $region12: #{densenet121_forward.123} parent=0 // pred_region
    _
  $region13: #{densenet121_forward.123} parent=0 // pred_fallthru
    _
  // Predicated region
  $region14: #{densenet121_forward.123} parent=0 // pred_check
    _
  $region15: #{densenet121_forward.123} parent=0 // pred_check_branch
    %1512 = sbr.rel (0) target = $region17
  $region16: #{densenet121_forward.123} parent=0 // pred_region
    _
  $region17: #{densenet121_forward.123} parent=0 // pred_fallthru
    _

// kernel: densenet121_forward.134
$region0: #{densenet121_forward.134}
  #allocation0 [shape = 'u32[]', space=smem, size = 0x4, offset = 0x4, fixed_abs, tag = 'smem constant byte address 0x4 - core index']
  #allocation1 [shape = 'u32[72,128]{1,0:T(1,128)}', space=vmem, size = 0x9000, scoped, tag = 'internal scratch']
  %s0 = inlined_call_operand.vmem [shape: bf16[128,256], index: 0, kind: input, shape index: {}]
  %s1 = inlined_call_operand.vmem [shape: bf16[1,256], index: 1, kind: input, shape index: {}]
  %s2 = inlined_call_operand.vmem [shape: bf16[1,256], index: 2, kind: input, shape index: {}]
  %s3 = inlined_call_operand.vmem [shape: bf16[256,128], index: 3, kind: input, shape index: {}]
  %s4 = inlined_call_operand.vmem [shape: bf16[128,128], index: 4, kind: output, shape index: {}]
  %s5 = sld [smem:[#allocation0]]
  $region26: #{densenet121_forward.134} parent=0
    _
  %s7 = ssub.s32 1, %s5
  %s8 = scalar_select 0, %s7, %s5
  // Predicated region
  $region2: #{densenet121_forward.134} parent=0 // pred_check
    _
  $region3: #{densenet121_forward.134} parent=0 // pred_check_branch
    %10 = sbr.rel (0) target = $region5
  $region4: #{densenet121_forward.134} parent=0 // pred_region
    _
  $region5: #{densenet121_forward.134} parent=0 // pred_fallthru
    _
  // Predicated region
  $region6: #{densenet121_forward.134} parent=0 // pred_check
    _
  $region7: #{densenet121_forward.134} parent=0 // pred_check_branch
    %12 = sbr.rel (0) target = $region9
  $region8: #{densenet121_forward.134} parent=0 // pred_region
    _
  $region9: #{densenet121_forward.134} parent=0 // pred_fallthru
    _
  // Predicated region
  $region10: #{densenet121_forward.134} parent=0 // pred_check
    _
  $region11: #{densenet121_forward.134} parent=0 // pred_check_branch
    %14 = sbr.rel (0) target = $region13
  $region12: #{densenet121_forward.134} parent=0 // pred_region
    _
  $region13: #{densenet121_forward.134} parent=0 // pred_fallthru
    _
  // Predicated region
  $region14: #{densenet121_forward.134} parent=0 // pred_check
    _
  $region15: #{densenet121_forward.134} parent=0 // pred_check_branch
    %16 = sbr.rel (0) target = $region17
  $region16: #{densenet121_forward.134} parent=0 // pred_region
    _
  $region17: #{densenet121_forward.134} parent=0 // pred_fallthru
    _
  %v17 = vld [vmem:[%s0] sm:$0xff]
  %v18 = vld [vmem:[%s0 + $0x8] sm:$0xff]
  %v19 = vld [vmem:[%s0 + $0x10] sm:$0xff]
  %v20 = vld [vmem:[%s0 + $0x18] sm:$0xff]
  %v21 = vld [vmem:[%s0 + $0x20] sm:$0xff]
  %v22 = vld [vmem:[%s0 + $0x28] sm:$0xff]
  %v23 = vld [vmem:[%s0 + $0x30] sm:$0xff]
  %v24 = vld [vmem:[%s0 + $0x38] sm:$0xff]
  %v25 = vld [vmem:[%s0 + $0x40] sm:$0xff]
  %v26 = vld [vmem:[%s0 + $0x48] sm:$0xff]
  %v27 = vld [vmem:[%s0 + $0x50] sm:$0xff]
  %v28 = vld [vmem:[%s0 + $0x58] sm:$0xff]
  %v29 = vld [vmem:[%s0 + $0x60] sm:$0xff]
  %v30 = vld [vmem:[%s0 + $0x68] sm:$0xff]
  %v31 = vld [vmem:[%s0 + $0x70] sm:$0xff]
  %v32 = vld [vmem:[%s0 + $0x78] sm:$0xff]
  %v33 = vld [vmem:[%s3] sm:$0xf]
  %v34 = vld [vmem:[%s3 + $0x4] sm:$0xf]
  %v35 = vld [vmem:[%s3 + $0x8] sm:$0xf]
  %v36 = vld [vmem:[%s3 + $0xc] sm:$0xf]
  %v37 = vld [vmem:[%s3 + $0x10] sm:$0xf]
  %v38 = vld [vmem:[%s3 + $0x14] sm:$0xf]
  %v39 = vld [vmem:[%s3 + $0x18] sm:$0xf]
  %v40 = vld [vmem:[%s3 + $0x1c] sm:$0xf]
  %v41 = vld [vmem:[%s3 + $0x20] sm:$0xf]
  %v42 = vld [vmem:[%s3 + $0x24] sm:$0xf]
  %v43 = vld [vmem:[%s3 + $0x28] sm:$0xf]
  %v44 = vld [vmem:[%s3 + $0x2c] sm:$0xf]
  %v45 = vld [vmem:[%s3 + $0x30] sm:$0xf]
  %v46 = vld [vmem:[%s3 + $0x34] sm:$0xf]
  %v47 = vld [vmem:[%s3 + $0x38] sm:$0xf]
  %v48 = vld [vmem:[%s3 + $0x3c] sm:$0xf]
  %v49 = vld [vmem:[%s3 + $0x40] sm:$0xf]
  %v50 = vld [vmem:[%s3 + $0x44] sm:$0xf]
  %v51 = vld [vmem:[%s3 + $0x48] sm:$0xf]
  %v52 = vld [vmem:[%s3 + $0x4c] sm:$0xf]
  %v53 = vld [vmem:[%s3 + $0x50] sm:$0xf]
  %v54 = vld [vmem:[%s3 + $0x54] sm:$0xf]
  %v55 = vld [vmem:[%s3 + $0x58] sm:$0xf]
  %v56 = vld [vmem:[%s3 + $0x5c] sm:$0xf]
  %v57 = vld [vmem:[%s3 + $0x60] sm:$0xf]
  %v58 = vld [vmem:[%s3 + $0x64] sm:$0xf]
  %v59 = vld [vmem:[%s3 + $0x68] sm:$0xf]
  %v60 = vld [vmem:[%s3 + $0x6c] sm:$0xf]
  %v61 = vld [vmem:[%s3 + $0x70] sm:$0xf]
  %v62 = vld [vmem:[%s3 + $0x74] sm:$0xf]
  %v63 = vld [vmem:[%s3 + $0x78] sm:$0xf]
  %v64 = vld [vmem:[%s3 + $0x7c] sm:$0xf]
  %v65 = vld [vmem:[%s1] sm:$0x3]
  %67 = vst [vmem:[#allocation1] ss:$9 sm:$0xff] %v65
  %v68 = vld [vmem:[#allocation1] sm:$0xff]
  %v69 = vld [vmem:[#allocation1 + $0x9] sm:$0xff]
  %v70 = vpack.i.b16 %v68, %v68
  %v72 = vperm.slane %v70, 0
  %v73 = vpack.i.b16 %v69, %v69
  %v75 = vperm.slane %v73, 0
  %v76 = vunpack.c.l.bf16 %v17
  %v77 = vunpack.c.h.bf16 %v17
  %v78 = vunpack.c.l.bf16 %v18
  %v79 = vunpack.c.h.bf16 %v18
  %v80 = vunpack.c.l.bf16 %v19
  %v81 = vunpack.c.h.bf16 %v19
  %v82 = vunpack.c.l.bf16 %v20
  %v83 = vunpack.c.h.bf16 %v20
  %v84 = vunpack.c.l.bf16 %v21
  %v85 = vunpack.c.h.bf16 %v21
  %v86 = vunpack.c.l.bf16 %v22
  %v87 = vunpack.c.h.bf16 %v22
  %v88 = vunpack.c.l.bf16 %v23
  %v89 = vunpack.c.h.bf16 %v23
  %v90 = vunpack.c.l.bf16 %v24
  %v91 = vunpack.c.h.bf16 %v24
  %v92 = vunpack.c.l.bf16 %v25
  %v93 = vunpack.c.h.bf16 %v25
  %v94 = vunpack.c.l.bf16 %v26
  %v95 = vunpack.c.h.bf16 %v26
  %v96 = vunpack.c.l.bf16 %v27
  %v97 = vunpack.c.h.bf16 %v27
  %v98 = vunpack.c.l.bf16 %v28
  %v99 = vunpack.c.h.bf16 %v28
  %v100 = vunpack.c.l.bf16 %v29
  %v101 = vunpack.c.h.bf16 %v29
  %v102 = vunpack.c.l.bf16 %v30
  %v103 = vunpack.c.h.bf16 %v30
  %v104 = vunpack.c.l.bf16 %v31
  %v105 = vunpack.c.h.bf16 %v31
  %v106 = vunpack.c.l.bf16 %v32
  %v107 = vunpack.c.h.bf16 %v32
  %v108 = vunpack.c.l.bf16 %v72
  %v109 = vunpack.c.l.bf16 %v75
  %v110 = vmul.f32 %v76, %v108
  %v111 = vmul.f32 %v77, %v109
  %v112 = vmul.f32 %v78, %v108
  %v113 = vmul.f32 %v79, %v109
  %v114 = vmul.f32 %v80, %v108
  %v115 = vmul.f32 %v81, %v109
  %v116 = vmul.f32 %v82, %v108
  %v117 = vmul.f32 %v83, %v109
  %v118 = vmul.f32 %v84, %v108
  %v119 = vmul.f32 %v85, %v109
  %v120 = vmul.f32 %v86, %v108
  %v121 = vmul.f32 %v87, %v109
  %v122 = vmul.f32 %v88, %v108
  %v123 = vmul.f32 %v89, %v109
  %v124 = vmul.f32 %v90, %v108
  %v125 = vmul.f32 %v91, %v109
  %v126 = vmul.f32 %v92, %v108
  %v127 = vmul.f32 %v93, %v109
  %v128 = vmul.f32 %v94, %v108
  %v129 = vmul.f32 %v95, %v109
  %v130 = vmul.f32 %v96, %v108
  %v131 = vmul.f32 %v97, %v109
  %v132 = vmul.f32 %v98, %v108
  %v133 = vmul.f32 %v99, %v109
  %v134 = vmul.f32 %v100, %v108
  %v135 = vmul.f32 %v101, %v109
  %v136 = vmul.f32 %v102, %v108
  %v137 = vmul.f32 %v103, %v109
  %v138 = vmul.f32 %v104, %v108
  %v139 = vmul.f32 %v105, %v109
  %v140 = vmul.f32 %v106, %v108
  %v141 = vmul.f32 %v107, %v109
  %v142 = vpack.c.bf16 %v111, %v110
  %v143 = vpack.c.bf16 %v113, %v112
  %v144 = vpack.c.bf16 %v115, %v114
  %v145 = vpack.c.bf16 %v117, %v116
  %v146 = vpack.c.bf16 %v119, %v118
  %v147 = vpack.c.bf16 %v121, %v120
  %v148 = vpack.c.bf16 %v123, %v122
  %v149 = vpack.c.bf16 %v125, %v124
  %v150 = vpack.c.bf16 %v127, %v126
  %v151 = vpack.c.bf16 %v129, %v128
  %v152 = vpack.c.bf16 %v131, %v130
  %v153 = vpack.c.bf16 %v133, %v132
  %v154 = vpack.c.bf16 %v135, %v134
  %v155 = vpack.c.bf16 %v137, %v136
  %v156 = vpack.c.bf16 %v139, %v138
  %v157 = vpack.c.bf16 %v141, %v140
  %v158 = vld [vmem:[%s2] sm:$0x3]
  %160 = vst [vmem:[#allocation1] ss:$9 sm:$0xff] %v158
  %v161 = vld [vmem:[#allocation1] sm:$0xff]
  %v162 = vld [vmem:[#allocation1 + $0x9] sm:$0xff]
  %v163 = vpack.i.b16 %v161, %v161
  %v165 = vperm.slane %v163, 0
  %v166 = vpack.i.b16 %v162, %v162
  %v168 = vperm.slane %v166, 0
  %v169 = vunpack.c.l.bf16 %v142
  %v170 = vunpack.c.h.bf16 %v142
  %v171 = vunpack.c.l.bf16 %v143
  %v172 = vunpack.c.h.bf16 %v143
  %v173 = vunpack.c.l.bf16 %v144
  %v174 = vunpack.c.h.bf16 %v144
  %v175 = vunpack.c.l.bf16 %v145
  %v176 = vunpack.c.h.bf16 %v145
  %v177 = vunpack.c.l.bf16 %v146
  %v178 = vunpack.c.h.bf16 %v146
  %v179 = vunpack.c.l.bf16 %v147
  %v180 = vunpack.c.h.bf16 %v147
  %v181 = vunpack.c.l.bf16 %v148
  %v182 = vunpack.c.h.bf16 %v148
  %v183 = vunpack.c.l.bf16 %v149
  %v184 = vunpack.c.h.bf16 %v149
  %v185 = vunpack.c.l.bf16 %v150
  %v186 = vunpack.c.h.bf16 %v150
  %v187 = vunpack.c.l.bf16 %v151
  %v188 = vunpack.c.h.bf16 %v151
  %v189 = vunpack.c.l.bf16 %v152
  %v190 = vunpack.c.h.bf16 %v152
  %v191 = vunpack.c.l.bf16 %v153
  %v192 = vunpack.c.h.bf16 %v153
  %v193 = vunpack.c.l.bf16 %v154
  %v194 = vunpack.c.h.bf16 %v154
  %v195 = vunpack.c.l.bf16 %v155
  %v196 = vunpack.c.h.bf16 %v155
  %v197 = vunpack.c.l.bf16 %v156
  %v198 = vunpack.c.h.bf16 %v156
  %v199 = vunpack.c.l.bf16 %v157
  %v200 = vunpack.c.h.bf16 %v157
  %v201 = vunpack.c.l.bf16 %v165
  %v202 = vunpack.c.l.bf16 %v168
  %v203 = vadd.f32 %v169, %v201
  %v204 = vadd.f32 %v170, %v202
  %v205 = vadd.f32 %v171, %v201
  %v206 = vadd.f32 %v172, %v202
  %v207 = vadd.f32 %v173, %v201
  %v208 = vadd.f32 %v174, %v202
  %v209 = vadd.f32 %v175, %v201
  %v210 = vadd.f32 %v176, %v202
  %v211 = vadd.f32 %v177, %v201
  %v212 = vadd.f32 %v178, %v202
  %v213 = vadd.f32 %v179, %v201
  %v214 = vadd.f32 %v180, %v202
  %v215 = vadd.f32 %v181, %v201
  %v216 = vadd.f32 %v182, %v202
  %v217 = vadd.f32 %v183, %v201
  %v218 = vadd.f32 %v184, %v202
  %v219 = vadd.f32 %v185, %v201
  %v220 = vadd.f32 %v186, %v202
  %v221 = vadd.f32 %v187, %v201
  %v222 = vadd.f32 %v188, %v202
  %v223 = vadd.f32 %v189, %v201
  %v224 = vadd.f32 %v190, %v202
  %v225 = vadd.f32 %v191, %v201
  %v226 = vadd.f32 %v192, %v202
  %v227 = vadd.f32 %v193, %v201
  %v228 = vadd.f32 %v194, %v202
  %v229 = vadd.f32 %v195, %v201
  %v230 = vadd.f32 %v196, %v202
  %v231 = vadd.f32 %v197, %v201
  %v232 = vadd.f32 %v198, %v202
  %v233 = vadd.f32 %v199, %v201
  %v234 = vadd.f32 %v200, %v202
  %v235 = vpack.c.bf16 %v204, %v203
  %v236 = vpack.c.bf16 %v206, %v205
  %v237 = vpack.c.bf16 %v208, %v207
  %v238 = vpack.c.bf16 %v210, %v209
  %v239 = vpack.c.bf16 %v212, %v211
  %v240 = vpack.c.bf16 %v214, %v213
  %v241 = vpack.c.bf16 %v216, %v215
  %v242 = vpack.c.bf16 %v218, %v217
  %v243 = vpack.c.bf16 %v220, %v219
  %v244 = vpack.c.bf16 %v222, %v221
  %v245 = vpack.c.bf16 %v224, %v223
  %v246 = vpack.c.bf16 %v226, %v225
  %v247 = vpack.c.bf16 %v228, %v227
  %v248 = vpack.c.bf16 %v230, %v229
  %v249 = vpack.c.bf16 %v232, %v231
  %v250 = vpack.c.bf16 %v234, %v233
  %v251 = vunpack.c.l.bf16 %v235
  %v252 = vunpack.c.h.bf16 %v235
  %v253 = vunpack.c.l.bf16 %v236
  %v254 = vunpack.c.h.bf16 %v236
  %v255 = vunpack.c.l.bf16 %v237
  %v256 = vunpack.c.h.bf16 %v237
  %v257 = vunpack.c.l.bf16 %v238
  %v258 = vunpack.c.h.bf16 %v238
  %v259 = vunpack.c.l.bf16 %v239
  %v260 = vunpack.c.h.bf16 %v239
  %v261 = vunpack.c.l.bf16 %v240
  %v262 = vunpack.c.h.bf16 %v240
  %v263 = vunpack.c.l.bf16 %v241
  %v264 = vunpack.c.h.bf16 %v241
  %v265 = vunpack.c.l.bf16 %v242
  %v266 = vunpack.c.h.bf16 %v242
  %v267 = vunpack.c.l.bf16 %v243
  %v268 = vunpack.c.h.bf16 %v243
  %v269 = vunpack.c.l.bf16 %v244
  %v270 = vunpack.c.h.bf16 %v244
  %v271 = vunpack.c.l.bf16 %v245
  %v272 = vunpack.c.h.bf16 %v245
  %v273 = vunpack.c.l.bf16 %v246
  %v274 = vunpack.c.h.bf16 %v246
  %v275 = vunpack.c.l.bf16 %v247
  %v276 = vunpack.c.h.bf16 %v247
  %v277 = vunpack.c.l.bf16 %v248
  %v278 = vunpack.c.h.bf16 %v248
  %v279 = vunpack.c.l.bf16 %v249
  %v280 = vunpack.c.h.bf16 %v249
  %v281 = vunpack.c.l.bf16 %v250
  %v282 = vunpack.c.h.bf16 %v250
  %v283 = vmax.f32 %v251, 0.0
  %v284 = vmax.f32 %v252, 0.0
  %v285 = vmax.f32 %v253, 0.0
  %v286 = vmax.f32 %v254, 0.0
  %v287 = vmax.f32 %v255, 0.0
  %v288 = vmax.f32 %v256, 0.0
  %v289 = vmax.f32 %v257, 0.0
  %v290 = vmax.f32 %v258, 0.0
  %v291 = vmax.f32 %v259, 0.0
  %v292 = vmax.f32 %v260, 0.0
  %v293 = vmax.f32 %v261, 0.0
  %v294 = vmax.f32 %v262, 0.0
  %v295 = vmax.f32 %v263, 0.0
  %v296 = vmax.f32 %v264, 0.0
  %v297 = vmax.f32 %v265, 0.0
  %v298 = vmax.f32 %v266, 0.0
  %v299 = vmax.f32 %v267, 0.0
  %v300 = vmax.f32 %v268, 0.0
  %v301 = vmax.f32 %v269, 0.0
  %v302 = vmax.f32 %v270, 0.0
  %v303 = vmax.f32 %v271, 0.0
  %v304 = vmax.f32 %v272, 0.0
  %v305 = vmax.f32 %v273, 0.0
  %v306 = vmax.f32 %v274, 0.0
  %v307 = vmax.f32 %v275, 0.0
  %v308 = vmax.f32 %v276, 0.0
  %v309 = vmax.f32 %v277, 0.0
  %v310 = vmax.f32 %v278, 0.0
  %v311 = vmax.f32 %v279, 0.0
  %v312 = vmax.f32 %v280, 0.0
  %v313 = vmax.f32 %v281, 0.0
  %v314 = vmax.f32 %v282, 0.0
  %v315 = vpack.c.bf16 %v285, %v283
  %v316 = vpack.c.bf16 %v286, %v284
  %v317 = vpack.c.bf16 %v289, %v287
  %v318 = vpack.c.bf16 %v290, %v288
  %v319 = vpack.c.bf16 %v293, %v291
  %v320 = vpack.c.bf16 %v294, %v292
  %v321 = vpack.c.bf16 %v297, %v295
  %v322 = vpack.c.bf16 %v298, %v296
  %v323 = vpack.c.bf16 %v301, %v299
  %v324 = vpack.c.bf16 %v302, %v300
  %v325 = vpack.c.bf16 %v305, %v303
  %v326 = vpack.c.bf16 %v306, %v304
  %v327 = vpack.c.bf16 %v309, %v307
  %v328 = vpack.c.bf16 %v310, %v308
  %v329 = vpack.c.bf16 %v313, %v311
  %v330 = vpack.c.bf16 %v314, %v312
  %v363 = vunpack.c.l.b16 %v33
  %v364 = vunpack.c.l.b16 %v34
  %v365 = vunpack.c.l.b16 %v35
  %v366 = vunpack.c.l.b16 %v36
  %v367 = vunpack.c.l.b16 %v37
  %v368 = vunpack.c.l.b16 %v38
  %v369 = vunpack.c.l.b16 %v39
  %v370 = vunpack.c.l.b16 %v40
  %v371 = vunpack.c.l.b16 %v41
  %v372 = vunpack.c.l.b16 %v42
  %v373 = vunpack.c.l.b16 %v43
  %v374 = vunpack.c.l.b16 %v44
  %v375 = vunpack.c.l.b16 %v45
  %v376 = vunpack.c.l.b16 %v46
  %v377 = vunpack.c.l.b16 %v47
  %v378 = vunpack.c.l.b16 %v48
  %v379 = vunpack.c.l.b16 %v49
  %v380 = vunpack.c.l.b16 %v50
  %v381 = vunpack.c.l.b16 %v51
  %v382 = vunpack.c.l.b16 %v52
  %v383 = vunpack.c.l.b16 %v53
  %v384 = vunpack.c.l.b16 %v54
  %v385 = vunpack.c.l.b16 %v55
  %v386 = vunpack.c.l.b16 %v56
  %v387 = vunpack.c.l.b16 %v57
  %v388 = vunpack.c.l.b16 %v58
  %v389 = vunpack.c.l.b16 %v59
  %v390 = vunpack.c.l.b16 %v60
  %v391 = vunpack.c.l.b16 %v61
  %v392 = vunpack.c.l.b16 %v62
  %v393 = vunpack.c.l.b16 %v63
  %v394 = vunpack.c.l.b16 %v64
  %v395 = vpack.c.b16 %v364, %v363
  %v396 = vpack.c.b16 %v366, %v365
  %v397 = vpack.c.b16 %v368, %v367
  %v398 = vpack.c.b16 %v370, %v369
  %v399 = vpack.c.b16 %v372, %v371
  %v400 = vpack.c.b16 %v374, %v373
  %v401 = vpack.c.b16 %v376, %v375
  %v402 = vpack.c.b16 %v378, %v377
  %v403 = vpack.c.b16 %v380, %v379
  %v404 = vpack.c.b16 %v382, %v381
  %v405 = vpack.c.b16 %v384, %v383
  %v406 = vpack.c.b16 %v386, %v385
  %v407 = vpack.c.b16 %v388, %v387
  %v408 = vpack.c.b16 %v390, %v389
  %v409 = vpack.c.b16 %v392, %v391
  %v410 = vpack.c.b16 %v394, %v393
  %427 = vmatpush.bf16.msra.mxu0 %v402
  %428 = vmatpush.bf16.msra.mxu0 %v401
  %429 = vmatpush.bf16.msra.mxu0 %v400
  %430 = vmatpush.bf16.msra.mxu0 %v399
  %431 = vmatpush.bf16.msra.mxu0 %v398
  %432 = vmatpush.bf16.msra.mxu0 %v397
  %433 = vmatpush.bf16.msra.mxu0 %v396
  %434 = vmatpush.bf16.msra.mxu0 %v395
  %435 = vmatmul.bf16.gmra.mxu0 %v315
  %v436 = vpop.f32.mrf.mxu0
  %v437 = vadd.f32 0.0, %v436
  %v438 = vpop.f32.mrf.mxu0
  %v439 = vadd.f32 0.0, %v438
  %440 = vmatmul.bf16.gmra.mxu0 %v317
  %v441 = vpop.f32.mrf.mxu0
  %v442 = vadd.f32 0.0, %v441
  %v443 = vpop.f32.mrf.mxu0
  %v444 = vadd.f32 0.0, %v443
  %445 = vmatmul.bf16.gmra.mxu0 %v319
  %v446 = vpop.f32.mrf.mxu0
  %v447 = vadd.f32 0.0, %v446
  %v448 = vpop.f32.mrf.mxu0
  %v449 = vadd.f32 0.0, %v448
  %450 = vmatmul.bf16.gmra.mxu0 %v321
  %v451 = vpop.f32.mrf.mxu0
  %v452 = vadd.f32 0.0, %v451
  %v453 = vpop.f32.mrf.mxu0
  %v454 = vadd.f32 0.0, %v453
  %455 = vmatmul.bf16.gmra.mxu0 %v323
  %v456 = vpop.f32.mrf.mxu0
  %v457 = vadd.f32 0.0, %v456
  %v458 = vpop.f32.mrf.mxu0
  %v459 = vadd.f32 0.0, %v458
  %460 = vmatmul.bf16.gmra.mxu0 %v325
  %v461 = vpop.f32.mrf.mxu0
  %v462 = vadd.f32 0.0, %v461
  %v463 = vpop.f32.mrf.mxu0
  %v464 = vadd.f32 0.0, %v463
  %465 = vmatmul.bf16.gmra.mxu0 %v327
  %v466 = vpop.f32.mrf.mxu0
  %v467 = vadd.f32 0.0, %v466
  %v468 = vpop.f32.mrf.mxu0
  %v469 = vadd.f32 0.0, %v468
  %470 = vmatmul.bf16.gmra.mxu0 %v329
  %v471 = vpop.f32.mrf.mxu0
  %v472 = vadd.f32 0.0, %v471
  %v473 = vpop.f32.mrf.mxu0
  %v474 = vadd.f32 0.0, %v473
  %475 = vdwg.mxu0
  %476 = vmatpush.bf16.msra.mxu0 %v410
  %477 = vmatpush.bf16.msra.mxu0 %v409
  %478 = vmatpush.bf16.msra.mxu0 %v408
  %479 = vmatpush.bf16.msra.mxu0 %v407
  %480 = vmatpush.bf16.msra.mxu0 %v406
  %481 = vmatpush.bf16.msra.mxu0 %v405
  %482 = vmatpush.bf16.msra.mxu0 %v404
  %483 = vmatpush.bf16.msra.mxu0 %v403
  %484 = vmatmul.bf16.gmra.mxu0 %v316
  %v485 = vpop.f32.mrf.mxu0
  %v486 = vadd.f32 %v437, %v485
  %v487 = vpop.f32.mrf.mxu0
  %v488 = vadd.f32 %v439, %v487
  %489 = vmatmul.bf16.gmra.mxu0 %v318
  %v490 = vpop.f32.mrf.mxu0
  %v491 = vadd.f32 %v442, %v490
  %v492 = vpop.f32.mrf.mxu0
  %v493 = vadd.f32 %v444, %v492
  %494 = vmatmul.bf16.gmra.mxu0 %v320
  %v495 = vpop.f32.mrf.mxu0
  %v496 = vadd.f32 %v447, %v495
  %v497 = vpop.f32.mrf.mxu0
  %v498 = vadd.f32 %v449, %v497
  %499 = vmatmul.bf16.gmra.mxu0 %v322
  %v500 = vpop.f32.mrf.mxu0
  %v501 = vadd.f32 %v452, %v500
  %v502 = vpop.f32.mrf.mxu0
  %v503 = vadd.f32 %v454, %v502
  %504 = vmatmul.bf16.gmra.mxu0 %v324
  %v505 = vpop.f32.mrf.mxu0
  %v506 = vadd.f32 %v457, %v505
  %v507 = vpop.f32.mrf.mxu0
  %v508 = vadd.f32 %v459, %v507
  %509 = vmatmul.bf16.gmra.mxu0 %v326
  %v510 = vpop.f32.mrf.mxu0
  %v511 = vadd.f32 %v462, %v510
  %v512 = vpop.f32.mrf.mxu0
  %v513 = vadd.f32 %v464, %v512
  %514 = vmatmul.bf16.gmra.mxu0 %v328
  %v515 = vpop.f32.mrf.mxu0
  %v516 = vadd.f32 %v467, %v515
  %v517 = vpop.f32.mrf.mxu0
  %v518 = vadd.f32 %v469, %v517
  %519 = vmatmul.bf16.gmra.mxu0 %v330
  %v520 = vpop.f32.mrf.mxu0
  %v521 = vadd.f32 %v472, %v520
  %v522 = vpop.f32.mrf.mxu0
  %v523 = vadd.f32 %v474, %v522
  %524 = vdwg.mxu0
  %v525 = vpack.c.bf16 %v486, %v486
  %v526 = vpack.c.bf16 %v488, %v488
  %v527 = vpack.c.bf16 %v491, %v491
  %v528 = vpack.c.bf16 %v493, %v493
  %v529 = vpack.c.bf16 %v496, %v496
  %v530 = vpack.c.bf16 %v498, %v498
  %v531 = vpack.c.bf16 %v501, %v501
  %v532 = vpack.c.bf16 %v503, %v503
  %v533 = vpack.c.bf16 %v506, %v506
  %v534 = vpack.c.bf16 %v508, %v508
  %v535 = vpack.c.bf16 %v511, %v511
  %v536 = vpack.c.bf16 %v513, %v513
  %v537 = vpack.c.bf16 %v516, %v516
  %v538 = vpack.c.bf16 %v518, %v518
  %v539 = vpack.c.bf16 %v521, %v521
  %v540 = vpack.c.bf16 %v523, %v523
  %541 = vst [vmem:[%s4] sm:$0xf] %v525
  %542 = vst [vmem:[%s4 + $0x4] sm:$0xf] %v526
  %543 = vst [vmem:[%s4 + $0x8] sm:$0xf] %v527
  %544 = vst [vmem:[%s4 + $0xc] sm:$0xf] %v528
  %545 = vst [vmem:[%s4 + $0x10] sm:$0xf] %v529
  %546 = vst [vmem:[%s4 + $0x14] sm:$0xf] %v530
  %547 = vst [vmem:[%s4 + $0x18] sm:$0xf] %v531
  %548 = vst [vmem:[%s4 + $0x1c] sm:$0xf] %v532
  %549 = vst [vmem:[%s4 + $0x20] sm:$0xf] %v533
  %550 = vst [vmem:[%s4 + $0x24] sm:$0xf] %v534
  %551 = vst [vmem:[%s4 + $0x28] sm:$0xf] %v535
  %552 = vst [vmem:[%s4 + $0x2c] sm:$0xf] %v536
  %553 = vst [vmem:[%s4 + $0x30] sm:$0xf] %v537
  %554 = vst [vmem:[%s4 + $0x34] sm:$0xf] %v538
  %555 = vst [vmem:[%s4 + $0x38] sm:$0xf] %v539
  %556 = vst [vmem:[%s4 + $0x3c] sm:$0xf] %v540
  // Predicated region
  $region18: #{densenet121_forward.134} parent=0 // pred_check
    _
  $region19: #{densenet121_forward.134} parent=0 // pred_check_branch
    %558 = sbr.rel (0) target = $region21
  $region20: #{densenet121_forward.134} parent=0 // pred_region
    _
  $region21: #{densenet121_forward.134} parent=0 // pred_fallthru
    _
  // Predicated region
  $region22: #{densenet121_forward.134} parent=0 // pred_check
    _
  $region23: #{densenet121_forward.134} parent=0 // pred_check_branch
    %560 = sbr.rel (0) target = $region25
  $region24: #{densenet121_forward.134} parent=0 // pred_region
    _
  $region25: #{densenet121_forward.134} parent=0 // pred_fallthru
    _

// kernel: densenet121_forward.135
$region0: #{densenet121_forward.135}
  #allocation0 [shape = 'u32[]', space=smem, size = 0x4, offset = 0x4, fixed_abs, tag = 'smem constant byte address 0x4 - core index']
  #allocation1 [shape = 'u32[72,128]{1,0:T(1,128)}', space=vmem, size = 0x9000, scoped, tag = 'internal scratch']
  %s0 = inlined_call_operand.vmem [shape: bf16[32,512], index: 0, kind: input, shape index: {}]
  %s1 = inlined_call_operand.vmem [shape: bf16[1,512], index: 1, kind: input, shape index: {}]
  %s2 = inlined_call_operand.vmem [shape: bf16[1,512], index: 2, kind: input, shape index: {}]
  %s3 = inlined_call_operand.vmem [shape: bf16[512,128], index: 3, kind: input, shape index: {}]
  %s4 = inlined_call_operand.vmem [shape: f32[1,128], index: 4, kind: input, shape index: {}]
  %s5 = inlined_call_operand.vmem [shape: f32[1,128], index: 5, kind: input, shape index: {}]
  %s6 = inlined_call_operand.vmem [shape: bf16[32,128], index: 6, kind: output, shape index: {}]
  %s7 = sld [smem:[#allocation0]]
  $region34: #{densenet121_forward.135} parent=0
    _
  %s9 = ssub.s32 1, %s7
  %s10 = scalar_select 0, %s9, %s7
  // Predicated region
  $region2: #{densenet121_forward.135} parent=0 // pred_check
    _
  $region3: #{densenet121_forward.135} parent=0 // pred_check_branch
    %12 = sbr.rel (0) target = $region5
  $region4: #{densenet121_forward.135} parent=0 // pred_region
    _
  $region5: #{densenet121_forward.135} parent=0 // pred_fallthru
    _
  // Predicated region
  $region6: #{densenet121_forward.135} parent=0 // pred_check
    _
  $region7: #{densenet121_forward.135} parent=0 // pred_check_branch
    %14 = sbr.rel (0) target = $region9
  $region8: #{densenet121_forward.135} parent=0 // pred_region
    _
  $region9: #{densenet121_forward.135} parent=0 // pred_fallthru
    _
  // Predicated region
  $region10: #{densenet121_forward.135} parent=0 // pred_check
    _
  $region11: #{densenet121_forward.135} parent=0 // pred_check_branch
    %16 = sbr.rel (0) target = $region13
  $region12: #{densenet121_forward.135} parent=0 // pred_region
    _
  $region13: #{densenet121_forward.135} parent=0 // pred_fallthru
    _
  // Predicated region
  $region14: #{densenet121_forward.135} parent=0 // pred_check
    _
  $region15: #{densenet121_forward.135} parent=0 // pred_check_branch
    %18 = sbr.rel (0) target = $region17
  $region16: #{densenet121_forward.135} parent=0 // pred_region
    _
  $region17: #{densenet121_forward.135} parent=0 // pred_fallthru
    _
  // Predicated region
  $region18: #{densenet121_forward.135} parent=0 // pred_check
    _
  $region19: #{densenet121_forward.135} parent=0 // pred_check_branch
    %20 = sbr.rel (0) target = $region21
  $region20: #{densenet121_forward.135} parent=0 // pred_region
    _
  $region21: #{densenet121_forward.135} parent=0 // pred_fallthru
    _
  // Predicated region
  $region22: #{densenet121_forward.135} parent=0 // pred_check
    _
  $region23: #{densenet121_forward.135} parent=0 // pred_check_branch
    %22 = sbr.rel (0) target = $region25
  $region24: #{densenet121_forward.135} parent=0 // pred_region
    _
  $region25: #{densenet121_forward.135} parent=0 // pred_fallthru
    _
  %v23 = vld [vmem:[%s0] sm:$0xff]
  %v24 = vld [vmem:[%s0 + $0x8] sm:$0xff]
  %v25 = vld [vmem:[%s0 + $0x10] sm:$0xff]
  %v26 = vld [vmem:[%s0 + $0x18] sm:$0xff]
  %v27 = vld [vmem:[%s0 + $0x20] sm:$0xff]
  %v28 = vld [vmem:[%s0 + $0x28] sm:$0xff]
  %v29 = vld [vmem:[%s0 + $0x30] sm:$0xff]
  %v30 = vld [vmem:[%s0 + $0x38] sm:$0xff]
  %v31 = vld [vmem:[%s3] sm:$0xf]
  %v32 = vld [vmem:[%s3 + $0x4] sm:$0xf]
  %v33 = vld [vmem:[%s3 + $0x8] sm:$0xf]
  %v34 = vld [vmem:[%s3 + $0xc] sm:$0xf]
  %v35 = vld [vmem:[%s3 + $0x10] sm:$0xf]
  %v36 = vld [vmem:[%s3 + $0x14] sm:$0xf]
  %v37 = vld [vmem:[%s3 + $0x18] sm:$0xf]
  %v38 = vld [vmem:[%s3 + $0x1c] sm:$0xf]
  %v39 = vld [vmem:[%s3 + $0x20] sm:$0xf]
  %v40 = vld [vmem:[%s3 + $0x24] sm:$0xf]
  %v41 = vld [vmem:[%s3 + $0x28] sm:$0xf]
  %v42 = vld [vmem:[%s3 + $0x2c] sm:$0xf]
  %v43 = vld [vmem:[%s3 + $0x30] sm:$0xf]
  %v44 = vld [vmem:[%s3 + $0x34] sm:$0xf]
  %v45 = vld [vmem:[%s3 + $0x38] sm:$0xf]
  %v46 = vld [vmem:[%s3 + $0x3c] sm:$0xf]
  %v47 = vld [vmem:[%s3 + $0x40] sm:$0xf]
  %v48 = vld [vmem:[%s3 + $0x44] sm:$0xf]
  %v49 = vld [vmem:[%s3 + $0x48] sm:$0xf]
  %v50 = vld [vmem:[%s3 + $0x4c] sm:$0xf]
  %v51 = vld [vmem:[%s3 + $0x50] sm:$0xf]
  %v52 = vld [vmem:[%s3 + $0x54] sm:$0xf]
  %v53 = vld [vmem:[%s3 + $0x58] sm:$0xf]
  %v54 = vld [vmem:[%s3 + $0x5c] sm:$0xf]
  %v55 = vld [vmem:[%s3 + $0x60] sm:$0xf]
  %v56 = vld [vmem:[%s3 + $0x64] sm:$0xf]
  %v57 = vld [vmem:[%s3 + $0x68] sm:$0xf]
  %v58 = vld [vmem:[%s3 + $0x6c] sm:$0xf]
  %v59 = vld [vmem:[%s3 + $0x70] sm:$0xf]
  %v60 = vld [vmem:[%s3 + $0x74] sm:$0xf]
  %v61 = vld [vmem:[%s3 + $0x78] sm:$0xf]
  %v62 = vld [vmem:[%s3 + $0x7c] sm:$0xf]
  %v63 = vld [vmem:[%s3 + $0x80] sm:$0xf]
  %v64 = vld [vmem:[%s3 + $0x84] sm:$0xf]
  %v65 = vld [vmem:[%s3 + $0x88] sm:$0xf]
  %v66 = vld [vmem:[%s3 + $0x8c] sm:$0xf]
  %v67 = vld [vmem:[%s3 + $0x90] sm:$0xf]
  %v68 = vld [vmem:[%s3 + $0x94] sm:$0xf]
  %v69 = vld [vmem:[%s3 + $0x98] sm:$0xf]
  %v70 = vld [vmem:[%s3 + $0x9c] sm:$0xf]
  %v71 = vld [vmem:[%s3 + $0xa0] sm:$0xf]
  %v72 = vld [vmem:[%s3 + $0xa4] sm:$0xf]
  %v73 = vld [vmem:[%s3 + $0xa8] sm:$0xf]
  %v74 = vld [vmem:[%s3 + $0xac] sm:$0xf]
  %v75 = vld [vmem:[%s3 + $0xb0] sm:$0xf]
  %v76 = vld [vmem:[%s3 + $0xb4] sm:$0xf]
  %v77 = vld [vmem:[%s3 + $0xb8] sm:$0xf]
  %v78 = vld [vmem:[%s3 + $0xbc] sm:$0xf]
  %v79 = vld [vmem:[%s3 + $0xc0] sm:$0xf]
  %v80 = vld [vmem:[%s3 + $0xc4] sm:$0xf]
  %v81 = vld [vmem:[%s3 + $0xc8] sm:$0xf]
  %v82 = vld [vmem:[%s3 + $0xcc] sm:$0xf]
  %v83 = vld [vmem:[%s3 + $0xd0] sm:$0xf]
  %v84 = vld [vmem:[%s3 + $0xd4] sm:$0xf]
  %v85 = vld [vmem:[%s3 + $0xd8] sm:$0xf]
  %v86 = vld [vmem:[%s3 + $0xdc] sm:$0xf]
  %v87 = vld [vmem:[%s3 + $0xe0] sm:$0xf]
  %v88 = vld [vmem:[%s3 + $0xe4] sm:$0xf]
  %v89 = vld [vmem:[%s3 + $0xe8] sm:$0xf]
  %v90 = vld [vmem:[%s3 + $0xec] sm:$0xf]
  %v91 = vld [vmem:[%s3 + $0xf0] sm:$0xf]
  %v92 = vld [vmem:[%s3 + $0xf4] sm:$0xf]
  %v93 = vld [vmem:[%s3 + $0xf8] sm:$0xf]
  %v94 = vld [vmem:[%s3 + $0xfc] sm:$0xf]
  %v95 = vld [vmem:[%s1] sm:$0xf]
  %97 = vst [vmem:[#allocation1] ss:$9 sm:$0xff] %v95
  %v98 = vld [vmem:[#allocation1] sm:$0xff]
  %v99 = vld [vmem:[#allocation1 + $0x9] sm:$0xff]
  %v100 = vld [vmem:[#allocation1 + $0x12] sm:$0xff]
  %v101 = vld [vmem:[#allocation1 + $0x1b] sm:$0xff]
  %v102 = vpack.i.b16 %v98, %v98
  %v104 = vperm.slane %v102, 0
  %v105 = vpack.i.b16 %v99, %v99
  %v107 = vperm.slane %v105, 0
  %v108 = vpack.i.b16 %v100, %v100
  %v110 = vperm.slane %v108, 0
  %v111 = vpack.i.b16 %v101, %v101
  %v113 = vperm.slane %v111, 0
  %v114 = vunpack.c.l.bf16 %v23
  %v115 = vunpack.c.h.bf16 %v23
  %v116 = vunpack.c.l.bf16 %v24
  %v117 = vunpack.c.h.bf16 %v24
  %v118 = vunpack.c.l.bf16 %v25
  %v119 = vunpack.c.h.bf16 %v25
  %v120 = vunpack.c.l.bf16 %v26
  %v121 = vunpack.c.h.bf16 %v26
  %v122 = vunpack.c.l.bf16 %v27
  %v123 = vunpack.c.h.bf16 %v27
  %v124 = vunpack.c.l.bf16 %v28
  %v125 = vunpack.c.h.bf16 %v28
  %v126 = vunpack.c.l.bf16 %v29
  %v127 = vunpack.c.h.bf16 %v29
  %v128 = vunpack.c.l.bf16 %v30
  %v129 = vunpack.c.h.bf16 %v30
  %v130 = vunpack.c.l.bf16 %v104
  %v131 = vunpack.c.l.bf16 %v107
  %v132 = vunpack.c.l.bf16 %v110
  %v133 = vunpack.c.l.bf16 %v113
  %v134 = vmul.f32 %v114, %v130
  %v135 = vmul.f32 %v115, %v131
  %v136 = vmul.f32 %v116, %v132
  %v137 = vmul.f32 %v117, %v133
  %v138 = vmul.f32 %v118, %v130
  %v139 = vmul.f32 %v119, %v131
  %v140 = vmul.f32 %v120, %v132
  %v141 = vmul.f32 %v121, %v133
  %v142 = vmul.f32 %v122, %v130
  %v143 = vmul.f32 %v123, %v131
  %v144 = vmul.f32 %v124, %v132
  %v145 = vmul.f32 %v125, %v133
  %v146 = vmul.f32 %v126, %v130
  %v147 = vmul.f32 %v127, %v131
  %v148 = vmul.f32 %v128, %v132
  %v149 = vmul.f32 %v129, %v133
  %v150 = vpack.c.bf16 %v135, %v134
  %v151 = vpack.c.bf16 %v137, %v136
  %v152 = vpack.c.bf16 %v139, %v138
  %v153 = vpack.c.bf16 %v141, %v140
  %v154 = vpack.c.bf16 %v143, %v142
  %v155 = vpack.c.bf16 %v145, %v144
  %v156 = vpack.c.bf16 %v147, %v146
  %v157 = vpack.c.bf16 %v149, %v148
  %v158 = vld [vmem:[%s2] sm:$0xf]
  %160 = vst [vmem:[#allocation1] ss:$9 sm:$0xff] %v158
  %v161 = vld [vmem:[#allocation1] sm:$0xff]
  %v162 = vld [vmem:[#allocation1 + $0x9] sm:$0xff]
  %v163 = vld [vmem:[#allocation1 + $0x12] sm:$0xff]
  %v164 = vld [vmem:[#allocation1 + $0x1b] sm:$0xff]
  %v165 = vpack.i.b16 %v161, %v161
  %v167 = vperm.slane %v165, 0
  %v168 = vpack.i.b16 %v162, %v162
  %v170 = vperm.slane %v168, 0
  %v171 = vpack.i.b16 %v163, %v163
  %v173 = vperm.slane %v171, 0
  %v174 = vpack.i.b16 %v164, %v164
  %v176 = vperm.slane %v174, 0
  %v177 = vunpack.c.l.bf16 %v150
  %v178 = vunpack.c.h.bf16 %v150
  %v179 = vunpack.c.l.bf16 %v151
  %v180 = vunpack.c.h.bf16 %v151
  %v181 = vunpack.c.l.bf16 %v152
  %v182 = vunpack.c.h.bf16 %v152
  %v183 = vunpack.c.l.bf16 %v153
  %v184 = vunpack.c.h.bf16 %v153
  %v185 = vunpack.c.l.bf16 %v154
  %v186 = vunpack.c.h.bf16 %v154
  %v187 = vunpack.c.l.bf16 %v155
  %v188 = vunpack.c.h.bf16 %v155
  %v189 = vunpack.c.l.bf16 %v156
  %v190 = vunpack.c.h.bf16 %v156
  %v191 = vunpack.c.l.bf16 %v157
  %v192 = vunpack.c.h.bf16 %v157
  %v193 = vunpack.c.l.bf16 %v167
  %v194 = vunpack.c.l.bf16 %v170
  %v195 = vunpack.c.l.bf16 %v173
  %v196 = vunpack.c.l.bf16 %v176
  %v197 = vadd.f32 %v177, %v193
  %v198 = vadd.f32 %v178, %v194
  %v199 = vadd.f32 %v179, %v195
  %v200 = vadd.f32 %v180, %v196
  %v201 = vadd.f32 %v181, %v193
  %v202 = vadd.f32 %v182, %v194
  %v203 = vadd.f32 %v183, %v195
  %v204 = vadd.f32 %v184, %v196
  %v205 = vadd.f32 %v185, %v193
  %v206 = vadd.f32 %v186, %v194
  %v207 = vadd.f32 %v187, %v195
  %v208 = vadd.f32 %v188, %v196
  %v209 = vadd.f32 %v189, %v193
  %v210 = vadd.f32 %v190, %v194
  %v211 = vadd.f32 %v191, %v195
  %v212 = vadd.f32 %v192, %v196
  %v213 = vpack.c.bf16 %v198, %v197
  %v214 = vpack.c.bf16 %v200, %v199
  %v215 = vpack.c.bf16 %v202, %v201
  %v216 = vpack.c.bf16 %v204, %v203
  %v217 = vpack.c.bf16 %v206, %v205
  %v218 = vpack.c.bf16 %v208, %v207
  %v219 = vpack.c.bf16 %v210, %v209
  %v220 = vpack.c.bf16 %v212, %v211
  %v221 = vunpack.c.l.bf16 %v213
  %v222 = vunpack.c.h.bf16 %v213
  %v223 = vunpack.c.l.bf16 %v214
  %v224 = vunpack.c.h.bf16 %v214
  %v225 = vunpack.c.l.bf16 %v215
  %v226 = vunpack.c.h.bf16 %v215
  %v227 = vunpack.c.l.bf16 %v216
  %v228 = vunpack.c.h.bf16 %v216
  %v229 = vunpack.c.l.bf16 %v217
  %v230 = vunpack.c.h.bf16 %v217
  %v231 = vunpack.c.l.bf16 %v218
  %v232 = vunpack.c.h.bf16 %v218
  %v233 = vunpack.c.l.bf16 %v219
  %v234 = vunpack.c.h.bf16 %v219
  %v235 = vunpack.c.l.bf16 %v220
  %v236 = vunpack.c.h.bf16 %v220
  %v237 = vmax.f32 %v221, 0.0
  %v238 = vmax.f32 %v222, 0.0
  %v239 = vmax.f32 %v223, 0.0
  %v240 = vmax.f32 %v224, 0.0
  %v241 = vmax.f32 %v225, 0.0
  %v242 = vmax.f32 %v226, 0.0
  %v243 = vmax.f32 %v227, 0.0
  %v244 = vmax.f32 %v228, 0.0
  %v245 = vmax.f32 %v229, 0.0
  %v246 = vmax.f32 %v230, 0.0
  %v247 = vmax.f32 %v231, 0.0
  %v248 = vmax.f32 %v232, 0.0
  %v249 = vmax.f32 %v233, 0.0
  %v250 = vmax.f32 %v234, 0.0
  %v251 = vmax.f32 %v235, 0.0
  %v252 = vmax.f32 %v236, 0.0
  %v253 = vpack.c.bf16 %v241, %v237
  %v254 = vpack.c.bf16 %v242, %v238
  %v255 = vpack.c.bf16 %v243, %v239
  %v256 = vpack.c.bf16 %v244, %v240
  %v257 = vpack.c.bf16 %v249, %v245
  %v258 = vpack.c.bf16 %v250, %v246
  %v259 = vpack.c.bf16 %v251, %v247
  %v260 = vpack.c.bf16 %v252, %v248
  %v325 = vunpack.c.l.b16 %v31
  %v326 = vunpack.c.l.b16 %v32
  %v327 = vunpack.c.l.b16 %v33
  %v328 = vunpack.c.l.b16 %v34
  %v329 = vunpack.c.l.b16 %v35
  %v330 = vunpack.c.l.b16 %v36
  %v331 = vunpack.c.l.b16 %v37
  %v332 = vunpack.c.l.b16 %v38
  %v333 = vunpack.c.l.b16 %v39
  %v334 = vunpack.c.l.b16 %v40
  %v335 = vunpack.c.l.b16 %v41
  %v336 = vunpack.c.l.b16 %v42
  %v337 = vunpack.c.l.b16 %v43
  %v338 = vunpack.c.l.b16 %v44
  %v339 = vunpack.c.l.b16 %v45
  %v340 = vunpack.c.l.b16 %v46
  %v341 = vunpack.c.l.b16 %v47
  %v342 = vunpack.c.l.b16 %v48
  %v343 = vunpack.c.l.b16 %v49
  %v344 = vunpack.c.l.b16 %v50
  %v345 = vunpack.c.l.b16 %v51
  %v346 = vunpack.c.l.b16 %v52
  %v347 = vunpack.c.l.b16 %v53
  %v348 = vunpack.c.l.b16 %v54
  %v349 = vunpack.c.l.b16 %v55
  %v350 = vunpack.c.l.b16 %v56
  %v351 = vunpack.c.l.b16 %v57
  %v352 = vunpack.c.l.b16 %v58
  %v353 = vunpack.c.l.b16 %v59
  %v354 = vunpack.c.l.b16 %v60
  %v355 = vunpack.c.l.b16 %v61
  %v356 = vunpack.c.l.b16 %v62
  %v357 = vunpack.c.l.b16 %v63
  %v358 = vunpack.c.l.b16 %v64
  %v359 = vunpack.c.l.b16 %v65
  %v360 = vunpack.c.l.b16 %v66
  %v361 = vunpack.c.l.b16 %v67
  %v362 = vunpack.c.l.b16 %v68
  %v363 = vunpack.c.l.b16 %v69
  %v364 = vunpack.c.l.b16 %v70
  %v365 = vunpack.c.l.b16 %v71
  %v366 = vunpack.c.l.b16 %v72
  %v367 = vunpack.c.l.b16 %v73
  %v368 = vunpack.c.l.b16 %v74
  %v369 = vunpack.c.l.b16 %v75
  %v370 = vunpack.c.l.b16 %v76
  %v371 = vunpack.c.l.b16 %v77
  %v372 = vunpack.c.l.b16 %v78
  %v373 = vunpack.c.l.b16 %v79
  %v374 = vunpack.c.l.b16 %v80
  %v375 = vunpack.c.l.b16 %v81
  %v376 = vunpack.c.l.b16 %v82
  %v377 = vunpack.c.l.b16 %v83
  %v378 = vunpack.c.l.b16 %v84
  %v379 = vunpack.c.l.b16 %v85
  %v380 = vunpack.c.l.b16 %v86
  %v381 = vunpack.c.l.b16 %v87
  %v382 = vunpack.c.l.b16 %v88
  %v383 = vunpack.c.l.b16 %v89
  %v384 = vunpack.c.l.b16 %v90
  %v385 = vunpack.c.l.b16 %v91
  %v386 = vunpack.c.l.b16 %v92
  %v387 = vunpack.c.l.b16 %v93
  %v388 = vunpack.c.l.b16 %v94
  %v389 = vpack.c.b16 %v326, %v325
  %v390 = vpack.c.b16 %v328, %v327
  %v391 = vpack.c.b16 %v330, %v329
  %v392 = vpack.c.b16 %v332, %v331
  %v393 = vpack.c.b16 %v334, %v333
  %v394 = vpack.c.b16 %v336, %v335
  %v395 = vpack.c.b16 %v338, %v337
  %v396 = vpack.c.b16 %v340, %v339
  %v397 = vpack.c.b16 %v342, %v341
  %v398 = vpack.c.b16 %v344, %v343
  %v399 = vpack.c.b16 %v346, %v345
  %v400 = vpack.c.b16 %v348, %v347
  %v401 = vpack.c.b16 %v350, %v349
  %v402 = vpack.c.b16 %v352, %v351
  %v403 = vpack.c.b16 %v354, %v353
  %v404 = vpack.c.b16 %v356, %v355
  %v405 = vpack.c.b16 %v358, %v357
  %v406 = vpack.c.b16 %v360, %v359
  %v407 = vpack.c.b16 %v362, %v361
  %v408 = vpack.c.b16 %v364, %v363
  %v409 = vpack.c.b16 %v366, %v365
  %v410 = vpack.c.b16 %v368, %v367
  %v411 = vpack.c.b16 %v370, %v369
  %v412 = vpack.c.b16 %v372, %v371
  %v413 = vpack.c.b16 %v374, %v373
  %v414 = vpack.c.b16 %v376, %v375
  %v415 = vpack.c.b16 %v378, %v377
  %v416 = vpack.c.b16 %v380, %v379
  %v417 = vpack.c.b16 %v382, %v381
  %v418 = vpack.c.b16 %v384, %v383
  %v419 = vpack.c.b16 %v386, %v385
  %v420 = vpack.c.b16 %v388, %v387
  %453 = vmatpush.bf16.msra.mxu0 %v396
  %454 = vmatpush.bf16.msra.mxu0 %v395
  %455 = vmatpush.bf16.msra.mxu0 %v394
  %456 = vmatpush.bf16.msra.mxu0 %v393
  %457 = vmatpush.bf16.msra.mxu0 %v392
  %458 = vmatpush.bf16.msra.mxu0 %v391
  %459 = vmatpush.bf16.msra.mxu0 %v390
  %460 = vmatpush.bf16.msra.mxu0 %v389
  %461 = vmatmul.bf16.gmra.mxu0 %v253
  %v462 = vpop.f32.mrf.mxu0
  %v463 = vadd.f32 0.0, %v462
  %v464 = vpop.f32.mrf.mxu0
  %v465 = vadd.f32 0.0, %v464
  %466 = vmatmul.bf16.gmra.mxu0 %v257
  %v467 = vpop.f32.mrf.mxu0
  %v468 = vadd.f32 0.0, %v467
  %v469 = vpop.f32.mrf.mxu0
  %v470 = vadd.f32 0.0, %v469
  %471 = vdwg.mxu0
  %472 = vmatpush.bf16.msra.mxu0 %v404
  %473 = vmatpush.bf16.msra.mxu0 %v403
  %474 = vmatpush.bf16.msra.mxu0 %v402
  %475 = vmatpush.bf16.msra.mxu0 %v401
  %476 = vmatpush.bf16.msra.mxu0 %v400
  %477 = vmatpush.bf16.msra.mxu0 %v399
  %478 = vmatpush.bf16.msra.mxu0 %v398
  %479 = vmatpush.bf16.msra.mxu0 %v397
  %480 = vmatmul.bf16.gmra.mxu0 %v254
  %v481 = vpop.f32.mrf.mxu0
  %v482 = vadd.f32 %v463, %v481
  %v483 = vpop.f32.mrf.mxu0
  %v484 = vadd.f32 %v465, %v483
  %485 = vmatmul.bf16.gmra.mxu0 %v258
  %v486 = vpop.f32.mrf.mxu0
  %v487 = vadd.f32 %v468, %v486
  %v488 = vpop.f32.mrf.mxu0
  %v489 = vadd.f32 %v470, %v488
  %490 = vdwg.mxu0
  %491 = vmatpush.bf16.msra.mxu0 %v412
  %492 = vmatpush.bf16.msra.mxu0 %v411
  %493 = vmatpush.bf16.msra.mxu0 %v410
  %494 = vmatpush.bf16.msra.mxu0 %v409
  %495 = vmatpush.bf16.msra.mxu0 %v408
  %496 = vmatpush.bf16.msra.mxu0 %v407
  %497 = vmatpush.bf16.msra.mxu0 %v406
  %498 = vmatpush.bf16.msra.mxu0 %v405
  %499 = vmatmul.bf16.gmra.mxu0 %v255
  %v500 = vpop.f32.mrf.mxu0
  %v501 = vadd.f32 %v482, %v500
  %v502 = vpop.f32.mrf.mxu0
  %v503 = vadd.f32 %v484, %v502
  %504 = vmatmul.bf16.gmra.mxu0 %v259
  %v505 = vpop.f32.mrf.mxu0
  %v506 = vadd.f32 %v487, %v505
  %v507 = vpop.f32.mrf.mxu0
  %v508 = vadd.f32 %v489, %v507
  %509 = vdwg.mxu0
  %510 = vmatpush.bf16.msra.mxu0 %v420
  %511 = vmatpush.bf16.msra.mxu0 %v419
  %512 = vmatpush.bf16.msra.mxu0 %v418
  %513 = vmatpush.bf16.msra.mxu0 %v417
  %514 = vmatpush.bf16.msra.mxu0 %v416
  %515 = vmatpush.bf16.msra.mxu0 %v415
  %516 = vmatpush.bf16.msra.mxu0 %v414
  %517 = vmatpush.bf16.msra.mxu0 %v413
  %518 = vmatmul.bf16.gmra.mxu0 %v256
  %v519 = vpop.f32.mrf.mxu0
  %v520 = vadd.f32 %v501, %v519
  %v521 = vpop.f32.mrf.mxu0
  %v522 = vadd.f32 %v503, %v521
  %523 = vmatmul.bf16.gmra.mxu0 %v260
  %v524 = vpop.f32.mrf.mxu0
  %v525 = vadd.f32 %v506, %v524
  %v526 = vpop.f32.mrf.mxu0
  %v527 = vadd.f32 %v508, %v526
  %528 = vdwg.mxu0
  %v529 = vld [vmem:[%s4] sm:$0x1]
  %v531 = vperm.slane %v529, 0
  %v533 = vmul.f32 %v520, %v531
  %v534 = vmul.f32 %v522, %v531
  %v535 = vmul.f32 %v525, %v531
  %v536 = vmul.f32 %v527, %v531
  %v537 = vld [vmem:[%s5] sm:$0x1]
  %v539 = vperm.slane %v537, 0
  %v541 = vadd.f32 %v533, %v539
  %v542 = vadd.f32 %v534, %v539
  %v543 = vadd.f32 %v535, %v539
  %v544 = vadd.f32 %v536, %v539
  %v545 = vmax.f32 %v541, 0.0
  %v546 = vmax.f32 %v542, 0.0
  %v547 = vmax.f32 %v543, 0.0
  %v548 = vmax.f32 %v544, 0.0
  %v549 = vpack.c.bf16 %v545, %v545
  %v550 = vpack.c.bf16 %v546, %v546
  %v551 = vpack.c.bf16 %v547, %v547
  %v552 = vpack.c.bf16 %v548, %v548
  %553 = vst [vmem:[%s6] sm:$0xf] %v549
  %554 = vst [vmem:[%s6 + $0x4] sm:$0xf] %v550
  %555 = vst [vmem:[%s6 + $0x8] sm:$0xf] %v551
  %556 = vst [vmem:[%s6 + $0xc] sm:$0xf] %v552
  // Predicated region
  $region26: #{densenet121_forward.135} parent=0 // pred_check
    _
  $region27: #{densenet121_forward.135} parent=0 // pred_check_branch
    %558 = sbr.rel (0) target = $region29
  $region28: #{densenet121_forward.135} parent=0 // pred_region
    _
  $region29: #{densenet121_forward.135} parent=0 // pred_fallthru
    _
  // Predicated region
  $region30: #{densenet121_forward.135} parent=0 // pred_check
    _
  $region31: #{densenet121_forward.135} parent=0 // pred_check_branch
    %560 = sbr.rel (0) target = $region33
  $region32: #{densenet121_forward.135} parent=0 // pred_region
    _
  $region33: #{densenet121_forward.135} parent=0 // pred_fallthru
    _

// kernel: densenet121_forward.136
$region0: #{densenet121_forward.136}
  #allocation0 [shape = 'u32[]', space=smem, size = 0x4, offset = 0x4, fixed_abs, tag = 'smem constant byte address 0x4 - core index']
  #allocation1 [shape = 'u32[72,128]{1,0:T(1,128)}', space=vmem, size = 0x9000, scoped, tag = 'internal scratch']
  %s0 = inlined_call_operand.vmem [shape: bf16[32,1152], index: 0, kind: input, shape index: {}]
  %s1 = inlined_call_operand.vmem [shape: bf16[1152,32], index: 1, kind: input, shape index: {}]
  %s2 = inlined_call_operand.vmem [shape: bf16[32,32], index: 2, kind: output, shape index: {}]
  %s3 = sld [smem:[#allocation0]]
  $region18: #{densenet121_forward.136} parent=0
    _
  %s5 = ssub.s32 1, %s3
  %s6 = scalar_select 0, %s5, %s3
  // Predicated region
  $region2: #{densenet121_forward.136} parent=0 // pred_check
    _
  $region3: #{densenet121_forward.136} parent=0 // pred_check_branch
    %8 = sbr.rel (0) target = $region5
  $region4: #{densenet121_forward.136} parent=0 // pred_region
    _
  $region5: #{densenet121_forward.136} parent=0 // pred_fallthru
    _
  // Predicated region
  $region6: #{densenet121_forward.136} parent=0 // pred_check
    _
  $region7: #{densenet121_forward.136} parent=0 // pred_check_branch
    %10 = sbr.rel (0) target = $region9
  $region8: #{densenet121_forward.136} parent=0 // pred_region
    _
  $region9: #{densenet121_forward.136} parent=0 // pred_fallthru
    _
  %v11 = vld [vmem:[%s0] sm:$0xff]
  %v12 = vld [vmem:[%s0 + $0x8] sm:$0xff]
  %v13 = vld [vmem:[%s0 + $0x10] sm:$0xff]
  %v14 = vld [vmem:[%s0 + $0x18] sm:$0xff]
  %v15 = vld [vmem:[%s0 + $0x20] sm:$0xf]
  %v16 = vld [vmem:[%s0 + $0x24] sm:$0xff]
  %v17 = vld [vmem:[%s0 + $0x2c] sm:$0xff]
  %v18 = vld [vmem:[%s0 + $0x34] sm:$0xff]
  %v19 = vld [vmem:[%s0 + $0x3c] sm:$0xff]
  %v20 = vld [vmem:[%s0 + $0x44] sm:$0xf]
  %v21 = vld [vmem:[%s0 + $0x48] sm:$0xff]
  %v22 = vld [vmem:[%s0 + $0x50] sm:$0xff]
  %v23 = vld [vmem:[%s0 + $0x58] sm:$0xff]
  %v24 = vld [vmem:[%s0 + $0x60] sm:$0xff]
  %v25 = vld [vmem:[%s0 + $0x68] sm:$0xf]
  %v26 = vld [vmem:[%s0 + $0x6c] sm:$0xff]
  %v27 = vld [vmem:[%s0 + $0x74] sm:$0xff]
  %v28 = vld [vmem:[%s0 + $0x7c] sm:$0xff]
  %v29 = vld [vmem:[%s0 + $0x84] sm:$0xff]
  %v30 = vld [vmem:[%s0 + $0x8c] sm:$0xf]
  %v31 = vld [vmem:[%s1] sm:$0xf]
  %v32 = vld [vmem:[%s1 + $0x4] sm:$0xf]
  %v33 = vld [vmem:[%s1 + $0x8] sm:$0xf]
  %v34 = vld [vmem:[%s1 + $0xc] sm:$0xf]
  %v35 = vld [vmem:[%s1 + $0x10] sm:$0xf]
  %v36 = vld [vmem:[%s1 + $0x14] sm:$0xf]
  %v37 = vld [vmem:[%s1 + $0x18] sm:$0xf]
  %v38 = vld [vmem:[%s1 + $0x1c] sm:$0xf]
  %v39 = vld [vmem:[%s1 + $0x20] sm:$0xf]
  %v40 = vld [vmem:[%s1 + $0x24] sm:$0xf]
  %v41 = vld [vmem:[%s1 + $0x28] sm:$0xf]
  %v42 = vld [vmem:[%s1 + $0x2c] sm:$0xf]
  %v43 = vld [vmem:[%s1 + $0x30] sm:$0xf]
  %v44 = vld [vmem:[%s1 + $0x34] sm:$0xf]
  %v45 = vld [vmem:[%s1 + $0x38] sm:$0xf]
  %v46 = vld [vmem:[%s1 + $0x3c] sm:$0xf]
  %v47 = vld [vmem:[%s1 + $0x40] sm:$0xf]
  %v48 = vld [vmem:[%s1 + $0x44] sm:$0xf]
  %v49 = vld [vmem:[%s1 + $0x48] sm:$0xf]
  %v50 = vld [vmem:[%s1 + $0x4c] sm:$0xf]
  %v51 = vld [vmem:[%s1 + $0x50] sm:$0xf]
  %v52 = vld [vmem:[%s1 + $0x54] sm:$0xf]
  %v53 = vld [vmem:[%s1 + $0x58] sm:$0xf]
  %v54 = vld [vmem:[%s1 + $0x5c] sm:$0xf]
  %v55 = vld [vmem:[%s1 + $0x60] sm:$0xf]
  %v56 = vld [vmem:[%s1 + $0x64] sm:$0xf]
  %v57 = vld [vmem:[%s1 + $0x68] sm:$0xf]
  %v58 = vld [vmem:[%s1 + $0x6c] sm:$0xf]
  %v59 = vld [vmem:[%s1 + $0x70] sm:$0xf]
  %v60 = vld [vmem:[%s1 + $0x74] sm:$0xf]
  %v61 = vld [vmem:[%s1 + $0x78] sm:$0xf]
  %v62 = vld [vmem:[%s1 + $0x7c] sm:$0xf]
  %v63 = vld [vmem:[%s1 + $0x80] sm:$0xf]
  %v64 = vld [vmem:[%s1 + $0x84] sm:$0xf]
  %v65 = vld [vmem:[%s1 + $0x88] sm:$0xf]
  %v66 = vld [vmem:[%s1 + $0x8c] sm:$0xf]
  %v67 = vld [vmem:[%s1 + $0x90] sm:$0xf]
  %v68 = vld [vmem:[%s1 + $0x94] sm:$0xf]
  %v69 = vld [vmem:[%s1 + $0x98] sm:$0xf]
  %v70 = vld [vmem:[%s1 + $0x9c] sm:$0xf]
  %v71 = vld [vmem:[%s1 + $0xa0] sm:$0xf]
  %v72 = vld [vmem:[%s1 + $0xa4] sm:$0xf]
  %v73 = vld [vmem:[%s1 + $0xa8] sm:$0xf]
  %v74 = vld [vmem:[%s1 + $0xac] sm:$0xf]
  %v75 = vld [vmem:[%s1 + $0xb0] sm:$0xf]
  %v76 = vld [vmem:[%s1 + $0xb4] sm:$0xf]
  %v77 = vld [vmem:[%s1 + $0xb8] sm:$0xf]
  %v78 = vld [vmem:[%s1 + $0xbc] sm:$0xf]
  %v79 = vld [vmem:[%s1 + $0xc0] sm:$0xf]
  %v80 = vld [vmem:[%s1 + $0xc4] sm:$0xf]
  %v81 = vld [vmem:[%s1 + $0xc8] sm:$0xf]
  %v82 = vld [vmem:[%s1 + $0xcc] sm:$0xf]
  %v83 = vld [vmem:[%s1 + $0xd0] sm:$0xf]
  %v84 = vld [vmem:[%s1 + $0xd4] sm:$0xf]
  %v85 = vld [vmem:[%s1 + $0xd8] sm:$0xf]
  %v86 = vld [vmem:[%s1 + $0xdc] sm:$0xf]
  %v87 = vld [vmem:[%s1 + $0xe0] sm:$0xf]
  %v88 = vld [vmem:[%s1 + $0xe4] sm:$0xf]
  %v89 = vld [vmem:[%s1 + $0xe8] sm:$0xf]
  %v90 = vld [vmem:[%s1 + $0xec] sm:$0xf]
  %v91 = vld [vmem:[%s1 + $0xf0] sm:$0xf]
  %v92 = vld [vmem:[%s1 + $0xf4] sm:$0xf]
  %v93 = vld [vmem:[%s1 + $0xf8] sm:$0xf]
  %v94 = vld [vmem:[%s1 + $0xfc] sm:$0xf]
  %v95 = vld [vmem:[%s1 + $0x100] sm:$0xf]
  %v96 = vld [vmem:[%s1 + $0x104] sm:$0xf]
  %v97 = vld [vmem:[%s1 + $0x108] sm:$0xf]
  %v98 = vld [vmem:[%s1 + $0x10c] sm:$0xf]
  %v99 = vld [vmem:[%s1 + $0x110] sm:$0xf]
  %v100 = vld [vmem:[%s1 + $0x114] sm:$0xf]
  %v101 = vld [vmem:[%s1 + $0x118] sm:$0xf]
  %v102 = vld [vmem:[%s1 + $0x11c] sm:$0xf]
  %v103 = vld [vmem:[%s1 + $0x120] sm:$0xf]
  %v104 = vld [vmem:[%s1 + $0x124] sm:$0xf]
  %v105 = vld [vmem:[%s1 + $0x128] sm:$0xf]
  %v106 = vld [vmem:[%s1 + $0x12c] sm:$0xf]
  %v107 = vld [vmem:[%s1 + $0x130] sm:$0xf]
  %v108 = vld [vmem:[%s1 + $0x134] sm:$0xf]
  %v109 = vld [vmem:[%s1 + $0x138] sm:$0xf]
  %v110 = vld [vmem:[%s1 + $0x13c] sm:$0xf]
  %v111 = vld [vmem:[%s1 + $0x140] sm:$0xf]
  %v112 = vld [vmem:[%s1 + $0x144] sm:$0xf]
  %v113 = vld [vmem:[%s1 + $0x148] sm:$0xf]
  %v114 = vld [vmem:[%s1 + $0x14c] sm:$0xf]
  %v115 = vld [vmem:[%s1 + $0x150] sm:$0xf]
  %v116 = vld [vmem:[%s1 + $0x154] sm:$0xf]
  %v117 = vld [vmem:[%s1 + $0x158] sm:$0xf]
  %v118 = vld [vmem:[%s1 + $0x15c] sm:$0xf]
  %v119 = vld [vmem:[%s1 + $0x160] sm:$0xf]
  %v120 = vld [vmem:[%s1 + $0x164] sm:$0xf]
  %v121 = vld [vmem:[%s1 + $0x168] sm:$0xf]
  %v122 = vld [vmem:[%s1 + $0x16c] sm:$0xf]
  %v123 = vld [vmem:[%s1 + $0x170] sm:$0xf]
  %v124 = vld [vmem:[%s1 + $0x174] sm:$0xf]
  %v125 = vld [vmem:[%s1 + $0x178] sm:$0xf]
  %v126 = vld [vmem:[%s1 + $0x17c] sm:$0xf]
  %v127 = vld [vmem:[%s1 + $0x180] sm:$0xf]
  %v128 = vld [vmem:[%s1 + $0x184] sm:$0xf]
  %v129 = vld [vmem:[%s1 + $0x188] sm:$0xf]
  %v130 = vld [vmem:[%s1 + $0x18c] sm:$0xf]
  %v131 = vld [vmem:[%s1 + $0x190] sm:$0xf]
  %v132 = vld [vmem:[%s1 + $0x194] sm:$0xf]
  %v133 = vld [vmem:[%s1 + $0x198] sm:$0xf]
  %v134 = vld [vmem:[%s1 + $0x19c] sm:$0xf]
  %v135 = vld [vmem:[%s1 + $0x1a0] sm:$0xf]
  %v136 = vld [vmem:[%s1 + $0x1a4] sm:$0xf]
  %v137 = vld [vmem:[%s1 + $0x1a8] sm:$0xf]
  %v138 = vld [vmem:[%s1 + $0x1ac] sm:$0xf]
  %v139 = vld [vmem:[%s1 + $0x1b0] sm:$0xf]
  %v140 = vld [vmem:[%s1 + $0x1b4] sm:$0xf]
  %v141 = vld [vmem:[%s1 + $0x1b8] sm:$0xf]
  %v142 = vld [vmem:[%s1 + $0x1bc] sm:$0xf]
  %v143 = vld [vmem:[%s1 + $0x1c0] sm:$0xf]
  %v144 = vld [vmem:[%s1 + $0x1c4] sm:$0xf]
  %v145 = vld [vmem:[%s1 + $0x1c8] sm:$0xf]
  %v146 = vld [vmem:[%s1 + $0x1cc] sm:$0xf]
  %v147 = vld [vmem:[%s1 + $0x1d0] sm:$0xf]
  %v148 = vld [vmem:[%s1 + $0x1d4] sm:$0xf]
  %v149 = vld [vmem:[%s1 + $0x1d8] sm:$0xf]
  %v150 = vld [vmem:[%s1 + $0x1dc] sm:$0xf]
  %v151 = vld [vmem:[%s1 + $0x1e0] sm:$0xf]
  %v152 = vld [vmem:[%s1 + $0x1e4] sm:$0xf]
  %v153 = vld [vmem:[%s1 + $0x1e8] sm:$0xf]
  %v154 = vld [vmem:[%s1 + $0x1ec] sm:$0xf]
  %v155 = vld [vmem:[%s1 + $0x1f0] sm:$0xf]
  %v156 = vld [vmem:[%s1 + $0x1f4] sm:$0xf]
  %v157 = vld [vmem:[%s1 + $0x1f8] sm:$0xf]
  %v158 = vld [vmem:[%s1 + $0x1fc] sm:$0xf]
  %v159 = vld [vmem:[%s1 + $0x200] sm:$0xf]
  %v160 = vld [vmem:[%s1 + $0x204] sm:$0xf]
  %v161 = vld [vmem:[%s1 + $0x208] sm:$0xf]
  %v162 = vld [vmem:[%s1 + $0x20c] sm:$0xf]
  %v163 = vld [vmem:[%s1 + $0x210] sm:$0xf]
  %v164 = vld [vmem:[%s1 + $0x214] sm:$0xf]
  %v165 = vld [vmem:[%s1 + $0x218] sm:$0xf]
  %v166 = vld [vmem:[%s1 + $0x21c] sm:$0xf]
  %v167 = vld [vmem:[%s1 + $0x220] sm:$0xf]
  %v168 = vld [vmem:[%s1 + $0x224] sm:$0xf]
  %v169 = vld [vmem:[%s1 + $0x228] sm:$0xf]
  %v170 = vld [vmem:[%s1 + $0x22c] sm:$0xf]
  %v171 = vld [vmem:[%s1 + $0x230] sm:$0xf]
  %v172 = vld [vmem:[%s1 + $0x234] sm:$0xf]
  %v173 = vld [vmem:[%s1 + $0x238] sm:$0xf]
  %v174 = vld [vmem:[%s1 + $0x23c] sm:$0xf]
  %v195 = vunpack.c.l.b16 %v11
  %v196 = vunpack.c.h.b16 %v11
  %v197 = vunpack.c.l.b16 %v12
  %v198 = vunpack.c.h.b16 %v12
  %v199 = vunpack.c.l.b16 %v13
  %v200 = vunpack.c.h.b16 %v13
  %v201 = vunpack.c.l.b16 %v14
  %v202 = vunpack.c.h.b16 %v14
  %v203 = vunpack.c.l.b16 %v15
  %v204 = vunpack.c.l.b16 %v16
  %v205 = vunpack.c.h.b16 %v16
  %v206 = vunpack.c.l.b16 %v17
  %v207 = vunpack.c.h.b16 %v17
  %v208 = vunpack.c.l.b16 %v18
  %v209 = vunpack.c.h.b16 %v18
  %v210 = vunpack.c.l.b16 %v19
  %v211 = vunpack.c.h.b16 %v19
  %v212 = vunpack.c.l.b16 %v20
  %v213 = vunpack.c.l.b16 %v21
  %v214 = vunpack.c.h.b16 %v21
  %v215 = vunpack.c.l.b16 %v22
  %v216 = vunpack.c.h.b16 %v22
  %v217 = vunpack.c.l.b16 %v23
  %v218 = vunpack.c.h.b16 %v23
  %v219 = vunpack.c.l.b16 %v24
  %v220 = vunpack.c.h.b16 %v24
  %v221 = vunpack.c.l.b16 %v25
  %v222 = vunpack.c.l.b16 %v26
  %v223 = vunpack.c.h.b16 %v26
  %v224 = vunpack.c.l.b16 %v27
  %v225 = vunpack.c.h.b16 %v27
  %v226 = vunpack.c.l.b16 %v28
  %v227 = vunpack.c.h.b16 %v28
  %v228 = vunpack.c.l.b16 %v29
  %v229 = vunpack.c.h.b16 %v29
  %v230 = vunpack.c.l.b16 %v30
  %v231 = vpack.c.b16 %v204, %v195
  %v232 = vpack.c.b16 %v205, %v196
  %v233 = vpack.c.b16 %v206, %v197
  %v234 = vpack.c.b16 %v207, %v198
  %v235 = vpack.c.b16 %v208, %v199
  %v236 = vpack.c.b16 %v209, %v200
  %v237 = vpack.c.b16 %v210, %v201
  %v238 = vpack.c.b16 %v211, %v202
  %v239 = vpack.c.b16 %v212, %v203
  %v240 = vpack.c.b16 %v222, %v213
  %v241 = vpack.c.b16 %v223, %v214
  %v242 = vpack.c.b16 %v224, %v215
  %v243 = vpack.c.b16 %v225, %v216
  %v244 = vpack.c.b16 %v226, %v217
  %v245 = vpack.c.b16 %v227, %v218
  %v246 = vpack.c.b16 %v228, %v219
  %v247 = vpack.c.b16 %v229, %v220
  %v248 = vpack.c.b16 %v230, %v221
  %v411 = vunpack.c.l.b16 %v31
  %v412 = vunpack.c.l.b16 %v32
  %v413 = vunpack.c.l.b16 %v33
  %v414 = vunpack.c.l.b16 %v34
  %v415 = vunpack.c.l.b16 %v35
  %v416 = vunpack.c.l.b16 %v36
  %v417 = vunpack.c.l.b16 %v37
  %v418 = vunpack.c.l.b16 %v38
  %v419 = vunpack.c.l.b16 %v39
  %v420 = vunpack.c.l.b16 %v40
  %v421 = vunpack.c.l.b16 %v41
  %v422 = vunpack.c.l.b16 %v42
  %v423 = vunpack.c.l.b16 %v43
  %v424 = vunpack.c.l.b16 %v44
  %v425 = vunpack.c.l.b16 %v45
  %v426 = vunpack.c.l.b16 %v46
  %v427 = vunpack.c.l.b16 %v47
  %v428 = vunpack.c.l.b16 %v48
  %v429 = vunpack.c.l.b16 %v49
  %v430 = vunpack.c.l.b16 %v50
  %v431 = vunpack.c.l.b16 %v51
  %v432 = vunpack.c.l.b16 %v52
  %v433 = vunpack.c.l.b16 %v53
  %v434 = vunpack.c.l.b16 %v54
  %v435 = vunpack.c.l.b16 %v55
  %v436 = vunpack.c.l.b16 %v56
  %v437 = vunpack.c.l.b16 %v57
  %v438 = vunpack.c.l.b16 %v58
  %v439 = vunpack.c.l.b16 %v59
  %v440 = vunpack.c.l.b16 %v60
  %v441 = vunpack.c.l.b16 %v61
  %v442 = vunpack.c.l.b16 %v62
  %v443 = vunpack.c.l.b16 %v63
  %v444 = vunpack.c.l.b16 %v64
  %v445 = vunpack.c.l.b16 %v65
  %v446 = vunpack.c.l.b16 %v66
  %v447 = vunpack.c.l.b16 %v67
  %v448 = vunpack.c.l.b16 %v68
  %v449 = vunpack.c.l.b16 %v69
  %v450 = vunpack.c.l.b16 %v70
  %v451 = vunpack.c.l.b16 %v71
  %v452 = vunpack.c.l.b16 %v72
  %v453 = vunpack.c.l.b16 %v73
  %v454 = vunpack.c.l.b16 %v74
  %v455 = vunpack.c.l.b16 %v75
  %v456 = vunpack.c.l.b16 %v76
  %v457 = vunpack.c.l.b16 %v77
  %v458 = vunpack.c.l.b16 %v78
  %v459 = vunpack.c.l.b16 %v79
  %v460 = vunpack.c.l.b16 %v80
  %v461 = vunpack.c.l.b16 %v81
  %v462 = vunpack.c.l.b16 %v82
  %v463 = vunpack.c.l.b16 %v83
  %v464 = vunpack.c.l.b16 %v84
  %v465 = vunpack.c.l.b16 %v85
  %v466 = vunpack.c.l.b16 %v86
  %v467 = vunpack.c.l.b16 %v87
  %v468 = vunpack.c.l.b16 %v88
  %v469 = vunpack.c.l.b16 %v89
  %v470 = vunpack.c.l.b16 %v90
  %v471 = vunpack.c.l.b16 %v91
  %v472 = vunpack.c.l.b16 %v92
  %v473 = vunpack.c.l.b16 %v93
  %v474 = vunpack.c.l.b16 %v94
  %v475 = vunpack.c.l.b16 %v95
  %v476 = vunpack.c.l.b16 %v96
  %v477 = vunpack.c.l.b16 %v97
  %v478 = vunpack.c.l.b16 %v98
  %v479 = vunpack.c.l.b16 %v99
  %v480 = vunpack.c.l.b16 %v100
  %v481 = vunpack.c.l.b16 %v101
  %v482 = vunpack.c.l.b16 %v102
  %v483 = vunpack.c.l.b16 %v103
  %v484 = vunpack.c.l.b16 %v104
  %v485 = vunpack.c.l.b16 %v105
  %v486 = vunpack.c.l.b16 %v106
  %v487 = vunpack.c.l.b16 %v107
  %v488 = vunpack.c.l.b16 %v108
  %v489 = vunpack.c.l.b16 %v109
  %v490 = vunpack.c.l.b16 %v110
  %v491 = vunpack.c.l.b16 %v111
  %v492 = vunpack.c.l.b16 %v112
  %v493 = vunpack.c.l.b16 %v113
  %v494 = vunpack.c.l.b16 %v114
  %v495 = vunpack.c.l.b16 %v115
  %v496 = vunpack.c.l.b16 %v116
  %v497 = vunpack.c.l.b16 %v117
  %v498 = vunpack.c.l.b16 %v118
  %v499 = vunpack.c.l.b16 %v119
  %v500 = vunpack.c.l.b16 %v120
  %v501 = vunpack.c.l.b16 %v121
  %v502 = vunpack.c.l.b16 %v122
  %v503 = vunpack.c.l.b16 %v123
  %v504 = vunpack.c.l.b16 %v124
  %v505 = vunpack.c.l.b16 %v125
  %v506 = vunpack.c.l.b16 %v126
  %v507 = vunpack.c.l.b16 %v127
  %v508 = vunpack.c.l.b16 %v128
  %v509 = vunpack.c.l.b16 %v129
  %v510 = vunpack.c.l.b16 %v130
  %v511 = vunpack.c.l.b16 %v131
  %v512 = vunpack.c.l.b16 %v132
  %v513 = vunpack.c.l.b16 %v133
  %v514 = vunpack.c.l.b16 %v134
  %v515 = vunpack.c.l.b16 %v135
  %v516 = vunpack.c.l.b16 %v136
  %v517 = vunpack.c.l.b16 %v137
  %v518 = vunpack.c.l.b16 %v138
  %v519 = vunpack.c.l.b16 %v139
  %v520 = vunpack.c.l.b16 %v140
  %v521 = vunpack.c.l.b16 %v141
  %v522 = vunpack.c.l.b16 %v142
  %v523 = vunpack.c.l.b16 %v143
  %v524 = vunpack.c.l.b16 %v144
  %v525 = vunpack.c.l.b16 %v145
  %v526 = vunpack.c.l.b16 %v146
  %v527 = vunpack.c.l.b16 %v147
  %v528 = vunpack.c.l.b16 %v148
  %v529 = vunpack.c.l.b16 %v149
  %v530 = vunpack.c.l.b16 %v150
  %v531 = vunpack.c.l.b16 %v151
  %v532 = vunpack.c.l.b16 %v152
  %v533 = vunpack.c.l.b16 %v153
  %v534 = vunpack.c.l.b16 %v154
  %v535 = vunpack.c.l.b16 %v155
  %v536 = vunpack.c.l.b16 %v156
  %v537 = vunpack.c.l.b16 %v157
  %v538 = vunpack.c.l.b16 %v158
  %v539 = vunpack.c.l.b16 %v159
  %v540 = vunpack.c.l.b16 %v160
  %v541 = vunpack.c.l.b16 %v161
  %v542 = vunpack.c.l.b16 %v162
  %v543 = vunpack.c.l.b16 %v163
  %v544 = vunpack.c.l.b16 %v164
  %v545 = vunpack.c.l.b16 %v165
  %v546 = vunpack.c.l.b16 %v166
  %v547 = vunpack.c.l.b16 %v167
  %v548 = vunpack.c.l.b16 %v168
  %v549 = vunpack.c.l.b16 %v169
  %v550 = vunpack.c.l.b16 %v170
  %v551 = vunpack.c.l.b16 %v171
  %v552 = vunpack.c.l.b16 %v172
  %v553 = vunpack.c.l.b16 %v173
  %v554 = vunpack.c.l.b16 %v174
  %v555 = vpack.c.b16 %v412, %v411
  %v556 = vpack.c.b16 %v414, %v413
  %v557 = vpack.c.b16 %v416, %v415
  %v558 = vpack.c.b16 %v418, %v417
  %v559 = vpack.c.b16 %v420, %v419
  %v560 = vpack.c.b16 %v422, %v421
  %v561 = vpack.c.b16 %v424, %v423
  %v562 = vpack.c.b16 %v426, %v425
  %v563 = vpack.c.b16 %v428, %v427
  %v564 = vpack.c.b16 %v430, %v429
  %v565 = vpack.c.b16 %v432, %v431
  %v566 = vpack.c.b16 %v434, %v433
  %v567 = vpack.c.b16 %v436, %v435
  %v568 = vpack.c.b16 %v438, %v437
  %v569 = vpack.c.b16 %v440, %v439
  %v570 = vpack.c.b16 %v442, %v441
  %v571 = vpack.c.b16 %v444, %v443
  %v572 = vpack.c.b16 %v446, %v445
  %v573 = vpack.c.b16 %v448, %v447
  %v574 = vpack.c.b16 %v450, %v449
  %v575 = vpack.c.b16 %v452, %v451
  %v576 = vpack.c.b16 %v454, %v453
  %v577 = vpack.c.b16 %v456, %v455
  %v578 = vpack.c.b16 %v458, %v457
  %v579 = vpack.c.b16 %v460, %v459
  %v580 = vpack.c.b16 %v462, %v461
  %v581 = vpack.c.b16 %v464, %v463
  %v582 = vpack.c.b16 %v466, %v465
  %v583 = vpack.c.b16 %v468, %v467
  %v584 = vpack.c.b16 %v470, %v469
  %v585 = vpack.c.b16 %v472, %v471
  %v586 = vpack.c.b16 %v474, %v473
  %v587 = vpack.c.b16 %v476, %v475
  %v588 = vpack.c.b16 %v478, %v477
  %v589 = vpack.c.b16 %v480, %v479
  %v590 = vpack.c.b16 %v482, %v481
  %v591 = vpack.c.b16 %v484, %v483
  %v592 = vpack.c.b16 %v486, %v485
  %v593 = vpack.c.b16 %v488, %v487
  %v594 = vpack.c.b16 %v490, %v489
  %v595 = vpack.c.b16 %v492, %v491
  %v596 = vpack.c.b16 %v494, %v493
  %v597 = vpack.c.b16 %v496, %v495
  %v598 = vpack.c.b16 %v498, %v497
  %v599 = vpack.c.b16 %v500, %v499
  %v600 = vpack.c.b16 %v502, %v501
  %v601 = vpack.c.b16 %v504, %v503
  %v602 = vpack.c.b16 %v506, %v505
  %v603 = vpack.c.b16 %v508, %v507
  %v604 = vpack.c.b16 %v510, %v509
  %v605 = vpack.c.b16 %v512, %v511
  %v606 = vpack.c.b16 %v514, %v513
  %v607 = vpack.c.b16 %v516, %v515
  %v608 = vpack.c.b16 %v518, %v517
  %v609 = vpack.c.b16 %v520, %v519
  %v610 = vpack.c.b16 %v522, %v521
  %v611 = vpack.c.b16 %v524, %v523
  %v612 = vpack.c.b16 %v526, %v525
  %v613 = vpack.c.b16 %v528, %v527
  %v614 = vpack.c.b16 %v530, %v529
  %v615 = vpack.c.b16 %v532, %v531
  %v616 = vpack.c.b16 %v534, %v533
  %v617 = vpack.c.b16 %v536, %v535
  %v618 = vpack.c.b16 %v538, %v537
  %v619 = vpack.c.b16 %v540, %v539
  %v620 = vpack.c.b16 %v542, %v541
  %v621 = vpack.c.b16 %v544, %v543
  %v622 = vpack.c.b16 %v546, %v545
  %v623 = vpack.c.b16 %v548, %v547
  %v624 = vpack.c.b16 %v550, %v549
  %v625 = vpack.c.b16 %v552, %v551
  %v626 = vpack.c.b16 %v554, %v553
  %699 = vmatpush.bf16.msra.mxu0 %v562
  %700 = vmatpush.bf16.msra.mxu0 %v561
  %701 = vmatpush.bf16.msra.mxu0 %v560
  %702 = vmatpush.bf16.msra.mxu0 %v559
  %703 = vmatpush.bf16.msra.mxu0 %v558
  %704 = vmatpush.bf16.msra.mxu0 %v557
  %705 = vmatpush.bf16.msra.mxu0 %v556
  %706 = vmatpush.bf16.msra.mxu0 %v555
  %707 = vmatmul.bf16.gmra.mxu0 %v231
  %v708 = vpop.f32.mrf.mxu0
  %v709 = vadd.f32 0.0, %v708
  %v710 = vpop.f32.mrf.mxu0
  %v711 = vadd.f32 0.0, %v710
  %712 = vmatmul.bf16.gmra.mxu0 %v240
  %v713 = vpop.f32.mrf.mxu0
  %v714 = vadd.f32 0.0, %v713
  %v715 = vpop.f32.mrf.mxu0
  %v716 = vadd.f32 0.0, %v715
  %717 = vdwg.mxu0
  %718 = vmatpush.bf16.msra.mxu0 %v570
  %719 = vmatpush.bf16.msra.mxu0 %v569
  %720 = vmatpush.bf16.msra.mxu0 %v568
  %721 = vmatpush.bf16.msra.mxu0 %v567
  %722 = vmatpush.bf16.msra.mxu0 %v566
  %723 = vmatpush.bf16.msra.mxu0 %v565
  %724 = vmatpush.bf16.msra.mxu0 %v564
  %725 = vmatpush.bf16.msra.mxu0 %v563
  %726 = vmatmul.bf16.gmra.mxu0 %v232
  %v727 = vpop.f32.mrf.mxu0
  %v728 = vadd.f32 %v709, %v727
  %v729 = vpop.f32.mrf.mxu0
  %v730 = vadd.f32 %v711, %v729
  %731 = vmatmul.bf16.gmra.mxu0 %v241
  %v732 = vpop.f32.mrf.mxu0
  %v733 = vadd.f32 %v714, %v732
  %v734 = vpop.f32.mrf.mxu0
  %v735 = vadd.f32 %v716, %v734
  %736 = vdwg.mxu0
  %737 = vmatpush.bf16.msra.mxu0 %v578
  %738 = vmatpush.bf16.msra.mxu0 %v577
  %739 = vmatpush.bf16.msra.mxu0 %v576
  %740 = vmatpush.bf16.msra.mxu0 %v575
  %741 = vmatpush.bf16.msra.mxu0 %v574
  %742 = vmatpush.bf16.msra.mxu0 %v573
  %743 = vmatpush.bf16.msra.mxu0 %v572
  %744 = vmatpush.bf16.msra.mxu0 %v571
  %745 = vmatmul.bf16.gmra.mxu0 %v233
  %v746 = vpop.f32.mrf.mxu0
  %v747 = vadd.f32 %v728, %v746
  %v748 = vpop.f32.mrf.mxu0
  %v749 = vadd.f32 %v730, %v748
  %750 = vmatmul.bf16.gmra.mxu0 %v242
  %v751 = vpop.f32.mrf.mxu0
  %v752 = vadd.f32 %v733, %v751
  %v753 = vpop.f32.mrf.mxu0
  %v754 = vadd.f32 %v735, %v753
  %755 = vdwg.mxu0
  %756 = vmatpush.bf16.msra.mxu0 %v586
  %757 = vmatpush.bf16.msra.mxu0 %v585
  %758 = vmatpush.bf16.msra.mxu0 %v584
  %759 = vmatpush.bf16.msra.mxu0 %v583
  %760 = vmatpush.bf16.msra.mxu0 %v582
  %761 = vmatpush.bf16.msra.mxu0 %v581
  %762 = vmatpush.bf16.msra.mxu0 %v580
  %763 = vmatpush.bf16.msra.mxu0 %v579
  %764 = vmatmul.bf16.gmra.mxu0 %v234
  %v765 = vpop.f32.mrf.mxu0
  %v766 = vadd.f32 %v747, %v765
  %v767 = vpop.f32.mrf.mxu0
  %v768 = vadd.f32 %v749, %v767
  %769 = vmatmul.bf16.gmra.mxu0 %v243
  %v770 = vpop.f32.mrf.mxu0
  %v771 = vadd.f32 %v752, %v770
  %v772 = vpop.f32.mrf.mxu0
  %v773 = vadd.f32 %v754, %v772
  %774 = vdwg.mxu0
  %775 = vmatpush.bf16.msra.mxu0 %v594
  %776 = vmatpush.bf16.msra.mxu0 %v593
  %777 = vmatpush.bf16.msra.mxu0 %v592
  %778 = vmatpush.bf16.msra.mxu0 %v591
  %779 = vmatpush.bf16.msra.mxu0 %v590
  %780 = vmatpush.bf16.msra.mxu0 %v589
  %781 = vmatpush.bf16.msra.mxu0 %v588
  %782 = vmatpush.bf16.msra.mxu0 %v587
  %783 = vmatmul.bf16.gmra.mxu0 %v235
  %v784 = vpop.f32.mrf.mxu0
  %v785 = vadd.f32 %v766, %v784
  %v786 = vpop.f32.mrf.mxu0
  %v787 = vadd.f32 %v768, %v786
  %788 = vmatmul.bf16.gmra.mxu0 %v244
  %v789 = vpop.f32.mrf.mxu0
  %v790 = vadd.f32 %v771, %v789
  %v791 = vpop.f32.mrf.mxu0
  %v792 = vadd.f32 %v773, %v791
  %793 = vdwg.mxu0
  %794 = vmatpush.bf16.msra.mxu0 %v602
  %795 = vmatpush.bf16.msra.mxu0 %v601
  %796 = vmatpush.bf16.msra.mxu0 %v600
  %797 = vmatpush.bf16.msra.mxu0 %v599
  %798 = vmatpush.bf16.msra.mxu0 %v598
  %799 = vmatpush.bf16.msra.mxu0 %v597
  %800 = vmatpush.bf16.msra.mxu0 %v596
  %801 = vmatpush.bf16.msra.mxu0 %v595
  %802 = vmatmul.bf16.gmra.mxu0 %v236
  %v803 = vpop.f32.mrf.mxu0
  %v804 = vadd.f32 %v785, %v803
  %v805 = vpop.f32.mrf.mxu0
  %v806 = vadd.f32 %v787, %v805
  %807 = vmatmul.bf16.gmra.mxu0 %v245
  %v808 = vpop.f32.mrf.mxu0
  %v809 = vadd.f32 %v790, %v808
  %v810 = vpop.f32.mrf.mxu0
  %v811 = vadd.f32 %v792, %v810
  %812 = vdwg.mxu0
  %813 = vmatpush.bf16.msra.mxu0 %v610
  %814 = vmatpush.bf16.msra.mxu0 %v609
  %815 = vmatpush.bf16.msra.mxu0 %v608
  %816 = vmatpush.bf16.msra.mxu0 %v607
  %817 = vmatpush.bf16.msra.mxu0 %v606
  %818 = vmatpush.bf16.msra.mxu0 %v605
  %819 = vmatpush.bf16.msra.mxu0 %v604
  %820 = vmatpush.bf16.msra.mxu0 %v603
  %821 = vmatmul.bf16.gmra.mxu0 %v237
  %v822 = vpop.f32.mrf.mxu0
  %v823 = vadd.f32 %v804, %v822
  %v824 = vpop.f32.mrf.mxu0
  %v825 = vadd.f32 %v806, %v824
  %826 = vmatmul.bf16.gmra.mxu0 %v246
  %v827 = vpop.f32.mrf.mxu0
  %v828 = vadd.f32 %v809, %v827
  %v829 = vpop.f32.mrf.mxu0
  %v830 = vadd.f32 %v811, %v829
  %831 = vdwg.mxu0
  %832 = vmatpush.bf16.msra.mxu0 %v618
  %833 = vmatpush.bf16.msra.mxu0 %v617
  %834 = vmatpush.bf16.msra.mxu0 %v616
  %835 = vmatpush.bf16.msra.mxu0 %v615
  %836 = vmatpush.bf16.msra.mxu0 %v614
  %837 = vmatpush.bf16.msra.mxu0 %v613
  %838 = vmatpush.bf16.msra.mxu0 %v612
  %839 = vmatpush.bf16.msra.mxu0 %v611
  %840 = vmatmul.bf16.gmra.mxu0 %v238
  %v841 = vpop.f32.mrf.mxu0
  %v842 = vadd.f32 %v823, %v841
  %v843 = vpop.f32.mrf.mxu0
  %v844 = vadd.f32 %v825, %v843
  %845 = vmatmul.bf16.gmra.mxu0 %v247
  %v846 = vpop.f32.mrf.mxu0
  %v847 = vadd.f32 %v828, %v846
  %v848 = vpop.f32.mrf.mxu0
  %v849 = vadd.f32 %v830, %v848
  %850 = vdwg.mxu0
  %851 = vmatpush.bf16.msra.mxu0 %v626
  %852 = vmatpush.bf16.msra.mxu0 %v625
  %853 = vmatpush.bf16.msra.mxu0 %v624
  %854 = vmatpush.bf16.msra.mxu0 %v623
  %855 = vmatpush.bf16.msra.mxu0 %v622
  %856 = vmatpush.bf16.msra.mxu0 %v621
  %857 = vmatpush.bf16.msra.mxu0 %v620
  %858 = vmatpush.bf16.msra.mxu0 %v619
  %859 = vmatmul.bf16.gmra.mxu0 %v239
  %v860 = vpop.f32.mrf.mxu0
  %v861 = vadd.f32 %v842, %v860
  %v862 = vpop.f32.mrf.mxu0
  %v863 = vadd.f32 %v844, %v862
  %864 = vmatmul.bf16.gmra.mxu0 %v248
  %v865 = vpop.f32.mrf.mxu0
  %v866 = vadd.f32 %v847, %v865
  %v867 = vpop.f32.mrf.mxu0
  %v868 = vadd.f32 %v849, %v867
  %869 = vdwg.mxu0
  %v870 = vpack.c.bf16 %v861, %v861
  %v871 = vpack.c.bf16 %v863, %v863
  %v872 = vpack.c.bf16 %v866, %v866
  %v873 = vpack.c.bf16 %v868, %v868
  %vm874 = vcmask 257024
  %875 = vst.msk [vmem:[%s2] sm:$0xf] %vm874, %v870
  %876 = vst.msk [vmem:[%s2 + $0x4] sm:$0xf] %vm874, %v871
  %877 = vst.msk [vmem:[%s2 + $0x8] sm:$0xf] %vm874, %v872
  %878 = vst.msk [vmem:[%s2 + $0xc] sm:$0xf] %vm874, %v873
  // Predicated region
  $region10: #{densenet121_forward.136} parent=0 // pred_check
    _
  $region11: #{densenet121_forward.136} parent=0 // pred_check_branch
    %880 = sbr.rel (0) target = $region13
  $region12: #{densenet121_forward.136} parent=0 // pred_region
    _
  $region13: #{densenet121_forward.136} parent=0 // pred_fallthru
    _
  // Predicated region
  $region14: #{densenet121_forward.136} parent=0 // pred_check
    _
  $region15: #{densenet121_forward.136} parent=0 // pred_check_branch
    %882 = sbr.rel (0) target = $region17
  $region16: #{densenet121_forward.136} parent=0 // pred_region
    _
  $region17: #{densenet121_forward.136} parent=0 // pred_fallthru
    _

// kernel: densenet121_forward.159
$region0: #{densenet121_forward.159}
  #allocation0 [shape = 'u32[]', space=smem, size = 0x4, offset = 0x4, fixed_abs, tag = 'smem constant byte address 0x4 - core index']
  #allocation1 [shape = 'u32[72,128]{1,0:T(1,128)}', space=vmem, size = 0x9000, scoped, tag = 'internal scratch']
  %s0 = inlined_call_operand.vmem [shape: bf16[32,512], index: 0, kind: input, shape index: {}]
  %s1 = inlined_call_operand.vmem [shape: bf16[1,512], index: 1, kind: input, shape index: {}]
  %s2 = inlined_call_operand.vmem [shape: bf16[1,512], index: 2, kind: input, shape index: {}]
  %s3 = inlined_call_operand.vmem [shape: bf16[512,256], index: 3, kind: input, shape index: {}]
  %s4 = inlined_call_operand.vmem [shape: bf16[32,256], index: 4, kind: output, shape index: {}]
  %s5 = sld [smem:[#allocation0]]
  $region26: #{densenet121_forward.159} parent=0
    _
  %s7 = ssub.s32 1, %s5
  %s8 = scalar_select 0, %s7, %s5
  // Predicated region
  $region2: #{densenet121_forward.159} parent=0 // pred_check
    _
  $region3: #{densenet121_forward.159} parent=0 // pred_check_branch
    %10 = sbr.rel (0) target = $region5
  $region4: #{densenet121_forward.159} parent=0 // pred_region
    _
  $region5: #{densenet121_forward.159} parent=0 // pred_fallthru
    _
  // Predicated region
  $region6: #{densenet121_forward.159} parent=0 // pred_check
    _
  $region7: #{densenet121_forward.159} parent=0 // pred_check_branch
    %12 = sbr.rel (0) target = $region9
  $region8: #{densenet121_forward.159} parent=0 // pred_region
    _
  $region9: #{densenet121_forward.159} parent=0 // pred_fallthru
    _
  // Predicated region
  $region10: #{densenet121_forward.159} parent=0 // pred_check
    _
  $region11: #{densenet121_forward.159} parent=0 // pred_check_branch
    %14 = sbr.rel (0) target = $region13
  $region12: #{densenet121_forward.159} parent=0 // pred_region
    _
  $region13: #{densenet121_forward.159} parent=0 // pred_fallthru
    _
  // Predicated region
  $region14: #{densenet121_forward.159} parent=0 // pred_check
    _
  $region15: #{densenet121_forward.159} parent=0 // pred_check_branch
    %16 = sbr.rel (0) target = $region17
  $region16: #{densenet121_forward.159} parent=0 // pred_region
    _
  $region17: #{densenet121_forward.159} parent=0 // pred_fallthru
    _
  %v17 = vld [vmem:[%s0] sm:$0xff]
  %v18 = vld [vmem:[%s0 + $0x8] sm:$0xff]
  %v19 = vld [vmem:[%s0 + $0x10] sm:$0xff]
  %v20 = vld [vmem:[%s0 + $0x18] sm:$0xff]
  %v21 = vld [vmem:[%s0 + $0x20] sm:$0xff]
  %v22 = vld [vmem:[%s0 + $0x28] sm:$0xff]
  %v23 = vld [vmem:[%s0 + $0x30] sm:$0xff]
  %v24 = vld [vmem:[%s0 + $0x38] sm:$0xff]
  %v25 = vld [vmem:[%s3] sm:$0xff]
  %v26 = vld [vmem:[%s3 + $0x8] sm:$0xff]
  %v27 = vld [vmem:[%s3 + $0x10] sm:$0xff]
  %v28 = vld [vmem:[%s3 + $0x18] sm:$0xff]
  %v29 = vld [vmem:[%s3 + $0x20] sm:$0xff]
  %v30 = vld [vmem:[%s3 + $0x28] sm:$0xff]
  %v31 = vld [vmem:[%s3 + $0x30] sm:$0xff]
  %v32 = vld [vmem:[%s3 + $0x38] sm:$0xff]
  %v33 = vld [vmem:[%s3 + $0x40] sm:$0xff]
  %v34 = vld [vmem:[%s3 + $0x48] sm:$0xff]
  %v35 = vld [vmem:[%s3 + $0x50] sm:$0xff]
  %v36 = vld [vmem:[%s3 + $0x58] sm:$0xff]
  %v37 = vld [vmem:[%s3 + $0x60] sm:$0xff]
  %v38 = vld [vmem:[%s3 + $0x68] sm:$0xff]
  %v39 = vld [vmem:[%s3 + $0x70] sm:$0xff]
  %v40 = vld [vmem:[%s3 + $0x78] sm:$0xff]
  %v41 = vld [vmem:[%s3 + $0x80] sm:$0xff]
  %v42 = vld [vmem:[%s3 + $0x88] sm:$0xff]
  %v43 = vld [vmem:[%s3 + $0x90] sm:$0xff]
  %v44 = vld [vmem:[%s3 + $0x98] sm:$0xff]
  %v45 = vld [vmem:[%s3 + $0xa0] sm:$0xff]
  %v46 = vld [vmem:[%s3 + $0xa8] sm:$0xff]
  %v47 = vld [vmem:[%s3 + $0xb0] sm:$0xff]
  %v48 = vld [vmem:[%s3 + $0xb8] sm:$0xff]
  %v49 = vld [vmem:[%s3 + $0xc0] sm:$0xff]
  %v50 = vld [vmem:[%s3 + $0xc8] sm:$0xff]
  %v51 = vld [vmem:[%s3 + $0xd0] sm:$0xff]
  %v52 = vld [vmem:[%s3 + $0xd8] sm:$0xff]
  %v53 = vld [vmem:[%s3 + $0xe0] sm:$0xff]
  %v54 = vld [vmem:[%s3 + $0xe8] sm:$0xff]
  %v55 = vld [vmem:[%s3 + $0xf0] sm:$0xff]
  %v56 = vld [vmem:[%s3 + $0xf8] sm:$0xff]
  %v57 = vld [vmem:[%s3 + $0x100] sm:$0xff]
  %v58 = vld [vmem:[%s3 + $0x108] sm:$0xff]
  %v59 = vld [vmem:[%s3 + $0x110] sm:$0xff]
  %v60 = vld [vmem:[%s3 + $0x118] sm:$0xff]
  %v61 = vld [vmem:[%s3 + $0x120] sm:$0xff]
  %v62 = vld [vmem:[%s3 + $0x128] sm:$0xff]
  %v63 = vld [vmem:[%s3 + $0x130] sm:$0xff]
  %v64 = vld [vmem:[%s3 + $0x138] sm:$0xff]
  %v65 = vld [vmem:[%s3 + $0x140] sm:$0xff]
  %v66 = vld [vmem:[%s3 + $0x148] sm:$0xff]
  %v67 = vld [vmem:[%s3 + $0x150] sm:$0xff]
  %v68 = vld [vmem:[%s3 + $0x158] sm:$0xff]
  %v69 = vld [vmem:[%s3 + $0x160] sm:$0xff]
  %v70 = vld [vmem:[%s3 + $0x168] sm:$0xff]
  %v71 = vld [vmem:[%s3 + $0x170] sm:$0xff]
  %v72 = vld [vmem:[%s3 + $0x178] sm:$0xff]
  %v73 = vld [vmem:[%s3 + $0x180] sm:$0xff]
  %v74 = vld [vmem:[%s3 + $0x188] sm:$0xff]
  %v75 = vld [vmem:[%s3 + $0x190] sm:$0xff]
  %v76 = vld [vmem:[%s3 + $0x198] sm:$0xff]
  %v77 = vld [vmem:[%s3 + $0x1a0] sm:$0xff]
  %v78 = vld [vmem:[%s3 + $0x1a8] sm:$0xff]
  %v79 = vld [vmem:[%s3 + $0x1b0] sm:$0xff]
  %v80 = vld [vmem:[%s3 + $0x1b8] sm:$0xff]
  %v81 = vld [vmem:[%s3 + $0x1c0] sm:$0xff]
  %v82 = vld [vmem:[%s3 + $0x1c8] sm:$0xff]
  %v83 = vld [vmem:[%s3 + $0x1d0] sm:$0xff]
  %v84 = vld [vmem:[%s3 + $0x1d8] sm:$0xff]
  %v85 = vld [vmem:[%s3 + $0x1e0] sm:$0xff]
  %v86 = vld [vmem:[%s3 + $0x1e8] sm:$0xff]
  %v87 = vld [vmem:[%s3 + $0x1f0] sm:$0xff]
  %v88 = vld [vmem:[%s3 + $0x1f8] sm:$0xff]
  %v89 = vld [vmem:[%s1] sm:$0xf]
  %91 = vst [vmem:[#allocation1] ss:$9 sm:$0xff] %v89
  %v92 = vld [vmem:[#allocation1] sm:$0xff]
  %v93 = vld [vmem:[#allocation1 + $0x9] sm:$0xff]
  %v94 = vld [vmem:[#allocation1 + $0x12] sm:$0xff]
  %v95 = vld [vmem:[#allocation1 + $0x1b] sm:$0xff]
  %v96 = vpack.i.b16 %v92, %v92
  %v98 = vperm.slane %v96, 0
  %v99 = vpack.i.b16 %v93, %v93
  %v101 = vperm.slane %v99, 0
  %v102 = vpack.i.b16 %v94, %v94
  %v104 = vperm.slane %v102, 0
  %v105 = vpack.i.b16 %v95, %v95
  %v107 = vperm.slane %v105, 0
  %v108 = vunpack.c.l.bf16 %v17
  %v109 = vunpack.c.h.bf16 %v17
  %v110 = vunpack.c.l.bf16 %v18
  %v111 = vunpack.c.h.bf16 %v18
  %v112 = vunpack.c.l.bf16 %v19
  %v113 = vunpack.c.h.bf16 %v19
  %v114 = vunpack.c.l.bf16 %v20
  %v115 = vunpack.c.h.bf16 %v20
  %v116 = vunpack.c.l.bf16 %v21
  %v117 = vunpack.c.h.bf16 %v21
  %v118 = vunpack.c.l.bf16 %v22
  %v119 = vunpack.c.h.bf16 %v22
  %v120 = vunpack.c.l.bf16 %v23
  %v121 = vunpack.c.h.bf16 %v23
  %v122 = vunpack.c.l.bf16 %v24
  %v123 = vunpack.c.h.bf16 %v24
  %v124 = vunpack.c.l.bf16 %v98
  %v125 = vunpack.c.l.bf16 %v101
  %v126 = vunpack.c.l.bf16 %v104
  %v127 = vunpack.c.l.bf16 %v107
  %v128 = vmul.f32 %v108, %v124
  %v129 = vmul.f32 %v109, %v125
  %v130 = vmul.f32 %v110, %v126
  %v131 = vmul.f32 %v111, %v127
  %v132 = vmul.f32 %v112, %v124
  %v133 = vmul.f32 %v113, %v125
  %v134 = vmul.f32 %v114, %v126
  %v135 = vmul.f32 %v115, %v127
  %v136 = vmul.f32 %v116, %v124
  %v137 = vmul.f32 %v117, %v125
  %v138 = vmul.f32 %v118, %v126
  %v139 = vmul.f32 %v119, %v127
  %v140 = vmul.f32 %v120, %v124
  %v141 = vmul.f32 %v121, %v125
  %v142 = vmul.f32 %v122, %v126
  %v143 = vmul.f32 %v123, %v127
  %v144 = vpack.c.bf16 %v129, %v128
  %v145 = vpack.c.bf16 %v131, %v130
  %v146 = vpack.c.bf16 %v133, %v132
  %v147 = vpack.c.bf16 %v135, %v134
  %v148 = vpack.c.bf16 %v137, %v136
  %v149 = vpack.c.bf16 %v139, %v138
  %v150 = vpack.c.bf16 %v141, %v140
  %v151 = vpack.c.bf16 %v143, %v142
  %v152 = vld [vmem:[%s2] sm:$0xf]
  %154 = vst [vmem:[#allocation1] ss:$9 sm:$0xff] %v152
  %v155 = vld [vmem:[#allocation1] sm:$0xff]
  %v156 = vld [vmem:[#allocation1 + $0x9] sm:$0xff]
  %v157 = vld [vmem:[#allocation1 + $0x12] sm:$0xff]
  %v158 = vld [vmem:[#allocation1 + $0x1b] sm:$0xff]
  %v159 = vpack.i.b16 %v155, %v155
  %v161 = vperm.slane %v159, 0
  %v162 = vpack.i.b16 %v156, %v156
  %v164 = vperm.slane %v162, 0
  %v165 = vpack.i.b16 %v157, %v157
  %v167 = vperm.slane %v165, 0
  %v168 = vpack.i.b16 %v158, %v158
  %v170 = vperm.slane %v168, 0
  %v171 = vunpack.c.l.bf16 %v144
  %v172 = vunpack.c.h.bf16 %v144
  %v173 = vunpack.c.l.bf16 %v145
  %v174 = vunpack.c.h.bf16 %v145
  %v175 = vunpack.c.l.bf16 %v146
  %v176 = vunpack.c.h.bf16 %v146
  %v177 = vunpack.c.l.bf16 %v147
  %v178 = vunpack.c.h.bf16 %v147
  %v179 = vunpack.c.l.bf16 %v148
  %v180 = vunpack.c.h.bf16 %v148
  %v181 = vunpack.c.l.bf16 %v149
  %v182 = vunpack.c.h.bf16 %v149
  %v183 = vunpack.c.l.bf16 %v150
  %v184 = vunpack.c.h.bf16 %v150
  %v185 = vunpack.c.l.bf16 %v151
  %v186 = vunpack.c.h.bf16 %v151
  %v187 = vunpack.c.l.bf16 %v161
  %v188 = vunpack.c.l.bf16 %v164
  %v189 = vunpack.c.l.bf16 %v167
  %v190 = vunpack.c.l.bf16 %v170
  %v191 = vadd.f32 %v171, %v187
  %v192 = vadd.f32 %v172, %v188
  %v193 = vadd.f32 %v173, %v189
  %v194 = vadd.f32 %v174, %v190
  %v195 = vadd.f32 %v175, %v187
  %v196 = vadd.f32 %v176, %v188
  %v197 = vadd.f32 %v177, %v189
  %v198 = vadd.f32 %v178, %v190
  %v199 = vadd.f32 %v179, %v187
  %v200 = vadd.f32 %v180, %v188
  %v201 = vadd.f32 %v181, %v189
  %v202 = vadd.f32 %v182, %v190
  %v203 = vadd.f32 %v183, %v187
  %v204 = vadd.f32 %v184, %v188
  %v205 = vadd.f32 %v185, %v189
  %v206 = vadd.f32 %v186, %v190
  %v207 = vpack.c.bf16 %v192, %v191
  %v208 = vpack.c.bf16 %v194, %v193
  %v209 = vpack.c.bf16 %v196, %v195
  %v210 = vpack.c.bf16 %v198, %v197
  %v211 = vpack.c.bf16 %v200, %v199
  %v212 = vpack.c.bf16 %v202, %v201
  %v213 = vpack.c.bf16 %v204, %v203
  %v214 = vpack.c.bf16 %v206, %v205
  %v215 = vunpack.c.l.bf16 %v207
  %v216 = vunpack.c.h.bf16 %v207
  %v217 = vunpack.c.l.bf16 %v208
  %v218 = vunpack.c.h.bf16 %v208
  %v219 = vunpack.c.l.bf16 %v209
  %v220 = vunpack.c.h.bf16 %v209
  %v221 = vunpack.c.l.bf16 %v210
  %v222 = vunpack.c.h.bf16 %v210
  %v223 = vunpack.c.l.bf16 %v211
  %v224 = vunpack.c.h.bf16 %v211
  %v225 = vunpack.c.l.bf16 %v212
  %v226 = vunpack.c.h.bf16 %v212
  %v227 = vunpack.c.l.bf16 %v213
  %v228 = vunpack.c.h.bf16 %v213
  %v229 = vunpack.c.l.bf16 %v214
  %v230 = vunpack.c.h.bf16 %v214
  %v231 = vmax.f32 %v215, 0.0
  %v232 = vmax.f32 %v216, 0.0
  %v233 = vmax.f32 %v217, 0.0
  %v234 = vmax.f32 %v218, 0.0
  %v235 = vmax.f32 %v219, 0.0
  %v236 = vmax.f32 %v220, 0.0
  %v237 = vmax.f32 %v221, 0.0
  %v238 = vmax.f32 %v222, 0.0
  %v239 = vmax.f32 %v223, 0.0
  %v240 = vmax.f32 %v224, 0.0
  %v241 = vmax.f32 %v225, 0.0
  %v242 = vmax.f32 %v226, 0.0
  %v243 = vmax.f32 %v227, 0.0
  %v244 = vmax.f32 %v228, 0.0
  %v245 = vmax.f32 %v229, 0.0
  %v246 = vmax.f32 %v230, 0.0
  %v247 = vpack.c.bf16 %v235, %v231
  %v248 = vpack.c.bf16 %v236, %v232
  %v249 = vpack.c.bf16 %v237, %v233
  %v250 = vpack.c.bf16 %v238, %v234
  %v251 = vpack.c.bf16 %v243, %v239
  %v252 = vpack.c.bf16 %v244, %v240
  %v253 = vpack.c.bf16 %v245, %v241
  %v254 = vpack.c.bf16 %v246, %v242
  %v319 = vunpack.c.l.b16 %v25
  %v320 = vunpack.c.h.b16 %v25
  %v321 = vunpack.c.l.b16 %v26
  %v322 = vunpack.c.h.b16 %v26
  %v323 = vunpack.c.l.b16 %v27
  %v324 = vunpack.c.h.b16 %v27
  %v325 = vunpack.c.l.b16 %v28
  %v326 = vunpack.c.h.b16 %v28
  %v327 = vunpack.c.l.b16 %v29
  %v328 = vunpack.c.h.b16 %v29
  %v329 = vunpack.c.l.b16 %v30
  %v330 = vunpack.c.h.b16 %v30
  %v331 = vunpack.c.l.b16 %v31
  %v332 = vunpack.c.h.b16 %v31
  %v333 = vunpack.c.l.b16 %v32
  %v334 = vunpack.c.h.b16 %v32
  %v335 = vunpack.c.l.b16 %v33
  %v336 = vunpack.c.h.b16 %v33
  %v337 = vunpack.c.l.b16 %v34
  %v338 = vunpack.c.h.b16 %v34
  %v339 = vunpack.c.l.b16 %v35
  %v340 = vunpack.c.h.b16 %v35
  %v341 = vunpack.c.l.b16 %v36
  %v342 = vunpack.c.h.b16 %v36
  %v343 = vunpack.c.l.b16 %v37
  %v344 = vunpack.c.h.b16 %v37
  %v345 = vunpack.c.l.b16 %v38
  %v346 = vunpack.c.h.b16 %v38
  %v347 = vunpack.c.l.b16 %v39
  %v348 = vunpack.c.h.b16 %v39
  %v349 = vunpack.c.l.b16 %v40
  %v350 = vunpack.c.h.b16 %v40
  %v351 = vunpack.c.l.b16 %v41
  %v352 = vunpack.c.h.b16 %v41
  %v353 = vunpack.c.l.b16 %v42
  %v354 = vunpack.c.h.b16 %v42
  %v355 = vunpack.c.l.b16 %v43
  %v356 = vunpack.c.h.b16 %v43
  %v357 = vunpack.c.l.b16 %v44
  %v358 = vunpack.c.h.b16 %v44
  %v359 = vunpack.c.l.b16 %v45
  %v360 = vunpack.c.h.b16 %v45
  %v361 = vunpack.c.l.b16 %v46
  %v362 = vunpack.c.h.b16 %v46
  %v363 = vunpack.c.l.b16 %v47
  %v364 = vunpack.c.h.b16 %v47
  %v365 = vunpack.c.l.b16 %v48
  %v366 = vunpack.c.h.b16 %v48
  %v367 = vunpack.c.l.b16 %v49
  %v368 = vunpack.c.h.b16 %v49
  %v369 = vunpack.c.l.b16 %v50
  %v370 = vunpack.c.h.b16 %v50
  %v371 = vunpack.c.l.b16 %v51
  %v372 = vunpack.c.h.b16 %v51
  %v373 = vunpack.c.l.b16 %v52
  %v374 = vunpack.c.h.b16 %v52
  %v375 = vunpack.c.l.b16 %v53
  %v376 = vunpack.c.h.b16 %v53
  %v377 = vunpack.c.l.b16 %v54
  %v378 = vunpack.c.h.b16 %v54
  %v379 = vunpack.c.l.b16 %v55
  %v380 = vunpack.c.h.b16 %v55
  %v381 = vunpack.c.l.b16 %v56
  %v382 = vunpack.c.h.b16 %v56
  %v383 = vunpack.c.l.b16 %v57
  %v384 = vunpack.c.h.b16 %v57
  %v385 = vunpack.c.l.b16 %v58
  %v386 = vunpack.c.h.b16 %v58
  %v387 = vunpack.c.l.b16 %v59
  %v388 = vunpack.c.h.b16 %v59
  %v389 = vunpack.c.l.b16 %v60
  %v390 = vunpack.c.h.b16 %v60
  %v391 = vunpack.c.l.b16 %v61
  %v392 = vunpack.c.h.b16 %v61
  %v393 = vunpack.c.l.b16 %v62
  %v394 = vunpack.c.h.b16 %v62
  %v395 = vunpack.c.l.b16 %v63
  %v396 = vunpack.c.h.b16 %v63
  %v397 = vunpack.c.l.b16 %v64
  %v398 = vunpack.c.h.b16 %v64
  %v399 = vunpack.c.l.b16 %v65
  %v400 = vunpack.c.h.b16 %v65
  %v401 = vunpack.c.l.b16 %v66
  %v402 = vunpack.c.h.b16 %v66
  %v403 = vunpack.c.l.b16 %v67
  %v404 = vunpack.c.h.b16 %v67
  %v405 = vunpack.c.l.b16 %v68
  %v406 = vunpack.c.h.b16 %v68
  %v407 = vunpack.c.l.b16 %v69
  %v408 = vunpack.c.h.b16 %v69
  %v409 = vunpack.c.l.b16 %v70
  %v410 = vunpack.c.h.b16 %v70
  %v411 = vunpack.c.l.b16 %v71
  %v412 = vunpack.c.h.b16 %v71
  %v413 = vunpack.c.l.b16 %v72
  %v414 = vunpack.c.h.b16 %v72
  %v415 = vunpack.c.l.b16 %v73
  %v416 = vunpack.c.h.b16 %v73
  %v417 = vunpack.c.l.b16 %v74
  %v418 = vunpack.c.h.b16 %v74
  %v419 = vunpack.c.l.b16 %v75
  %v420 = vunpack.c.h.b16 %v75
  %v421 = vunpack.c.l.b16 %v76
  %v422 = vunpack.c.h.b16 %v76
  %v423 = vunpack.c.l.b16 %v77
  %v424 = vunpack.c.h.b16 %v77
  %v425 = vunpack.c.l.b16 %v78
  %v426 = vunpack.c.h.b16 %v78
  %v427 = vunpack.c.l.b16 %v79
  %v428 = vunpack.c.h.b16 %v79
  %v429 = vunpack.c.l.b16 %v80
  %v430 = vunpack.c.h.b16 %v80
  %v431 = vunpack.c.l.b16 %v81
  %v432 = vunpack.c.h.b16 %v81
  %v433 = vunpack.c.l.b16 %v82
  %v434 = vunpack.c.h.b16 %v82
  %v435 = vunpack.c.l.b16 %v83
  %v436 = vunpack.c.h.b16 %v83
  %v437 = vunpack.c.l.b16 %v84
  %v438 = vunpack.c.h.b16 %v84
  %v439 = vunpack.c.l.b16 %v85
  %v440 = vunpack.c.h.b16 %v85
  %v441 = vunpack.c.l.b16 %v86
  %v442 = vunpack.c.h.b16 %v86
  %v443 = vunpack.c.l.b16 %v87
  %v444 = vunpack.c.h.b16 %v87
  %v445 = vunpack.c.l.b16 %v88
  %v446 = vunpack.c.h.b16 %v88
  %v447 = vpack.c.b16 %v321, %v319
  %v448 = vpack.c.b16 %v322, %v320
  %v449 = vpack.c.b16 %v325, %v323
  %v450 = vpack.c.b16 %v326, %v324
  %v451 = vpack.c.b16 %v329, %v327
  %v452 = vpack.c.b16 %v330, %v328
  %v453 = vpack.c.b16 %v333, %v331
  %v454 = vpack.c.b16 %v334, %v332
  %v455 = vpack.c.b16 %v337, %v335
  %v456 = vpack.c.b16 %v338, %v336
  %v457 = vpack.c.b16 %v341, %v339
  %v458 = vpack.c.b16 %v342, %v340
  %v459 = vpack.c.b16 %v345, %v343
  %v460 = vpack.c.b16 %v346, %v344
  %v461 = vpack.c.b16 %v349, %v347
  %v462 = vpack.c.b16 %v350, %v348
  %v463 = vpack.c.b16 %v353, %v351
  %v464 = vpack.c.b16 %v354, %v352
  %v465 = vpack.c.b16 %v357, %v355
  %v466 = vpack.c.b16 %v358, %v356
  %v467 = vpack.c.b16 %v361, %v359
  %v468 = vpack.c.b16 %v362, %v360
  %v469 = vpack.c.b16 %v365, %v363
  %v470 = vpack.c.b16 %v366, %v364
  %v471 = vpack.c.b16 %v369, %v367
  %v472 = vpack.c.b16 %v370, %v368
  %v473 = vpack.c.b16 %v373, %v371
  %v474 = vpack.c.b16 %v374, %v372
  %v475 = vpack.c.b16 %v377, %v375
  %v476 = vpack.c.b16 %v378, %v376
  %v477 = vpack.c.b16 %v381, %v379
  %v478 = vpack.c.b16 %v382, %v380
  %v479 = vpack.c.b16 %v385, %v383
  %v480 = vpack.c.b16 %v386, %v384
  %v481 = vpack.c.b16 %v389, %v387
  %v482 = vpack.c.b16 %v390, %v388
  %v483 = vpack.c.b16 %v393, %v391
  %v484 = vpack.c.b16 %v394, %v392
  %v485 = vpack.c.b16 %v397, %v395
  %v486 = vpack.c.b16 %v398, %v396
  %v487 = vpack.c.b16 %v401, %v399
  %v488 = vpack.c.b16 %v402, %v400
  %v489 = vpack.c.b16 %v405, %v403
  %v490 = vpack.c.b16 %v406, %v404
  %v491 = vpack.c.b16 %v409, %v407
  %v492 = vpack.c.b16 %v410, %v408
  %v493 = vpack.c.b16 %v413, %v411
  %v494 = vpack.c.b16 %v414, %v412
  %v495 = vpack.c.b16 %v417, %v415
  %v496 = vpack.c.b16 %v418, %v416
  %v497 = vpack.c.b16 %v421, %v419
  %v498 = vpack.c.b16 %v422, %v420
  %v499 = vpack.c.b16 %v425, %v423
  %v500 = vpack.c.b16 %v426, %v424
  %v501 = vpack.c.b16 %v429, %v427
  %v502 = vpack.c.b16 %v430, %v428
  %v503 = vpack.c.b16 %v433, %v431
  %v504 = vpack.c.b16 %v434, %v432
  %v505 = vpack.c.b16 %v437, %v435
  %v506 = vpack.c.b16 %v438, %v436
  %v507 = vpack.c.b16 %v441, %v439
  %v508 = vpack.c.b16 %v442, %v440
  %v509 = vpack.c.b16 %v445, %v443
  %v510 = vpack.c.b16 %v446, %v444
  %575 = vmatpush.bf16.msra.mxu0 %v461
  %576 = vmatpush.bf16.msra.mxu0 %v459
  %577 = vmatpush.bf16.msra.mxu0 %v457
  %578 = vmatpush.bf16.msra.mxu0 %v455
  %579 = vmatpush.bf16.msra.mxu0 %v453
  %580 = vmatpush.bf16.msra.mxu0 %v451
  %581 = vmatpush.bf16.msra.mxu0 %v449
  %582 = vmatpush.bf16.msra.mxu0 %v447
  %583 = vmatmul.bf16.gmra.mxu0 %v247
  %v584 = vpop.f32.mrf.mxu0
  %v585 = vadd.f32 0.0, %v584
  %v586 = vpop.f32.mrf.mxu0
  %v587 = vadd.f32 0.0, %v586
  %588 = vmatmul.bf16.gmra.mxu0 %v251
  %v589 = vpop.f32.mrf.mxu0
  %v590 = vadd.f32 0.0, %v589
  %v591 = vpop.f32.mrf.mxu0
  %v592 = vadd.f32 0.0, %v591
  %593 = vdwg.mxu0
  %594 = vmatpush.bf16.msra.mxu0 %v477
  %595 = vmatpush.bf16.msra.mxu0 %v475
  %596 = vmatpush.bf16.msra.mxu0 %v473
  %597 = vmatpush.bf16.msra.mxu0 %v471
  %598 = vmatpush.bf16.msra.mxu0 %v469
  %599 = vmatpush.bf16.msra.mxu0 %v467
  %600 = vmatpush.bf16.msra.mxu0 %v465
  %601 = vmatpush.bf16.msra.mxu0 %v463
  %602 = vmatmul.bf16.gmra.mxu0 %v248
  %v603 = vpop.f32.mrf.mxu0
  %v604 = vadd.f32 %v585, %v603
  %v605 = vpop.f32.mrf.mxu0
  %v606 = vadd.f32 %v587, %v605
  %607 = vmatmul.bf16.gmra.mxu0 %v252
  %v608 = vpop.f32.mrf.mxu0
  %v609 = vadd.f32 %v590, %v608
  %v610 = vpop.f32.mrf.mxu0
  %v611 = vadd.f32 %v592, %v610
  %612 = vdwg.mxu0
  %613 = vmatpush.bf16.msra.mxu0 %v493
  %614 = vmatpush.bf16.msra.mxu0 %v491
  %615 = vmatpush.bf16.msra.mxu0 %v489
  %616 = vmatpush.bf16.msra.mxu0 %v487
  %617 = vmatpush.bf16.msra.mxu0 %v485
  %618 = vmatpush.bf16.msra.mxu0 %v483
  %619 = vmatpush.bf16.msra.mxu0 %v481
  %620 = vmatpush.bf16.msra.mxu0 %v479
  %621 = vmatmul.bf16.gmra.mxu0 %v249
  %v622 = vpop.f32.mrf.mxu0
  %v623 = vadd.f32 %v604, %v622
  %v624 = vpop.f32.mrf.mxu0
  %v625 = vadd.f32 %v606, %v624
  %626 = vmatmul.bf16.gmra.mxu0 %v253
  %v627 = vpop.f32.mrf.mxu0
  %v628 = vadd.f32 %v609, %v627
  %v629 = vpop.f32.mrf.mxu0
  %v630 = vadd.f32 %v611, %v629
  %631 = vdwg.mxu0
  %632 = vmatpush.bf16.msra.mxu0 %v509
  %633 = vmatpush.bf16.msra.mxu0 %v507
  %634 = vmatpush.bf16.msra.mxu0 %v505
  %635 = vmatpush.bf16.msra.mxu0 %v503
  %636 = vmatpush.bf16.msra.mxu0 %v501
  %637 = vmatpush.bf16.msra.mxu0 %v499
  %638 = vmatpush.bf16.msra.mxu0 %v497
  %639 = vmatpush.bf16.msra.mxu0 %v495
  %640 = vmatmul.bf16.gmra.mxu0 %v250
  %v641 = vpop.f32.mrf.mxu0
  %v642 = vadd.f32 %v623, %v641
  %v643 = vpop.f32.mrf.mxu0
  %v644 = vadd.f32 %v625, %v643
  %645 = vmatmul.bf16.gmra.mxu0 %v254
  %v646 = vpop.f32.mrf.mxu0
  %v647 = vadd.f32 %v628, %v646
  %v648 = vpop.f32.mrf.mxu0
  %v649 = vadd.f32 %v630, %v648
  %650 = vdwg.mxu0
  %651 = vmatpush.bf16.msra.mxu0 %v462
  %652 = vmatpush.bf16.msra.mxu0 %v460
  %653 = vmatpush.bf16.msra.mxu0 %v458
  %654 = vmatpush.bf16.msra.mxu0 %v456
  %655 = vmatpush.bf16.msra.mxu0 %v454
  %656 = vmatpush.bf16.msra.mxu0 %v452
  %657 = vmatpush.bf16.msra.mxu0 %v450
  %658 = vmatpush.bf16.msra.mxu0 %v448
  %659 = vmatmul.bf16.gmra.mxu0 %v247
  %v660 = vpop.f32.mrf.mxu0
  %v661 = vadd.f32 0.0, %v660
  %v662 = vpop.f32.mrf.mxu0
  %v663 = vadd.f32 0.0, %v662
  %664 = vmatmul.bf16.gmra.mxu0 %v251
  %v665 = vpop.f32.mrf.mxu0
  %v666 = vadd.f32 0.0, %v665
  %v667 = vpop.f32.mrf.mxu0
  %v668 = vadd.f32 0.0, %v667
  %669 = vdwg.mxu0
  %670 = vmatpush.bf16.msra.mxu0 %v478
  %671 = vmatpush.bf16.msra.mxu0 %v476
  %672 = vmatpush.bf16.msra.mxu0 %v474
  %673 = vmatpush.bf16.msra.mxu0 %v472
  %674 = vmatpush.bf16.msra.mxu0 %v470
  %675 = vmatpush.bf16.msra.mxu0 %v468
  %676 = vmatpush.bf16.msra.mxu0 %v466
  %677 = vmatpush.bf16.msra.mxu0 %v464
  %678 = vmatmul.bf16.gmra.mxu0 %v248
  %v679 = vpop.f32.mrf.mxu0
  %v680 = vadd.f32 %v661, %v679
  %v681 = vpop.f32.mrf.mxu0
  %v682 = vadd.f32 %v663, %v681
  %683 = vmatmul.bf16.gmra.mxu0 %v252
  %v684 = vpop.f32.mrf.mxu0
  %v685 = vadd.f32 %v666, %v684
  %v686 = vpop.f32.mrf.mxu0
  %v687 = vadd.f32 %v668, %v686
  %688 = vdwg.mxu0
  %689 = vmatpush.bf16.msra.mxu0 %v494
  %690 = vmatpush.bf16.msra.mxu0 %v492
  %691 = vmatpush.bf16.msra.mxu0 %v490
  %692 = vmatpush.bf16.msra.mxu0 %v488
  %693 = vmatpush.bf16.msra.mxu0 %v486
  %694 = vmatpush.bf16.msra.mxu0 %v484
  %695 = vmatpush.bf16.msra.mxu0 %v482
  %696 = vmatpush.bf16.msra.mxu0 %v480
  %697 = vmatmul.bf16.gmra.mxu0 %v249
  %v698 = vpop.f32.mrf.mxu0
  %v699 = vadd.f32 %v680, %v698
  %v700 = vpop.f32.mrf.mxu0
  %v701 = vadd.f32 %v682, %v700
  %702 = vmatmul.bf16.gmra.mxu0 %v253
  %v703 = vpop.f32.mrf.mxu0
  %v704 = vadd.f32 %v685, %v703
  %v705 = vpop.f32.mrf.mxu0
  %v706 = vadd.f32 %v687, %v705
  %707 = vdwg.mxu0
  %708 = vmatpush.bf16.msra.mxu0 %v510
  %709 = vmatpush.bf16.msra.mxu0 %v508
  %710 = vmatpush.bf16.msra.mxu0 %v506
  %711 = vmatpush.bf16.msra.mxu0 %v504
  %712 = vmatpush.bf16.msra.mxu0 %v502
  %713 = vmatpush.bf16.msra.mxu0 %v500
  %714 = vmatpush.bf16.msra.mxu0 %v498
  %715 = vmatpush.bf16.msra.mxu0 %v496
  %716 = vmatmul.bf16.gmra.mxu0 %v250
  %v717 = vpop.f32.mrf.mxu0
  %v718 = vadd.f32 %v699, %v717
  %v719 = vpop.f32.mrf.mxu0
  %v720 = vadd.f32 %v701, %v719
  %721 = vmatmul.bf16.gmra.mxu0 %v254
  %v722 = vpop.f32.mrf.mxu0
  %v723 = vadd.f32 %v704, %v722
  %v724 = vpop.f32.mrf.mxu0
  %v725 = vadd.f32 %v706, %v724
  %726 = vdwg.mxu0
  %v727 = vpack.c.bf16 %v718, %v642
  %v728 = vpack.c.bf16 %v720, %v644
  %v729 = vpack.c.bf16 %v723, %v647
  %v730 = vpack.c.bf16 %v725, %v649
  %731 = vst [vmem:[%s4] sm:$0xff] %v727
  %732 = vst [vmem:[%s4 + $0x8] sm:$0xff] %v728
  %733 = vst [vmem:[%s4 + $0x10] sm:$0xff] %v729
  %734 = vst [vmem:[%s4 + $0x18] sm:$0xff] %v730
  // Predicated region
  $region18: #{densenet121_forward.159} parent=0 // pred_check
    _
  $region19: #{densenet121_forward.159} parent=0 // pred_check_branch
    %736 = sbr.rel (0) target = $region21
  $region20: #{densenet121_forward.159} parent=0 // pred_region
    _
  $region21: #{densenet121_forward.159} parent=0 // pred_fallthru
    _
  // Predicated region
  $region22: #{densenet121_forward.159} parent=0 // pred_check
    _
  $region23: #{densenet121_forward.159} parent=0 // pred_check_branch
    %738 = sbr.rel (0) target = $region25
  $region24: #{densenet121_forward.159} parent=0 // pred_region
    _
  $region25: #{densenet121_forward.159} parent=0 // pred_fallthru
    _

// kernel: densenet121_forward.160
$region0: #{densenet121_forward.160}
  #allocation0 [shape = 'u32[]', space=smem, size = 0x4, offset = 0x4, fixed_abs, tag = 'smem constant byte address 0x4 - core index']
  #allocation1 [shape = 'u32[72,128]{1,0:T(1,128)}', space=vmem, size = 0x9000, scoped, tag = 'internal scratch']
  %s0 = inlined_call_operand.vmem [shape: bf16[8,1024], index: 0, kind: input, shape index: {}]
  %s1 = inlined_call_operand.vmem [shape: bf16[1,1024], index: 1, kind: input, shape index: {}]
  %s2 = inlined_call_operand.vmem [shape: bf16[1,1024], index: 2, kind: input, shape index: {}]
  %s3 = inlined_call_operand.vmem [shape: bf16[1024,128], index: 3, kind: input, shape index: {}]
  %s4 = inlined_call_operand.vmem [shape: f32[1,128], index: 4, kind: input, shape index: {}]
  %s5 = inlined_call_operand.vmem [shape: f32[1,128], index: 5, kind: input, shape index: {}]
  %s6 = inlined_call_operand.vmem [shape: bf16[8,128], index: 6, kind: output, shape index: {}]
  %s7 = sld [smem:[#allocation0]]
  $region34: #{densenet121_forward.160} parent=0
    _
  %s9 = ssub.s32 1, %s7
  %s10 = scalar_select 0, %s9, %s7
  // Predicated region
  $region2: #{densenet121_forward.160} parent=0 // pred_check
    _
  $region3: #{densenet121_forward.160} parent=0 // pred_check_branch
    %12 = sbr.rel (0) target = $region5
  $region4: #{densenet121_forward.160} parent=0 // pred_region
    _
  $region5: #{densenet121_forward.160} parent=0 // pred_fallthru
    _
  // Predicated region
  $region6: #{densenet121_forward.160} parent=0 // pred_check
    _
  $region7: #{densenet121_forward.160} parent=0 // pred_check_branch
    %14 = sbr.rel (0) target = $region9
  $region8: #{densenet121_forward.160} parent=0 // pred_region
    _
  $region9: #{densenet121_forward.160} parent=0 // pred_fallthru
    _
  // Predicated region
  $region10: #{densenet121_forward.160} parent=0 // pred_check
    _
  $region11: #{densenet121_forward.160} parent=0 // pred_check_branch
    %16 = sbr.rel (0) target = $region13
  $region12: #{densenet121_forward.160} parent=0 // pred_region
    _
  $region13: #{densenet121_forward.160} parent=0 // pred_fallthru
    _
  // Predicated region
  $region14: #{densenet121_forward.160} parent=0 // pred_check
    _
  $region15: #{densenet121_forward.160} parent=0 // pred_check_branch
    %18 = sbr.rel (0) target = $region17
  $region16: #{densenet121_forward.160} parent=0 // pred_region
    _
  $region17: #{densenet121_forward.160} parent=0 // pred_fallthru
    _
  // Predicated region
  $region18: #{densenet121_forward.160} parent=0 // pred_check
    _
  $region19: #{densenet121_forward.160} parent=0 // pred_check_branch
    %20 = sbr.rel (0) target = $region21
  $region20: #{densenet121_forward.160} parent=0 // pred_region
    _
  $region21: #{densenet121_forward.160} parent=0 // pred_fallthru
    _
  // Predicated region
  $region22: #{densenet121_forward.160} parent=0 // pred_check
    _
  $region23: #{densenet121_forward.160} parent=0 // pred_check_branch
    %22 = sbr.rel (0) target = $region25
  $region24: #{densenet121_forward.160} parent=0 // pred_region
    _
  $region25: #{densenet121_forward.160} parent=0 // pred_fallthru
    _
  %v23 = vld [vmem:[%s0] sm:$0xff]
  %v24 = vld [vmem:[%s0 + $0x8] sm:$0xff]
  %v25 = vld [vmem:[%s0 + $0x10] sm:$0xff]
  %v26 = vld [vmem:[%s0 + $0x18] sm:$0xff]
  %v27 = vld [vmem:[%s3] sm:$0xf]
  %v28 = vld [vmem:[%s3 + $0x4] sm:$0xf]
  %v29 = vld [vmem:[%s3 + $0x8] sm:$0xf]
  %v30 = vld [vmem:[%s3 + $0xc] sm:$0xf]
  %v31 = vld [vmem:[%s3 + $0x10] sm:$0xf]
  %v32 = vld [vmem:[%s3 + $0x14] sm:$0xf]
  %v33 = vld [vmem:[%s3 + $0x18] sm:$0xf]
  %v34 = vld [vmem:[%s3 + $0x1c] sm:$0xf]
  %v35 = vld [vmem:[%s3 + $0x20] sm:$0xf]
  %v36 = vld [vmem:[%s3 + $0x24] sm:$0xf]
  %v37 = vld [vmem:[%s3 + $0x28] sm:$0xf]
  %v38 = vld [vmem:[%s3 + $0x2c] sm:$0xf]
  %v39 = vld [vmem:[%s3 + $0x30] sm:$0xf]
  %v40 = vld [vmem:[%s3 + $0x34] sm:$0xf]
  %v41 = vld [vmem:[%s3 + $0x38] sm:$0xf]
  %v42 = vld [vmem:[%s3 + $0x3c] sm:$0xf]
  %v43 = vld [vmem:[%s3 + $0x40] sm:$0xf]
  %v44 = vld [vmem:[%s3 + $0x44] sm:$0xf]
  %v45 = vld [vmem:[%s3 + $0x48] sm:$0xf]
  %v46 = vld [vmem:[%s3 + $0x4c] sm:$0xf]
  %v47 = vld [vmem:[%s3 + $0x50] sm:$0xf]
  %v48 = vld [vmem:[%s3 + $0x54] sm:$0xf]
  %v49 = vld [vmem:[%s3 + $0x58] sm:$0xf]
  %v50 = vld [vmem:[%s3 + $0x5c] sm:$0xf]
  %v51 = vld [vmem:[%s3 + $0x60] sm:$0xf]
  %v52 = vld [vmem:[%s3 + $0x64] sm:$0xf]
  %v53 = vld [vmem:[%s3 + $0x68] sm:$0xf]
  %v54 = vld [vmem:[%s3 + $0x6c] sm:$0xf]
  %v55 = vld [vmem:[%s3 + $0x70] sm:$0xf]
  %v56 = vld [vmem:[%s3 + $0x74] sm:$0xf]
  %v57 = vld [vmem:[%s3 + $0x78] sm:$0xf]
  %v58 = vld [vmem:[%s3 + $0x7c] sm:$0xf]
  %v59 = vld [vmem:[%s3 + $0x80] sm:$0xf]
  %v60 = vld [vmem:[%s3 + $0x84] sm:$0xf]
  %v61 = vld [vmem:[%s3 + $0x88] sm:$0xf]
  %v62 = vld [vmem:[%s3 + $0x8c] sm:$0xf]
  %v63 = vld [vmem:[%s3 + $0x90] sm:$0xf]
  %v64 = vld [vmem:[%s3 + $0x94] sm:$0xf]
  %v65 = vld [vmem:[%s3 + $0x98] sm:$0xf]
  %v66 = vld [vmem:[%s3 + $0x9c] sm:$0xf]
  %v67 = vld [vmem:[%s3 + $0xa0] sm:$0xf]
  %v68 = vld [vmem:[%s3 + $0xa4] sm:$0xf]
  %v69 = vld [vmem:[%s3 + $0xa8] sm:$0xf]
  %v70 = vld [vmem:[%s3 + $0xac] sm:$0xf]
  %v71 = vld [vmem:[%s3 + $0xb0] sm:$0xf]
  %v72 = vld [vmem:[%s3 + $0xb4] sm:$0xf]
  %v73 = vld [vmem:[%s3 + $0xb8] sm:$0xf]
  %v74 = vld [vmem:[%s3 + $0xbc] sm:$0xf]
  %v75 = vld [vmem:[%s3 + $0xc0] sm:$0xf]
  %v76 = vld [vmem:[%s3 + $0xc4] sm:$0xf]
  %v77 = vld [vmem:[%s3 + $0xc8] sm:$0xf]
  %v78 = vld [vmem:[%s3 + $0xcc] sm:$0xf]
  %v79 = vld [vmem:[%s3 + $0xd0] sm:$0xf]
  %v80 = vld [vmem:[%s3 + $0xd4] sm:$0xf]
  %v81 = vld [vmem:[%s3 + $0xd8] sm:$0xf]
  %v82 = vld [vmem:[%s3 + $0xdc] sm:$0xf]
  %v83 = vld [vmem:[%s3 + $0xe0] sm:$0xf]
  %v84 = vld [vmem:[%s3 + $0xe4] sm:$0xf]
  %v85 = vld [vmem:[%s3 + $0xe8] sm:$0xf]
  %v86 = vld [vmem:[%s3 + $0xec] sm:$0xf]
  %v87 = vld [vmem:[%s3 + $0xf0] sm:$0xf]
  %v88 = vld [vmem:[%s3 + $0xf4] sm:$0xf]
  %v89 = vld [vmem:[%s3 + $0xf8] sm:$0xf]
  %v90 = vld [vmem:[%s3 + $0xfc] sm:$0xf]
  %v91 = vld [vmem:[%s3 + $0x100] sm:$0xf]
  %v92 = vld [vmem:[%s3 + $0x104] sm:$0xf]
  %v93 = vld [vmem:[%s3 + $0x108] sm:$0xf]
  %v94 = vld [vmem:[%s3 + $0x10c] sm:$0xf]
  %v95 = vld [vmem:[%s3 + $0x110] sm:$0xf]
  %v96 = vld [vmem:[%s3 + $0x114] sm:$0xf]
  %v97 = vld [vmem:[%s3 + $0x118] sm:$0xf]
  %v98 = vld [vmem:[%s3 + $0x11c] sm:$0xf]
  %v99 = vld [vmem:[%s3 + $0x120] sm:$0xf]
  %v100 = vld [vmem:[%s3 + $0x124] sm:$0xf]
  %v101 = vld [vmem:[%s3 + $0x128] sm:$0xf]
  %v102 = vld [vmem:[%s3 + $0x12c] sm:$0xf]
  %v103 = vld [vmem:[%s3 + $0x130] sm:$0xf]
  %v104 = vld [vmem:[%s3 + $0x134] sm:$0xf]
  %v105 = vld [vmem:[%s3 + $0x138] sm:$0xf]
  %v106 = vld [vmem:[%s3 + $0x13c] sm:$0xf]
  %v107 = vld [vmem:[%s3 + $0x140] sm:$0xf]
  %v108 = vld [vmem:[%s3 + $0x144] sm:$0xf]
  %v109 = vld [vmem:[%s3 + $0x148] sm:$0xf]
  %v110 = vld [vmem:[%s3 + $0x14c] sm:$0xf]
  %v111 = vld [vmem:[%s3 + $0x150] sm:$0xf]
  %v112 = vld [vmem:[%s3 + $0x154] sm:$0xf]
  %v113 = vld [vmem:[%s3 + $0x158] sm:$0xf]
  %v114 = vld [vmem:[%s3 + $0x15c] sm:$0xf]
  %v115 = vld [vmem:[%s3 + $0x160] sm:$0xf]
  %v116 = vld [vmem:[%s3 + $0x164] sm:$0xf]
  %v117 = vld [vmem:[%s3 + $0x168] sm:$0xf]
  %v118 = vld [vmem:[%s3 + $0x16c] sm:$0xf]
  %v119 = vld [vmem:[%s3 + $0x170] sm:$0xf]
  %v120 = vld [vmem:[%s3 + $0x174] sm:$0xf]
  %v121 = vld [vmem:[%s3 + $0x178] sm:$0xf]
  %v122 = vld [vmem:[%s3 + $0x17c] sm:$0xf]
  %v123 = vld [vmem:[%s3 + $0x180] sm:$0xf]
  %v124 = vld [vmem:[%s3 + $0x184] sm:$0xf]
  %v125 = vld [vmem:[%s3 + $0x188] sm:$0xf]
  %v126 = vld [vmem:[%s3 + $0x18c] sm:$0xf]
  %v127 = vld [vmem:[%s3 + $0x190] sm:$0xf]
  %v128 = vld [vmem:[%s3 + $0x194] sm:$0xf]
  %v129 = vld [vmem:[%s3 + $0x198] sm:$0xf]
  %v130 = vld [vmem:[%s3 + $0x19c] sm:$0xf]
  %v131 = vld [vmem:[%s3 + $0x1a0] sm:$0xf]
  %v132 = vld [vmem:[%s3 + $0x1a4] sm:$0xf]
  %v133 = vld [vmem:[%s3 + $0x1a8] sm:$0xf]
  %v134 = vld [vmem:[%s3 + $0x1ac] sm:$0xf]
  %v135 = vld [vmem:[%s3 + $0x1b0] sm:$0xf]
  %v136 = vld [vmem:[%s3 + $0x1b4] sm:$0xf]
  %v137 = vld [vmem:[%s3 + $0x1b8] sm:$0xf]
  %v138 = vld [vmem:[%s3 + $0x1bc] sm:$0xf]
  %v139 = vld [vmem:[%s3 + $0x1c0] sm:$0xf]
  %v140 = vld [vmem:[%s3 + $0x1c4] sm:$0xf]
  %v141 = vld [vmem:[%s3 + $0x1c8] sm:$0xf]
  %v142 = vld [vmem:[%s3 + $0x1cc] sm:$0xf]
  %v143 = vld [vmem:[%s3 + $0x1d0] sm:$0xf]
  %v144 = vld [vmem:[%s3 + $0x1d4] sm:$0xf]
  %v145 = vld [vmem:[%s3 + $0x1d8] sm:$0xf]
  %v146 = vld [vmem:[%s3 + $0x1dc] sm:$0xf]
  %v147 = vld [vmem:[%s3 + $0x1e0] sm:$0xf]
  %v148 = vld [vmem:[%s3 + $0x1e4] sm:$0xf]
  %v149 = vld [vmem:[%s3 + $0x1e8] sm:$0xf]
  %v150 = vld [vmem:[%s3 + $0x1ec] sm:$0xf]
  %v151 = vld [vmem:[%s3 + $0x1f0] sm:$0xf]
  %v152 = vld [vmem:[%s3 + $0x1f4] sm:$0xf]
  %v153 = vld [vmem:[%s3 + $0x1f8] sm:$0xf]
  %v154 = vld [vmem:[%s3 + $0x1fc] sm:$0xf]
  %v155 = vld [vmem:[%s1] sm:$0xff]
  %157 = vst [vmem:[#allocation1] ss:$9 sm:$0xff] %v155
  %v158 = vld [vmem:[#allocation1] sm:$0xff]
  %v159 = vld [vmem:[#allocation1 + $0x9] sm:$0xff]
  %v160 = vld [vmem:[#allocation1 + $0x12] sm:$0xff]
  %v161 = vld [vmem:[#allocation1 + $0x1b] sm:$0xff]
  %v162 = vld [vmem:[#allocation1 + $0x24] sm:$0xff]
  %v163 = vld [vmem:[#allocation1 + $0x2d] sm:$0xff]
  %v164 = vld [vmem:[#allocation1 + $0x36] sm:$0xff]
  %v165 = vld [vmem:[#allocation1 + $0x3f] sm:$0xff]
  %v166 = vpack.i.b16 %v158, %v158
  %v168 = vperm.slane %v166, 0
  %v169 = vpack.i.b16 %v159, %v159
  %v171 = vperm.slane %v169, 0
  %v172 = vpack.i.b16 %v160, %v160
  %v174 = vperm.slane %v172, 0
  %v175 = vpack.i.b16 %v161, %v161
  %v177 = vperm.slane %v175, 0
  %v178 = vpack.i.b16 %v162, %v162
  %v180 = vperm.slane %v178, 0
  %v181 = vpack.i.b16 %v163, %v163
  %v183 = vperm.slane %v181, 0
  %v184 = vpack.i.b16 %v164, %v164
  %v186 = vperm.slane %v184, 0
  %v187 = vpack.i.b16 %v165, %v165
  %v189 = vperm.slane %v187, 0
  %v190 = vunpack.c.l.bf16 %v23
  %v191 = vunpack.c.h.bf16 %v23
  %v192 = vunpack.c.l.bf16 %v24
  %v193 = vunpack.c.h.bf16 %v24
  %v194 = vunpack.c.l.bf16 %v25
  %v195 = vunpack.c.h.bf16 %v25
  %v196 = vunpack.c.l.bf16 %v26
  %v197 = vunpack.c.h.bf16 %v26
  %v198 = vunpack.c.l.bf16 %v168
  %v199 = vunpack.c.l.bf16 %v171
  %v200 = vunpack.c.l.bf16 %v174
  %v201 = vunpack.c.l.bf16 %v177
  %v202 = vunpack.c.l.bf16 %v180
  %v203 = vunpack.c.l.bf16 %v183
  %v204 = vunpack.c.l.bf16 %v186
  %v205 = vunpack.c.l.bf16 %v189
  %v206 = vmul.f32 %v190, %v198
  %v207 = vmul.f32 %v191, %v199
  %v208 = vmul.f32 %v192, %v200
  %v209 = vmul.f32 %v193, %v201
  %v210 = vmul.f32 %v194, %v202
  %v211 = vmul.f32 %v195, %v203
  %v212 = vmul.f32 %v196, %v204
  %v213 = vmul.f32 %v197, %v205
  %v214 = vpack.c.bf16 %v207, %v206
  %v215 = vpack.c.bf16 %v209, %v208
  %v216 = vpack.c.bf16 %v211, %v210
  %v217 = vpack.c.bf16 %v213, %v212
  %v218 = vld [vmem:[%s2] sm:$0xff]
  %220 = vst [vmem:[#allocation1] ss:$9 sm:$0xff] %v218
  %v221 = vld [vmem:[#allocation1] sm:$0xff]
  %v222 = vld [vmem:[#allocation1 + $0x9] sm:$0xff]
  %v223 = vld [vmem:[#allocation1 + $0x12] sm:$0xff]
  %v224 = vld [vmem:[#allocation1 + $0x1b] sm:$0xff]
  %v225 = vld [vmem:[#allocation1 + $0x24] sm:$0xff]
  %v226 = vld [vmem:[#allocation1 + $0x2d] sm:$0xff]
  %v227 = vld [vmem:[#allocation1 + $0x36] sm:$0xff]
  %v228 = vld [vmem:[#allocation1 + $0x3f] sm:$0xff]
  %v229 = vpack.i.b16 %v221, %v221
  %v231 = vperm.slane %v229, 0
  %v232 = vpack.i.b16 %v222, %v222
  %v234 = vperm.slane %v232, 0
  %v235 = vpack.i.b16 %v223, %v223
  %v237 = vperm.slane %v235, 0
  %v238 = vpack.i.b16 %v224, %v224
  %v240 = vperm.slane %v238, 0
  %v241 = vpack.i.b16 %v225, %v225
  %v243 = vperm.slane %v241, 0
  %v244 = vpack.i.b16 %v226, %v226
  %v246 = vperm.slane %v244, 0
  %v247 = vpack.i.b16 %v227, %v227
  %v249 = vperm.slane %v247, 0
  %v250 = vpack.i.b16 %v228, %v228
  %v252 = vperm.slane %v250, 0
  %v253 = vunpack.c.l.bf16 %v214
  %v254 = vunpack.c.h.bf16 %v214
  %v255 = vunpack.c.l.bf16 %v215
  %v256 = vunpack.c.h.bf16 %v215
  %v257 = vunpack.c.l.bf16 %v216
  %v258 = vunpack.c.h.bf16 %v216
  %v259 = vunpack.c.l.bf16 %v217
  %v260 = vunpack.c.h.bf16 %v217
  %v261 = vunpack.c.l.bf16 %v231
  %v262 = vunpack.c.l.bf16 %v234
  %v263 = vunpack.c.l.bf16 %v237
  %v264 = vunpack.c.l.bf16 %v240
  %v265 = vunpack.c.l.bf16 %v243
  %v266 = vunpack.c.l.bf16 %v246
  %v267 = vunpack.c.l.bf16 %v249
  %v268 = vunpack.c.l.bf16 %v252
  %v269 = vadd.f32 %v253, %v261
  %v270 = vadd.f32 %v254, %v262
  %v271 = vadd.f32 %v255, %v263
  %v272 = vadd.f32 %v256, %v264
  %v273 = vadd.f32 %v257, %v265
  %v274 = vadd.f32 %v258, %v266
  %v275 = vadd.f32 %v259, %v267
  %v276 = vadd.f32 %v260, %v268
  %v277 = vpack.c.bf16 %v270, %v269
  %v278 = vpack.c.bf16 %v272, %v271
  %v279 = vpack.c.bf16 %v274, %v273
  %v280 = vpack.c.bf16 %v276, %v275
  %v281 = vunpack.c.l.bf16 %v277
  %v282 = vunpack.c.h.bf16 %v277
  %v283 = vunpack.c.l.bf16 %v278
  %v284 = vunpack.c.h.bf16 %v278
  %v285 = vunpack.c.l.bf16 %v279
  %v286 = vunpack.c.h.bf16 %v279
  %v287 = vunpack.c.l.bf16 %v280
  %v288 = vunpack.c.h.bf16 %v280
  %v289 = vmax.f32 %v281, 0.0
  %v290 = vmax.f32 %v282, 0.0
  %v291 = vmax.f32 %v283, 0.0
  %v292 = vmax.f32 %v284, 0.0
  %v293 = vmax.f32 %v285, 0.0
  %v294 = vmax.f32 %v286, 0.0
  %v295 = vmax.f32 %v287, 0.0
  %v296 = vmax.f32 %v288, 0.0
  %v297 = vpack.c.bf16 %v289, %v289
  %v298 = vpack.c.bf16 %v290, %v290
  %v299 = vpack.c.bf16 %v291, %v291
  %v300 = vpack.c.bf16 %v292, %v292
  %v301 = vpack.c.bf16 %v293, %v293
  %v302 = vpack.c.bf16 %v294, %v294
  %v303 = vpack.c.bf16 %v295, %v295
  %v304 = vpack.c.bf16 %v296, %v296
  %v433 = vunpack.c.l.b16 %v27
  %v434 = vunpack.c.l.b16 %v28
  %v435 = vunpack.c.l.b16 %v29
  %v436 = vunpack.c.l.b16 %v30
  %v437 = vunpack.c.l.b16 %v31
  %v438 = vunpack.c.l.b16 %v32
  %v439 = vunpack.c.l.b16 %v33
  %v440 = vunpack.c.l.b16 %v34
  %v441 = vunpack.c.l.b16 %v35
  %v442 = vunpack.c.l.b16 %v36
  %v443 = vunpack.c.l.b16 %v37
  %v444 = vunpack.c.l.b16 %v38
  %v445 = vunpack.c.l.b16 %v39
  %v446 = vunpack.c.l.b16 %v40
  %v447 = vunpack.c.l.b16 %v41
  %v448 = vunpack.c.l.b16 %v42
  %v449 = vunpack.c.l.b16 %v43
  %v450 = vunpack.c.l.b16 %v44
  %v451 = vunpack.c.l.b16 %v45
  %v452 = vunpack.c.l.b16 %v46
  %v453 = vunpack.c.l.b16 %v47
  %v454 = vunpack.c.l.b16 %v48
  %v455 = vunpack.c.l.b16 %v49
  %v456 = vunpack.c.l.b16 %v50
  %v457 = vunpack.c.l.b16 %v51
  %v458 = vunpack.c.l.b16 %v52
  %v459 = vunpack.c.l.b16 %v53
  %v460 = vunpack.c.l.b16 %v54
  %v461 = vunpack.c.l.b16 %v55
  %v462 = vunpack.c.l.b16 %v56
  %v463 = vunpack.c.l.b16 %v57
  %v464 = vunpack.c.l.b16 %v58
  %v465 = vunpack.c.l.b16 %v59
  %v466 = vunpack.c.l.b16 %v60
  %v467 = vunpack.c.l.b16 %v61
  %v468 = vunpack.c.l.b16 %v62
  %v469 = vunpack.c.l.b16 %v63
  %v470 = vunpack.c.l.b16 %v64
  %v471 = vunpack.c.l.b16 %v65
  %v472 = vunpack.c.l.b16 %v66
  %v473 = vunpack.c.l.b16 %v67
  %v474 = vunpack.c.l.b16 %v68
  %v475 = vunpack.c.l.b16 %v69
  %v476 = vunpack.c.l.b16 %v70
  %v477 = vunpack.c.l.b16 %v71
  %v478 = vunpack.c.l.b16 %v72
  %v479 = vunpack.c.l.b16 %v73
  %v480 = vunpack.c.l.b16 %v74
  %v481 = vunpack.c.l.b16 %v75
  %v482 = vunpack.c.l.b16 %v76
  %v483 = vunpack.c.l.b16 %v77
  %v484 = vunpack.c.l.b16 %v78
  %v485 = vunpack.c.l.b16 %v79
  %v486 = vunpack.c.l.b16 %v80
  %v487 = vunpack.c.l.b16 %v81
  %v488 = vunpack.c.l.b16 %v82
  %v489 = vunpack.c.l.b16 %v83
  %v490 = vunpack.c.l.b16 %v84
  %v491 = vunpack.c.l.b16 %v85
  %v492 = vunpack.c.l.b16 %v86
  %v493 = vunpack.c.l.b16 %v87
  %v494 = vunpack.c.l.b16 %v88
  %v495 = vunpack.c.l.b16 %v89
  %v496 = vunpack.c.l.b16 %v90
  %v497 = vunpack.c.l.b16 %v91
  %v498 = vunpack.c.l.b16 %v92
  %v499 = vunpack.c.l.b16 %v93
  %v500 = vunpack.c.l.b16 %v94
  %v501 = vunpack.c.l.b16 %v95
  %v502 = vunpack.c.l.b16 %v96
  %v503 = vunpack.c.l.b16 %v97
  %v504 = vunpack.c.l.b16 %v98
  %v505 = vunpack.c.l.b16 %v99
  %v506 = vunpack.c.l.b16 %v100
  %v507 = vunpack.c.l.b16 %v101
  %v508 = vunpack.c.l.b16 %v102
  %v509 = vunpack.c.l.b16 %v103
  %v510 = vunpack.c.l.b16 %v104
  %v511 = vunpack.c.l.b16 %v105
  %v512 = vunpack.c.l.b16 %v106
  %v513 = vunpack.c.l.b16 %v107
  %v514 = vunpack.c.l.b16 %v108
  %v515 = vunpack.c.l.b16 %v109
  %v516 = vunpack.c.l.b16 %v110
  %v517 = vunpack.c.l.b16 %v111
  %v518 = vunpack.c.l.b16 %v112
  %v519 = vunpack.c.l.b16 %v113
  %v520 = vunpack.c.l.b16 %v114
  %v521 = vunpack.c.l.b16 %v115
  %v522 = vunpack.c.l.b16 %v116
  %v523 = vunpack.c.l.b16 %v117
  %v524 = vunpack.c.l.b16 %v118
  %v525 = vunpack.c.l.b16 %v119
  %v526 = vunpack.c.l.b16 %v120
  %v527 = vunpack.c.l.b16 %v121
  %v528 = vunpack.c.l.b16 %v122
  %v529 = vunpack.c.l.b16 %v123
  %v530 = vunpack.c.l.b16 %v124
  %v531 = vunpack.c.l.b16 %v125
  %v532 = vunpack.c.l.b16 %v126
  %v533 = vunpack.c.l.b16 %v127
  %v534 = vunpack.c.l.b16 %v128
  %v535 = vunpack.c.l.b16 %v129
  %v536 = vunpack.c.l.b16 %v130
  %v537 = vunpack.c.l.b16 %v131
  %v538 = vunpack.c.l.b16 %v132
  %v539 = vunpack.c.l.b16 %v133
  %v540 = vunpack.c.l.b16 %v134
  %v541 = vunpack.c.l.b16 %v135
  %v542 = vunpack.c.l.b16 %v136
  %v543 = vunpack.c.l.b16 %v137
  %v544 = vunpack.c.l.b16 %v138
  %v545 = vunpack.c.l.b16 %v139
  %v546 = vunpack.c.l.b16 %v140
  %v547 = vunpack.c.l.b16 %v141
  %v548 = vunpack.c.l.b16 %v142
  %v549 = vunpack.c.l.b16 %v143
  %v550 = vunpack.c.l.b16 %v144
  %v551 = vunpack.c.l.b16 %v145
  %v552 = vunpack.c.l.b16 %v146
  %v553 = vunpack.c.l.b16 %v147
  %v554 = vunpack.c.l.b16 %v148
  %v555 = vunpack.c.l.b16 %v149
  %v556 = vunpack.c.l.b16 %v150
  %v557 = vunpack.c.l.b16 %v151
  %v558 = vunpack.c.l.b16 %v152
  %v559 = vunpack.c.l.b16 %v153
  %v560 = vunpack.c.l.b16 %v154
  %v561 = vpack.c.b16 %v434, %v433
  %v562 = vpack.c.b16 %v436, %v435
  %v563 = vpack.c.b16 %v438, %v437
  %v564 = vpack.c.b16 %v440, %v439
  %v565 = vpack.c.b16 %v442, %v441
  %v566 = vpack.c.b16 %v444, %v443
  %v567 = vpack.c.b16 %v446, %v445
  %v568 = vpack.c.b16 %v448, %v447
  %v569 = vpack.c.b16 %v450, %v449
  %v570 = vpack.c.b16 %v452, %v451
  %v571 = vpack.c.b16 %v454, %v453
  %v572 = vpack.c.b16 %v456, %v455
  %v573 = vpack.c.b16 %v458, %v457
  %v574 = vpack.c.b16 %v460, %v459
  %v575 = vpack.c.b16 %v462, %v461
  %v576 = vpack.c.b16 %v464, %v463
  %v577 = vpack.c.b16 %v466, %v465
  %v578 = vpack.c.b16 %v468, %v467
  %v579 = vpack.c.b16 %v470, %v469
  %v580 = vpack.c.b16 %v472, %v471
  %v581 = vpack.c.b16 %v474, %v473
  %v582 = vpack.c.b16 %v476, %v475
  %v583 = vpack.c.b16 %v478, %v477
  %v584 = vpack.c.b16 %v480, %v479
  %v585 = vpack.c.b16 %v482, %v481
  %v586 = vpack.c.b16 %v484, %v483
  %v587 = vpack.c.b16 %v486, %v485
  %v588 = vpack.c.b16 %v488, %v487
  %v589 = vpack.c.b16 %v490, %v489
  %v590 = vpack.c.b16 %v492, %v491
  %v591 = vpack.c.b16 %v494, %v493
  %v592 = vpack.c.b16 %v496, %v495
  %v593 = vpack.c.b16 %v498, %v497
  %v594 = vpack.c.b16 %v500, %v499
  %v595 = vpack.c.b16 %v502, %v501
  %v596 = vpack.c.b16 %v504, %v503
  %v597 = vpack.c.b16 %v506, %v505
  %v598 = vpack.c.b16 %v508, %v507
  %v599 = vpack.c.b16 %v510, %v509
  %v600 = vpack.c.b16 %v512, %v511
  %v601 = vpack.c.b16 %v514, %v513
  %v602 = vpack.c.b16 %v516, %v515
  %v603 = vpack.c.b16 %v518, %v517
  %v604 = vpack.c.b16 %v520, %v519
  %v605 = vpack.c.b16 %v522, %v521
  %v606 = vpack.c.b16 %v524, %v523
  %v607 = vpack.c.b16 %v526, %v525
  %v608 = vpack.c.b16 %v528, %v527
  %v609 = vpack.c.b16 %v530, %v529
  %v610 = vpack.c.b16 %v532, %v531
  %v611 = vpack.c.b16 %v534, %v533
  %v612 = vpack.c.b16 %v536, %v535
  %v613 = vpack.c.b16 %v538, %v537
  %v614 = vpack.c.b16 %v540, %v539
  %v615 = vpack.c.b16 %v542, %v541
  %v616 = vpack.c.b16 %v544, %v543
  %v617 = vpack.c.b16 %v546, %v545
  %v618 = vpack.c.b16 %v548, %v547
  %v619 = vpack.c.b16 %v550, %v549
  %v620 = vpack.c.b16 %v552, %v551
  %v621 = vpack.c.b16 %v554, %v553
  %v622 = vpack.c.b16 %v556, %v555
  %v623 = vpack.c.b16 %v558, %v557
  %v624 = vpack.c.b16 %v560, %v559
  %689 = vmatpush.bf16.msra.mxu0 %v568
  %690 = vmatpush.bf16.msra.mxu0 %v567
  %691 = vmatpush.bf16.msra.mxu0 %v566
  %692 = vmatpush.bf16.msra.mxu0 %v565
  %693 = vmatpush.bf16.msra.mxu0 %v564
  %694 = vmatpush.bf16.msra.mxu0 %v563
  %695 = vmatpush.bf16.msra.mxu0 %v562
  %696 = vmatpush.bf16.msra.mxu0 %v561
  %697 = vmatmul.bf16.gmra.mxu0 %v297
  %v698 = vpop.f32.mrf.mxu0
  %v699 = vadd.f32 0.0, %v698
  %v700 = vpop.f32.mrf.mxu0
  %701 = vdwg.mxu0
  %702 = vmatpush.bf16.msra.mxu0 %v576
  %703 = vmatpush.bf16.msra.mxu0 %v575
  %704 = vmatpush.bf16.msra.mxu0 %v574
  %705 = vmatpush.bf16.msra.mxu0 %v573
  %706 = vmatpush.bf16.msra.mxu0 %v572
  %707 = vmatpush.bf16.msra.mxu0 %v571
  %708 = vmatpush.bf16.msra.mxu0 %v570
  %709 = vmatpush.bf16.msra.mxu0 %v569
  %710 = vmatmul.bf16.gmra.mxu0 %v298
  %v711 = vpop.f32.mrf.mxu0
  %v712 = vadd.f32 %v699, %v711
  %v713 = vpop.f32.mrf.mxu0
  %714 = vdwg.mxu0
  %715 = vmatpush.bf16.msra.mxu0 %v584
  %716 = vmatpush.bf16.msra.mxu0 %v583
  %717 = vmatpush.bf16.msra.mxu0 %v582
  %718 = vmatpush.bf16.msra.mxu0 %v581
  %719 = vmatpush.bf16.msra.mxu0 %v580
  %720 = vmatpush.bf16.msra.mxu0 %v579
  %721 = vmatpush.bf16.msra.mxu0 %v578
  %722 = vmatpush.bf16.msra.mxu0 %v577
  %723 = vmatmul.bf16.gmra.mxu0 %v299
  %v724 = vpop.f32.mrf.mxu0
  %v725 = vadd.f32 %v712, %v724
  %v726 = vpop.f32.mrf.mxu0
  %727 = vdwg.mxu0
  %728 = vmatpush.bf16.msra.mxu0 %v592
  %729 = vmatpush.bf16.msra.mxu0 %v591
  %730 = vmatpush.bf16.msra.mxu0 %v590
  %731 = vmatpush.bf16.msra.mxu0 %v589
  %732 = vmatpush.bf16.msra.mxu0 %v588
  %733 = vmatpush.bf16.msra.mxu0 %v587
  %734 = vmatpush.bf16.msra.mxu0 %v586
  %735 = vmatpush.bf16.msra.mxu0 %v585
  %736 = vmatmul.bf16.gmra.mxu0 %v300
  %v737 = vpop.f32.mrf.mxu0
  %v738 = vadd.f32 %v725, %v737
  %v739 = vpop.f32.mrf.mxu0
  %740 = vdwg.mxu0
  %741 = vmatpush.bf16.msra.mxu0 %v600
  %742 = vmatpush.bf16.msra.mxu0 %v599
  %743 = vmatpush.bf16.msra.mxu0 %v598
  %744 = vmatpush.bf16.msra.mxu0 %v597
  %745 = vmatpush.bf16.msra.mxu0 %v596
  %746 = vmatpush.bf16.msra.mxu0 %v595
  %747 = vmatpush.bf16.msra.mxu0 %v594
  %748 = vmatpush.bf16.msra.mxu0 %v593
  %749 = vmatmul.bf16.gmra.mxu0 %v301
  %v750 = vpop.f32.mrf.mxu0
  %v751 = vadd.f32 %v738, %v750
  %v752 = vpop.f32.mrf.mxu0
  %753 = vdwg.mxu0
  %754 = vmatpush.bf16.msra.mxu0 %v608
  %755 = vmatpush.bf16.msra.mxu0 %v607
  %756 = vmatpush.bf16.msra.mxu0 %v606
  %757 = vmatpush.bf16.msra.mxu0 %v605
  %758 = vmatpush.bf16.msra.mxu0 %v604
  %759 = vmatpush.bf16.msra.mxu0 %v603
  %760 = vmatpush.bf16.msra.mxu0 %v602
  %761 = vmatpush.bf16.msra.mxu0 %v601
  %762 = vmatmul.bf16.gmra.mxu0 %v302
  %v763 = vpop.f32.mrf.mxu0
  %v764 = vadd.f32 %v751, %v763
  %v765 = vpop.f32.mrf.mxu0
  %766 = vdwg.mxu0
  %767 = vmatpush.bf16.msra.mxu0 %v616
  %768 = vmatpush.bf16.msra.mxu0 %v615
  %769 = vmatpush.bf16.msra.mxu0 %v614
  %770 = vmatpush.bf16.msra.mxu0 %v613
  %771 = vmatpush.bf16.msra.mxu0 %v612
  %772 = vmatpush.bf16.msra.mxu0 %v611
  %773 = vmatpush.bf16.msra.mxu0 %v610
  %774 = vmatpush.bf16.msra.mxu0 %v609
  %775 = vmatmul.bf16.gmra.mxu0 %v303
  %v776 = vpop.f32.mrf.mxu0
  %v777 = vadd.f32 %v764, %v776
  %v778 = vpop.f32.mrf.mxu0
  %779 = vdwg.mxu0
  %780 = vmatpush.bf16.msra.mxu0 %v624
  %781 = vmatpush.bf16.msra.mxu0 %v623
  %782 = vmatpush.bf16.msra.mxu0 %v622
  %783 = vmatpush.bf16.msra.mxu0 %v621
  %784 = vmatpush.bf16.msra.mxu0 %v620
  %785 = vmatpush.bf16.msra.mxu0 %v619
  %786 = vmatpush.bf16.msra.mxu0 %v618
  %787 = vmatpush.bf16.msra.mxu0 %v617
  %788 = vmatmul.bf16.gmra.mxu0 %v304
  %v789 = vpop.f32.mrf.mxu0
  %v790 = vadd.f32 %v777, %v789
  %v791 = vpop.f32.mrf.mxu0
  %792 = vdwg.mxu0
  %v793 = vld [vmem:[%s4] sm:$0x1]
  %v795 = vperm.slane %v793, 0
  %v797 = vmul.f32 %v790, %v795
  %v798 = vld [vmem:[%s5] sm:$0x1]
  %v800 = vperm.slane %v798, 0
  %v802 = vadd.f32 %v797, %v800
  %v803 = vmax.f32 %v802, 0.0
  %v804 = vpack.c.bf16 %v803, %v803
  %805 = vst [vmem:[%s6] sm:$0xf] %v804
  // Predicated region
  $region26: #{densenet121_forward.160} parent=0 // pred_check
    _
  $region27: #{densenet121_forward.160} parent=0 // pred_check_branch
    %807 = sbr.rel (0) target = $region29
  $region28: #{densenet121_forward.160} parent=0 // pred_region
    _
  $region29: #{densenet121_forward.160} parent=0 // pred_fallthru
    _
  // Predicated region
  $region30: #{densenet121_forward.160} parent=0 // pred_check
    _
  $region31: #{densenet121_forward.160} parent=0 // pred_check_branch
    %809 = sbr.rel (0) target = $region33
  $region32: #{densenet121_forward.160} parent=0 // pred_region
    _
  $region33: #{densenet121_forward.160} parent=0 // pred_fallthru
    _

// kernel: densenet121_forward.161
$region0: #{densenet121_forward.161}
  #allocation0 [shape = 'u32[]', space=smem, size = 0x4, offset = 0x4, fixed_abs, tag = 'smem constant byte address 0x4 - core index']
  #allocation1 [shape = 'u32[72,128]{1,0:T(1,128)}', space=vmem, size = 0x9000, scoped, tag = 'internal scratch']
  %s0 = inlined_call_operand.vmem [shape: bf16[8,1152], index: 0, kind: input, shape index: {}]
  %s1 = inlined_call_operand.vmem [shape: bf16[1152,32], index: 1, kind: input, shape index: {}]
  %s2 = inlined_call_operand.vmem [shape: bf16[8,32], index: 2, kind: output, shape index: {}]
  %s3 = sld [smem:[#allocation0]]
  $region18: #{densenet121_forward.161} parent=0
    _
  %s5 = ssub.s32 1, %s3
  %s6 = scalar_select 0, %s5, %s3
  // Predicated region
  $region2: #{densenet121_forward.161} parent=0 // pred_check
    _
  $region3: #{densenet121_forward.161} parent=0 // pred_check_branch
    %8 = sbr.rel (0) target = $region5
  $region4: #{densenet121_forward.161} parent=0 // pred_region
    _
  $region5: #{densenet121_forward.161} parent=0 // pred_fallthru
    _
  // Predicated region
  $region6: #{densenet121_forward.161} parent=0 // pred_check
    _
  $region7: #{densenet121_forward.161} parent=0 // pred_check_branch
    %10 = sbr.rel (0) target = $region9
  $region8: #{densenet121_forward.161} parent=0 // pred_region
    _
  $region9: #{densenet121_forward.161} parent=0 // pred_fallthru
    _
  %v11 = vld [vmem:[%s0] sm:$0xff]
  %v12 = vld [vmem:[%s0 + $0x8] sm:$0xff]
  %v13 = vld [vmem:[%s0 + $0x10] sm:$0xff]
  %v14 = vld [vmem:[%s0 + $0x18] sm:$0xff]
  %v15 = vld [vmem:[%s0 + $0x20] sm:$0xf]
  %v16 = vld [vmem:[%s1] sm:$0xf]
  %v17 = vld [vmem:[%s1 + $0x4] sm:$0xf]
  %v18 = vld [vmem:[%s1 + $0x8] sm:$0xf]
  %v19 = vld [vmem:[%s1 + $0xc] sm:$0xf]
  %v20 = vld [vmem:[%s1 + $0x10] sm:$0xf]
  %v21 = vld [vmem:[%s1 + $0x14] sm:$0xf]
  %v22 = vld [vmem:[%s1 + $0x18] sm:$0xf]
  %v23 = vld [vmem:[%s1 + $0x1c] sm:$0xf]
  %v24 = vld [vmem:[%s1 + $0x20] sm:$0xf]
  %v25 = vld [vmem:[%s1 + $0x24] sm:$0xf]
  %v26 = vld [vmem:[%s1 + $0x28] sm:$0xf]
  %v27 = vld [vmem:[%s1 + $0x2c] sm:$0xf]
  %v28 = vld [vmem:[%s1 + $0x30] sm:$0xf]
  %v29 = vld [vmem:[%s1 + $0x34] sm:$0xf]
  %v30 = vld [vmem:[%s1 + $0x38] sm:$0xf]
  %v31 = vld [vmem:[%s1 + $0x3c] sm:$0xf]
  %v32 = vld [vmem:[%s1 + $0x40] sm:$0xf]
  %v33 = vld [vmem:[%s1 + $0x44] sm:$0xf]
  %v34 = vld [vmem:[%s1 + $0x48] sm:$0xf]
  %v35 = vld [vmem:[%s1 + $0x4c] sm:$0xf]
  %v36 = vld [vmem:[%s1 + $0x50] sm:$0xf]
  %v37 = vld [vmem:[%s1 + $0x54] sm:$0xf]
  %v38 = vld [vmem:[%s1 + $0x58] sm:$0xf]
  %v39 = vld [vmem:[%s1 + $0x5c] sm:$0xf]
  %v40 = vld [vmem:[%s1 + $0x60] sm:$0xf]
  %v41 = vld [vmem:[%s1 + $0x64] sm:$0xf]
  %v42 = vld [vmem:[%s1 + $0x68] sm:$0xf]
  %v43 = vld [vmem:[%s1 + $0x6c] sm:$0xf]
  %v44 = vld [vmem:[%s1 + $0x70] sm:$0xf]
  %v45 = vld [vmem:[%s1 + $0x74] sm:$0xf]
  %v46 = vld [vmem:[%s1 + $0x78] sm:$0xf]
  %v47 = vld [vmem:[%s1 + $0x7c] sm:$0xf]
  %v48 = vld [vmem:[%s1 + $0x80] sm:$0xf]
  %v49 = vld [vmem:[%s1 + $0x84] sm:$0xf]
  %v50 = vld [vmem:[%s1 + $0x88] sm:$0xf]
  %v51 = vld [vmem:[%s1 + $0x8c] sm:$0xf]
  %v52 = vld [vmem:[%s1 + $0x90] sm:$0xf]
  %v53 = vld [vmem:[%s1 + $0x94] sm:$0xf]
  %v54 = vld [vmem:[%s1 + $0x98] sm:$0xf]
  %v55 = vld [vmem:[%s1 + $0x9c] sm:$0xf]
  %v56 = vld [vmem:[%s1 + $0xa0] sm:$0xf]
  %v57 = vld [vmem:[%s1 + $0xa4] sm:$0xf]
  %v58 = vld [vmem:[%s1 + $0xa8] sm:$0xf]
  %v59 = vld [vmem:[%s1 + $0xac] sm:$0xf]
  %v60 = vld [vmem:[%s1 + $0xb0] sm:$0xf]
  %v61 = vld [vmem:[%s1 + $0xb4] sm:$0xf]
  %v62 = vld [vmem:[%s1 + $0xb8] sm:$0xf]
  %v63 = vld [vmem:[%s1 + $0xbc] sm:$0xf]
  %v64 = vld [vmem:[%s1 + $0xc0] sm:$0xf]
  %v65 = vld [vmem:[%s1 + $0xc4] sm:$0xf]
  %v66 = vld [vmem:[%s1 + $0xc8] sm:$0xf]
  %v67 = vld [vmem:[%s1 + $0xcc] sm:$0xf]
  %v68 = vld [vmem:[%s1 + $0xd0] sm:$0xf]
  %v69 = vld [vmem:[%s1 + $0xd4] sm:$0xf]
  %v70 = vld [vmem:[%s1 + $0xd8] sm:$0xf]
  %v71 = vld [vmem:[%s1 + $0xdc] sm:$0xf]
  %v72 = vld [vmem:[%s1 + $0xe0] sm:$0xf]
  %v73 = vld [vmem:[%s1 + $0xe4] sm:$0xf]
  %v74 = vld [vmem:[%s1 + $0xe8] sm:$0xf]
  %v75 = vld [vmem:[%s1 + $0xec] sm:$0xf]
  %v76 = vld [vmem:[%s1 + $0xf0] sm:$0xf]
  %v77 = vld [vmem:[%s1 + $0xf4] sm:$0xf]
  %v78 = vld [vmem:[%s1 + $0xf8] sm:$0xf]
  %v79 = vld [vmem:[%s1 + $0xfc] sm:$0xf]
  %v80 = vld [vmem:[%s1 + $0x100] sm:$0xf]
  %v81 = vld [vmem:[%s1 + $0x104] sm:$0xf]
  %v82 = vld [vmem:[%s1 + $0x108] sm:$0xf]
  %v83 = vld [vmem:[%s1 + $0x10c] sm:$0xf]
  %v84 = vld [vmem:[%s1 + $0x110] sm:$0xf]
  %v85 = vld [vmem:[%s1 + $0x114] sm:$0xf]
  %v86 = vld [vmem:[%s1 + $0x118] sm:$0xf]
  %v87 = vld [vmem:[%s1 + $0x11c] sm:$0xf]
  %v88 = vld [vmem:[%s1 + $0x120] sm:$0xf]
  %v89 = vld [vmem:[%s1 + $0x124] sm:$0xf]
  %v90 = vld [vmem:[%s1 + $0x128] sm:$0xf]
  %v91 = vld [vmem:[%s1 + $0x12c] sm:$0xf]
  %v92 = vld [vmem:[%s1 + $0x130] sm:$0xf]
  %v93 = vld [vmem:[%s1 + $0x134] sm:$0xf]
  %v94 = vld [vmem:[%s1 + $0x138] sm:$0xf]
  %v95 = vld [vmem:[%s1 + $0x13c] sm:$0xf]
  %v96 = vld [vmem:[%s1 + $0x140] sm:$0xf]
  %v97 = vld [vmem:[%s1 + $0x144] sm:$0xf]
  %v98 = vld [vmem:[%s1 + $0x148] sm:$0xf]
  %v99 = vld [vmem:[%s1 + $0x14c] sm:$0xf]
  %v100 = vld [vmem:[%s1 + $0x150] sm:$0xf]
  %v101 = vld [vmem:[%s1 + $0x154] sm:$0xf]
  %v102 = vld [vmem:[%s1 + $0x158] sm:$0xf]
  %v103 = vld [vmem:[%s1 + $0x15c] sm:$0xf]
  %v104 = vld [vmem:[%s1 + $0x160] sm:$0xf]
  %v105 = vld [vmem:[%s1 + $0x164] sm:$0xf]
  %v106 = vld [vmem:[%s1 + $0x168] sm:$0xf]
  %v107 = vld [vmem:[%s1 + $0x16c] sm:$0xf]
  %v108 = vld [vmem:[%s1 + $0x170] sm:$0xf]
  %v109 = vld [vmem:[%s1 + $0x174] sm:$0xf]
  %v110 = vld [vmem:[%s1 + $0x178] sm:$0xf]
  %v111 = vld [vmem:[%s1 + $0x17c] sm:$0xf]
  %v112 = vld [vmem:[%s1 + $0x180] sm:$0xf]
  %v113 = vld [vmem:[%s1 + $0x184] sm:$0xf]
  %v114 = vld [vmem:[%s1 + $0x188] sm:$0xf]
  %v115 = vld [vmem:[%s1 + $0x18c] sm:$0xf]
  %v116 = vld [vmem:[%s1 + $0x190] sm:$0xf]
  %v117 = vld [vmem:[%s1 + $0x194] sm:$0xf]
  %v118 = vld [vmem:[%s1 + $0x198] sm:$0xf]
  %v119 = vld [vmem:[%s1 + $0x19c] sm:$0xf]
  %v120 = vld [vmem:[%s1 + $0x1a0] sm:$0xf]
  %v121 = vld [vmem:[%s1 + $0x1a4] sm:$0xf]
  %v122 = vld [vmem:[%s1 + $0x1a8] sm:$0xf]
  %v123 = vld [vmem:[%s1 + $0x1ac] sm:$0xf]
  %v124 = vld [vmem:[%s1 + $0x1b0] sm:$0xf]
  %v125 = vld [vmem:[%s1 + $0x1b4] sm:$0xf]
  %v126 = vld [vmem:[%s1 + $0x1b8] sm:$0xf]
  %v127 = vld [vmem:[%s1 + $0x1bc] sm:$0xf]
  %v128 = vld [vmem:[%s1 + $0x1c0] sm:$0xf]
  %v129 = vld [vmem:[%s1 + $0x1c4] sm:$0xf]
  %v130 = vld [vmem:[%s1 + $0x1c8] sm:$0xf]
  %v131 = vld [vmem:[%s1 + $0x1cc] sm:$0xf]
  %v132 = vld [vmem:[%s1 + $0x1d0] sm:$0xf]
  %v133 = vld [vmem:[%s1 + $0x1d4] sm:$0xf]
  %v134 = vld [vmem:[%s1 + $0x1d8] sm:$0xf]
  %v135 = vld [vmem:[%s1 + $0x1dc] sm:$0xf]
  %v136 = vld [vmem:[%s1 + $0x1e0] sm:$0xf]
  %v137 = vld [vmem:[%s1 + $0x1e4] sm:$0xf]
  %v138 = vld [vmem:[%s1 + $0x1e8] sm:$0xf]
  %v139 = vld [vmem:[%s1 + $0x1ec] sm:$0xf]
  %v140 = vld [vmem:[%s1 + $0x1f0] sm:$0xf]
  %v141 = vld [vmem:[%s1 + $0x1f4] sm:$0xf]
  %v142 = vld [vmem:[%s1 + $0x1f8] sm:$0xf]
  %v143 = vld [vmem:[%s1 + $0x1fc] sm:$0xf]
  %v144 = vld [vmem:[%s1 + $0x200] sm:$0xf]
  %v145 = vld [vmem:[%s1 + $0x204] sm:$0xf]
  %v146 = vld [vmem:[%s1 + $0x208] sm:$0xf]
  %v147 = vld [vmem:[%s1 + $0x20c] sm:$0xf]
  %v148 = vld [vmem:[%s1 + $0x210] sm:$0xf]
  %v149 = vld [vmem:[%s1 + $0x214] sm:$0xf]
  %v150 = vld [vmem:[%s1 + $0x218] sm:$0xf]
  %v151 = vld [vmem:[%s1 + $0x21c] sm:$0xf]
  %v152 = vld [vmem:[%s1 + $0x220] sm:$0xf]
  %v153 = vld [vmem:[%s1 + $0x224] sm:$0xf]
  %v154 = vld [vmem:[%s1 + $0x228] sm:$0xf]
  %v155 = vld [vmem:[%s1 + $0x22c] sm:$0xf]
  %v156 = vld [vmem:[%s1 + $0x230] sm:$0xf]
  %v157 = vld [vmem:[%s1 + $0x234] sm:$0xf]
  %v158 = vld [vmem:[%s1 + $0x238] sm:$0xf]
  %v159 = vld [vmem:[%s1 + $0x23c] sm:$0xf]
  %v165 = vunpack.c.l.b16 %v11
  %v166 = vunpack.c.h.b16 %v11
  %v167 = vunpack.c.l.b16 %v12
  %v168 = vunpack.c.h.b16 %v12
  %v169 = vunpack.c.l.b16 %v13
  %v170 = vunpack.c.h.b16 %v13
  %v171 = vunpack.c.l.b16 %v14
  %v172 = vunpack.c.h.b16 %v14
  %v173 = vunpack.c.l.b16 %v15
  %v174 = vpack.c.b16 %v165, %v165
  %v175 = vpack.c.b16 %v166, %v166
  %v176 = vpack.c.b16 %v167, %v167
  %v177 = vpack.c.b16 %v168, %v168
  %v178 = vpack.c.b16 %v169, %v169
  %v179 = vpack.c.b16 %v170, %v170
  %v180 = vpack.c.b16 %v171, %v171
  %v181 = vpack.c.b16 %v172, %v172
  %v182 = vpack.c.b16 %v173, %v173
  %v336 = vunpack.c.l.b16 %v16
  %v337 = vunpack.c.l.b16 %v17
  %v338 = vunpack.c.l.b16 %v18
  %v339 = vunpack.c.l.b16 %v19
  %v340 = vunpack.c.l.b16 %v20
  %v341 = vunpack.c.l.b16 %v21
  %v342 = vunpack.c.l.b16 %v22
  %v343 = vunpack.c.l.b16 %v23
  %v344 = vunpack.c.l.b16 %v24
  %v345 = vunpack.c.l.b16 %v25
  %v346 = vunpack.c.l.b16 %v26
  %v347 = vunpack.c.l.b16 %v27
  %v348 = vunpack.c.l.b16 %v28
  %v349 = vunpack.c.l.b16 %v29
  %v350 = vunpack.c.l.b16 %v30
  %v351 = vunpack.c.l.b16 %v31
  %v352 = vunpack.c.l.b16 %v32
  %v353 = vunpack.c.l.b16 %v33
  %v354 = vunpack.c.l.b16 %v34
  %v355 = vunpack.c.l.b16 %v35
  %v356 = vunpack.c.l.b16 %v36
  %v357 = vunpack.c.l.b16 %v37
  %v358 = vunpack.c.l.b16 %v38
  %v359 = vunpack.c.l.b16 %v39
  %v360 = vunpack.c.l.b16 %v40
  %v361 = vunpack.c.l.b16 %v41
  %v362 = vunpack.c.l.b16 %v42
  %v363 = vunpack.c.l.b16 %v43
  %v364 = vunpack.c.l.b16 %v44
  %v365 = vunpack.c.l.b16 %v45
  %v366 = vunpack.c.l.b16 %v46
  %v367 = vunpack.c.l.b16 %v47
  %v368 = vunpack.c.l.b16 %v48
  %v369 = vunpack.c.l.b16 %v49
  %v370 = vunpack.c.l.b16 %v50
  %v371 = vunpack.c.l.b16 %v51
  %v372 = vunpack.c.l.b16 %v52
  %v373 = vunpack.c.l.b16 %v53
  %v374 = vunpack.c.l.b16 %v54
  %v375 = vunpack.c.l.b16 %v55
  %v376 = vunpack.c.l.b16 %v56
  %v377 = vunpack.c.l.b16 %v57
  %v378 = vunpack.c.l.b16 %v58
  %v379 = vunpack.c.l.b16 %v59
  %v380 = vunpack.c.l.b16 %v60
  %v381 = vunpack.c.l.b16 %v61
  %v382 = vunpack.c.l.b16 %v62
  %v383 = vunpack.c.l.b16 %v63
  %v384 = vunpack.c.l.b16 %v64
  %v385 = vunpack.c.l.b16 %v65
  %v386 = vunpack.c.l.b16 %v66
  %v387 = vunpack.c.l.b16 %v67
  %v388 = vunpack.c.l.b16 %v68
  %v389 = vunpack.c.l.b16 %v69
  %v390 = vunpack.c.l.b16 %v70
  %v391 = vunpack.c.l.b16 %v71
  %v392 = vunpack.c.l.b16 %v72
  %v393 = vunpack.c.l.b16 %v73
  %v394 = vunpack.c.l.b16 %v74
  %v395 = vunpack.c.l.b16 %v75
  %v396 = vunpack.c.l.b16 %v76
  %v397 = vunpack.c.l.b16 %v77
  %v398 = vunpack.c.l.b16 %v78
  %v399 = vunpack.c.l.b16 %v79
  %v400 = vunpack.c.l.b16 %v80
  %v401 = vunpack.c.l.b16 %v81
  %v402 = vunpack.c.l.b16 %v82
  %v403 = vunpack.c.l.b16 %v83
  %v404 = vunpack.c.l.b16 %v84
  %v405 = vunpack.c.l.b16 %v85
  %v406 = vunpack.c.l.b16 %v86
  %v407 = vunpack.c.l.b16 %v87
  %v408 = vunpack.c.l.b16 %v88
  %v409 = vunpack.c.l.b16 %v89
  %v410 = vunpack.c.l.b16 %v90
  %v411 = vunpack.c.l.b16 %v91
  %v412 = vunpack.c.l.b16 %v92
  %v413 = vunpack.c.l.b16 %v93
  %v414 = vunpack.c.l.b16 %v94
  %v415 = vunpack.c.l.b16 %v95
  %v416 = vunpack.c.l.b16 %v96
  %v417 = vunpack.c.l.b16 %v97
  %v418 = vunpack.c.l.b16 %v98
  %v419 = vunpack.c.l.b16 %v99
  %v420 = vunpack.c.l.b16 %v100
  %v421 = vunpack.c.l.b16 %v101
  %v422 = vunpack.c.l.b16 %v102
  %v423 = vunpack.c.l.b16 %v103
  %v424 = vunpack.c.l.b16 %v104
  %v425 = vunpack.c.l.b16 %v105
  %v426 = vunpack.c.l.b16 %v106
  %v427 = vunpack.c.l.b16 %v107
  %v428 = vunpack.c.l.b16 %v108
  %v429 = vunpack.c.l.b16 %v109
  %v430 = vunpack.c.l.b16 %v110
  %v431 = vunpack.c.l.b16 %v111
  %v432 = vunpack.c.l.b16 %v112
  %v433 = vunpack.c.l.b16 %v113
  %v434 = vunpack.c.l.b16 %v114
  %v435 = vunpack.c.l.b16 %v115
  %v436 = vunpack.c.l.b16 %v116
  %v437 = vunpack.c.l.b16 %v117
  %v438 = vunpack.c.l.b16 %v118
  %v439 = vunpack.c.l.b16 %v119
  %v440 = vunpack.c.l.b16 %v120
  %v441 = vunpack.c.l.b16 %v121
  %v442 = vunpack.c.l.b16 %v122
  %v443 = vunpack.c.l.b16 %v123
  %v444 = vunpack.c.l.b16 %v124
  %v445 = vunpack.c.l.b16 %v125
  %v446 = vunpack.c.l.b16 %v126
  %v447 = vunpack.c.l.b16 %v127
  %v448 = vunpack.c.l.b16 %v128
  %v449 = vunpack.c.l.b16 %v129
  %v450 = vunpack.c.l.b16 %v130
  %v451 = vunpack.c.l.b16 %v131
  %v452 = vunpack.c.l.b16 %v132
  %v453 = vunpack.c.l.b16 %v133
  %v454 = vunpack.c.l.b16 %v134
  %v455 = vunpack.c.l.b16 %v135
  %v456 = vunpack.c.l.b16 %v136
  %v457 = vunpack.c.l.b16 %v137
  %v458 = vunpack.c.l.b16 %v138
  %v459 = vunpack.c.l.b16 %v139
  %v460 = vunpack.c.l.b16 %v140
  %v461 = vunpack.c.l.b16 %v141
  %v462 = vunpack.c.l.b16 %v142
  %v463 = vunpack.c.l.b16 %v143
  %v464 = vunpack.c.l.b16 %v144
  %v465 = vunpack.c.l.b16 %v145
  %v466 = vunpack.c.l.b16 %v146
  %v467 = vunpack.c.l.b16 %v147
  %v468 = vunpack.c.l.b16 %v148
  %v469 = vunpack.c.l.b16 %v149
  %v470 = vunpack.c.l.b16 %v150
  %v471 = vunpack.c.l.b16 %v151
  %v472 = vunpack.c.l.b16 %v152
  %v473 = vunpack.c.l.b16 %v153
  %v474 = vunpack.c.l.b16 %v154
  %v475 = vunpack.c.l.b16 %v155
  %v476 = vunpack.c.l.b16 %v156
  %v477 = vunpack.c.l.b16 %v157
  %v478 = vunpack.c.l.b16 %v158
  %v479 = vunpack.c.l.b16 %v159
  %v480 = vpack.c.b16 %v337, %v336
  %v481 = vpack.c.b16 %v339, %v338
  %v482 = vpack.c.b16 %v341, %v340
  %v483 = vpack.c.b16 %v343, %v342
  %v484 = vpack.c.b16 %v345, %v344
  %v485 = vpack.c.b16 %v347, %v346
  %v486 = vpack.c.b16 %v349, %v348
  %v487 = vpack.c.b16 %v351, %v350
  %v488 = vpack.c.b16 %v353, %v352
  %v489 = vpack.c.b16 %v355, %v354
  %v490 = vpack.c.b16 %v357, %v356
  %v491 = vpack.c.b16 %v359, %v358
  %v492 = vpack.c.b16 %v361, %v360
  %v493 = vpack.c.b16 %v363, %v362
  %v494 = vpack.c.b16 %v365, %v364
  %v495 = vpack.c.b16 %v367, %v366
  %v496 = vpack.c.b16 %v369, %v368
  %v497 = vpack.c.b16 %v371, %v370
  %v498 = vpack.c.b16 %v373, %v372
  %v499 = vpack.c.b16 %v375, %v374
  %v500 = vpack.c.b16 %v377, %v376
  %v501 = vpack.c.b16 %v379, %v378
  %v502 = vpack.c.b16 %v381, %v380
  %v503 = vpack.c.b16 %v383, %v382
  %v504 = vpack.c.b16 %v385, %v384
  %v505 = vpack.c.b16 %v387, %v386
  %v506 = vpack.c.b16 %v389, %v388
  %v507 = vpack.c.b16 %v391, %v390
  %v508 = vpack.c.b16 %v393, %v392
  %v509 = vpack.c.b16 %v395, %v394
  %v510 = vpack.c.b16 %v397, %v396
  %v511 = vpack.c.b16 %v399, %v398
  %v512 = vpack.c.b16 %v401, %v400
  %v513 = vpack.c.b16 %v403, %v402
  %v514 = vpack.c.b16 %v405, %v404
  %v515 = vpack.c.b16 %v407, %v406
  %v516 = vpack.c.b16 %v409, %v408
  %v517 = vpack.c.b16 %v411, %v410
  %v518 = vpack.c.b16 %v413, %v412
  %v519 = vpack.c.b16 %v415, %v414
  %v520 = vpack.c.b16 %v417, %v416
  %v521 = vpack.c.b16 %v419, %v418
  %v522 = vpack.c.b16 %v421, %v420
  %v523 = vpack.c.b16 %v423, %v422
  %v524 = vpack.c.b16 %v425, %v424
  %v525 = vpack.c.b16 %v427, %v426
  %v526 = vpack.c.b16 %v429, %v428
  %v527 = vpack.c.b16 %v431, %v430
  %v528 = vpack.c.b16 %v433, %v432
  %v529 = vpack.c.b16 %v435, %v434
  %v530 = vpack.c.b16 %v437, %v436
  %v531 = vpack.c.b16 %v439, %v438
  %v532 = vpack.c.b16 %v441, %v440
  %v533 = vpack.c.b16 %v443, %v442
  %v534 = vpack.c.b16 %v445, %v444
  %v535 = vpack.c.b16 %v447, %v446
  %v536 = vpack.c.b16 %v449, %v448
  %v537 = vpack.c.b16 %v451, %v450
  %v538 = vpack.c.b16 %v453, %v452
  %v539 = vpack.c.b16 %v455, %v454
  %v540 = vpack.c.b16 %v457, %v456
  %v541 = vpack.c.b16 %v459, %v458
  %v542 = vpack.c.b16 %v461, %v460
  %v543 = vpack.c.b16 %v463, %v462
  %v544 = vpack.c.b16 %v465, %v464
  %v545 = vpack.c.b16 %v467, %v466
  %v546 = vpack.c.b16 %v469, %v468
  %v547 = vpack.c.b16 %v471, %v470
  %v548 = vpack.c.b16 %v473, %v472
  %v549 = vpack.c.b16 %v475, %v474
  %v550 = vpack.c.b16 %v477, %v476
  %v551 = vpack.c.b16 %v479, %v478
  %624 = vmatpush.bf16.msra.mxu0 %v487
  %625 = vmatpush.bf16.msra.mxu0 %v486
  %626 = vmatpush.bf16.msra.mxu0 %v485
  %627 = vmatpush.bf16.msra.mxu0 %v484
  %628 = vmatpush.bf16.msra.mxu0 %v483
  %629 = vmatpush.bf16.msra.mxu0 %v482
  %630 = vmatpush.bf16.msra.mxu0 %v481
  %631 = vmatpush.bf16.msra.mxu0 %v480
  %632 = vmatmul.bf16.gmra.mxu0 %v174
  %v633 = vpop.f32.mrf.mxu0
  %v634 = vadd.f32 0.0, %v633
  %v635 = vpop.f32.mrf.mxu0
  %636 = vdwg.mxu0
  %637 = vmatpush.bf16.msra.mxu0 %v495
  %638 = vmatpush.bf16.msra.mxu0 %v494
  %639 = vmatpush.bf16.msra.mxu0 %v493
  %640 = vmatpush.bf16.msra.mxu0 %v492
  %641 = vmatpush.bf16.msra.mxu0 %v491
  %642 = vmatpush.bf16.msra.mxu0 %v490
  %643 = vmatpush.bf16.msra.mxu0 %v489
  %644 = vmatpush.bf16.msra.mxu0 %v488
  %645 = vmatmul.bf16.gmra.mxu0 %v175
  %v646 = vpop.f32.mrf.mxu0
  %v647 = vadd.f32 %v634, %v646
  %v648 = vpop.f32.mrf.mxu0
  %649 = vdwg.mxu0
  %650 = vmatpush.bf16.msra.mxu0 %v503
  %651 = vmatpush.bf16.msra.mxu0 %v502
  %652 = vmatpush.bf16.msra.mxu0 %v501
  %653 = vmatpush.bf16.msra.mxu0 %v500
  %654 = vmatpush.bf16.msra.mxu0 %v499
  %655 = vmatpush.bf16.msra.mxu0 %v498
  %656 = vmatpush.bf16.msra.mxu0 %v497
  %657 = vmatpush.bf16.msra.mxu0 %v496
  %658 = vmatmul.bf16.gmra.mxu0 %v176
  %v659 = vpop.f32.mrf.mxu0
  %v660 = vadd.f32 %v647, %v659
  %v661 = vpop.f32.mrf.mxu0
  %662 = vdwg.mxu0
  %663 = vmatpush.bf16.msra.mxu0 %v511
  %664 = vmatpush.bf16.msra.mxu0 %v510
  %665 = vmatpush.bf16.msra.mxu0 %v509
  %666 = vmatpush.bf16.msra.mxu0 %v508
  %667 = vmatpush.bf16.msra.mxu0 %v507
  %668 = vmatpush.bf16.msra.mxu0 %v506
  %669 = vmatpush.bf16.msra.mxu0 %v505
  %670 = vmatpush.bf16.msra.mxu0 %v504
  %671 = vmatmul.bf16.gmra.mxu0 %v177
  %v672 = vpop.f32.mrf.mxu0
  %v673 = vadd.f32 %v660, %v672
  %v674 = vpop.f32.mrf.mxu0
  %675 = vdwg.mxu0
  %676 = vmatpush.bf16.msra.mxu0 %v519
  %677 = vmatpush.bf16.msra.mxu0 %v518
  %678 = vmatpush.bf16.msra.mxu0 %v517
  %679 = vmatpush.bf16.msra.mxu0 %v516
  %680 = vmatpush.bf16.msra.mxu0 %v515
  %681 = vmatpush.bf16.msra.mxu0 %v514
  %682 = vmatpush.bf16.msra.mxu0 %v513
  %683 = vmatpush.bf16.msra.mxu0 %v512
  %684 = vmatmul.bf16.gmra.mxu0 %v178
  %v685 = vpop.f32.mrf.mxu0
  %v686 = vadd.f32 %v673, %v685
  %v687 = vpop.f32.mrf.mxu0
  %688 = vdwg.mxu0
  %689 = vmatpush.bf16.msra.mxu0 %v527
  %690 = vmatpush.bf16.msra.mxu0 %v526
  %691 = vmatpush.bf16.msra.mxu0 %v525
  %692 = vmatpush.bf16.msra.mxu0 %v524
  %693 = vmatpush.bf16.msra.mxu0 %v523
  %694 = vmatpush.bf16.msra.mxu0 %v522
  %695 = vmatpush.bf16.msra.mxu0 %v521
  %696 = vmatpush.bf16.msra.mxu0 %v520
  %697 = vmatmul.bf16.gmra.mxu0 %v179
  %v698 = vpop.f32.mrf.mxu0
  %v699 = vadd.f32 %v686, %v698
  %v700 = vpop.f32.mrf.mxu0
  %701 = vdwg.mxu0
  %702 = vmatpush.bf16.msra.mxu0 %v535
  %703 = vmatpush.bf16.msra.mxu0 %v534
  %704 = vmatpush.bf16.msra.mxu0 %v533
  %705 = vmatpush.bf16.msra.mxu0 %v532
  %706 = vmatpush.bf16.msra.mxu0 %v531
  %707 = vmatpush.bf16.msra.mxu0 %v530
  %708 = vmatpush.bf16.msra.mxu0 %v529
  %709 = vmatpush.bf16.msra.mxu0 %v528
  %710 = vmatmul.bf16.gmra.mxu0 %v180
  %v711 = vpop.f32.mrf.mxu0
  %v712 = vadd.f32 %v699, %v711
  %v713 = vpop.f32.mrf.mxu0
  %714 = vdwg.mxu0
  %715 = vmatpush.bf16.msra.mxu0 %v543
  %716 = vmatpush.bf16.msra.mxu0 %v542
  %717 = vmatpush.bf16.msra.mxu0 %v541
  %718 = vmatpush.bf16.msra.mxu0 %v540
  %719 = vmatpush.bf16.msra.mxu0 %v539
  %720 = vmatpush.bf16.msra.mxu0 %v538
  %721 = vmatpush.bf16.msra.mxu0 %v537
  %722 = vmatpush.bf16.msra.mxu0 %v536
  %723 = vmatmul.bf16.gmra.mxu0 %v181
  %v724 = vpop.f32.mrf.mxu0
  %v725 = vadd.f32 %v712, %v724
  %v726 = vpop.f32.mrf.mxu0
  %727 = vdwg.mxu0
  %728 = vmatpush.bf16.msra.mxu0 %v551
  %729 = vmatpush.bf16.msra.mxu0 %v550
  %730 = vmatpush.bf16.msra.mxu0 %v549
  %731 = vmatpush.bf16.msra.mxu0 %v548
  %732 = vmatpush.bf16.msra.mxu0 %v547
  %733 = vmatpush.bf16.msra.mxu0 %v546
  %734 = vmatpush.bf16.msra.mxu0 %v545
  %735 = vmatpush.bf16.msra.mxu0 %v544
  %736 = vmatmul.bf16.gmra.mxu0 %v182
  %v737 = vpop.f32.mrf.mxu0
  %v738 = vadd.f32 %v725, %v737
  %v739 = vpop.f32.mrf.mxu0
  %740 = vdwg.mxu0
  %v741 = vpack.c.bf16 %v738, %v738
  %vm742 = vcmask 257024
  %743 = vst.msk [vmem:[%s2] sm:$0xf] %vm742, %v741
  // Predicated region
  $region10: #{densenet121_forward.161} parent=0 // pred_check
    _
  $region11: #{densenet121_forward.161} parent=0 // pred_check_branch
    %745 = sbr.rel (0) target = $region13
  $region12: #{densenet121_forward.161} parent=0 // pred_region
    _
  $region13: #{densenet121_forward.161} parent=0 // pred_fallthru
    _
  // Predicated region
  $region14: #{densenet121_forward.161} parent=0 // pred_check
    _
  $region15: #{densenet121_forward.161} parent=0 // pred_check_branch
    %747 = sbr.rel (0) target = $region17
  $region16: #{densenet121_forward.161} parent=0 // pred_region
    _
  $region17: #{densenet121_forward.161} parent=0 // pred_fallthru
    _

// kernel: densenet121_forward.209
$region0: #{densenet121_forward.209}
  #allocation0 [shape = 'u32[]', space=smem, size = 0x4, offset = 0x4, fixed_abs, tag = 'smem constant byte address 0x4 - core index']
  #allocation1 [shape = 'u32[72,128]{1,0:T(1,128)}', space=vmem, size = 0x9000, scoped, tag = 'internal scratch']
  %s0 = inlined_call_operand.vmem [shape: bf16[2,1024], index: 0, kind: input, shape index: {}]
  %s1 = inlined_call_operand.vmem [shape: bf16[1,1024], index: 1, kind: input, shape index: {}]
  %s2 = inlined_call_operand.vmem [shape: bf16[1,1024], index: 2, kind: input, shape index: {}]
  %s3 = inlined_call_operand.vmem [shape: bf16[1024,128], index: 3, kind: input, shape index: {}]
  %s4 = inlined_call_operand.vmem [shape: f32[1,128], index: 4, kind: input, shape index: {}]
  %s5 = inlined_call_operand.vmem [shape: f32[1,128], index: 5, kind: input, shape index: {}]
  %s6 = inlined_call_operand.vmem [shape: bf16[2,128], index: 6, kind: output, shape index: {}]
  %s7 = sld [smem:[#allocation0]]
  $region34: #{densenet121_forward.209} parent=0
    _
  %s9 = ssub.s32 1, %s7
  %s10 = scalar_select 0, %s9, %s7
  // Predicated region
  $region2: #{densenet121_forward.209} parent=0 // pred_check
    _
  $region3: #{densenet121_forward.209} parent=0 // pred_check_branch
    %12 = sbr.rel (0) target = $region5
  $region4: #{densenet121_forward.209} parent=0 // pred_region
    _
  $region5: #{densenet121_forward.209} parent=0 // pred_fallthru
    _
  // Predicated region
  $region6: #{densenet121_forward.209} parent=0 // pred_check
    _
  $region7: #{densenet121_forward.209} parent=0 // pred_check_branch
    %14 = sbr.rel (0) target = $region9
  $region8: #{densenet121_forward.209} parent=0 // pred_region
    _
  $region9: #{densenet121_forward.209} parent=0 // pred_fallthru
    _
  // Predicated region
  $region10: #{densenet121_forward.209} parent=0 // pred_check
    _
  $region11: #{densenet121_forward.209} parent=0 // pred_check_branch
    %16 = sbr.rel (0) target = $region13
  $region12: #{densenet121_forward.209} parent=0 // pred_region
    _
  $region13: #{densenet121_forward.209} parent=0 // pred_fallthru
    _
  // Predicated region
  $region14: #{densenet121_forward.209} parent=0 // pred_check
    _
  $region15: #{densenet121_forward.209} parent=0 // pred_check_branch
    %18 = sbr.rel (0) target = $region17
  $region16: #{densenet121_forward.209} parent=0 // pred_region
    _
  $region17: #{densenet121_forward.209} parent=0 // pred_fallthru
    _
  // Predicated region
  $region18: #{densenet121_forward.209} parent=0 // pred_check
    _
  $region19: #{densenet121_forward.209} parent=0 // pred_check_branch
    %20 = sbr.rel (0) target = $region21
  $region20: #{densenet121_forward.209} parent=0 // pred_region
    _
  $region21: #{densenet121_forward.209} parent=0 // pred_fallthru
    _
  // Predicated region
  $region22: #{densenet121_forward.209} parent=0 // pred_check
    _
  $region23: #{densenet121_forward.209} parent=0 // pred_check_branch
    %22 = sbr.rel (0) target = $region25
  $region24: #{densenet121_forward.209} parent=0 // pred_region
    _
  $region25: #{densenet121_forward.209} parent=0 // pred_fallthru
    _
  %v23 = vld [vmem:[%s0] sm:$0xff]
  %v24 = vld [vmem:[%s3] sm:$0xf]
  %v25 = vld [vmem:[%s3 + $0x4] sm:$0xf]
  %v26 = vld [vmem:[%s3 + $0x8] sm:$0xf]
  %v27 = vld [vmem:[%s3 + $0xc] sm:$0xf]
  %v28 = vld [vmem:[%s3 + $0x10] sm:$0xf]
  %v29 = vld [vmem:[%s3 + $0x14] sm:$0xf]
  %v30 = vld [vmem:[%s3 + $0x18] sm:$0xf]
  %v31 = vld [vmem:[%s3 + $0x1c] sm:$0xf]
  %v32 = vld [vmem:[%s3 + $0x20] sm:$0xf]
  %v33 = vld [vmem:[%s3 + $0x24] sm:$0xf]
  %v34 = vld [vmem:[%s3 + $0x28] sm:$0xf]
  %v35 = vld [vmem:[%s3 + $0x2c] sm:$0xf]
  %v36 = vld [vmem:[%s3 + $0x30] sm:$0xf]
  %v37 = vld [vmem:[%s3 + $0x34] sm:$0xf]
  %v38 = vld [vmem:[%s3 + $0x38] sm:$0xf]
  %v39 = vld [vmem:[%s3 + $0x3c] sm:$0xf]
  %v40 = vld [vmem:[%s3 + $0x40] sm:$0xf]
  %v41 = vld [vmem:[%s3 + $0x44] sm:$0xf]
  %v42 = vld [vmem:[%s3 + $0x48] sm:$0xf]
  %v43 = vld [vmem:[%s3 + $0x4c] sm:$0xf]
  %v44 = vld [vmem:[%s3 + $0x50] sm:$0xf]
  %v45 = vld [vmem:[%s3 + $0x54] sm:$0xf]
  %v46 = vld [vmem:[%s3 + $0x58] sm:$0xf]
  %v47 = vld [vmem:[%s3 + $0x5c] sm:$0xf]
  %v48 = vld [vmem:[%s3 + $0x60] sm:$0xf]
  %v49 = vld [vmem:[%s3 + $0x64] sm:$0xf]
  %v50 = vld [vmem:[%s3 + $0x68] sm:$0xf]
  %v51 = vld [vmem:[%s3 + $0x6c] sm:$0xf]
  %v52 = vld [vmem:[%s3 + $0x70] sm:$0xf]
  %v53 = vld [vmem:[%s3 + $0x74] sm:$0xf]
  %v54 = vld [vmem:[%s3 + $0x78] sm:$0xf]
  %v55 = vld [vmem:[%s3 + $0x7c] sm:$0xf]
  %v56 = vld [vmem:[%s3 + $0x80] sm:$0xf]
  %v57 = vld [vmem:[%s3 + $0x84] sm:$0xf]
  %v58 = vld [vmem:[%s3 + $0x88] sm:$0xf]
  %v59 = vld [vmem:[%s3 + $0x8c] sm:$0xf]
  %v60 = vld [vmem:[%s3 + $0x90] sm:$0xf]
  %v61 = vld [vmem:[%s3 + $0x94] sm:$0xf]
  %v62 = vld [vmem:[%s3 + $0x98] sm:$0xf]
  %v63 = vld [vmem:[%s3 + $0x9c] sm:$0xf]
  %v64 = vld [vmem:[%s3 + $0xa0] sm:$0xf]
  %v65 = vld [vmem:[%s3 + $0xa4] sm:$0xf]
  %v66 = vld [vmem:[%s3 + $0xa8] sm:$0xf]
  %v67 = vld [vmem:[%s3 + $0xac] sm:$0xf]
  %v68 = vld [vmem:[%s3 + $0xb0] sm:$0xf]
  %v69 = vld [vmem:[%s3 + $0xb4] sm:$0xf]
  %v70 = vld [vmem:[%s3 + $0xb8] sm:$0xf]
  %v71 = vld [vmem:[%s3 + $0xbc] sm:$0xf]
  %v72 = vld [vmem:[%s3 + $0xc0] sm:$0xf]
  %v73 = vld [vmem:[%s3 + $0xc4] sm:$0xf]
  %v74 = vld [vmem:[%s3 + $0xc8] sm:$0xf]
  %v75 = vld [vmem:[%s3 + $0xcc] sm:$0xf]
  %v76 = vld [vmem:[%s3 + $0xd0] sm:$0xf]
  %v77 = vld [vmem:[%s3 + $0xd4] sm:$0xf]
  %v78 = vld [vmem:[%s3 + $0xd8] sm:$0xf]
  %v79 = vld [vmem:[%s3 + $0xdc] sm:$0xf]
  %v80 = vld [vmem:[%s3 + $0xe0] sm:$0xf]
  %v81 = vld [vmem:[%s3 + $0xe4] sm:$0xf]
  %v82 = vld [vmem:[%s3 + $0xe8] sm:$0xf]
  %v83 = vld [vmem:[%s3 + $0xec] sm:$0xf]
  %v84 = vld [vmem:[%s3 + $0xf0] sm:$0xf]
  %v85 = vld [vmem:[%s3 + $0xf4] sm:$0xf]
  %v86 = vld [vmem:[%s3 + $0xf8] sm:$0xf]
  %v87 = vld [vmem:[%s3 + $0xfc] sm:$0xf]
  %v88 = vld [vmem:[%s3 + $0x100] sm:$0xf]
  %v89 = vld [vmem:[%s3 + $0x104] sm:$0xf]
  %v90 = vld [vmem:[%s3 + $0x108] sm:$0xf]
  %v91 = vld [vmem:[%s3 + $0x10c] sm:$0xf]
  %v92 = vld [vmem:[%s3 + $0x110] sm:$0xf]
  %v93 = vld [vmem:[%s3 + $0x114] sm:$0xf]
  %v94 = vld [vmem:[%s3 + $0x118] sm:$0xf]
  %v95 = vld [vmem:[%s3 + $0x11c] sm:$0xf]
  %v96 = vld [vmem:[%s3 + $0x120] sm:$0xf]
  %v97 = vld [vmem:[%s3 + $0x124] sm:$0xf]
  %v98 = vld [vmem:[%s3 + $0x128] sm:$0xf]
  %v99 = vld [vmem:[%s3 + $0x12c] sm:$0xf]
  %v100 = vld [vmem:[%s3 + $0x130] sm:$0xf]
  %v101 = vld [vmem:[%s3 + $0x134] sm:$0xf]
  %v102 = vld [vmem:[%s3 + $0x138] sm:$0xf]
  %v103 = vld [vmem:[%s3 + $0x13c] sm:$0xf]
  %v104 = vld [vmem:[%s3 + $0x140] sm:$0xf]
  %v105 = vld [vmem:[%s3 + $0x144] sm:$0xf]
  %v106 = vld [vmem:[%s3 + $0x148] sm:$0xf]
  %v107 = vld [vmem:[%s3 + $0x14c] sm:$0xf]
  %v108 = vld [vmem:[%s3 + $0x150] sm:$0xf]
  %v109 = vld [vmem:[%s3 + $0x154] sm:$0xf]
  %v110 = vld [vmem:[%s3 + $0x158] sm:$0xf]
  %v111 = vld [vmem:[%s3 + $0x15c] sm:$0xf]
  %v112 = vld [vmem:[%s3 + $0x160] sm:$0xf]
  %v113 = vld [vmem:[%s3 + $0x164] sm:$0xf]
  %v114 = vld [vmem:[%s3 + $0x168] sm:$0xf]
  %v115 = vld [vmem:[%s3 + $0x16c] sm:$0xf]
  %v116 = vld [vmem:[%s3 + $0x170] sm:$0xf]
  %v117 = vld [vmem:[%s3 + $0x174] sm:$0xf]
  %v118 = vld [vmem:[%s3 + $0x178] sm:$0xf]
  %v119 = vld [vmem:[%s3 + $0x17c] sm:$0xf]
  %v120 = vld [vmem:[%s3 + $0x180] sm:$0xf]
  %v121 = vld [vmem:[%s3 + $0x184] sm:$0xf]
  %v122 = vld [vmem:[%s3 + $0x188] sm:$0xf]
  %v123 = vld [vmem:[%s3 + $0x18c] sm:$0xf]
  %v124 = vld [vmem:[%s3 + $0x190] sm:$0xf]
  %v125 = vld [vmem:[%s3 + $0x194] sm:$0xf]
  %v126 = vld [vmem:[%s3 + $0x198] sm:$0xf]
  %v127 = vld [vmem:[%s3 + $0x19c] sm:$0xf]
  %v128 = vld [vmem:[%s3 + $0x1a0] sm:$0xf]
  %v129 = vld [vmem:[%s3 + $0x1a4] sm:$0xf]
  %v130 = vld [vmem:[%s3 + $0x1a8] sm:$0xf]
  %v131 = vld [vmem:[%s3 + $0x1ac] sm:$0xf]
  %v132 = vld [vmem:[%s3 + $0x1b0] sm:$0xf]
  %v133 = vld [vmem:[%s3 + $0x1b4] sm:$0xf]
  %v134 = vld [vmem:[%s3 + $0x1b8] sm:$0xf]
  %v135 = vld [vmem:[%s3 + $0x1bc] sm:$0xf]
  %v136 = vld [vmem:[%s3 + $0x1c0] sm:$0xf]
  %v137 = vld [vmem:[%s3 + $0x1c4] sm:$0xf]
  %v138 = vld [vmem:[%s3 + $0x1c8] sm:$0xf]
  %v139 = vld [vmem:[%s3 + $0x1cc] sm:$0xf]
  %v140 = vld [vmem:[%s3 + $0x1d0] sm:$0xf]
  %v141 = vld [vmem:[%s3 + $0x1d4] sm:$0xf]
  %v142 = vld [vmem:[%s3 + $0x1d8] sm:$0xf]
  %v143 = vld [vmem:[%s3 + $0x1dc] sm:$0xf]
  %v144 = vld [vmem:[%s3 + $0x1e0] sm:$0xf]
  %v145 = vld [vmem:[%s3 + $0x1e4] sm:$0xf]
  %v146 = vld [vmem:[%s3 + $0x1e8] sm:$0xf]
  %v147 = vld [vmem:[%s3 + $0x1ec] sm:$0xf]
  %v148 = vld [vmem:[%s3 + $0x1f0] sm:$0xf]
  %v149 = vld [vmem:[%s3 + $0x1f4] sm:$0xf]
  %v150 = vld [vmem:[%s3 + $0x1f8] sm:$0xf]
  %v151 = vld [vmem:[%s3 + $0x1fc] sm:$0xf]
  %v152 = vld [vmem:[%s1] sm:$0xff]
  %154 = vst [vmem:[#allocation1] ss:$9 sm:$0xff] %v152
  %v155 = vld [vmem:[#allocation1] sm:$0xff]
  %v156 = vld [vmem:[#allocation1 + $0x9] sm:$0xff]
  %v157 = vld [vmem:[#allocation1 + $0x12] sm:$0xff]
  %v158 = vld [vmem:[#allocation1 + $0x1b] sm:$0xff]
  %v159 = vld [vmem:[#allocation1 + $0x24] sm:$0xff]
  %v160 = vld [vmem:[#allocation1 + $0x2d] sm:$0xff]
  %v161 = vld [vmem:[#allocation1 + $0x36] sm:$0xff]
  %v162 = vld [vmem:[#allocation1 + $0x3f] sm:$0xff]
  %v163 = vpack.i.b16 %v155, %v155
  %v165 = vperm.slane %v163, 0
  %v166 = vpack.i.b16 %v156, %v156
  %v168 = vperm.slane %v166, 0
  %v169 = vpack.i.b16 %v157, %v157
  %v171 = vperm.slane %v169, 0
  %v172 = vpack.i.b16 %v158, %v158
  %v174 = vperm.slane %v172, 0
  %v175 = vpack.i.b16 %v159, %v159
  %v177 = vperm.slane %v175, 0
  %v178 = vpack.i.b16 %v160, %v160
  %v180 = vperm.slane %v178, 0
  %v181 = vpack.i.b16 %v161, %v161
  %v183 = vperm.slane %v181, 0
  %v184 = vpack.i.b16 %v162, %v162
  %v186 = vperm.slane %v184, 0
  %v187 = vunpack.c.l.bf16 %v23
  %v188 = vunpack.c.h.bf16 %v23
  %v189 = vunpack.c.l.bf16 %v165
  %v190 = vunpack.c.l.bf16 %v168
  %v191 = vunpack.c.l.bf16 %v171
  %v192 = vunpack.c.l.bf16 %v174
  %v193 = vunpack.c.l.bf16 %v177
  %v194 = vunpack.c.l.bf16 %v180
  %v195 = vunpack.c.l.bf16 %v183
  %v196 = vunpack.c.l.bf16 %v186
  %v205 = vrot.slane %v190, 6
  %v206 = vrot.slane %v191, 4
  %v207 = vrot.slane %v192, 2
  %v208 = vrot.slane %v194, 6
  %v209 = vrot.slane %v195, 4
  %v210 = vrot.slane %v196, 2
  %vm211 = vcmask 1041408
  %v212 = vsel %vm211, %v189, %v205
  %vm213 = vcmask 1045508
  %v214 = vsel %vm213, %v206, %v207
  %vm215 = vcmask 1043456
  %v216 = vsel %vm215, %v212, %v214
  %v217 = vsel %vm211, %v193, %v208
  %v218 = vsel %vm213, %v209, %v210
  %v219 = vsel %vm215, %v217, %v218
  %v222 = vmul.f32 %v187, %v216
  %v223 = vmul.f32 %v188, %v219
  %226 = vst [vmem:[#allocation1] ss:$4 sm:$0xff] %v222
  %s227 = scalar_lea.vmem [#allocation1], 32
  %228 = vst [vmem:[%s227] ss:$4 sm:$0xff] %v223
  %v229 = vld.sshfl [vmem:[#allocation1] sm:$0xff pattern:$0x73625140]
  %v230 = vld.sshfl [vmem:[#allocation1 + $0x8] sm:$0xff pattern:$0x73625140]
  %v231 = vld.sshfl [vmem:[#allocation1 + $0x10] sm:$0xff pattern:$0x73625140]
  %v232 = vld.sshfl [vmem:[#allocation1 + $0x18] sm:$0xff pattern:$0x73625140]
  %v233 = vld.sshfl [vmem:[#allocation1 + $0x20] sm:$0xff pattern:$0x73625140]
  %v234 = vld.sshfl [vmem:[#allocation1 + $0x28] sm:$0xff pattern:$0x73625140]
  %v235 = vld.sshfl [vmem:[#allocation1 + $0x30] sm:$0xff pattern:$0x73625140]
  %v236 = vld.sshfl [vmem:[#allocation1 + $0x38] sm:$0xff pattern:$0x73625140]
  %v245 = vpack.c.bf16 %v230, %v229
  %v246 = vpack.c.bf16 %v232, %v231
  %v247 = vpack.c.bf16 %v234, %v233
  %v248 = vpack.c.bf16 %v236, %v235
  %v249 = vld [vmem:[%s2] sm:$0xff]
  %251 = vst [vmem:[#allocation1] ss:$9 sm:$0xff] %v249
  %v252 = vld [vmem:[#allocation1] sm:$0xff]
  %v253 = vld [vmem:[#allocation1 + $0x9] sm:$0xff]
  %v254 = vld [vmem:[#allocation1 + $0x12] sm:$0xff]
  %v255 = vld [vmem:[#allocation1 + $0x1b] sm:$0xff]
  %v256 = vld [vmem:[#allocation1 + $0x24] sm:$0xff]
  %v257 = vld [vmem:[#allocation1 + $0x2d] sm:$0xff]
  %v258 = vld [vmem:[#allocation1 + $0x36] sm:$0xff]
  %v259 = vld [vmem:[#allocation1 + $0x3f] sm:$0xff]
  %v260 = vpack.i.b16 %v252, %v252
  %v262 = vperm.slane %v260, 0
  %v263 = vpack.i.b16 %v253, %v253
  %v265 = vperm.slane %v263, 0
  %v266 = vpack.i.b16 %v254, %v254
  %v268 = vperm.slane %v266, 0
  %v269 = vpack.i.b16 %v255, %v255
  %v271 = vperm.slane %v269, 0
  %v272 = vpack.i.b16 %v256, %v256
  %v274 = vperm.slane %v272, 0
  %v275 = vpack.i.b16 %v257, %v257
  %v277 = vperm.slane %v275, 0
  %v278 = vpack.i.b16 %v258, %v258
  %v280 = vperm.slane %v278, 0
  %v281 = vpack.i.b16 %v259, %v259
  %v283 = vperm.slane %v281, 0
  %v284 = vunpack.c.l.bf16 %v245
  %v285 = vunpack.c.h.bf16 %v245
  %v286 = vunpack.c.l.bf16 %v246
  %v287 = vunpack.c.h.bf16 %v246
  %v288 = vunpack.c.l.bf16 %v247
  %v289 = vunpack.c.h.bf16 %v247
  %v290 = vunpack.c.l.bf16 %v248
  %v291 = vunpack.c.h.bf16 %v248
  %v292 = vunpack.c.l.bf16 %v262
  %v293 = vunpack.c.l.bf16 %v265
  %v294 = vunpack.c.l.bf16 %v268
  %v295 = vunpack.c.l.bf16 %v271
  %v296 = vunpack.c.l.bf16 %v274
  %v297 = vunpack.c.l.bf16 %v277
  %v298 = vunpack.c.l.bf16 %v280
  %v299 = vunpack.c.l.bf16 %v283
  %v300 = vadd.f32 %v284, %v292
  %v301 = vadd.f32 %v285, %v293
  %v302 = vadd.f32 %v286, %v294
  %v303 = vadd.f32 %v287, %v295
  %v304 = vadd.f32 %v288, %v296
  %v305 = vadd.f32 %v289, %v297
  %v306 = vadd.f32 %v290, %v298
  %v307 = vadd.f32 %v291, %v299
  %v308 = vpack.c.bf16 %v301, %v300
  %v309 = vpack.c.bf16 %v303, %v302
  %v310 = vpack.c.bf16 %v305, %v304
  %v311 = vpack.c.bf16 %v307, %v306
  %v312 = vunpack.c.l.bf16 %v308
  %v313 = vunpack.c.h.bf16 %v308
  %v314 = vunpack.c.l.bf16 %v309
  %v315 = vunpack.c.h.bf16 %v309
  %v316 = vunpack.c.l.bf16 %v310
  %v317 = vunpack.c.h.bf16 %v310
  %v318 = vunpack.c.l.bf16 %v311
  %v319 = vunpack.c.h.bf16 %v311
  %v320 = vmax.f32 %v312, 0.0
  %v321 = vmax.f32 %v313, 0.0
  %v322 = vmax.f32 %v314, 0.0
  %v323 = vmax.f32 %v315, 0.0
  %v324 = vmax.f32 %v316, 0.0
  %v325 = vmax.f32 %v317, 0.0
  %v326 = vmax.f32 %v318, 0.0
  %v327 = vmax.f32 %v319, 0.0
  %v328 = vpack.c.bf16 %v320, %v320
  %v329 = vpack.c.bf16 %v321, %v321
  %v330 = vpack.c.bf16 %v322, %v322
  %v331 = vpack.c.bf16 %v323, %v323
  %v332 = vpack.c.bf16 %v324, %v324
  %v333 = vpack.c.bf16 %v325, %v325
  %v334 = vpack.c.bf16 %v326, %v326
  %v335 = vpack.c.bf16 %v327, %v327
  %v464 = vunpack.c.l.b16 %v24
  %v465 = vunpack.c.l.b16 %v25
  %v466 = vunpack.c.l.b16 %v26
  %v467 = vunpack.c.l.b16 %v27
  %v468 = vunpack.c.l.b16 %v28
  %v469 = vunpack.c.l.b16 %v29
  %v470 = vunpack.c.l.b16 %v30
  %v471 = vunpack.c.l.b16 %v31
  %v472 = vunpack.c.l.b16 %v32
  %v473 = vunpack.c.l.b16 %v33
  %v474 = vunpack.c.l.b16 %v34
  %v475 = vunpack.c.l.b16 %v35
  %v476 = vunpack.c.l.b16 %v36
  %v477 = vunpack.c.l.b16 %v37
  %v478 = vunpack.c.l.b16 %v38
  %v479 = vunpack.c.l.b16 %v39
  %v480 = vunpack.c.l.b16 %v40
  %v481 = vunpack.c.l.b16 %v41
  %v482 = vunpack.c.l.b16 %v42
  %v483 = vunpack.c.l.b16 %v43
  %v484 = vunpack.c.l.b16 %v44
  %v485 = vunpack.c.l.b16 %v45
  %v486 = vunpack.c.l.b16 %v46
  %v487 = vunpack.c.l.b16 %v47
  %v488 = vunpack.c.l.b16 %v48
  %v489 = vunpack.c.l.b16 %v49
  %v490 = vunpack.c.l.b16 %v50
  %v491 = vunpack.c.l.b16 %v51
  %v492 = vunpack.c.l.b16 %v52
  %v493 = vunpack.c.l.b16 %v53
  %v494 = vunpack.c.l.b16 %v54
  %v495 = vunpack.c.l.b16 %v55
  %v496 = vunpack.c.l.b16 %v56
  %v497 = vunpack.c.l.b16 %v57
  %v498 = vunpack.c.l.b16 %v58
  %v499 = vunpack.c.l.b16 %v59
  %v500 = vunpack.c.l.b16 %v60
  %v501 = vunpack.c.l.b16 %v61
  %v502 = vunpack.c.l.b16 %v62
  %v503 = vunpack.c.l.b16 %v63
  %v504 = vunpack.c.l.b16 %v64
  %v505 = vunpack.c.l.b16 %v65
  %v506 = vunpack.c.l.b16 %v66
  %v507 = vunpack.c.l.b16 %v67
  %v508 = vunpack.c.l.b16 %v68
  %v509 = vunpack.c.l.b16 %v69
  %v510 = vunpack.c.l.b16 %v70
  %v511 = vunpack.c.l.b16 %v71
  %v512 = vunpack.c.l.b16 %v72
  %v513 = vunpack.c.l.b16 %v73
  %v514 = vunpack.c.l.b16 %v74
  %v515 = vunpack.c.l.b16 %v75
  %v516 = vunpack.c.l.b16 %v76
  %v517 = vunpack.c.l.b16 %v77
  %v518 = vunpack.c.l.b16 %v78
  %v519 = vunpack.c.l.b16 %v79
  %v520 = vunpack.c.l.b16 %v80
  %v521 = vunpack.c.l.b16 %v81
  %v522 = vunpack.c.l.b16 %v82
  %v523 = vunpack.c.l.b16 %v83
  %v524 = vunpack.c.l.b16 %v84
  %v525 = vunpack.c.l.b16 %v85
  %v526 = vunpack.c.l.b16 %v86
  %v527 = vunpack.c.l.b16 %v87
  %v528 = vunpack.c.l.b16 %v88
  %v529 = vunpack.c.l.b16 %v89
  %v530 = vunpack.c.l.b16 %v90
  %v531 = vunpack.c.l.b16 %v91
  %v532 = vunpack.c.l.b16 %v92
  %v533 = vunpack.c.l.b16 %v93
  %v534 = vunpack.c.l.b16 %v94
  %v535 = vunpack.c.l.b16 %v95
  %v536 = vunpack.c.l.b16 %v96
  %v537 = vunpack.c.l.b16 %v97
  %v538 = vunpack.c.l.b16 %v98
  %v539 = vunpack.c.l.b16 %v99
  %v540 = vunpack.c.l.b16 %v100
  %v541 = vunpack.c.l.b16 %v101
  %v542 = vunpack.c.l.b16 %v102
  %v543 = vunpack.c.l.b16 %v103
  %v544 = vunpack.c.l.b16 %v104
  %v545 = vunpack.c.l.b16 %v105
  %v546 = vunpack.c.l.b16 %v106
  %v547 = vunpack.c.l.b16 %v107
  %v548 = vunpack.c.l.b16 %v108
  %v549 = vunpack.c.l.b16 %v109
  %v550 = vunpack.c.l.b16 %v110
  %v551 = vunpack.c.l.b16 %v111
  %v552 = vunpack.c.l.b16 %v112
  %v553 = vunpack.c.l.b16 %v113
  %v554 = vunpack.c.l.b16 %v114
  %v555 = vunpack.c.l.b16 %v115
  %v556 = vunpack.c.l.b16 %v116
  %v557 = vunpack.c.l.b16 %v117
  %v558 = vunpack.c.l.b16 %v118
  %v559 = vunpack.c.l.b16 %v119
  %v560 = vunpack.c.l.b16 %v120
  %v561 = vunpack.c.l.b16 %v121
  %v562 = vunpack.c.l.b16 %v122
  %v563 = vunpack.c.l.b16 %v123
  %v564 = vunpack.c.l.b16 %v124
  %v565 = vunpack.c.l.b16 %v125
  %v566 = vunpack.c.l.b16 %v126
  %v567 = vunpack.c.l.b16 %v127
  %v568 = vunpack.c.l.b16 %v128
  %v569 = vunpack.c.l.b16 %v129
  %v570 = vunpack.c.l.b16 %v130
  %v571 = vunpack.c.l.b16 %v131
  %v572 = vunpack.c.l.b16 %v132
  %v573 = vunpack.c.l.b16 %v133
  %v574 = vunpack.c.l.b16 %v134
  %v575 = vunpack.c.l.b16 %v135
  %v576 = vunpack.c.l.b16 %v136
  %v577 = vunpack.c.l.b16 %v137
  %v578 = vunpack.c.l.b16 %v138
  %v579 = vunpack.c.l.b16 %v139
  %v580 = vunpack.c.l.b16 %v140
  %v581 = vunpack.c.l.b16 %v141
  %v582 = vunpack.c.l.b16 %v142
  %v583 = vunpack.c.l.b16 %v143
  %v584 = vunpack.c.l.b16 %v144
  %v585 = vunpack.c.l.b16 %v145
  %v586 = vunpack.c.l.b16 %v146
  %v587 = vunpack.c.l.b16 %v147
  %v588 = vunpack.c.l.b16 %v148
  %v589 = vunpack.c.l.b16 %v149
  %v590 = vunpack.c.l.b16 %v150
  %v591 = vunpack.c.l.b16 %v151
  %v592 = vpack.c.b16 %v465, %v464
  %v593 = vpack.c.b16 %v467, %v466
  %v594 = vpack.c.b16 %v469, %v468
  %v595 = vpack.c.b16 %v471, %v470
  %v596 = vpack.c.b16 %v473, %v472
  %v597 = vpack.c.b16 %v475, %v474
  %v598 = vpack.c.b16 %v477, %v476
  %v599 = vpack.c.b16 %v479, %v478
  %v600 = vpack.c.b16 %v481, %v480
  %v601 = vpack.c.b16 %v483, %v482
  %v602 = vpack.c.b16 %v485, %v484
  %v603 = vpack.c.b16 %v487, %v486
  %v604 = vpack.c.b16 %v489, %v488
  %v605 = vpack.c.b16 %v491, %v490
  %v606 = vpack.c.b16 %v493, %v492
  %v607 = vpack.c.b16 %v495, %v494
  %v608 = vpack.c.b16 %v497, %v496
  %v609 = vpack.c.b16 %v499, %v498
  %v610 = vpack.c.b16 %v501, %v500
  %v611 = vpack.c.b16 %v503, %v502
  %v612 = vpack.c.b16 %v505, %v504
  %v613 = vpack.c.b16 %v507, %v506
  %v614 = vpack.c.b16 %v509, %v508
  %v615 = vpack.c.b16 %v511, %v510
  %v616 = vpack.c.b16 %v513, %v512
  %v617 = vpack.c.b16 %v515, %v514
  %v618 = vpack.c.b16 %v517, %v516
  %v619 = vpack.c.b16 %v519, %v518
  %v620 = vpack.c.b16 %v521, %v520
  %v621 = vpack.c.b16 %v523, %v522
  %v622 = vpack.c.b16 %v525, %v524
  %v623 = vpack.c.b16 %v527, %v526
  %v624 = vpack.c.b16 %v529, %v528
  %v625 = vpack.c.b16 %v531, %v530
  %v626 = vpack.c.b16 %v533, %v532
  %v627 = vpack.c.b16 %v535, %v534
  %v628 = vpack.c.b16 %v537, %v536
  %v629 = vpack.c.b16 %v539, %v538
  %v630 = vpack.c.b16 %v541, %v540
  %v631 = vpack.c.b16 %v543, %v542
  %v632 = vpack.c.b16 %v545, %v544
  %v633 = vpack.c.b16 %v547, %v546
  %v634 = vpack.c.b16 %v549, %v548
  %v635 = vpack.c.b16 %v551, %v550
  %v636 = vpack.c.b16 %v553, %v552
  %v637 = vpack.c.b16 %v555, %v554
  %v638 = vpack.c.b16 %v557, %v556
  %v639 = vpack.c.b16 %v559, %v558
  %v640 = vpack.c.b16 %v561, %v560
  %v641 = vpack.c.b16 %v563, %v562
  %v642 = vpack.c.b16 %v565, %v564
  %v643 = vpack.c.b16 %v567, %v566
  %v644 = vpack.c.b16 %v569, %v568
  %v645 = vpack.c.b16 %v571, %v570
  %v646 = vpack.c.b16 %v573, %v572
  %v647 = vpack.c.b16 %v575, %v574
  %v648 = vpack.c.b16 %v577, %v576
  %v649 = vpack.c.b16 %v579, %v578
  %v650 = vpack.c.b16 %v581, %v580
  %v651 = vpack.c.b16 %v583, %v582
  %v652 = vpack.c.b16 %v585, %v584
  %v653 = vpack.c.b16 %v587, %v586
  %v654 = vpack.c.b16 %v589, %v588
  %v655 = vpack.c.b16 %v591, %v590
  %720 = vmatpush.bf16.msra.mxu0 %v599
  %721 = vmatpush.bf16.msra.mxu0 %v598
  %722 = vmatpush.bf16.msra.mxu0 %v597
  %723 = vmatpush.bf16.msra.mxu0 %v596
  %724 = vmatpush.bf16.msra.mxu0 %v595
  %725 = vmatpush.bf16.msra.mxu0 %v594
  %726 = vmatpush.bf16.msra.mxu0 %v593
  %727 = vmatpush.bf16.msra.mxu0 %v592
  %728 = vmatmul.bf16.gmra.mxu0 %v328
  %v729 = vpop.f32.mrf.mxu0
  %v730 = vadd.f32 0.0, %v729
  %v731 = vpop.f32.mrf.mxu0
  %732 = vdwg.mxu0
  %733 = vmatpush.bf16.msra.mxu0 %v607
  %734 = vmatpush.bf16.msra.mxu0 %v606
  %735 = vmatpush.bf16.msra.mxu0 %v605
  %736 = vmatpush.bf16.msra.mxu0 %v604
  %737 = vmatpush.bf16.msra.mxu0 %v603
  %738 = vmatpush.bf16.msra.mxu0 %v602
  %739 = vmatpush.bf16.msra.mxu0 %v601
  %740 = vmatpush.bf16.msra.mxu0 %v600
  %741 = vmatmul.bf16.gmra.mxu0 %v329
  %v742 = vpop.f32.mrf.mxu0
  %v743 = vadd.f32 %v730, %v742
  %v744 = vpop.f32.mrf.mxu0
  %745 = vdwg.mxu0
  %746 = vmatpush.bf16.msra.mxu0 %v615
  %747 = vmatpush.bf16.msra.mxu0 %v614
  %748 = vmatpush.bf16.msra.mxu0 %v613
  %749 = vmatpush.bf16.msra.mxu0 %v612
  %750 = vmatpush.bf16.msra.mxu0 %v611
  %751 = vmatpush.bf16.msra.mxu0 %v610
  %752 = vmatpush.bf16.msra.mxu0 %v609
  %753 = vmatpush.bf16.msra.mxu0 %v608
  %754 = vmatmul.bf16.gmra.mxu0 %v330
  %v755 = vpop.f32.mrf.mxu0
  %v756 = vadd.f32 %v743, %v755
  %v757 = vpop.f32.mrf.mxu0
  %758 = vdwg.mxu0
  %759 = vmatpush.bf16.msra.mxu0 %v623
  %760 = vmatpush.bf16.msra.mxu0 %v622
  %761 = vmatpush.bf16.msra.mxu0 %v621
  %762 = vmatpush.bf16.msra.mxu0 %v620
  %763 = vmatpush.bf16.msra.mxu0 %v619
  %764 = vmatpush.bf16.msra.mxu0 %v618
  %765 = vmatpush.bf16.msra.mxu0 %v617
  %766 = vmatpush.bf16.msra.mxu0 %v616
  %767 = vmatmul.bf16.gmra.mxu0 %v331
  %v768 = vpop.f32.mrf.mxu0
  %v769 = vadd.f32 %v756, %v768
  %v770 = vpop.f32.mrf.mxu0
  %771 = vdwg.mxu0
  %772 = vmatpush.bf16.msra.mxu0 %v631
  %773 = vmatpush.bf16.msra.mxu0 %v630
  %774 = vmatpush.bf16.msra.mxu0 %v629
  %775 = vmatpush.bf16.msra.mxu0 %v628
  %776 = vmatpush.bf16.msra.mxu0 %v627
  %777 = vmatpush.bf16.msra.mxu0 %v626
  %778 = vmatpush.bf16.msra.mxu0 %v625
  %779 = vmatpush.bf16.msra.mxu0 %v624
  %780 = vmatmul.bf16.gmra.mxu0 %v332
  %v781 = vpop.f32.mrf.mxu0
  %v782 = vadd.f32 %v769, %v781
  %v783 = vpop.f32.mrf.mxu0
  %784 = vdwg.mxu0
  %785 = vmatpush.bf16.msra.mxu0 %v639
  %786 = vmatpush.bf16.msra.mxu0 %v638
  %787 = vmatpush.bf16.msra.mxu0 %v637
  %788 = vmatpush.bf16.msra.mxu0 %v636
  %789 = vmatpush.bf16.msra.mxu0 %v635
  %790 = vmatpush.bf16.msra.mxu0 %v634
  %791 = vmatpush.bf16.msra.mxu0 %v633
  %792 = vmatpush.bf16.msra.mxu0 %v632
  %793 = vmatmul.bf16.gmra.mxu0 %v333
  %v794 = vpop.f32.mrf.mxu0
  %v795 = vadd.f32 %v782, %v794
  %v796 = vpop.f32.mrf.mxu0
  %797 = vdwg.mxu0
  %798 = vmatpush.bf16.msra.mxu0 %v647
  %799 = vmatpush.bf16.msra.mxu0 %v646
  %800 = vmatpush.bf16.msra.mxu0 %v645
  %801 = vmatpush.bf16.msra.mxu0 %v644
  %802 = vmatpush.bf16.msra.mxu0 %v643
  %803 = vmatpush.bf16.msra.mxu0 %v642
  %804 = vmatpush.bf16.msra.mxu0 %v641
  %805 = vmatpush.bf16.msra.mxu0 %v640
  %806 = vmatmul.bf16.gmra.mxu0 %v334
  %v807 = vpop.f32.mrf.mxu0
  %v808 = vadd.f32 %v795, %v807
  %v809 = vpop.f32.mrf.mxu0
  %810 = vdwg.mxu0
  %811 = vmatpush.bf16.msra.mxu0 %v655
  %812 = vmatpush.bf16.msra.mxu0 %v654
  %813 = vmatpush.bf16.msra.mxu0 %v653
  %814 = vmatpush.bf16.msra.mxu0 %v652
  %815 = vmatpush.bf16.msra.mxu0 %v651
  %816 = vmatpush.bf16.msra.mxu0 %v650
  %817 = vmatpush.bf16.msra.mxu0 %v649
  %818 = vmatpush.bf16.msra.mxu0 %v648
  %819 = vmatmul.bf16.gmra.mxu0 %v335
  %v820 = vpop.f32.mrf.mxu0
  %v821 = vadd.f32 %v808, %v820
  %v822 = vpop.f32.mrf.mxu0
  %823 = vdwg.mxu0
  %v824 = vld [vmem:[%s4] sm:$0x1]
  %v826 = vperm.slane %v824, 0
  %v828 = vmul.f32 %v821, %v826
  %v829 = vld [vmem:[%s5] sm:$0x1]
  %v831 = vperm.slane %v829, 0
  %v833 = vadd.f32 %v828, %v831
  %v834 = vmax.f32 %v833, 0.0
  %v835 = vpack.c.bf16 %v834, %v834
  %836 = vst [vmem:[%s6] sm:$0x1] %v835
  // Predicated region
  $region26: #{densenet121_forward.209} parent=0 // pred_check
    _
  $region27: #{densenet121_forward.209} parent=0 // pred_check_branch
    %838 = sbr.rel (0) target = $region29
  $region28: #{densenet121_forward.209} parent=0 // pred_region
    _
  $region29: #{densenet121_forward.209} parent=0 // pred_fallthru
    _
  // Predicated region
  $region30: #{densenet121_forward.209} parent=0 // pred_check
    _
  $region31: #{densenet121_forward.209} parent=0 // pred_check_branch
    %840 = sbr.rel (0) target = $region33
  $region32: #{densenet121_forward.209} parent=0 // pred_region
    _
  $region33: #{densenet121_forward.209} parent=0 // pred_fallthru
    _

// kernel: densenet121_forward.210
$region0: #{densenet121_forward.210}
  #allocation0 [shape = 'u32[]', space=smem, size = 0x4, offset = 0x4, fixed_abs, tag = 'smem constant byte address 0x4 - core index']
  #allocation1 [shape = 'u32[72,128]{1,0:T(1,128)}', space=vmem, size = 0x9000, scoped, tag = 'internal scratch']
  %s0 = inlined_call_operand.vmem [shape: bf16[2,1152], index: 0, kind: input, shape index: {}]
  %s1 = inlined_call_operand.vmem [shape: bf16[1152,32], index: 1, kind: input, shape index: {}]
  %s2 = inlined_call_operand.vmem [shape: bf16[2,32], index: 2, kind: output, shape index: {}]
  %s3 = sld [smem:[#allocation0]]
  $region18: #{densenet121_forward.210} parent=0
    _
  %s5 = ssub.s32 1, %s3
  %s6 = scalar_select 0, %s5, %s3
  // Predicated region
  $region2: #{densenet121_forward.210} parent=0 // pred_check
    _
  $region3: #{densenet121_forward.210} parent=0 // pred_check_branch
    %8 = sbr.rel (0) target = $region5
  $region4: #{densenet121_forward.210} parent=0 // pred_region
    _
  $region5: #{densenet121_forward.210} parent=0 // pred_fallthru
    _
  // Predicated region
  $region6: #{densenet121_forward.210} parent=0 // pred_check
    _
  $region7: #{densenet121_forward.210} parent=0 // pred_check_branch
    %10 = sbr.rel (0) target = $region9
  $region8: #{densenet121_forward.210} parent=0 // pred_region
    _
  $region9: #{densenet121_forward.210} parent=0 // pred_fallthru
    _
  %v11 = vld [vmem:[%s0] sm:$0xff]
  %v12 = vld [vmem:[%s0 + $0x8] sm:$0x1]
  %v13 = vld [vmem:[%s1] sm:$0xf]
  %v14 = vld [vmem:[%s1 + $0x4] sm:$0xf]
  %v15 = vld [vmem:[%s1 + $0x8] sm:$0xf]
  %v16 = vld [vmem:[%s1 + $0xc] sm:$0xf]
  %v17 = vld [vmem:[%s1 + $0x10] sm:$0xf]
  %v18 = vld [vmem:[%s1 + $0x14] sm:$0xf]
  %v19 = vld [vmem:[%s1 + $0x18] sm:$0xf]
  %v20 = vld [vmem:[%s1 + $0x1c] sm:$0xf]
  %v21 = vld [vmem:[%s1 + $0x20] sm:$0xf]
  %v22 = vld [vmem:[%s1 + $0x24] sm:$0xf]
  %v23 = vld [vmem:[%s1 + $0x28] sm:$0xf]
  %v24 = vld [vmem:[%s1 + $0x2c] sm:$0xf]
  %v25 = vld [vmem:[%s1 + $0x30] sm:$0xf]
  %v26 = vld [vmem:[%s1 + $0x34] sm:$0xf]
  %v27 = vld [vmem:[%s1 + $0x38] sm:$0xf]
  %v28 = vld [vmem:[%s1 + $0x3c] sm:$0xf]
  %v29 = vld [vmem:[%s1 + $0x40] sm:$0xf]
  %v30 = vld [vmem:[%s1 + $0x44] sm:$0xf]
  %v31 = vld [vmem:[%s1 + $0x48] sm:$0xf]
  %v32 = vld [vmem:[%s1 + $0x4c] sm:$0xf]
  %v33 = vld [vmem:[%s1 + $0x50] sm:$0xf]
  %v34 = vld [vmem:[%s1 + $0x54] sm:$0xf]
  %v35 = vld [vmem:[%s1 + $0x58] sm:$0xf]
  %v36 = vld [vmem:[%s1 + $0x5c] sm:$0xf]
  %v37 = vld [vmem:[%s1 + $0x60] sm:$0xf]
  %v38 = vld [vmem:[%s1 + $0x64] sm:$0xf]
  %v39 = vld [vmem:[%s1 + $0x68] sm:$0xf]
  %v40 = vld [vmem:[%s1 + $0x6c] sm:$0xf]
  %v41 = vld [vmem:[%s1 + $0x70] sm:$0xf]
  %v42 = vld [vmem:[%s1 + $0x74] sm:$0xf]
  %v43 = vld [vmem:[%s1 + $0x78] sm:$0xf]
  %v44 = vld [vmem:[%s1 + $0x7c] sm:$0xf]
  %v45 = vld [vmem:[%s1 + $0x80] sm:$0xf]
  %v46 = vld [vmem:[%s1 + $0x84] sm:$0xf]
  %v47 = vld [vmem:[%s1 + $0x88] sm:$0xf]
  %v48 = vld [vmem:[%s1 + $0x8c] sm:$0xf]
  %v49 = vld [vmem:[%s1 + $0x90] sm:$0xf]
  %v50 = vld [vmem:[%s1 + $0x94] sm:$0xf]
  %v51 = vld [vmem:[%s1 + $0x98] sm:$0xf]
  %v52 = vld [vmem:[%s1 + $0x9c] sm:$0xf]
  %v53 = vld [vmem:[%s1 + $0xa0] sm:$0xf]
  %v54 = vld [vmem:[%s1 + $0xa4] sm:$0xf]
  %v55 = vld [vmem:[%s1 + $0xa8] sm:$0xf]
  %v56 = vld [vmem:[%s1 + $0xac] sm:$0xf]
  %v57 = vld [vmem:[%s1 + $0xb0] sm:$0xf]
  %v58 = vld [vmem:[%s1 + $0xb4] sm:$0xf]
  %v59 = vld [vmem:[%s1 + $0xb8] sm:$0xf]
  %v60 = vld [vmem:[%s1 + $0xbc] sm:$0xf]
  %v61 = vld [vmem:[%s1 + $0xc0] sm:$0xf]
  %v62 = vld [vmem:[%s1 + $0xc4] sm:$0xf]
  %v63 = vld [vmem:[%s1 + $0xc8] sm:$0xf]
  %v64 = vld [vmem:[%s1 + $0xcc] sm:$0xf]
  %v65 = vld [vmem:[%s1 + $0xd0] sm:$0xf]
  %v66 = vld [vmem:[%s1 + $0xd4] sm:$0xf]
  %v67 = vld [vmem:[%s1 + $0xd8] sm:$0xf]
  %v68 = vld [vmem:[%s1 + $0xdc] sm:$0xf]
  %v69 = vld [vmem:[%s1 + $0xe0] sm:$0xf]
  %v70 = vld [vmem:[%s1 + $0xe4] sm:$0xf]
  %v71 = vld [vmem:[%s1 + $0xe8] sm:$0xf]
  %v72 = vld [vmem:[%s1 + $0xec] sm:$0xf]
  %v73 = vld [vmem:[%s1 + $0xf0] sm:$0xf]
  %v74 = vld [vmem:[%s1 + $0xf4] sm:$0xf]
  %v75 = vld [vmem:[%s1 + $0xf8] sm:$0xf]
  %v76 = vld [vmem:[%s1 + $0xfc] sm:$0xf]
  %v77 = vld [vmem:[%s1 + $0x100] sm:$0xf]
  %v78 = vld [vmem:[%s1 + $0x104] sm:$0xf]
  %v79 = vld [vmem:[%s1 + $0x108] sm:$0xf]
  %v80 = vld [vmem:[%s1 + $0x10c] sm:$0xf]
  %v81 = vld [vmem:[%s1 + $0x110] sm:$0xf]
  %v82 = vld [vmem:[%s1 + $0x114] sm:$0xf]
  %v83 = vld [vmem:[%s1 + $0x118] sm:$0xf]
  %v84 = vld [vmem:[%s1 + $0x11c] sm:$0xf]
  %v85 = vld [vmem:[%s1 + $0x120] sm:$0xf]
  %v86 = vld [vmem:[%s1 + $0x124] sm:$0xf]
  %v87 = vld [vmem:[%s1 + $0x128] sm:$0xf]
  %v88 = vld [vmem:[%s1 + $0x12c] sm:$0xf]
  %v89 = vld [vmem:[%s1 + $0x130] sm:$0xf]
  %v90 = vld [vmem:[%s1 + $0x134] sm:$0xf]
  %v91 = vld [vmem:[%s1 + $0x138] sm:$0xf]
  %v92 = vld [vmem:[%s1 + $0x13c] sm:$0xf]
  %v93 = vld [vmem:[%s1 + $0x140] sm:$0xf]
  %v94 = vld [vmem:[%s1 + $0x144] sm:$0xf]
  %v95 = vld [vmem:[%s1 + $0x148] sm:$0xf]
  %v96 = vld [vmem:[%s1 + $0x14c] sm:$0xf]
  %v97 = vld [vmem:[%s1 + $0x150] sm:$0xf]
  %v98 = vld [vmem:[%s1 + $0x154] sm:$0xf]
  %v99 = vld [vmem:[%s1 + $0x158] sm:$0xf]
  %v100 = vld [vmem:[%s1 + $0x15c] sm:$0xf]
  %v101 = vld [vmem:[%s1 + $0x160] sm:$0xf]
  %v102 = vld [vmem:[%s1 + $0x164] sm:$0xf]
  %v103 = vld [vmem:[%s1 + $0x168] sm:$0xf]
  %v104 = vld [vmem:[%s1 + $0x16c] sm:$0xf]
  %v105 = vld [vmem:[%s1 + $0x170] sm:$0xf]
  %v106 = vld [vmem:[%s1 + $0x174] sm:$0xf]
  %v107 = vld [vmem:[%s1 + $0x178] sm:$0xf]
  %v108 = vld [vmem:[%s1 + $0x17c] sm:$0xf]
  %v109 = vld [vmem:[%s1 + $0x180] sm:$0xf]
  %v110 = vld [vmem:[%s1 + $0x184] sm:$0xf]
  %v111 = vld [vmem:[%s1 + $0x188] sm:$0xf]
  %v112 = vld [vmem:[%s1 + $0x18c] sm:$0xf]
  %v113 = vld [vmem:[%s1 + $0x190] sm:$0xf]
  %v114 = vld [vmem:[%s1 + $0x194] sm:$0xf]
  %v115 = vld [vmem:[%s1 + $0x198] sm:$0xf]
  %v116 = vld [vmem:[%s1 + $0x19c] sm:$0xf]
  %v117 = vld [vmem:[%s1 + $0x1a0] sm:$0xf]
  %v118 = vld [vmem:[%s1 + $0x1a4] sm:$0xf]
  %v119 = vld [vmem:[%s1 + $0x1a8] sm:$0xf]
  %v120 = vld [vmem:[%s1 + $0x1ac] sm:$0xf]
  %v121 = vld [vmem:[%s1 + $0x1b0] sm:$0xf]
  %v122 = vld [vmem:[%s1 + $0x1b4] sm:$0xf]
  %v123 = vld [vmem:[%s1 + $0x1b8] sm:$0xf]
  %v124 = vld [vmem:[%s1 + $0x1bc] sm:$0xf]
  %v125 = vld [vmem:[%s1 + $0x1c0] sm:$0xf]
  %v126 = vld [vmem:[%s1 + $0x1c4] sm:$0xf]
  %v127 = vld [vmem:[%s1 + $0x1c8] sm:$0xf]
  %v128 = vld [vmem:[%s1 + $0x1cc] sm:$0xf]
  %v129 = vld [vmem:[%s1 + $0x1d0] sm:$0xf]
  %v130 = vld [vmem:[%s1 + $0x1d4] sm:$0xf]
  %v131 = vld [vmem:[%s1 + $0x1d8] sm:$0xf]
  %v132 = vld [vmem:[%s1 + $0x1dc] sm:$0xf]
  %v133 = vld [vmem:[%s1 + $0x1e0] sm:$0xf]
  %v134 = vld [vmem:[%s1 + $0x1e4] sm:$0xf]
  %v135 = vld [vmem:[%s1 + $0x1e8] sm:$0xf]
  %v136 = vld [vmem:[%s1 + $0x1ec] sm:$0xf]
  %v137 = vld [vmem:[%s1 + $0x1f0] sm:$0xf]
  %v138 = vld [vmem:[%s1 + $0x1f4] sm:$0xf]
  %v139 = vld [vmem:[%s1 + $0x1f8] sm:$0xf]
  %v140 = vld [vmem:[%s1 + $0x1fc] sm:$0xf]
  %v141 = vld [vmem:[%s1 + $0x200] sm:$0xf]
  %v142 = vld [vmem:[%s1 + $0x204] sm:$0xf]
  %v143 = vld [vmem:[%s1 + $0x208] sm:$0xf]
  %v144 = vld [vmem:[%s1 + $0x20c] sm:$0xf]
  %v145 = vld [vmem:[%s1 + $0x210] sm:$0xf]
  %v146 = vld [vmem:[%s1 + $0x214] sm:$0xf]
  %v147 = vld [vmem:[%s1 + $0x218] sm:$0xf]
  %v148 = vld [vmem:[%s1 + $0x21c] sm:$0xf]
  %v149 = vld [vmem:[%s1 + $0x220] sm:$0xf]
  %v150 = vld [vmem:[%s1 + $0x224] sm:$0xf]
  %v151 = vld [vmem:[%s1 + $0x228] sm:$0xf]
  %v152 = vld [vmem:[%s1 + $0x22c] sm:$0xf]
  %v153 = vld [vmem:[%s1 + $0x230] sm:$0xf]
  %v154 = vld [vmem:[%s1 + $0x234] sm:$0xf]
  %v155 = vld [vmem:[%s1 + $0x238] sm:$0xf]
  %v156 = vld [vmem:[%s1 + $0x23c] sm:$0xf]
  %158 = vst [vmem:[#allocation1] ss:$9 sm:$0xff] %v11
  %v159 = vld [vmem:[#allocation1] sm:$0xff]
  %v160 = vld [vmem:[#allocation1 + $0x9] sm:$0xff]
  %v161 = vld [vmem:[#allocation1 + $0x12] sm:$0xff]
  %v162 = vld [vmem:[#allocation1 + $0x1b] sm:$0xff]
  %v163 = vld [vmem:[#allocation1 + $0x24] sm:$0xff]
  %v164 = vld [vmem:[#allocation1 + $0x2d] sm:$0xff]
  %v165 = vld [vmem:[#allocation1 + $0x36] sm:$0xff]
  %v166 = vld [vmem:[#allocation1 + $0x3f] sm:$0xff]
  %168 = vst [vmem:[#allocation1] ss:$9 sm:$0xff] %v12
  %v169 = vld [vmem:[#allocation1] sm:$0xff]
  %v323 = vunpack.c.l.b16 %v13
  %v324 = vunpack.c.l.b16 %v14
  %v325 = vunpack.c.l.b16 %v15
  %v326 = vunpack.c.l.b16 %v16
  %v327 = vunpack.c.l.b16 %v17
  %v328 = vunpack.c.l.b16 %v18
  %v329 = vunpack.c.l.b16 %v19
  %v330 = vunpack.c.l.b16 %v20
  %v331 = vunpack.c.l.b16 %v21
  %v332 = vunpack.c.l.b16 %v22
  %v333 = vunpack.c.l.b16 %v23
  %v334 = vunpack.c.l.b16 %v24
  %v335 = vunpack.c.l.b16 %v25
  %v336 = vunpack.c.l.b16 %v26
  %v337 = vunpack.c.l.b16 %v27
  %v338 = vunpack.c.l.b16 %v28
  %v339 = vunpack.c.l.b16 %v29
  %v340 = vunpack.c.l.b16 %v30
  %v341 = vunpack.c.l.b16 %v31
  %v342 = vunpack.c.l.b16 %v32
  %v343 = vunpack.c.l.b16 %v33
  %v344 = vunpack.c.l.b16 %v34
  %v345 = vunpack.c.l.b16 %v35
  %v346 = vunpack.c.l.b16 %v36
  %v347 = vunpack.c.l.b16 %v37
  %v348 = vunpack.c.l.b16 %v38
  %v349 = vunpack.c.l.b16 %v39
  %v350 = vunpack.c.l.b16 %v40
  %v351 = vunpack.c.l.b16 %v41
  %v352 = vunpack.c.l.b16 %v42
  %v353 = vunpack.c.l.b16 %v43
  %v354 = vunpack.c.l.b16 %v44
  %v355 = vunpack.c.l.b16 %v45
  %v356 = vunpack.c.l.b16 %v46
  %v357 = vunpack.c.l.b16 %v47
  %v358 = vunpack.c.l.b16 %v48
  %v359 = vunpack.c.l.b16 %v49
  %v360 = vunpack.c.l.b16 %v50
  %v361 = vunpack.c.l.b16 %v51
  %v362 = vunpack.c.l.b16 %v52
  %v363 = vunpack.c.l.b16 %v53
  %v364 = vunpack.c.l.b16 %v54
  %v365 = vunpack.c.l.b16 %v55
  %v366 = vunpack.c.l.b16 %v56
  %v367 = vunpack.c.l.b16 %v57
  %v368 = vunpack.c.l.b16 %v58
  %v369 = vunpack.c.l.b16 %v59
  %v370 = vunpack.c.l.b16 %v60
  %v371 = vunpack.c.l.b16 %v61
  %v372 = vunpack.c.l.b16 %v62
  %v373 = vunpack.c.l.b16 %v63
  %v374 = vunpack.c.l.b16 %v64
  %v375 = vunpack.c.l.b16 %v65
  %v376 = vunpack.c.l.b16 %v66
  %v377 = vunpack.c.l.b16 %v67
  %v378 = vunpack.c.l.b16 %v68
  %v379 = vunpack.c.l.b16 %v69
  %v380 = vunpack.c.l.b16 %v70
  %v381 = vunpack.c.l.b16 %v71
  %v382 = vunpack.c.l.b16 %v72
  %v383 = vunpack.c.l.b16 %v73
  %v384 = vunpack.c.l.b16 %v74
  %v385 = vunpack.c.l.b16 %v75
  %v386 = vunpack.c.l.b16 %v76
  %v387 = vunpack.c.l.b16 %v77
  %v388 = vunpack.c.l.b16 %v78
  %v389 = vunpack.c.l.b16 %v79
  %v390 = vunpack.c.l.b16 %v80
  %v391 = vunpack.c.l.b16 %v81
  %v392 = vunpack.c.l.b16 %v82
  %v393 = vunpack.c.l.b16 %v83
  %v394 = vunpack.c.l.b16 %v84
  %v395 = vunpack.c.l.b16 %v85
  %v396 = vunpack.c.l.b16 %v86
  %v397 = vunpack.c.l.b16 %v87
  %v398 = vunpack.c.l.b16 %v88
  %v399 = vunpack.c.l.b16 %v89
  %v400 = vunpack.c.l.b16 %v90
  %v401 = vunpack.c.l.b16 %v91
  %v402 = vunpack.c.l.b16 %v92
  %v403 = vunpack.c.l.b16 %v93
  %v404 = vunpack.c.l.b16 %v94
  %v405 = vunpack.c.l.b16 %v95
  %v406 = vunpack.c.l.b16 %v96
  %v407 = vunpack.c.l.b16 %v97
  %v408 = vunpack.c.l.b16 %v98
  %v409 = vunpack.c.l.b16 %v99
  %v410 = vunpack.c.l.b16 %v100
  %v411 = vunpack.c.l.b16 %v101
  %v412 = vunpack.c.l.b16 %v102
  %v413 = vunpack.c.l.b16 %v103
  %v414 = vunpack.c.l.b16 %v104
  %v415 = vunpack.c.l.b16 %v105
  %v416 = vunpack.c.l.b16 %v106
  %v417 = vunpack.c.l.b16 %v107
  %v418 = vunpack.c.l.b16 %v108
  %v419 = vunpack.c.l.b16 %v109
  %v420 = vunpack.c.l.b16 %v110
  %v421 = vunpack.c.l.b16 %v111
  %v422 = vunpack.c.l.b16 %v112
  %v423 = vunpack.c.l.b16 %v113
  %v424 = vunpack.c.l.b16 %v114
  %v425 = vunpack.c.l.b16 %v115
  %v426 = vunpack.c.l.b16 %v116
  %v427 = vunpack.c.l.b16 %v117
  %v428 = vunpack.c.l.b16 %v118
  %v429 = vunpack.c.l.b16 %v119
  %v430 = vunpack.c.l.b16 %v120
  %v431 = vunpack.c.l.b16 %v121
  %v432 = vunpack.c.l.b16 %v122
  %v433 = vunpack.c.l.b16 %v123
  %v434 = vunpack.c.l.b16 %v124
  %v435 = vunpack.c.l.b16 %v125
  %v436 = vunpack.c.l.b16 %v126
  %v437 = vunpack.c.l.b16 %v127
  %v438 = vunpack.c.l.b16 %v128
  %v439 = vunpack.c.l.b16 %v129
  %v440 = vunpack.c.l.b16 %v130
  %v441 = vunpack.c.l.b16 %v131
  %v442 = vunpack.c.l.b16 %v132
  %v443 = vunpack.c.l.b16 %v133
  %v444 = vunpack.c.l.b16 %v134
  %v445 = vunpack.c.l.b16 %v135
  %v446 = vunpack.c.l.b16 %v136
  %v447 = vunpack.c.l.b16 %v137
  %v448 = vunpack.c.l.b16 %v138
  %v449 = vunpack.c.l.b16 %v139
  %v450 = vunpack.c.l.b16 %v140
  %v451 = vunpack.c.l.b16 %v141
  %v452 = vunpack.c.l.b16 %v142
  %v453 = vunpack.c.l.b16 %v143
  %v454 = vunpack.c.l.b16 %v144
  %v455 = vunpack.c.l.b16 %v145
  %v456 = vunpack.c.l.b16 %v146
  %v457 = vunpack.c.l.b16 %v147
  %v458 = vunpack.c.l.b16 %v148
  %v459 = vunpack.c.l.b16 %v149
  %v460 = vunpack.c.l.b16 %v150
  %v461 = vunpack.c.l.b16 %v151
  %v462 = vunpack.c.l.b16 %v152
  %v463 = vunpack.c.l.b16 %v153
  %v464 = vunpack.c.l.b16 %v154
  %v465 = vunpack.c.l.b16 %v155
  %v466 = vunpack.c.l.b16 %v156
  %v467 = vpack.c.b16 %v324, %v323
  %v468 = vpack.c.b16 %v326, %v325
  %v469 = vpack.c.b16 %v328, %v327
  %v470 = vpack.c.b16 %v330, %v329
  %v471 = vpack.c.b16 %v332, %v331
  %v472 = vpack.c.b16 %v334, %v333
  %v473 = vpack.c.b16 %v336, %v335
  %v474 = vpack.c.b16 %v338, %v337
  %v475 = vpack.c.b16 %v340, %v339
  %v476 = vpack.c.b16 %v342, %v341
  %v477 = vpack.c.b16 %v344, %v343
  %v478 = vpack.c.b16 %v346, %v345
  %v479 = vpack.c.b16 %v348, %v347
  %v480 = vpack.c.b16 %v350, %v349
  %v481 = vpack.c.b16 %v352, %v351
  %v482 = vpack.c.b16 %v354, %v353
  %v483 = vpack.c.b16 %v356, %v355
  %v484 = vpack.c.b16 %v358, %v357
  %v485 = vpack.c.b16 %v360, %v359
  %v486 = vpack.c.b16 %v362, %v361
  %v487 = vpack.c.b16 %v364, %v363
  %v488 = vpack.c.b16 %v366, %v365
  %v489 = vpack.c.b16 %v368, %v367
  %v490 = vpack.c.b16 %v370, %v369
  %v491 = vpack.c.b16 %v372, %v371
  %v492 = vpack.c.b16 %v374, %v373
  %v493 = vpack.c.b16 %v376, %v375
  %v494 = vpack.c.b16 %v378, %v377
  %v495 = vpack.c.b16 %v380, %v379
  %v496 = vpack.c.b16 %v382, %v381
  %v497 = vpack.c.b16 %v384, %v383
  %v498 = vpack.c.b16 %v386, %v385
  %v499 = vpack.c.b16 %v388, %v387
  %v500 = vpack.c.b16 %v390, %v389
  %v501 = vpack.c.b16 %v392, %v391
  %v502 = vpack.c.b16 %v394, %v393
  %v503 = vpack.c.b16 %v396, %v395
  %v504 = vpack.c.b16 %v398, %v397
  %v505 = vpack.c.b16 %v400, %v399
  %v506 = vpack.c.b16 %v402, %v401
  %v507 = vpack.c.b16 %v404, %v403
  %v508 = vpack.c.b16 %v406, %v405
  %v509 = vpack.c.b16 %v408, %v407
  %v510 = vpack.c.b16 %v410, %v409
  %v511 = vpack.c.b16 %v412, %v411
  %v512 = vpack.c.b16 %v414, %v413
  %v513 = vpack.c.b16 %v416, %v415
  %v514 = vpack.c.b16 %v418, %v417
  %v515 = vpack.c.b16 %v420, %v419
  %v516 = vpack.c.b16 %v422, %v421
  %v517 = vpack.c.b16 %v424, %v423
  %v518 = vpack.c.b16 %v426, %v425
  %v519 = vpack.c.b16 %v428, %v427
  %v520 = vpack.c.b16 %v430, %v429
  %v521 = vpack.c.b16 %v432, %v431
  %v522 = vpack.c.b16 %v434, %v433
  %v523 = vpack.c.b16 %v436, %v435
  %v524 = vpack.c.b16 %v438, %v437
  %v525 = vpack.c.b16 %v440, %v439
  %v526 = vpack.c.b16 %v442, %v441
  %v527 = vpack.c.b16 %v444, %v443
  %v528 = vpack.c.b16 %v446, %v445
  %v529 = vpack.c.b16 %v448, %v447
  %v530 = vpack.c.b16 %v450, %v449
  %v531 = vpack.c.b16 %v452, %v451
  %v532 = vpack.c.b16 %v454, %v453
  %v533 = vpack.c.b16 %v456, %v455
  %v534 = vpack.c.b16 %v458, %v457
  %v535 = vpack.c.b16 %v460, %v459
  %v536 = vpack.c.b16 %v462, %v461
  %v537 = vpack.c.b16 %v464, %v463
  %v538 = vpack.c.b16 %v466, %v465
  %611 = vmatpush.bf16.msra.mxu0 %v474
  %612 = vmatpush.bf16.msra.mxu0 %v473
  %613 = vmatpush.bf16.msra.mxu0 %v472
  %614 = vmatpush.bf16.msra.mxu0 %v471
  %615 = vmatpush.bf16.msra.mxu0 %v470
  %616 = vmatpush.bf16.msra.mxu0 %v469
  %617 = vmatpush.bf16.msra.mxu0 %v468
  %618 = vmatpush.bf16.msra.mxu0 %v467
  %619 = vmatmul.bf16.gmra.mxu0 %v159
  %v620 = vpop.f32.mrf.mxu0
  %v621 = vadd.f32 0.0, %v620
  %v622 = vpop.f32.mrf.mxu0
  %623 = vdwg.mxu0
  %624 = vmatpush.bf16.msra.mxu0 %v482
  %625 = vmatpush.bf16.msra.mxu0 %v481
  %626 = vmatpush.bf16.msra.mxu0 %v480
  %627 = vmatpush.bf16.msra.mxu0 %v479
  %628 = vmatpush.bf16.msra.mxu0 %v478
  %629 = vmatpush.bf16.msra.mxu0 %v477
  %630 = vmatpush.bf16.msra.mxu0 %v476
  %631 = vmatpush.bf16.msra.mxu0 %v475
  %632 = vmatmul.bf16.gmra.mxu0 %v160
  %v633 = vpop.f32.mrf.mxu0
  %v634 = vadd.f32 %v621, %v633
  %v635 = vpop.f32.mrf.mxu0
  %636 = vdwg.mxu0
  %637 = vmatpush.bf16.msra.mxu0 %v490
  %638 = vmatpush.bf16.msra.mxu0 %v489
  %639 = vmatpush.bf16.msra.mxu0 %v488
  %640 = vmatpush.bf16.msra.mxu0 %v487
  %641 = vmatpush.bf16.msra.mxu0 %v486
  %642 = vmatpush.bf16.msra.mxu0 %v485
  %643 = vmatpush.bf16.msra.mxu0 %v484
  %644 = vmatpush.bf16.msra.mxu0 %v483
  %645 = vmatmul.bf16.gmra.mxu0 %v161
  %v646 = vpop.f32.mrf.mxu0
  %v647 = vadd.f32 %v634, %v646
  %v648 = vpop.f32.mrf.mxu0
  %649 = vdwg.mxu0
  %650 = vmatpush.bf16.msra.mxu0 %v498
  %651 = vmatpush.bf16.msra.mxu0 %v497
  %652 = vmatpush.bf16.msra.mxu0 %v496
  %653 = vmatpush.bf16.msra.mxu0 %v495
  %654 = vmatpush.bf16.msra.mxu0 %v494
  %655 = vmatpush.bf16.msra.mxu0 %v493
  %656 = vmatpush.bf16.msra.mxu0 %v492
  %657 = vmatpush.bf16.msra.mxu0 %v491
  %658 = vmatmul.bf16.gmra.mxu0 %v162
  %v659 = vpop.f32.mrf.mxu0
  %v660 = vadd.f32 %v647, %v659
  %v661 = vpop.f32.mrf.mxu0
  %662 = vdwg.mxu0
  %663 = vmatpush.bf16.msra.mxu0 %v506
  %664 = vmatpush.bf16.msra.mxu0 %v505
  %665 = vmatpush.bf16.msra.mxu0 %v504
  %666 = vmatpush.bf16.msra.mxu0 %v503
  %667 = vmatpush.bf16.msra.mxu0 %v502
  %668 = vmatpush.bf16.msra.mxu0 %v501
  %669 = vmatpush.bf16.msra.mxu0 %v500
  %670 = vmatpush.bf16.msra.mxu0 %v499
  %671 = vmatmul.bf16.gmra.mxu0 %v163
  %v672 = vpop.f32.mrf.mxu0
  %v673 = vadd.f32 %v660, %v672
  %v674 = vpop.f32.mrf.mxu0
  %675 = vdwg.mxu0
  %676 = vmatpush.bf16.msra.mxu0 %v514
  %677 = vmatpush.bf16.msra.mxu0 %v513
  %678 = vmatpush.bf16.msra.mxu0 %v512
  %679 = vmatpush.bf16.msra.mxu0 %v511
  %680 = vmatpush.bf16.msra.mxu0 %v510
  %681 = vmatpush.bf16.msra.mxu0 %v509
  %682 = vmatpush.bf16.msra.mxu0 %v508
  %683 = vmatpush.bf16.msra.mxu0 %v507
  %684 = vmatmul.bf16.gmra.mxu0 %v164
  %v685 = vpop.f32.mrf.mxu0
  %v686 = vadd.f32 %v673, %v685
  %v687 = vpop.f32.mrf.mxu0
  %688 = vdwg.mxu0
  %689 = vmatpush.bf16.msra.mxu0 %v522
  %690 = vmatpush.bf16.msra.mxu0 %v521
  %691 = vmatpush.bf16.msra.mxu0 %v520
  %692 = vmatpush.bf16.msra.mxu0 %v519
  %693 = vmatpush.bf16.msra.mxu0 %v518
  %694 = vmatpush.bf16.msra.mxu0 %v517
  %695 = vmatpush.bf16.msra.mxu0 %v516
  %696 = vmatpush.bf16.msra.mxu0 %v515
  %697 = vmatmul.bf16.gmra.mxu0 %v165
  %v698 = vpop.f32.mrf.mxu0
  %v699 = vadd.f32 %v686, %v698
  %v700 = vpop.f32.mrf.mxu0
  %701 = vdwg.mxu0
  %702 = vmatpush.bf16.msra.mxu0 %v530
  %703 = vmatpush.bf16.msra.mxu0 %v529
  %704 = vmatpush.bf16.msra.mxu0 %v528
  %705 = vmatpush.bf16.msra.mxu0 %v527
  %706 = vmatpush.bf16.msra.mxu0 %v526
  %707 = vmatpush.bf16.msra.mxu0 %v525
  %708 = vmatpush.bf16.msra.mxu0 %v524
  %709 = vmatpush.bf16.msra.mxu0 %v523
  %710 = vmatmul.bf16.gmra.mxu0 %v166
  %v711 = vpop.f32.mrf.mxu0
  %v712 = vadd.f32 %v699, %v711
  %v713 = vpop.f32.mrf.mxu0
  %714 = vdwg.mxu0
  %715 = vmatpush.bf16.msra.mxu0 %v538
  %716 = vmatpush.bf16.msra.mxu0 %v537
  %717 = vmatpush.bf16.msra.mxu0 %v536
  %718 = vmatpush.bf16.msra.mxu0 %v535
  %719 = vmatpush.bf16.msra.mxu0 %v534
  %720 = vmatpush.bf16.msra.mxu0 %v533
  %721 = vmatpush.bf16.msra.mxu0 %v532
  %722 = vmatpush.bf16.msra.mxu0 %v531
  %723 = vmatmul.bf16.gmra.mxu0 %v169
  %v724 = vpop.f32.mrf.mxu0
  %v725 = vadd.f32 %v712, %v724
  %v726 = vpop.f32.mrf.mxu0
  %727 = vdwg.mxu0
  %v728 = vpack.c.bf16 %v725, %v725
  %vm729 = vcmask 253952
  %730 = vst.msk [vmem:[%s2] sm:$0x1] %vm729, %v728
  // Predicated region
  $region10: #{densenet121_forward.210} parent=0 // pred_check
    _
  $region11: #{densenet121_forward.210} parent=0 // pred_check_branch
    %732 = sbr.rel (0) target = $region13
  $region12: #{densenet121_forward.210} parent=0 // pred_region
    _
  $region13: #{densenet121_forward.210} parent=0 // pred_fallthru
    _
  // Predicated region
  $region14: #{densenet121_forward.210} parent=0 // pred_check
    _
  $region15: #{densenet121_forward.210} parent=0 // pred_check_branch
    %734 = sbr.rel (0) target = $region17
  $region16: #{densenet121_forward.210} parent=0 // pred_region
    _
  $region17: #{densenet121_forward.210} parent=0 // pred_fallthru
    _

// kernel: densenet121_forward.208
$region0: #{densenet121_forward.208}
  #allocation0 [shape = 'u32[]', space=smem, size = 0x4, offset = 0x4, fixed_abs, tag = 'smem constant byte address 0x4 - core index']
  #allocation1 [shape = 'u32[72,128]{1,0:T(1,128)}', space=vmem, size = 0x9000, scoped, tag = 'internal scratch']
  %s0 = inlined_call_operand.vmem [shape: bf16[8,1024], index: 0, kind: input, shape index: {}]
  %s1 = inlined_call_operand.vmem [shape: bf16[1,1024], index: 1, kind: input, shape index: {}]
  %s2 = inlined_call_operand.vmem [shape: bf16[1,1024], index: 2, kind: input, shape index: {}]
  %s3 = inlined_call_operand.vmem [shape: bf16[1024,512], index: 3, kind: input, shape index: {}]
  %s4 = inlined_call_operand.vmem [shape: bf16[8,512], index: 4, kind: output, shape index: {}]
  %s5 = sld [smem:[#allocation0]]
  $region26: #{densenet121_forward.208} parent=0
    _
  %s7 = ssub.s32 1, %s5
  %s8 = scalar_select 0, %s7, %s5
  // Predicated region
  $region2: #{densenet121_forward.208} parent=0 // pred_check
    _
  $region3: #{densenet121_forward.208} parent=0 // pred_check_branch
    %10 = sbr.rel (0) target = $region5
  $region4: #{densenet121_forward.208} parent=0 // pred_region
    _
  $region5: #{densenet121_forward.208} parent=0 // pred_fallthru
    _
  // Predicated region
  $region6: #{densenet121_forward.208} parent=0 // pred_check
    _
  $region7: #{densenet121_forward.208} parent=0 // pred_check_branch
    %12 = sbr.rel (0) target = $region9
  $region8: #{densenet121_forward.208} parent=0 // pred_region
    _
  $region9: #{densenet121_forward.208} parent=0 // pred_fallthru
    _
  // Predicated region
  $region10: #{densenet121_forward.208} parent=0 // pred_check
    _
  $region11: #{densenet121_forward.208} parent=0 // pred_check_branch
    %14 = sbr.rel (0) target = $region13
  $region12: #{densenet121_forward.208} parent=0 // pred_region
    _
  $region13: #{densenet121_forward.208} parent=0 // pred_fallthru
    _
  // Predicated region
  $region14: #{densenet121_forward.208} parent=0 // pred_check
    _
  $region15: #{densenet121_forward.208} parent=0 // pred_check_branch
    %16 = sbr.rel (0) target = $region17
  $region16: #{densenet121_forward.208} parent=0 // pred_region
    _
  $region17: #{densenet121_forward.208} parent=0 // pred_fallthru
    _
  %v17 = vld [vmem:[%s0] sm:$0xff]
  %v18 = vld [vmem:[%s0 + $0x8] sm:$0xff]
  %v19 = vld [vmem:[%s0 + $0x10] sm:$0xff]
  %v20 = vld [vmem:[%s0 + $0x18] sm:$0xff]
  %v21 = vld [vmem:[%s3] sm:$0xff]
  %v22 = vld [vmem:[%s3 + $0x8] sm:$0xff]
  %v23 = vld [vmem:[%s3 + $0x10] sm:$0xff]
  %v24 = vld [vmem:[%s3 + $0x18] sm:$0xff]
  %v25 = vld [vmem:[%s3 + $0x20] sm:$0xff]
  %v26 = vld [vmem:[%s3 + $0x28] sm:$0xff]
  %v27 = vld [vmem:[%s3 + $0x30] sm:$0xff]
  %v28 = vld [vmem:[%s3 + $0x38] sm:$0xff]
  %v29 = vld [vmem:[%s3 + $0x40] sm:$0xff]
  %v30 = vld [vmem:[%s3 + $0x48] sm:$0xff]
  %v31 = vld [vmem:[%s3 + $0x50] sm:$0xff]
  %v32 = vld [vmem:[%s3 + $0x58] sm:$0xff]
  %v33 = vld [vmem:[%s3 + $0x60] sm:$0xff]
  %v34 = vld [vmem:[%s3 + $0x68] sm:$0xff]
  %v35 = vld [vmem:[%s3 + $0x70] sm:$0xff]
  %v36 = vld [vmem:[%s3 + $0x78] sm:$0xff]
  %v37 = vld [vmem:[%s3 + $0x80] sm:$0xff]
  %v38 = vld [vmem:[%s3 + $0x88] sm:$0xff]
  %v39 = vld [vmem:[%s3 + $0x90] sm:$0xff]
  %v40 = vld [vmem:[%s3 + $0x98] sm:$0xff]
  %v41 = vld [vmem:[%s3 + $0xa0] sm:$0xff]
  %v42 = vld [vmem:[%s3 + $0xa8] sm:$0xff]
  %v43 = vld [vmem:[%s3 + $0xb0] sm:$0xff]
  %v44 = vld [vmem:[%s3 + $0xb8] sm:$0xff]
  %v45 = vld [vmem:[%s3 + $0xc0] sm:$0xff]
  %v46 = vld [vmem:[%s3 + $0xc8] sm:$0xff]
  %v47 = vld [vmem:[%s3 + $0xd0] sm:$0xff]
  %v48 = vld [vmem:[%s3 + $0xd8] sm:$0xff]
  %v49 = vld [vmem:[%s3 + $0xe0] sm:$0xff]
  %v50 = vld [vmem:[%s3 + $0xe8] sm:$0xff]
  %v51 = vld [vmem:[%s3 + $0xf0] sm:$0xff]
  %v52 = vld [vmem:[%s3 + $0xf8] sm:$0xff]
  %v53 = vld [vmem:[%s3 + $0x100] sm:$0xff]
  %v54 = vld [vmem:[%s3 + $0x108] sm:$0xff]
  %v55 = vld [vmem:[%s3 + $0x110] sm:$0xff]
  %v56 = vld [vmem:[%s3 + $0x118] sm:$0xff]
  %v57 = vld [vmem:[%s3 + $0x120] sm:$0xff]
  %v58 = vld [vmem:[%s3 + $0x128] sm:$0xff]
  %v59 = vld [vmem:[%s3 + $0x130] sm:$0xff]
  %v60 = vld [vmem:[%s3 + $0x138] sm:$0xff]
  %v61 = vld [vmem:[%s3 + $0x140] sm:$0xff]
  %v62 = vld [vmem:[%s3 + $0x148] sm:$0xff]
  %v63 = vld [vmem:[%s3 + $0x150] sm:$0xff]
  %v64 = vld [vmem:[%s3 + $0x158] sm:$0xff]
  %v65 = vld [vmem:[%s3 + $0x160] sm:$0xff]
  %v66 = vld [vmem:[%s3 + $0x168] sm:$0xff]
  %v67 = vld [vmem:[%s3 + $0x170] sm:$0xff]
  %v68 = vld [vmem:[%s3 + $0x178] sm:$0xff]
  %v69 = vld [vmem:[%s3 + $0x180] sm:$0xff]
  %v70 = vld [vmem:[%s3 + $0x188] sm:$0xff]
  %v71 = vld [vmem:[%s3 + $0x190] sm:$0xff]
  %v72 = vld [vmem:[%s3 + $0x198] sm:$0xff]
  %v73 = vld [vmem:[%s3 + $0x1a0] sm:$0xff]
  %v74 = vld [vmem:[%s3 + $0x1a8] sm:$0xff]
  %v75 = vld [vmem:[%s3 + $0x1b0] sm:$0xff]
  %v76 = vld [vmem:[%s3 + $0x1b8] sm:$0xff]
  %v77 = vld [vmem:[%s3 + $0x1c0] sm:$0xff]
  %v78 = vld [vmem:[%s3 + $0x1c8] sm:$0xff]
  %v79 = vld [vmem:[%s3 + $0x1d0] sm:$0xff]
  %v80 = vld [vmem:[%s3 + $0x1d8] sm:$0xff]
  %v81 = vld [vmem:[%s3 + $0x1e0] sm:$0xff]
  %v82 = vld [vmem:[%s3 + $0x1e8] sm:$0xff]
  %v83 = vld [vmem:[%s3 + $0x1f0] sm:$0xff]
  %v84 = vld [vmem:[%s3 + $0x1f8] sm:$0xff]
  %v85 = vld [vmem:[%s3 + $0x200] sm:$0xff]
  %v86 = vld [vmem:[%s3 + $0x208] sm:$0xff]
  %v87 = vld [vmem:[%s3 + $0x210] sm:$0xff]
  %v88 = vld [vmem:[%s3 + $0x218] sm:$0xff]
  %v89 = vld [vmem:[%s3 + $0x220] sm:$0xff]
  %v90 = vld [vmem:[%s3 + $0x228] sm:$0xff]
  %v91 = vld [vmem:[%s3 + $0x230] sm:$0xff]
  %v92 = vld [vmem:[%s3 + $0x238] sm:$0xff]
  %v93 = vld [vmem:[%s3 + $0x240] sm:$0xff]
  %v94 = vld [vmem:[%s3 + $0x248] sm:$0xff]
  %v95 = vld [vmem:[%s3 + $0x250] sm:$0xff]
  %v96 = vld [vmem:[%s3 + $0x258] sm:$0xff]
  %v97 = vld [vmem:[%s3 + $0x260] sm:$0xff]
  %v98 = vld [vmem:[%s3 + $0x268] sm:$0xff]
  %v99 = vld [vmem:[%s3 + $0x270] sm:$0xff]
  %v100 = vld [vmem:[%s3 + $0x278] sm:$0xff]
  %v101 = vld [vmem:[%s3 + $0x280] sm:$0xff]
  %v102 = vld [vmem:[%s3 + $0x288] sm:$0xff]
  %v103 = vld [vmem:[%s3 + $0x290] sm:$0xff]
  %v104 = vld [vmem:[%s3 + $0x298] sm:$0xff]
  %v105 = vld [vmem:[%s3 + $0x2a0] sm:$0xff]
  %v106 = vld [vmem:[%s3 + $0x2a8] sm:$0xff]
  %v107 = vld [vmem:[%s3 + $0x2b0] sm:$0xff]
  %v108 = vld [vmem:[%s3 + $0x2b8] sm:$0xff]
  %v109 = vld [vmem:[%s3 + $0x2c0] sm:$0xff]
  %v110 = vld [vmem:[%s3 + $0x2c8] sm:$0xff]
  %v111 = vld [vmem:[%s3 + $0x2d0] sm:$0xff]
  %v112 = vld [vmem:[%s3 + $0x2d8] sm:$0xff]
  %v113 = vld [vmem:[%s3 + $0x2e0] sm:$0xff]
  %v114 = vld [vmem:[%s3 + $0x2e8] sm:$0xff]
  %v115 = vld [vmem:[%s3 + $0x2f0] sm:$0xff]
  %v116 = vld [vmem:[%s3 + $0x2f8] sm:$0xff]
  %v117 = vld [vmem:[%s3 + $0x300] sm:$0xff]
  %v118 = vld [vmem:[%s3 + $0x308] sm:$0xff]
  %v119 = vld [vmem:[%s3 + $0x310] sm:$0xff]
  %v120 = vld [vmem:[%s3 + $0x318] sm:$0xff]
  %v121 = vld [vmem:[%s3 + $0x320] sm:$0xff]
  %v122 = vld [vmem:[%s3 + $0x328] sm:$0xff]
  %v123 = vld [vmem:[%s3 + $0x330] sm:$0xff]
  %v124 = vld [vmem:[%s3 + $0x338] sm:$0xff]
  %v125 = vld [vmem:[%s3 + $0x340] sm:$0xff]
  %v126 = vld [vmem:[%s3 + $0x348] sm:$0xff]
  %v127 = vld [vmem:[%s3 + $0x350] sm:$0xff]
  %v128 = vld [vmem:[%s3 + $0x358] sm:$0xff]
  %v129 = vld [vmem:[%s3 + $0x360] sm:$0xff]
  %v130 = vld [vmem:[%s3 + $0x368] sm:$0xff]
  %v131 = vld [vmem:[%s3 + $0x370] sm:$0xff]
  %v132 = vld [vmem:[%s3 + $0x378] sm:$0xff]
  %v133 = vld [vmem:[%s3 + $0x380] sm:$0xff]
  %v134 = vld [vmem:[%s3 + $0x388] sm:$0xff]
  %v135 = vld [vmem:[%s3 + $0x390] sm:$0xff]
  %v136 = vld [vmem:[%s3 + $0x398] sm:$0xff]
  %v137 = vld [vmem:[%s3 + $0x3a0] sm:$0xff]
  %v138 = vld [vmem:[%s3 + $0x3a8] sm:$0xff]
  %v139 = vld [vmem:[%s3 + $0x3b0] sm:$0xff]
  %v140 = vld [vmem:[%s3 + $0x3b8] sm:$0xff]
  %v141 = vld [vmem:[%s3 + $0x3c0] sm:$0xff]
  %v142 = vld [vmem:[%s3 + $0x3c8] sm:$0xff]
  %v143 = vld [vmem:[%s3 + $0x3d0] sm:$0xff]
  %v144 = vld [vmem:[%s3 + $0x3d8] sm:$0xff]
  %v145 = vld [vmem:[%s3 + $0x3e0] sm:$0xff]
  %v146 = vld [vmem:[%s3 + $0x3e8] sm:$0xff]
  %v147 = vld [vmem:[%s3 + $0x3f0] sm:$0xff]
  %v148 = vld [vmem:[%s3 + $0x3f8] sm:$0xff]
  %v149 = vld [vmem:[%s3 + $0x400] sm:$0xff]
  %v150 = vld [vmem:[%s3 + $0x408] sm:$0xff]
  %v151 = vld [vmem:[%s3 + $0x410] sm:$0xff]
  %v152 = vld [vmem:[%s3 + $0x418] sm:$0xff]
  %v153 = vld [vmem:[%s3 + $0x420] sm:$0xff]
  %v154 = vld [vmem:[%s3 + $0x428] sm:$0xff]
  %v155 = vld [vmem:[%s3 + $0x430] sm:$0xff]
  %v156 = vld [vmem:[%s3 + $0x438] sm:$0xff]
  %v157 = vld [vmem:[%s3 + $0x440] sm:$0xff]
  %v158 = vld [vmem:[%s3 + $0x448] sm:$0xff]
  %v159 = vld [vmem:[%s3 + $0x450] sm:$0xff]
  %v160 = vld [vmem:[%s3 + $0x458] sm:$0xff]
  %v161 = vld [vmem:[%s3 + $0x460] sm:$0xff]
  %v162 = vld [vmem:[%s3 + $0x468] sm:$0xff]
  %v163 = vld [vmem:[%s3 + $0x470] sm:$0xff]
  %v164 = vld [vmem:[%s3 + $0x478] sm:$0xff]
  %v165 = vld [vmem:[%s3 + $0x480] sm:$0xff]
  %v166 = vld [vmem:[%s3 + $0x488] sm:$0xff]
  %v167 = vld [vmem:[%s3 + $0x490] sm:$0xff]
  %v168 = vld [vmem:[%s3 + $0x498] sm:$0xff]
  %v169 = vld [vmem:[%s3 + $0x4a0] sm:$0xff]
  %v170 = vld [vmem:[%s3 + $0x4a8] sm:$0xff]
  %v171 = vld [vmem:[%s3 + $0x4b0] sm:$0xff]
  %v172 = vld [vmem:[%s3 + $0x4b8] sm:$0xff]
  %v173 = vld [vmem:[%s3 + $0x4c0] sm:$0xff]
  %v174 = vld [vmem:[%s3 + $0x4c8] sm:$0xff]
  %v175 = vld [vmem:[%s3 + $0x4d0] sm:$0xff]
  %v176 = vld [vmem:[%s3 + $0x4d8] sm:$0xff]
  %v177 = vld [vmem:[%s3 + $0x4e0] sm:$0xff]
  %v178 = vld [vmem:[%s3 + $0x4e8] sm:$0xff]
  %v179 = vld [vmem:[%s3 + $0x4f0] sm:$0xff]
  %v180 = vld [vmem:[%s3 + $0x4f8] sm:$0xff]
  %v181 = vld [vmem:[%s3 + $0x500] sm:$0xff]
  %v182 = vld [vmem:[%s3 + $0x508] sm:$0xff]
  %v183 = vld [vmem:[%s3 + $0x510] sm:$0xff]
  %v184 = vld [vmem:[%s3 + $0x518] sm:$0xff]
  %v185 = vld [vmem:[%s3 + $0x520] sm:$0xff]
  %v186 = vld [vmem:[%s3 + $0x528] sm:$0xff]
  %v187 = vld [vmem:[%s3 + $0x530] sm:$0xff]
  %v188 = vld [vmem:[%s3 + $0x538] sm:$0xff]
  %v189 = vld [vmem:[%s3 + $0x540] sm:$0xff]
  %v190 = vld [vmem:[%s3 + $0x548] sm:$0xff]
  %v191 = vld [vmem:[%s3 + $0x550] sm:$0xff]
  %v192 = vld [vmem:[%s3 + $0x558] sm:$0xff]
  %v193 = vld [vmem:[%s3 + $0x560] sm:$0xff]
  %v194 = vld [vmem:[%s3 + $0x568] sm:$0xff]
  %v195 = vld [vmem:[%s3 + $0x570] sm:$0xff]
  %v196 = vld [vmem:[%s3 + $0x578] sm:$0xff]
  %v197 = vld [vmem:[%s3 + $0x580] sm:$0xff]
  %v198 = vld [vmem:[%s3 + $0x588] sm:$0xff]
  %v199 = vld [vmem:[%s3 + $0x590] sm:$0xff]
  %v200 = vld [vmem:[%s3 + $0x598] sm:$0xff]
  %v201 = vld [vmem:[%s3 + $0x5a0] sm:$0xff]
  %v202 = vld [vmem:[%s3 + $0x5a8] sm:$0xff]
  %v203 = vld [vmem:[%s3 + $0x5b0] sm:$0xff]
  %v204 = vld [vmem:[%s3 + $0x5b8] sm:$0xff]
  %v205 = vld [vmem:[%s3 + $0x5c0] sm:$0xff]
  %v206 = vld [vmem:[%s3 + $0x5c8] sm:$0xff]
  %v207 = vld [vmem:[%s3 + $0x5d0] sm:$0xff]
  %v208 = vld [vmem:[%s3 + $0x5d8] sm:$0xff]
  %v209 = vld [vmem:[%s3 + $0x5e0] sm:$0xff]
  %v210 = vld [vmem:[%s3 + $0x5e8] sm:$0xff]
  %v211 = vld [vmem:[%s3 + $0x5f0] sm:$0xff]
  %v212 = vld [vmem:[%s3 + $0x5f8] sm:$0xff]
  %v213 = vld [vmem:[%s3 + $0x600] sm:$0xff]
  %v214 = vld [vmem:[%s3 + $0x608] sm:$0xff]
  %v215 = vld [vmem:[%s3 + $0x610] sm:$0xff]
  %v216 = vld [vmem:[%s3 + $0x618] sm:$0xff]
  %v217 = vld [vmem:[%s3 + $0x620] sm:$0xff]
  %v218 = vld [vmem:[%s3 + $0x628] sm:$0xff]
  %v219 = vld [vmem:[%s3 + $0x630] sm:$0xff]
  %v220 = vld [vmem:[%s3 + $0x638] sm:$0xff]
  %v221 = vld [vmem:[%s3 + $0x640] sm:$0xff]
  %v222 = vld [vmem:[%s3 + $0x648] sm:$0xff]
  %v223 = vld [vmem:[%s3 + $0x650] sm:$0xff]
  %v224 = vld [vmem:[%s3 + $0x658] sm:$0xff]
  %v225 = vld [vmem:[%s3 + $0x660] sm:$0xff]
  %v226 = vld [vmem:[%s3 + $0x668] sm:$0xff]
  %v227 = vld [vmem:[%s3 + $0x670] sm:$0xff]
  %v228 = vld [vmem:[%s3 + $0x678] sm:$0xff]
  %v229 = vld [vmem:[%s3 + $0x680] sm:$0xff]
  %v230 = vld [vmem:[%s3 + $0x688] sm:$0xff]
  %v231 = vld [vmem:[%s3 + $0x690] sm:$0xff]
  %v232 = vld [vmem:[%s3 + $0x698] sm:$0xff]
  %v233 = vld [vmem:[%s3 + $0x6a0] sm:$0xff]
  %v234 = vld [vmem:[%s3 + $0x6a8] sm:$0xff]
  %v235 = vld [vmem:[%s3 + $0x6b0] sm:$0xff]
  %v236 = vld [vmem:[%s3 + $0x6b8] sm:$0xff]
  %v237 = vld [vmem:[%s3 + $0x6c0] sm:$0xff]
  %v238 = vld [vmem:[%s3 + $0x6c8] sm:$0xff]
  %v239 = vld [vmem:[%s3 + $0x6d0] sm:$0xff]
  %v240 = vld [vmem:[%s3 + $0x6d8] sm:$0xff]
  %v241 = vld [vmem:[%s3 + $0x6e0] sm:$0xff]
  %v242 = vld [vmem:[%s3 + $0x6e8] sm:$0xff]
  %v243 = vld [vmem:[%s3 + $0x6f0] sm:$0xff]
  %v244 = vld [vmem:[%s3 + $0x6f8] sm:$0xff]
  %v245 = vld [vmem:[%s3 + $0x700] sm:$0xff]
  %v246 = vld [vmem:[%s3 + $0x708] sm:$0xff]
  %v247 = vld [vmem:[%s3 + $0x710] sm:$0xff]
  %v248 = vld [vmem:[%s3 + $0x718] sm:$0xff]
  %v249 = vld [vmem:[%s3 + $0x720] sm:$0xff]
  %v250 = vld [vmem:[%s3 + $0x728] sm:$0xff]
  %v251 = vld [vmem:[%s3 + $0x730] sm:$0xff]
  %v252 = vld [vmem:[%s3 + $0x738] sm:$0xff]
  %v253 = vld [vmem:[%s3 + $0x740] sm:$0xff]
  %v254 = vld [vmem:[%s3 + $0x748] sm:$0xff]
  %v255 = vld [vmem:[%s3 + $0x750] sm:$0xff]
  %v256 = vld [vmem:[%s3 + $0x758] sm:$0xff]
  %v257 = vld [vmem:[%s3 + $0x760] sm:$0xff]
  %v258 = vld [vmem:[%s3 + $0x768] sm:$0xff]
  %v259 = vld [vmem:[%s3 + $0x770] sm:$0xff]
  %v260 = vld [vmem:[%s3 + $0x778] sm:$0xff]
  %v261 = vld [vmem:[%s3 + $0x780] sm:$0xff]
  %v262 = vld [vmem:[%s3 + $0x788] sm:$0xff]
  %v263 = vld [vmem:[%s3 + $0x790] sm:$0xff]
  %v264 = vld [vmem:[%s3 + $0x798] sm:$0xff]
  %v265 = vld [vmem:[%s3 + $0x7a0] sm:$0xff]
  %v266 = vld [vmem:[%s3 + $0x7a8] sm:$0xff]
  %v267 = vld [vmem:[%s3 + $0x7b0] sm:$0xff]
  %v268 = vld [vmem:[%s3 + $0x7b8] sm:$0xff]
  %v269 = vld [vmem:[%s3 + $0x7c0] sm:$0xff]
  %v270 = vld [vmem:[%s3 + $0x7c8] sm:$0xff]
  %v271 = vld [vmem:[%s3 + $0x7d0] sm:$0xff]
  %v272 = vld [vmem:[%s3 + $0x7d8] sm:$0xff]
  %v273 = vld [vmem:[%s3 + $0x7e0] sm:$0xff]
  %v274 = vld [vmem:[%s3 + $0x7e8] sm:$0xff]
  %v275 = vld [vmem:[%s3 + $0x7f0] sm:$0xff]
  %v276 = vld [vmem:[%s3 + $0x7f8] sm:$0xff]
  %v277 = vld [vmem:[%s1] sm:$0xff]
  %279 = vst [vmem:[#allocation1] ss:$9 sm:$0xff] %v277
  %v280 = vld [vmem:[#allocation1] sm:$0xff]
  %v281 = vld [vmem:[#allocation1 + $0x9] sm:$0xff]
  %v282 = vld [vmem:[#allocation1 + $0x12] sm:$0xff]
  %v283 = vld [vmem:[#allocation1 + $0x1b] sm:$0xff]
  %v284 = vld [vmem:[#allocation1 + $0x24] sm:$0xff]
  %v285 = vld [vmem:[#allocation1 + $0x2d] sm:$0xff]
  %v286 = vld [vmem:[#allocation1 + $0x36] sm:$0xff]
  %v287 = vld [vmem:[#allocation1 + $0x3f] sm:$0xff]
  %v288 = vpack.i.b16 %v280, %v280
  %v290 = vperm.slane %v288, 0
  %v291 = vpack.i.b16 %v281, %v281
  %v293 = vperm.slane %v291, 0
  %v294 = vpack.i.b16 %v282, %v282
  %v296 = vperm.slane %v294, 0
  %v297 = vpack.i.b16 %v283, %v283
  %v299 = vperm.slane %v297, 0
  %v300 = vpack.i.b16 %v284, %v284
  %v302 = vperm.slane %v300, 0
  %v303 = vpack.i.b16 %v285, %v285
  %v305 = vperm.slane %v303, 0
  %v306 = vpack.i.b16 %v286, %v286
  %v308 = vperm.slane %v306, 0
  %v309 = vpack.i.b16 %v287, %v287
  %v311 = vperm.slane %v309, 0
  %v312 = vunpack.c.l.bf16 %v17
  %v313 = vunpack.c.h.bf16 %v17
  %v314 = vunpack.c.l.bf16 %v18
  %v315 = vunpack.c.h.bf16 %v18
  %v316 = vunpack.c.l.bf16 %v19
  %v317 = vunpack.c.h.bf16 %v19
  %v318 = vunpack.c.l.bf16 %v20
  %v319 = vunpack.c.h.bf16 %v20
  %v320 = vunpack.c.l.bf16 %v290
  %v321 = vunpack.c.l.bf16 %v293
  %v322 = vunpack.c.l.bf16 %v296
  %v323 = vunpack.c.l.bf16 %v299
  %v324 = vunpack.c.l.bf16 %v302
  %v325 = vunpack.c.l.bf16 %v305
  %v326 = vunpack.c.l.bf16 %v308
  %v327 = vunpack.c.l.bf16 %v311
  %v328 = vmul.f32 %v312, %v320
  %v329 = vmul.f32 %v313, %v321
  %v330 = vmul.f32 %v314, %v322
  %v331 = vmul.f32 %v315, %v323
  %v332 = vmul.f32 %v316, %v324
  %v333 = vmul.f32 %v317, %v325
  %v334 = vmul.f32 %v318, %v326
  %v335 = vmul.f32 %v319, %v327
  %v336 = vpack.c.bf16 %v329, %v328
  %v337 = vpack.c.bf16 %v331, %v330
  %v338 = vpack.c.bf16 %v333, %v332
  %v339 = vpack.c.bf16 %v335, %v334
  %v340 = vld [vmem:[%s2] sm:$0xff]
  %342 = vst [vmem:[#allocation1] ss:$9 sm:$0xff] %v340
  %v343 = vld [vmem:[#allocation1] sm:$0xff]
  %v344 = vld [vmem:[#allocation1 + $0x9] sm:$0xff]
  %v345 = vld [vmem:[#allocation1 + $0x12] sm:$0xff]
  %v346 = vld [vmem:[#allocation1 + $0x1b] sm:$0xff]
  %v347 = vld [vmem:[#allocation1 + $0x24] sm:$0xff]
  %v348 = vld [vmem:[#allocation1 + $0x2d] sm:$0xff]
  %v349 = vld [vmem:[#allocation1 + $0x36] sm:$0xff]
  %v350 = vld [vmem:[#allocation1 + $0x3f] sm:$0xff]
  %v351 = vpack.i.b16 %v343, %v343
  %v353 = vperm.slane %v351, 0
  %v354 = vpack.i.b16 %v344, %v344
  %v356 = vperm.slane %v354, 0
  %v357 = vpack.i.b16 %v345, %v345
  %v359 = vperm.slane %v357, 0
  %v360 = vpack.i.b16 %v346, %v346
  %v362 = vperm.slane %v360, 0
  %v363 = vpack.i.b16 %v347, %v347
  %v365 = vperm.slane %v363, 0
  %v366 = vpack.i.b16 %v348, %v348
  %v368 = vperm.slane %v366, 0
  %v369 = vpack.i.b16 %v349, %v349
  %v371 = vperm.slane %v369, 0
  %v372 = vpack.i.b16 %v350, %v350
  %v374 = vperm.slane %v372, 0
  %v375 = vunpack.c.l.bf16 %v336
  %v376 = vunpack.c.h.bf16 %v336
  %v377 = vunpack.c.l.bf16 %v337
  %v378 = vunpack.c.h.bf16 %v337
  %v379 = vunpack.c.l.bf16 %v338
  %v380 = vunpack.c.h.bf16 %v338
  %v381 = vunpack.c.l.bf16 %v339
  %v382 = vunpack.c.h.bf16 %v339
  %v383 = vunpack.c.l.bf16 %v353
  %v384 = vunpack.c.l.bf16 %v356
  %v385 = vunpack.c.l.bf16 %v359
  %v386 = vunpack.c.l.bf16 %v362
  %v387 = vunpack.c.l.bf16 %v365
  %v388 = vunpack.c.l.bf16 %v368
  %v389 = vunpack.c.l.bf16 %v371
  %v390 = vunpack.c.l.bf16 %v374
  %v391 = vadd.f32 %v375, %v383
  %v392 = vadd.f32 %v376, %v384
  %v393 = vadd.f32 %v377, %v385
  %v394 = vadd.f32 %v378, %v386
  %v395 = vadd.f32 %v379, %v387
  %v396 = vadd.f32 %v380, %v388
  %v397 = vadd.f32 %v381, %v389
  %v398 = vadd.f32 %v382, %v390
  %v399 = vpack.c.bf16 %v392, %v391
  %v400 = vpack.c.bf16 %v394, %v393
  %v401 = vpack.c.bf16 %v396, %v395
  %v402 = vpack.c.bf16 %v398, %v397
  %v403 = vunpack.c.l.bf16 %v399
  %v404 = vunpack.c.h.bf16 %v399
  %v405 = vunpack.c.l.bf16 %v400
  %v406 = vunpack.c.h.bf16 %v400
  %v407 = vunpack.c.l.bf16 %v401
  %v408 = vunpack.c.h.bf16 %v401
  %v409 = vunpack.c.l.bf16 %v402
  %v410 = vunpack.c.h.bf16 %v402
  %v411 = vmax.f32 %v403, 0.0
  %v412 = vmax.f32 %v404, 0.0
  %v413 = vmax.f32 %v405, 0.0
  %v414 = vmax.f32 %v406, 0.0
  %v415 = vmax.f32 %v407, 0.0
  %v416 = vmax.f32 %v408, 0.0
  %v417 = vmax.f32 %v409, 0.0
  %v418 = vmax.f32 %v410, 0.0
  %v419 = vpack.c.bf16 %v411, %v411
  %v420 = vpack.c.bf16 %v412, %v412
  %v421 = vpack.c.bf16 %v413, %v413
  %v422 = vpack.c.bf16 %v414, %v414
  %v423 = vpack.c.bf16 %v415, %v415
  %v424 = vpack.c.bf16 %v416, %v416
  %v425 = vpack.c.bf16 %v417, %v417
  %v426 = vpack.c.bf16 %v418, %v418
  %v683 = vunpack.c.l.b16 %v21
  %v684 = vunpack.c.h.b16 %v21
  %v685 = vunpack.c.l.b16 %v22
  %v686 = vunpack.c.h.b16 %v22
  %v687 = vunpack.c.l.b16 %v23
  %v688 = vunpack.c.h.b16 %v23
  %v689 = vunpack.c.l.b16 %v24
  %v690 = vunpack.c.h.b16 %v24
  %v691 = vunpack.c.l.b16 %v25
  %v692 = vunpack.c.h.b16 %v25
  %v693 = vunpack.c.l.b16 %v26
  %v694 = vunpack.c.h.b16 %v26
  %v695 = vunpack.c.l.b16 %v27
  %v696 = vunpack.c.h.b16 %v27
  %v697 = vunpack.c.l.b16 %v28
  %v698 = vunpack.c.h.b16 %v28
  %v699 = vunpack.c.l.b16 %v29
  %v700 = vunpack.c.h.b16 %v29
  %v701 = vunpack.c.l.b16 %v30
  %v702 = vunpack.c.h.b16 %v30
  %v703 = vunpack.c.l.b16 %v31
  %v704 = vunpack.c.h.b16 %v31
  %v705 = vunpack.c.l.b16 %v32
  %v706 = vunpack.c.h.b16 %v32
  %v707 = vunpack.c.l.b16 %v33
  %v708 = vunpack.c.h.b16 %v33
  %v709 = vunpack.c.l.b16 %v34
  %v710 = vunpack.c.h.b16 %v34
  %v711 = vunpack.c.l.b16 %v35
  %v712 = vunpack.c.h.b16 %v35
  %v713 = vunpack.c.l.b16 %v36
  %v714 = vunpack.c.h.b16 %v36
  %v715 = vunpack.c.l.b16 %v37
  %v716 = vunpack.c.h.b16 %v37
  %v717 = vunpack.c.l.b16 %v38
  %v718 = vunpack.c.h.b16 %v38
  %v719 = vunpack.c.l.b16 %v39
  %v720 = vunpack.c.h.b16 %v39
  %v721 = vunpack.c.l.b16 %v40
  %v722 = vunpack.c.h.b16 %v40
  %v723 = vunpack.c.l.b16 %v41
  %v724 = vunpack.c.h.b16 %v41
  %v725 = vunpack.c.l.b16 %v42
  %v726 = vunpack.c.h.b16 %v42
  %v727 = vunpack.c.l.b16 %v43
  %v728 = vunpack.c.h.b16 %v43
  %v729 = vunpack.c.l.b16 %v44
  %v730 = vunpack.c.h.b16 %v44
  %v731 = vunpack.c.l.b16 %v45
  %v732 = vunpack.c.h.b16 %v45
  %v733 = vunpack.c.l.b16 %v46
  %v734 = vunpack.c.h.b16 %v46
  %v735 = vunpack.c.l.b16 %v47
  %v736 = vunpack.c.h.b16 %v47
  %v737 = vunpack.c.l.b16 %v48
  %v738 = vunpack.c.h.b16 %v48
  %v739 = vunpack.c.l.b16 %v49
  %v740 = vunpack.c.h.b16 %v49
  %v741 = vunpack.c.l.b16 %v50
  %v742 = vunpack.c.h.b16 %v50
  %v743 = vunpack.c.l.b16 %v51
  %v744 = vunpack.c.h.b16 %v51
  %v745 = vunpack.c.l.b16 %v52
  %v746 = vunpack.c.h.b16 %v52
  %v747 = vunpack.c.l.b16 %v53
  %v748 = vunpack.c.h.b16 %v53
  %v749 = vunpack.c.l.b16 %v54
  %v750 = vunpack.c.h.b16 %v54
  %v751 = vunpack.c.l.b16 %v55
  %v752 = vunpack.c.h.b16 %v55
  %v753 = vunpack.c.l.b16 %v56
  %v754 = vunpack.c.h.b16 %v56
  %v755 = vunpack.c.l.b16 %v57
  %v756 = vunpack.c.h.b16 %v57
  %v757 = vunpack.c.l.b16 %v58
  %v758 = vunpack.c.h.b16 %v58
  %v759 = vunpack.c.l.b16 %v59
  %v760 = vunpack.c.h.b16 %v59
  %v761 = vunpack.c.l.b16 %v60
  %v762 = vunpack.c.h.b16 %v60
  %v763 = vunpack.c.l.b16 %v61
  %v764 = vunpack.c.h.b16 %v61
  %v765 = vunpack.c.l.b16 %v62
  %v766 = vunpack.c.h.b16 %v62
  %v767 = vunpack.c.l.b16 %v63
  %v768 = vunpack.c.h.b16 %v63
  %v769 = vunpack.c.l.b16 %v64
  %v770 = vunpack.c.h.b16 %v64
  %v771 = vunpack.c.l.b16 %v65
  %v772 = vunpack.c.h.b16 %v65
  %v773 = vunpack.c.l.b16 %v66
  %v774 = vunpack.c.h.b16 %v66
  %v775 = vunpack.c.l.b16 %v67
  %v776 = vunpack.c.h.b16 %v67
  %v777 = vunpack.c.l.b16 %v68
  %v778 = vunpack.c.h.b16 %v68
  %v779 = vunpack.c.l.b16 %v69
  %v780 = vunpack.c.h.b16 %v69
  %v781 = vunpack.c.l.b16 %v70
  %v782 = vunpack.c.h.b16 %v70
  %v783 = vunpack.c.l.b16 %v71
  %v784 = vunpack.c.h.b16 %v71
  %v785 = vunpack.c.l.b16 %v72
  %v786 = vunpack.c.h.b16 %v72
  %v787 = vunpack.c.l.b16 %v73
  %v788 = vunpack.c.h.b16 %v73
  %v789 = vunpack.c.l.b16 %v74
  %v790 = vunpack.c.h.b16 %v74
  %v791 = vunpack.c.l.b16 %v75
  %v792 = vunpack.c.h.b16 %v75
  %v793 = vunpack.c.l.b16 %v76
  %v794 = vunpack.c.h.b16 %v76
  %v795 = vunpack.c.l.b16 %v77
  %v796 = vunpack.c.h.b16 %v77
  %v797 = vunpack.c.l.b16 %v78
  %v798 = vunpack.c.h.b16 %v78
  %v799 = vunpack.c.l.b16 %v79
  %v800 = vunpack.c.h.b16 %v79
  %v801 = vunpack.c.l.b16 %v80
  %v802 = vunpack.c.h.b16 %v80
  %v803 = vunpack.c.l.b16 %v81
  %v804 = vunpack.c.h.b16 %v81
  %v805 = vunpack.c.l.b16 %v82
  %v806 = vunpack.c.h.b16 %v82
  %v807 = vunpack.c.l.b16 %v83
  %v808 = vunpack.c.h.b16 %v83
  %v809 = vunpack.c.l.b16 %v84
  %v810 = vunpack.c.h.b16 %v84
  %v811 = vunpack.c.l.b16 %v85
  %v812 = vunpack.c.h.b16 %v85
  %v813 = vunpack.c.l.b16 %v86
  %v814 = vunpack.c.h.b16 %v86
  %v815 = vunpack.c.l.b16 %v87
  %v816 = vunpack.c.h.b16 %v87
  %v817 = vunpack.c.l.b16 %v88
  %v818 = vunpack.c.h.b16 %v88
  %v819 = vunpack.c.l.b16 %v89
  %v820 = vunpack.c.h.b16 %v89
  %v821 = vunpack.c.l.b16 %v90
  %v822 = vunpack.c.h.b16 %v90
  %v823 = vunpack.c.l.b16 %v91
  %v824 = vunpack.c.h.b16 %v91
  %v825 = vunpack.c.l.b16 %v92
  %v826 = vunpack.c.h.b16 %v92
  %v827 = vunpack.c.l.b16 %v93
  %v828 = vunpack.c.h.b16 %v93
  %v829 = vunpack.c.l.b16 %v94
  %v830 = vunpack.c.h.b16 %v94
  %v831 = vunpack.c.l.b16 %v95
  %v832 = vunpack.c.h.b16 %v95
  %v833 = vunpack.c.l.b16 %v96
  %v834 = vunpack.c.h.b16 %v96
  %v835 = vunpack.c.l.b16 %v97
  %v836 = vunpack.c.h.b16 %v97
  %v837 = vunpack.c.l.b16 %v98
  %v838 = vunpack.c.h.b16 %v98
  %v839 = vunpack.c.l.b16 %v99
  %v840 = vunpack.c.h.b16 %v99
  %v841 = vunpack.c.l.b16 %v100
  %v842 = vunpack.c.h.b16 %v100
  %v843 = vunpack.c.l.b16 %v101
  %v844 = vunpack.c.h.b16 %v101
  %v845 = vunpack.c.l.b16 %v102
  %v846 = vunpack.c.h.b16 %v102
  %v847 = vunpack.c.l.b16 %v103
  %v848 = vunpack.c.h.b16 %v103
  %v849 = vunpack.c.l.b16 %v104
  %v850 = vunpack.c.h.b16 %v104
  %v851 = vunpack.c.l.b16 %v105
  %v852 = vunpack.c.h.b16 %v105
  %v853 = vunpack.c.l.b16 %v106
  %v854 = vunpack.c.h.b16 %v106
  %v855 = vunpack.c.l.b16 %v107
  %v856 = vunpack.c.h.b16 %v107
  %v857 = vunpack.c.l.b16 %v108
  %v858 = vunpack.c.h.b16 %v108
  %v859 = vunpack.c.l.b16 %v109
  %v860 = vunpack.c.h.b16 %v109
  %v861 = vunpack.c.l.b16 %v110
  %v862 = vunpack.c.h.b16 %v110
  %v863 = vunpack.c.l.b16 %v111
  %v864 = vunpack.c.h.b16 %v111
  %v865 = vunpack.c.l.b16 %v112
  %v866 = vunpack.c.h.b16 %v112
  %v867 = vunpack.c.l.b16 %v113
  %v868 = vunpack.c.h.b16 %v113
  %v869 = vunpack.c.l.b16 %v114
  %v870 = vunpack.c.h.b16 %v114
  %v871 = vunpack.c.l.b16 %v115
  %v872 = vunpack.c.h.b16 %v115
  %v873 = vunpack.c.l.b16 %v116
  %v874 = vunpack.c.h.b16 %v116
  %v875 = vunpack.c.l.b16 %v117
  %v876 = vunpack.c.h.b16 %v117
  %v877 = vunpack.c.l.b16 %v118
  %v878 = vunpack.c.h.b16 %v118
  %v879 = vunpack.c.l.b16 %v119
  %v880 = vunpack.c.h.b16 %v119
  %v881 = vunpack.c.l.b16 %v120
  %v882 = vunpack.c.h.b16 %v120
  %v883 = vunpack.c.l.b16 %v121
  %v884 = vunpack.c.h.b16 %v121
  %v885 = vunpack.c.l.b16 %v122
  %v886 = vunpack.c.h.b16 %v122
  %v887 = vunpack.c.l.b16 %v123
  %v888 = vunpack.c.h.b16 %v123
  %v889 = vunpack.c.l.b16 %v124
  %v890 = vunpack.c.h.b16 %v124
  %v891 = vunpack.c.l.b16 %v125
  %v892 = vunpack.c.h.b16 %v125
  %v893 = vunpack.c.l.b16 %v126
  %v894 = vunpack.c.h.b16 %v126
  %v895 = vunpack.c.l.b16 %v127
  %v896 = vunpack.c.h.b16 %v127
  %v897 = vunpack.c.l.b16 %v128
  %v898 = vunpack.c.h.b16 %v128
  %v899 = vunpack.c.l.b16 %v129
  %v900 = vunpack.c.h.b16 %v129
  %v901 = vunpack.c.l.b16 %v130
  %v902 = vunpack.c.h.b16 %v130
  %v903 = vunpack.c.l.b16 %v131
  %v904 = vunpack.c.h.b16 %v131
  %v905 = vunpack.c.l.b16 %v132
  %v906 = vunpack.c.h.b16 %v132
  %v907 = vunpack.c.l.b16 %v133
  %v908 = vunpack.c.h.b16 %v133
  %v909 = vunpack.c.l.b16 %v134
  %v910 = vunpack.c.h.b16 %v134
  %v911 = vunpack.c.l.b16 %v135
  %v912 = vunpack.c.h.b16 %v135
  %v913 = vunpack.c.l.b16 %v136
  %v914 = vunpack.c.h.b16 %v136
  %v915 = vunpack.c.l.b16 %v137
  %v916 = vunpack.c.h.b16 %v137
  %v917 = vunpack.c.l.b16 %v138
  %v918 = vunpack.c.h.b16 %v138
  %v919 = vunpack.c.l.b16 %v139
  %v920 = vunpack.c.h.b16 %v139
  %v921 = vunpack.c.l.b16 %v140
  %v922 = vunpack.c.h.b16 %v140
  %v923 = vunpack.c.l.b16 %v141
  %v924 = vunpack.c.h.b16 %v141
  %v925 = vunpack.c.l.b16 %v142
  %v926 = vunpack.c.h.b16 %v142
  %v927 = vunpack.c.l.b16 %v143
  %v928 = vunpack.c.h.b16 %v143
  %v929 = vunpack.c.l.b16 %v144
  %v930 = vunpack.c.h.b16 %v144
  %v931 = vunpack.c.l.b16 %v145
  %v932 = vunpack.c.h.b16 %v145
  %v933 = vunpack.c.l.b16 %v146
  %v934 = vunpack.c.h.b16 %v146
  %v935 = vunpack.c.l.b16 %v147
  %v936 = vunpack.c.h.b16 %v147
  %v937 = vunpack.c.l.b16 %v148
  %v938 = vunpack.c.h.b16 %v148
  %v939 = vunpack.c.l.b16 %v149
  %v940 = vunpack.c.h.b16 %v149
  %v941 = vunpack.c.l.b16 %v150
  %v942 = vunpack.c.h.b16 %v150
  %v943 = vunpack.c.l.b16 %v151
  %v944 = vunpack.c.h.b16 %v151
  %v945 = vunpack.c.l.b16 %v152
  %v946 = vunpack.c.h.b16 %v152
  %v947 = vunpack.c.l.b16 %v153
  %v948 = vunpack.c.h.b16 %v153
  %v949 = vunpack.c.l.b16 %v154
  %v950 = vunpack.c.h.b16 %v154
  %v951 = vunpack.c.l.b16 %v155
  %v952 = vunpack.c.h.b16 %v155
  %v953 = vunpack.c.l.b16 %v156
  %v954 = vunpack.c.h.b16 %v156
  %v955 = vunpack.c.l.b16 %v157
  %v956 = vunpack.c.h.b16 %v157
  %v957 = vunpack.c.l.b16 %v158
  %v958 = vunpack.c.h.b16 %v158
  %v959 = vunpack.c.l.b16 %v159
  %v960 = vunpack.c.h.b16 %v159
  %v961 = vunpack.c.l.b16 %v160
  %v962 = vunpack.c.h.b16 %v160
  %v963 = vunpack.c.l.b16 %v161
  %v964 = vunpack.c.h.b16 %v161
  %v965 = vunpack.c.l.b16 %v162
  %v966 = vunpack.c.h.b16 %v162
  %v967 = vunpack.c.l.b16 %v163
  %v968 = vunpack.c.h.b16 %v163
  %v969 = vunpack.c.l.b16 %v164
  %v970 = vunpack.c.h.b16 %v164
  %v971 = vunpack.c.l.b16 %v165
  %v972 = vunpack.c.h.b16 %v165
  %v973 = vunpack.c.l.b16 %v166
  %v974 = vunpack.c.h.b16 %v166
  %v975 = vunpack.c.l.b16 %v167
  %v976 = vunpack.c.h.b16 %v167
  %v977 = vunpack.c.l.b16 %v168
  %v978 = vunpack.c.h.b16 %v168
  %v979 = vunpack.c.l.b16 %v169
  %v980 = vunpack.c.h.b16 %v169
  %v981 = vunpack.c.l.b16 %v170
  %v982 = vunpack.c.h.b16 %v170
  %v983 = vunpack.c.l.b16 %v171
  %v984 = vunpack.c.h.b16 %v171
  %v985 = vunpack.c.l.b16 %v172
  %v986 = vunpack.c.h.b16 %v172
  %v987 = vunpack.c.l.b16 %v173
  %v988 = vunpack.c.h.b16 %v173
  %v989 = vunpack.c.l.b16 %v174
  %v990 = vunpack.c.h.b16 %v174
  %v991 = vunpack.c.l.b16 %v175
  %v992 = vunpack.c.h.b16 %v175
  %v993 = vunpack.c.l.b16 %v176
  %v994 = vunpack.c.h.b16 %v176
  %v995 = vunpack.c.l.b16 %v177
  %v996 = vunpack.c.h.b16 %v177
  %v997 = vunpack.c.l.b16 %v178
  %v998 = vunpack.c.h.b16 %v178
  %v999 = vunpack.c.l.b16 %v179
  %v1000 = vunpack.c.h.b16 %v179
  %v1001 = vunpack.c.l.b16 %v180
  %v1002 = vunpack.c.h.b16 %v180
  %v1003 = vunpack.c.l.b16 %v181
  %v1004 = vunpack.c.h.b16 %v181
  %v1005 = vunpack.c.l.b16 %v182
  %v1006 = vunpack.c.h.b16 %v182
  %v1007 = vunpack.c.l.b16 %v183
  %v1008 = vunpack.c.h.b16 %v183
  %v1009 = vunpack.c.l.b16 %v184
  %v1010 = vunpack.c.h.b16 %v184
  %v1011 = vunpack.c.l.b16 %v185
  %v1012 = vunpack.c.h.b16 %v185
  %v1013 = vunpack.c.l.b16 %v186
  %v1014 = vunpack.c.h.b16 %v186
  %v1015 = vunpack.c.l.b16 %v187
  %v1016 = vunpack.c.h.b16 %v187
  %v1017 = vunpack.c.l.b16 %v188
  %v1018 = vunpack.c.h.b16 %v188
  %v1019 = vunpack.c.l.b16 %v189
  %v1020 = vunpack.c.h.b16 %v189
  %v1021 = vunpack.c.l.b16 %v190
  %v1022 = vunpack.c.h.b16 %v190
  %v1023 = vunpack.c.l.b16 %v191
  %v1024 = vunpack.c.h.b16 %v191
  %v1025 = vunpack.c.l.b16 %v192
  %v1026 = vunpack.c.h.b16 %v192
  %v1027 = vunpack.c.l.b16 %v193
  %v1028 = vunpack.c.h.b16 %v193
  %v1029 = vunpack.c.l.b16 %v194
  %v1030 = vunpack.c.h.b16 %v194
  %v1031 = vunpack.c.l.b16 %v195
  %v1032 = vunpack.c.h.b16 %v195
  %v1033 = vunpack.c.l.b16 %v196
  %v1034 = vunpack.c.h.b16 %v196
  %v1035 = vunpack.c.l.b16 %v197
  %v1036 = vunpack.c.h.b16 %v197
  %v1037 = vunpack.c.l.b16 %v198
  %v1038 = vunpack.c.h.b16 %v198
  %v1039 = vunpack.c.l.b16 %v199
  %v1040 = vunpack.c.h.b16 %v199
  %v1041 = vunpack.c.l.b16 %v200
  %v1042 = vunpack.c.h.b16 %v200
  %v1043 = vunpack.c.l.b16 %v201
  %v1044 = vunpack.c.h.b16 %v201
  %v1045 = vunpack.c.l.b16 %v202
  %v1046 = vunpack.c.h.b16 %v202
  %v1047 = vunpack.c.l.b16 %v203
  %v1048 = vunpack.c.h.b16 %v203
  %v1049 = vunpack.c.l.b16 %v204
  %v1050 = vunpack.c.h.b16 %v204
  %v1051 = vunpack.c.l.b16 %v205
  %v1052 = vunpack.c.h.b16 %v205
  %v1053 = vunpack.c.l.b16 %v206
  %v1054 = vunpack.c.h.b16 %v206
  %v1055 = vunpack.c.l.b16 %v207
  %v1056 = vunpack.c.h.b16 %v207
  %v1057 = vunpack.c.l.b16 %v208
  %v1058 = vunpack.c.h.b16 %v208
  %v1059 = vunpack.c.l.b16 %v209
  %v1060 = vunpack.c.h.b16 %v209
  %v1061 = vunpack.c.l.b16 %v210
  %v1062 = vunpack.c.h.b16 %v210
  %v1063 = vunpack.c.l.b16 %v211
  %v1064 = vunpack.c.h.b16 %v211
  %v1065 = vunpack.c.l.b16 %v212
  %v1066 = vunpack.c.h.b16 %v212
  %v1067 = vunpack.c.l.b16 %v213
  %v1068 = vunpack.c.h.b16 %v213
  %v1069 = vunpack.c.l.b16 %v214
  %v1070 = vunpack.c.h.b16 %v214
  %v1071 = vunpack.c.l.b16 %v215
  %v1072 = vunpack.c.h.b16 %v215
  %v1073 = vunpack.c.l.b16 %v216
  %v1074 = vunpack.c.h.b16 %v216
  %v1075 = vunpack.c.l.b16 %v217
  %v1076 = vunpack.c.h.b16 %v217
  %v1077 = vunpack.c.l.b16 %v218
  %v1078 = vunpack.c.h.b16 %v218
  %v1079 = vunpack.c.l.b16 %v219
  %v1080 = vunpack.c.h.b16 %v219
  %v1081 = vunpack.c.l.b16 %v220
  %v1082 = vunpack.c.h.b16 %v220
  %v1083 = vunpack.c.l.b16 %v221
  %v1084 = vunpack.c.h.b16 %v221
  %v1085 = vunpack.c.l.b16 %v222
  %v1086 = vunpack.c.h.b16 %v222
  %v1087 = vunpack.c.l.b16 %v223
  %v1088 = vunpack.c.h.b16 %v223
  %v1089 = vunpack.c.l.b16 %v224
  %v1090 = vunpack.c.h.b16 %v224
  %v1091 = vunpack.c.l.b16 %v225
  %v1092 = vunpack.c.h.b16 %v225
  %v1093 = vunpack.c.l.b16 %v226
  %v1094 = vunpack.c.h.b16 %v226
  %v1095 = vunpack.c.l.b16 %v227
  %v1096 = vunpack.c.h.b16 %v227
  %v1097 = vunpack.c.l.b16 %v228
  %v1098 = vunpack.c.h.b16 %v228
  %v1099 = vunpack.c.l.b16 %v229
  %v1100 = vunpack.c.h.b16 %v229
  %v1101 = vunpack.c.l.b16 %v230
  %v1102 = vunpack.c.h.b16 %v230
  %v1103 = vunpack.c.l.b16 %v231
  %v1104 = vunpack.c.h.b16 %v231
  %v1105 = vunpack.c.l.b16 %v232
  %v1106 = vunpack.c.h.b16 %v232
  %v1107 = vunpack.c.l.b16 %v233
  %v1108 = vunpack.c.h.b16 %v233
  %v1109 = vunpack.c.l.b16 %v234
  %v1110 = vunpack.c.h.b16 %v234
  %v1111 = vunpack.c.l.b16 %v235
  %v1112 = vunpack.c.h.b16 %v235
  %v1113 = vunpack.c.l.b16 %v236
  %v1114 = vunpack.c.h.b16 %v236
  %v1115 = vunpack.c.l.b16 %v237
  %v1116 = vunpack.c.h.b16 %v237
  %v1117 = vunpack.c.l.b16 %v238
  %v1118 = vunpack.c.h.b16 %v238
  %v1119 = vunpack.c.l.b16 %v239
  %v1120 = vunpack.c.h.b16 %v239
  %v1121 = vunpack.c.l.b16 %v240
  %v1122 = vunpack.c.h.b16 %v240
  %v1123 = vunpack.c.l.b16 %v241
  %v1124 = vunpack.c.h.b16 %v241
  %v1125 = vunpack.c.l.b16 %v242
  %v1126 = vunpack.c.h.b16 %v242
  %v1127 = vunpack.c.l.b16 %v243
  %v1128 = vunpack.c.h.b16 %v243
  %v1129 = vunpack.c.l.b16 %v244
  %v1130 = vunpack.c.h.b16 %v244
  %v1131 = vunpack.c.l.b16 %v245
  %v1132 = vunpack.c.h.b16 %v245
  %v1133 = vunpack.c.l.b16 %v246
  %v1134 = vunpack.c.h.b16 %v246
  %v1135 = vunpack.c.l.b16 %v247
  %v1136 = vunpack.c.h.b16 %v247
  %v1137 = vunpack.c.l.b16 %v248
  %v1138 = vunpack.c.h.b16 %v248
  %v1139 = vunpack.c.l.b16 %v249
  %v1140 = vunpack.c.h.b16 %v249
  %v1141 = vunpack.c.l.b16 %v250
  %v1142 = vunpack.c.h.b16 %v250
  %v1143 = vunpack.c.l.b16 %v251
  %v1144 = vunpack.c.h.b16 %v251
  %v1145 = vunpack.c.l.b16 %v252
  %v1146 = vunpack.c.h.b16 %v252
  %v1147 = vunpack.c.l.b16 %v253
  %v1148 = vunpack.c.h.b16 %v253
  %v1149 = vunpack.c.l.b16 %v254
  %v1150 = vunpack.c.h.b16 %v254
  %v1151 = vunpack.c.l.b16 %v255
  %v1152 = vunpack.c.h.b16 %v255
  %v1153 = vunpack.c.l.b16 %v256
  %v1154 = vunpack.c.h.b16 %v256
  %v1155 = vunpack.c.l.b16 %v257
  %v1156 = vunpack.c.h.b16 %v257
  %v1157 = vunpack.c.l.b16 %v258
  %v1158 = vunpack.c.h.b16 %v258
  %v1159 = vunpack.c.l.b16 %v259
  %v1160 = vunpack.c.h.b16 %v259
  %v1161 = vunpack.c.l.b16 %v260
  %v1162 = vunpack.c.h.b16 %v260
  %v1163 = vunpack.c.l.b16 %v261
  %v1164 = vunpack.c.h.b16 %v261
  %v1165 = vunpack.c.l.b16 %v262
  %v1166 = vunpack.c.h.b16 %v262
  %v1167 = vunpack.c.l.b16 %v263
  %v1168 = vunpack.c.h.b16 %v263
  %v1169 = vunpack.c.l.b16 %v264
  %v1170 = vunpack.c.h.b16 %v264
  %v1171 = vunpack.c.l.b16 %v265
  %v1172 = vunpack.c.h.b16 %v265
  %v1173 = vunpack.c.l.b16 %v266
  %v1174 = vunpack.c.h.b16 %v266
  %v1175 = vunpack.c.l.b16 %v267
  %v1176 = vunpack.c.h.b16 %v267
  %v1177 = vunpack.c.l.b16 %v268
  %v1178 = vunpack.c.h.b16 %v268
  %v1179 = vunpack.c.l.b16 %v269
  %v1180 = vunpack.c.h.b16 %v269
  %v1181 = vunpack.c.l.b16 %v270
  %v1182 = vunpack.c.h.b16 %v270
  %v1183 = vunpack.c.l.b16 %v271
  %v1184 = vunpack.c.h.b16 %v271
  %v1185 = vunpack.c.l.b16 %v272
  %v1186 = vunpack.c.h.b16 %v272
  %v1187 = vunpack.c.l.b16 %v273
  %v1188 = vunpack.c.h.b16 %v273
  %v1189 = vunpack.c.l.b16 %v274
  %v1190 = vunpack.c.h.b16 %v274
  %v1191 = vunpack.c.l.b16 %v275
  %v1192 = vunpack.c.h.b16 %v275
  %v1193 = vunpack.c.l.b16 %v276
  %v1194 = vunpack.c.h.b16 %v276
  %v1195 = vpack.c.b16 %v687, %v683
  %v1196 = vpack.c.b16 %v688, %v684
  %v1197 = vpack.c.b16 %v689, %v685
  %v1198 = vpack.c.b16 %v690, %v686
  %v1199 = vpack.c.b16 %v695, %v691
  %v1200 = vpack.c.b16 %v696, %v692
  %v1201 = vpack.c.b16 %v697, %v693
  %v1202 = vpack.c.b16 %v698, %v694
  %v1203 = vpack.c.b16 %v703, %v699
  %v1204 = vpack.c.b16 %v704, %v700
  %v1205 = vpack.c.b16 %v705, %v701
  %v1206 = vpack.c.b16 %v706, %v702
  %v1207 = vpack.c.b16 %v711, %v707
  %v1208 = vpack.c.b16 %v712, %v708
  %v1209 = vpack.c.b16 %v713, %v709
  %v1210 = vpack.c.b16 %v714, %v710
  %v1211 = vpack.c.b16 %v719, %v715
  %v1212 = vpack.c.b16 %v720, %v716
  %v1213 = vpack.c.b16 %v721, %v717
  %v1214 = vpack.c.b16 %v722, %v718
  %v1215 = vpack.c.b16 %v727, %v723
  %v1216 = vpack.c.b16 %v728, %v724
  %v1217 = vpack.c.b16 %v729, %v725
  %v1218 = vpack.c.b16 %v730, %v726
  %v1219 = vpack.c.b16 %v735, %v731
  %v1220 = vpack.c.b16 %v736, %v732
  %v1221 = vpack.c.b16 %v737, %v733
  %v1222 = vpack.c.b16 %v738, %v734
  %v1223 = vpack.c.b16 %v743, %v739
  %v1224 = vpack.c.b16 %v744, %v740
  %v1225 = vpack.c.b16 %v745, %v741
  %v1226 = vpack.c.b16 %v746, %v742
  %v1227 = vpack.c.b16 %v751, %v747
  %v1228 = vpack.c.b16 %v752, %v748
  %v1229 = vpack.c.b16 %v753, %v749
  %v1230 = vpack.c.b16 %v754, %v750
  %v1231 = vpack.c.b16 %v759, %v755
  %v1232 = vpack.c.b16 %v760, %v756
  %v1233 = vpack.c.b16 %v761, %v757
  %v1234 = vpack.c.b16 %v762, %v758
  %v1235 = vpack.c.b16 %v767, %v763
  %v1236 = vpack.c.b16 %v768, %v764
  %v1237 = vpack.c.b16 %v769, %v765
  %v1238 = vpack.c.b16 %v770, %v766
  %v1239 = vpack.c.b16 %v775, %v771
  %v1240 = vpack.c.b16 %v776, %v772
  %v1241 = vpack.c.b16 %v777, %v773
  %v1242 = vpack.c.b16 %v778, %v774
  %v1243 = vpack.c.b16 %v783, %v779
  %v1244 = vpack.c.b16 %v784, %v780
  %v1245 = vpack.c.b16 %v785, %v781
  %v1246 = vpack.c.b16 %v786, %v782
  %v1247 = vpack.c.b16 %v791, %v787
  %v1248 = vpack.c.b16 %v792, %v788
  %v1249 = vpack.c.b16 %v793, %v789
  %v1250 = vpack.c.b16 %v794, %v790
  %v1251 = vpack.c.b16 %v799, %v795
  %v1252 = vpack.c.b16 %v800, %v796
  %v1253 = vpack.c.b16 %v801, %v797
  %v1254 = vpack.c.b16 %v802, %v798
  %v1255 = vpack.c.b16 %v807, %v803
  %v1256 = vpack.c.b16 %v808, %v804
  %v1257 = vpack.c.b16 %v809, %v805
  %v1258 = vpack.c.b16 %v810, %v806
  %v1259 = vpack.c.b16 %v815, %v811
  %v1260 = vpack.c.b16 %v816, %v812
  %v1261 = vpack.c.b16 %v817, %v813
  %v1262 = vpack.c.b16 %v818, %v814
  %v1263 = vpack.c.b16 %v823, %v819
  %v1264 = vpack.c.b16 %v824, %v820
  %v1265 = vpack.c.b16 %v825, %v821
  %v1266 = vpack.c.b16 %v826, %v822
  %v1267 = vpack.c.b16 %v831, %v827
  %v1268 = vpack.c.b16 %v832, %v828
  %v1269 = vpack.c.b16 %v833, %v829
  %v1270 = vpack.c.b16 %v834, %v830
  %v1271 = vpack.c.b16 %v839, %v835
  %v1272 = vpack.c.b16 %v840, %v836
  %v1273 = vpack.c.b16 %v841, %v837
  %v1274 = vpack.c.b16 %v842, %v838
  %v1275 = vpack.c.b16 %v847, %v843
  %v1276 = vpack.c.b16 %v848, %v844
  %v1277 = vpack.c.b16 %v849, %v845
  %v1278 = vpack.c.b16 %v850, %v846
  %v1279 = vpack.c.b16 %v855, %v851
  %v1280 = vpack.c.b16 %v856, %v852
  %v1281 = vpack.c.b16 %v857, %v853
  %v1282 = vpack.c.b16 %v858, %v854
  %v1283 = vpack.c.b16 %v863, %v859
  %v1284 = vpack.c.b16 %v864, %v860
  %v1285 = vpack.c.b16 %v865, %v861
  %v1286 = vpack.c.b16 %v866, %v862
  %v1287 = vpack.c.b16 %v871, %v867
  %v1288 = vpack.c.b16 %v872, %v868
  %v1289 = vpack.c.b16 %v873, %v869
  %v1290 = vpack.c.b16 %v874, %v870
  %v1291 = vpack.c.b16 %v879, %v875
  %v1292 = vpack.c.b16 %v880, %v876
  %v1293 = vpack.c.b16 %v881, %v877
  %v1294 = vpack.c.b16 %v882, %v878
  %v1295 = vpack.c.b16 %v887, %v883
  %v1296 = vpack.c.b16 %v888, %v884
  %v1297 = vpack.c.b16 %v889, %v885
  %v1298 = vpack.c.b16 %v890, %v886
  %v1299 = vpack.c.b16 %v895, %v891
  %v1300 = vpack.c.b16 %v896, %v892
  %v1301 = vpack.c.b16 %v897, %v893
  %v1302 = vpack.c.b16 %v898, %v894
  %v1303 = vpack.c.b16 %v903, %v899
  %v1304 = vpack.c.b16 %v904, %v900
  %v1305 = vpack.c.b16 %v905, %v901
  %v1306 = vpack.c.b16 %v906, %v902
  %v1307 = vpack.c.b16 %v911, %v907
  %v1308 = vpack.c.b16 %v912, %v908
  %v1309 = vpack.c.b16 %v913, %v909
  %v1310 = vpack.c.b16 %v914, %v910
  %v1311 = vpack.c.b16 %v919, %v915
  %v1312 = vpack.c.b16 %v920, %v916
  %v1313 = vpack.c.b16 %v921, %v917
  %v1314 = vpack.c.b16 %v922, %v918
  %v1315 = vpack.c.b16 %v927, %v923
  %v1316 = vpack.c.b16 %v928, %v924
  %v1317 = vpack.c.b16 %v929, %v925
  %v1318 = vpack.c.b16 %v930, %v926
  %v1319 = vpack.c.b16 %v935, %v931
  %v1320 = vpack.c.b16 %v936, %v932
  %v1321 = vpack.c.b16 %v937, %v933
  %v1322 = vpack.c.b16 %v938, %v934
  %v1323 = vpack.c.b16 %v943, %v939
  %v1324 = vpack.c.b16 %v944, %v940
  %v1325 = vpack.c.b16 %v945, %v941
  %v1326 = vpack.c.b16 %v946, %v942
  %v1327 = vpack.c.b16 %v951, %v947
  %v1328 = vpack.c.b16 %v952, %v948
  %v1329 = vpack.c.b16 %v953, %v949
  %v1330 = vpack.c.b16 %v954, %v950
  %v1331 = vpack.c.b16 %v959, %v955
  %v1332 = vpack.c.b16 %v960, %v956
  %v1333 = vpack.c.b16 %v961, %v957
  %v1334 = vpack.c.b16 %v962, %v958
  %v1335 = vpack.c.b16 %v967, %v963
  %v1336 = vpack.c.b16 %v968, %v964
  %v1337 = vpack.c.b16 %v969, %v965
  %v1338 = vpack.c.b16 %v970, %v966
  %v1339 = vpack.c.b16 %v975, %v971
  %v1340 = vpack.c.b16 %v976, %v972
  %v1341 = vpack.c.b16 %v977, %v973
  %v1342 = vpack.c.b16 %v978, %v974
  %v1343 = vpack.c.b16 %v983, %v979
  %v1344 = vpack.c.b16 %v984, %v980
  %v1345 = vpack.c.b16 %v985, %v981
  %v1346 = vpack.c.b16 %v986, %v982
  %v1347 = vpack.c.b16 %v991, %v987
  %v1348 = vpack.c.b16 %v992, %v988
  %v1349 = vpack.c.b16 %v993, %v989
  %v1350 = vpack.c.b16 %v994, %v990
  %v1351 = vpack.c.b16 %v999, %v995
  %v1352 = vpack.c.b16 %v1000, %v996
  %v1353 = vpack.c.b16 %v1001, %v997
  %v1354 = vpack.c.b16 %v1002, %v998
  %v1355 = vpack.c.b16 %v1007, %v1003
  %v1356 = vpack.c.b16 %v1008, %v1004
  %v1357 = vpack.c.b16 %v1009, %v1005
  %v1358 = vpack.c.b16 %v1010, %v1006
  %v1359 = vpack.c.b16 %v1015, %v1011
  %v1360 = vpack.c.b16 %v1016, %v1012
  %v1361 = vpack.c.b16 %v1017, %v1013
  %v1362 = vpack.c.b16 %v1018, %v1014
  %v1363 = vpack.c.b16 %v1023, %v1019
  %v1364 = vpack.c.b16 %v1024, %v1020
  %v1365 = vpack.c.b16 %v1025, %v1021
  %v1366 = vpack.c.b16 %v1026, %v1022
  %v1367 = vpack.c.b16 %v1031, %v1027
  %v1368 = vpack.c.b16 %v1032, %v1028
  %v1369 = vpack.c.b16 %v1033, %v1029
  %v1370 = vpack.c.b16 %v1034, %v1030
  %v1371 = vpack.c.b16 %v1039, %v1035
  %v1372 = vpack.c.b16 %v1040, %v1036
  %v1373 = vpack.c.b16 %v1041, %v1037
  %v1374 = vpack.c.b16 %v1042, %v1038
  %v1375 = vpack.c.b16 %v1047, %v1043
  %v1376 = vpack.c.b16 %v1048, %v1044
  %v1377 = vpack.c.b16 %v1049, %v1045
  %v1378 = vpack.c.b16 %v1050, %v1046
  %v1379 = vpack.c.b16 %v1055, %v1051
  %v1380 = vpack.c.b16 %v1056, %v1052
  %v1381 = vpack.c.b16 %v1057, %v1053
  %v1382 = vpack.c.b16 %v1058, %v1054
  %v1383 = vpack.c.b16 %v1063, %v1059
  %v1384 = vpack.c.b16 %v1064, %v1060
  %v1385 = vpack.c.b16 %v1065, %v1061
  %v1386 = vpack.c.b16 %v1066, %v1062
  %v1387 = vpack.c.b16 %v1071, %v1067
  %v1388 = vpack.c.b16 %v1072, %v1068
  %v1389 = vpack.c.b16 %v1073, %v1069
  %v1390 = vpack.c.b16 %v1074, %v1070
  %v1391 = vpack.c.b16 %v1079, %v1075
  %v1392 = vpack.c.b16 %v1080, %v1076
  %v1393 = vpack.c.b16 %v1081, %v1077
  %v1394 = vpack.c.b16 %v1082, %v1078
  %v1395 = vpack.c.b16 %v1087, %v1083
  %v1396 = vpack.c.b16 %v1088, %v1084
  %v1397 = vpack.c.b16 %v1089, %v1085
  %v1398 = vpack.c.b16 %v1090, %v1086
  %v1399 = vpack.c.b16 %v1095, %v1091
  %v1400 = vpack.c.b16 %v1096, %v1092
  %v1401 = vpack.c.b16 %v1097, %v1093
  %v1402 = vpack.c.b16 %v1098, %v1094
  %v1403 = vpack.c.b16 %v1103, %v1099
  %v1404 = vpack.c.b16 %v1104, %v1100
  %v1405 = vpack.c.b16 %v1105, %v1101
  %v1406 = vpack.c.b16 %v1106, %v1102
  %v1407 = vpack.c.b16 %v1111, %v1107
  %v1408 = vpack.c.b16 %v1112, %v1108
  %v1409 = vpack.c.b16 %v1113, %v1109
  %v1410 = vpack.c.b16 %v1114, %v1110
  %v1411 = vpack.c.b16 %v1119, %v1115
  %v1412 = vpack.c.b16 %v1120, %v1116
  %v1413 = vpack.c.b16 %v1121, %v1117
  %v1414 = vpack.c.b16 %v1122, %v1118
  %v1415 = vpack.c.b16 %v1127, %v1123
  %v1416 = vpack.c.b16 %v1128, %v1124
  %v1417 = vpack.c.b16 %v1129, %v1125
  %v1418 = vpack.c.b16 %v1130, %v1126
  %v1419 = vpack.c.b16 %v1135, %v1131
  %v1420 = vpack.c.b16 %v1136, %v1132
  %v1421 = vpack.c.b16 %v1137, %v1133
  %v1422 = vpack.c.b16 %v1138, %v1134
  %v1423 = vpack.c.b16 %v1143, %v1139
  %v1424 = vpack.c.b16 %v1144, %v1140
  %v1425 = vpack.c.b16 %v1145, %v1141
  %v1426 = vpack.c.b16 %v1146, %v1142
  %v1427 = vpack.c.b16 %v1151, %v1147
  %v1428 = vpack.c.b16 %v1152, %v1148
  %v1429 = vpack.c.b16 %v1153, %v1149
  %v1430 = vpack.c.b16 %v1154, %v1150
  %v1431 = vpack.c.b16 %v1159, %v1155
  %v1432 = vpack.c.b16 %v1160, %v1156
  %v1433 = vpack.c.b16 %v1161, %v1157
  %v1434 = vpack.c.b16 %v1162, %v1158
  %v1435 = vpack.c.b16 %v1167, %v1163
  %v1436 = vpack.c.b16 %v1168, %v1164
  %v1437 = vpack.c.b16 %v1169, %v1165
  %v1438 = vpack.c.b16 %v1170, %v1166
  %v1439 = vpack.c.b16 %v1175, %v1171
  %v1440 = vpack.c.b16 %v1176, %v1172
  %v1441 = vpack.c.b16 %v1177, %v1173
  %v1442 = vpack.c.b16 %v1178, %v1174
  %v1443 = vpack.c.b16 %v1183, %v1179
  %v1444 = vpack.c.b16 %v1184, %v1180
  %v1445 = vpack.c.b16 %v1185, %v1181
  %v1446 = vpack.c.b16 %v1186, %v1182
  %v1447 = vpack.c.b16 %v1191, %v1187
  %v1448 = vpack.c.b16 %v1192, %v1188
  %v1449 = vpack.c.b16 %v1193, %v1189
  %v1450 = vpack.c.b16 %v1194, %v1190
  %1707 = vmatpush.bf16.msra.mxu0 %v1223
  %1708 = vmatpush.bf16.msra.mxu0 %v1219
  %1709 = vmatpush.bf16.msra.mxu0 %v1215
  %1710 = vmatpush.bf16.msra.mxu0 %v1211
  %1711 = vmatpush.bf16.msra.mxu0 %v1207
  %1712 = vmatpush.bf16.msra.mxu0 %v1203
  %1713 = vmatpush.bf16.msra.mxu0 %v1199
  %1714 = vmatpush.bf16.msra.mxu0 %v1195
  %1715 = vmatmul.bf16.gmra.mxu0 %v419
  %v1716 = vpop.f32.mrf.mxu0
  %v1717 = vadd.f32 0.0, %v1716
  %v1718 = vpop.f32.mrf.mxu0
  %1719 = vdwg.mxu0
  %1720 = vmatpush.bf16.msra.mxu0 %v1255
  %1721 = vmatpush.bf16.msra.mxu0 %v1251
  %1722 = vmatpush.bf16.msra.mxu0 %v1247
  %1723 = vmatpush.bf16.msra.mxu0 %v1243
  %1724 = vmatpush.bf16.msra.mxu0 %v1239
  %1725 = vmatpush.bf16.msra.mxu0 %v1235
  %1726 = vmatpush.bf16.msra.mxu0 %v1231
  %1727 = vmatpush.bf16.msra.mxu0 %v1227
  %1728 = vmatmul.bf16.gmra.mxu0 %v420
  %v1729 = vpop.f32.mrf.mxu0
  %v1730 = vadd.f32 %v1717, %v1729
  %v1731 = vpop.f32.mrf.mxu0
  %1732 = vdwg.mxu0
  %1733 = vmatpush.bf16.msra.mxu0 %v1287
  %1734 = vmatpush.bf16.msra.mxu0 %v1283
  %1735 = vmatpush.bf16.msra.mxu0 %v1279
  %1736 = vmatpush.bf16.msra.mxu0 %v1275
  %1737 = vmatpush.bf16.msra.mxu0 %v1271
  %1738 = vmatpush.bf16.msra.mxu0 %v1267
  %1739 = vmatpush.bf16.msra.mxu0 %v1263
  %1740 = vmatpush.bf16.msra.mxu0 %v1259
  %1741 = vmatmul.bf16.gmra.mxu0 %v421
  %v1742 = vpop.f32.mrf.mxu0
  %v1743 = vadd.f32 %v1730, %v1742
  %v1744 = vpop.f32.mrf.mxu0
  %1745 = vdwg.mxu0
  %1746 = vmatpush.bf16.msra.mxu0 %v1319
  %1747 = vmatpush.bf16.msra.mxu0 %v1315
  %1748 = vmatpush.bf16.msra.mxu0 %v1311
  %1749 = vmatpush.bf16.msra.mxu0 %v1307
  %1750 = vmatpush.bf16.msra.mxu0 %v1303
  %1751 = vmatpush.bf16.msra.mxu0 %v1299
  %1752 = vmatpush.bf16.msra.mxu0 %v1295
  %1753 = vmatpush.bf16.msra.mxu0 %v1291
  %1754 = vmatmul.bf16.gmra.mxu0 %v422
  %v1755 = vpop.f32.mrf.mxu0
  %v1756 = vadd.f32 %v1743, %v1755
  %v1757 = vpop.f32.mrf.mxu0
  %1758 = vdwg.mxu0
  %1759 = vmatpush.bf16.msra.mxu0 %v1351
  %1760 = vmatpush.bf16.msra.mxu0 %v1347
  %1761 = vmatpush.bf16.msra.mxu0 %v1343
  %1762 = vmatpush.bf16.msra.mxu0 %v1339
  %1763 = vmatpush.bf16.msra.mxu0 %v1335
  %1764 = vmatpush.bf16.msra.mxu0 %v1331
  %1765 = vmatpush.bf16.msra.mxu0 %v1327
  %1766 = vmatpush.bf16.msra.mxu0 %v1323
  %1767 = vmatmul.bf16.gmra.mxu0 %v423
  %v1768 = vpop.f32.mrf.mxu0
  %v1769 = vadd.f32 %v1756, %v1768
  %v1770 = vpop.f32.mrf.mxu0
  %1771 = vdwg.mxu0
  %1772 = vmatpush.bf16.msra.mxu0 %v1383
  %1773 = vmatpush.bf16.msra.mxu0 %v1379
  %1774 = vmatpush.bf16.msra.mxu0 %v1375
  %1775 = vmatpush.bf16.msra.mxu0 %v1371
  %1776 = vmatpush.bf16.msra.mxu0 %v1367
  %1777 = vmatpush.bf16.msra.mxu0 %v1363
  %1778 = vmatpush.bf16.msra.mxu0 %v1359
  %1779 = vmatpush.bf16.msra.mxu0 %v1355
  %1780 = vmatmul.bf16.gmra.mxu0 %v424
  %v1781 = vpop.f32.mrf.mxu0
  %v1782 = vadd.f32 %v1769, %v1781
  %v1783 = vpop.f32.mrf.mxu0
  %1784 = vdwg.mxu0
  %1785 = vmatpush.bf16.msra.mxu0 %v1415
  %1786 = vmatpush.bf16.msra.mxu0 %v1411
  %1787 = vmatpush.bf16.msra.mxu0 %v1407
  %1788 = vmatpush.bf16.msra.mxu0 %v1403
  %1789 = vmatpush.bf16.msra.mxu0 %v1399
  %1790 = vmatpush.bf16.msra.mxu0 %v1395
  %1791 = vmatpush.bf16.msra.mxu0 %v1391
  %1792 = vmatpush.bf16.msra.mxu0 %v1387
  %1793 = vmatmul.bf16.gmra.mxu0 %v425
  %v1794 = vpop.f32.mrf.mxu0
  %v1795 = vadd.f32 %v1782, %v1794
  %v1796 = vpop.f32.mrf.mxu0
  %1797 = vdwg.mxu0
  %1798 = vmatpush.bf16.msra.mxu0 %v1447
  %1799 = vmatpush.bf16.msra.mxu0 %v1443
  %1800 = vmatpush.bf16.msra.mxu0 %v1439
  %1801 = vmatpush.bf16.msra.mxu0 %v1435
  %1802 = vmatpush.bf16.msra.mxu0 %v1431
  %1803 = vmatpush.bf16.msra.mxu0 %v1427
  %1804 = vmatpush.bf16.msra.mxu0 %v1423
  %1805 = vmatpush.bf16.msra.mxu0 %v1419
  %1806 = vmatmul.bf16.gmra.mxu0 %v426
  %v1807 = vpop.f32.mrf.mxu0
  %v1808 = vadd.f32 %v1795, %v1807
  %v1809 = vpop.f32.mrf.mxu0
  %1810 = vdwg.mxu0
  %1811 = vmatpush.bf16.msra.mxu0 %v1224
  %1812 = vmatpush.bf16.msra.mxu0 %v1220
  %1813 = vmatpush.bf16.msra.mxu0 %v1216
  %1814 = vmatpush.bf16.msra.mxu0 %v1212
  %1815 = vmatpush.bf16.msra.mxu0 %v1208
  %1816 = vmatpush.bf16.msra.mxu0 %v1204
  %1817 = vmatpush.bf16.msra.mxu0 %v1200
  %1818 = vmatpush.bf16.msra.mxu0 %v1196
  %1819 = vmatmul.bf16.gmra.mxu0 %v419
  %v1820 = vpop.f32.mrf.mxu0
  %v1821 = vadd.f32 0.0, %v1820
  %v1822 = vpop.f32.mrf.mxu0
  %1823 = vdwg.mxu0
  %1824 = vmatpush.bf16.msra.mxu0 %v1256
  %1825 = vmatpush.bf16.msra.mxu0 %v1252
  %1826 = vmatpush.bf16.msra.mxu0 %v1248
  %1827 = vmatpush.bf16.msra.mxu0 %v1244
  %1828 = vmatpush.bf16.msra.mxu0 %v1240
  %1829 = vmatpush.bf16.msra.mxu0 %v1236
  %1830 = vmatpush.bf16.msra.mxu0 %v1232
  %1831 = vmatpush.bf16.msra.mxu0 %v1228
  %1832 = vmatmul.bf16.gmra.mxu0 %v420
  %v1833 = vpop.f32.mrf.mxu0
  %v1834 = vadd.f32 %v1821, %v1833
  %v1835 = vpop.f32.mrf.mxu0
  %1836 = vdwg.mxu0
  %1837 = vmatpush.bf16.msra.mxu0 %v1288
  %1838 = vmatpush.bf16.msra.mxu0 %v1284
  %1839 = vmatpush.bf16.msra.mxu0 %v1280
  %1840 = vmatpush.bf16.msra.mxu0 %v1276
  %1841 = vmatpush.bf16.msra.mxu0 %v1272
  %1842 = vmatpush.bf16.msra.mxu0 %v1268
  %1843 = vmatpush.bf16.msra.mxu0 %v1264
  %1844 = vmatpush.bf16.msra.mxu0 %v1260
  %1845 = vmatmul.bf16.gmra.mxu0 %v421
  %v1846 = vpop.f32.mrf.mxu0
  %v1847 = vadd.f32 %v1834, %v1846
  %v1848 = vpop.f32.mrf.mxu0
  %1849 = vdwg.mxu0
  %1850 = vmatpush.bf16.msra.mxu0 %v1320
  %1851 = vmatpush.bf16.msra.mxu0 %v1316
  %1852 = vmatpush.bf16.msra.mxu0 %v1312
  %1853 = vmatpush.bf16.msra.mxu0 %v1308
  %1854 = vmatpush.bf16.msra.mxu0 %v1304
  %1855 = vmatpush.bf16.msra.mxu0 %v1300
  %1856 = vmatpush.bf16.msra.mxu0 %v1296
  %1857 = vmatpush.bf16.msra.mxu0 %v1292
  %1858 = vmatmul.bf16.gmra.mxu0 %v422
  %v1859 = vpop.f32.mrf.mxu0
  %v1860 = vadd.f32 %v1847, %v1859
  %v1861 = vpop.f32.mrf.mxu0
  %1862 = vdwg.mxu0
  %1863 = vmatpush.bf16.msra.mxu0 %v1352
  %1864 = vmatpush.bf16.msra.mxu0 %v1348
  %1865 = vmatpush.bf16.msra.mxu0 %v1344
  %1866 = vmatpush.bf16.msra.mxu0 %v1340
  %1867 = vmatpush.bf16.msra.mxu0 %v1336
  %1868 = vmatpush.bf16.msra.mxu0 %v1332
  %1869 = vmatpush.bf16.msra.mxu0 %v1328
  %1870 = vmatpush.bf16.msra.mxu0 %v1324
  %1871 = vmatmul.bf16.gmra.mxu0 %v423
  %v1872 = vpop.f32.mrf.mxu0
  %v1873 = vadd.f32 %v1860, %v1872
  %v1874 = vpop.f32.mrf.mxu0
  %1875 = vdwg.mxu0
  %1876 = vmatpush.bf16.msra.mxu0 %v1384
  %1877 = vmatpush.bf16.msra.mxu0 %v1380
  %1878 = vmatpush.bf16.msra.mxu0 %v1376
  %1879 = vmatpush.bf16.msra.mxu0 %v1372
  %1880 = vmatpush.bf16.msra.mxu0 %v1368
  %1881 = vmatpush.bf16.msra.mxu0 %v1364
  %1882 = vmatpush.bf16.msra.mxu0 %v1360
  %1883 = vmatpush.bf16.msra.mxu0 %v1356
  %1884 = vmatmul.bf16.gmra.mxu0 %v424
  %v1885 = vpop.f32.mrf.mxu0
  %v1886 = vadd.f32 %v1873, %v1885
  %v1887 = vpop.f32.mrf.mxu0
  %1888 = vdwg.mxu0
  %1889 = vmatpush.bf16.msra.mxu0 %v1416
  %1890 = vmatpush.bf16.msra.mxu0 %v1412
  %1891 = vmatpush.bf16.msra.mxu0 %v1408
  %1892 = vmatpush.bf16.msra.mxu0 %v1404
  %1893 = vmatpush.bf16.msra.mxu0 %v1400
  %1894 = vmatpush.bf16.msra.mxu0 %v1396
  %1895 = vmatpush.bf16.msra.mxu0 %v1392
  %1896 = vmatpush.bf16.msra.mxu0 %v1388
  %1897 = vmatmul.bf16.gmra.mxu0 %v425
  %v1898 = vpop.f32.mrf.mxu0
  %v1899 = vadd.f32 %v1886, %v1898
  %v1900 = vpop.f32.mrf.mxu0
  %1901 = vdwg.mxu0
  %1902 = vmatpush.bf16.msra.mxu0 %v1448
  %1903 = vmatpush.bf16.msra.mxu0 %v1444
  %1904 = vmatpush.bf16.msra.mxu0 %v1440
  %1905 = vmatpush.bf16.msra.mxu0 %v1436
  %1906 = vmatpush.bf16.msra.mxu0 %v1432
  %1907 = vmatpush.bf16.msra.mxu0 %v1428
  %1908 = vmatpush.bf16.msra.mxu0 %v1424
  %1909 = vmatpush.bf16.msra.mxu0 %v1420
  %1910 = vmatmul.bf16.gmra.mxu0 %v426
  %v1911 = vpop.f32.mrf.mxu0
  %v1912 = vadd.f32 %v1899, %v1911
  %v1913 = vpop.f32.mrf.mxu0
  %1914 = vdwg.mxu0
  %1915 = vmatpush.bf16.msra.mxu0 %v1225
  %1916 = vmatpush.bf16.msra.mxu0 %v1221
  %1917 = vmatpush.bf16.msra.mxu0 %v1217
  %1918 = vmatpush.bf16.msra.mxu0 %v1213
  %1919 = vmatpush.bf16.msra.mxu0 %v1209
  %1920 = vmatpush.bf16.msra.mxu0 %v1205
  %1921 = vmatpush.bf16.msra.mxu0 %v1201
  %1922 = vmatpush.bf16.msra.mxu0 %v1197
  %1923 = vmatmul.bf16.gmra.mxu0 %v419
  %v1924 = vpop.f32.mrf.mxu0
  %v1925 = vadd.f32 0.0, %v1924
  %v1926 = vpop.f32.mrf.mxu0
  %1927 = vdwg.mxu0
  %1928 = vmatpush.bf16.msra.mxu0 %v1257
  %1929 = vmatpush.bf16.msra.mxu0 %v1253
  %1930 = vmatpush.bf16.msra.mxu0 %v1249
  %1931 = vmatpush.bf16.msra.mxu0 %v1245
  %1932 = vmatpush.bf16.msra.mxu0 %v1241
  %1933 = vmatpush.bf16.msra.mxu0 %v1237
  %1934 = vmatpush.bf16.msra.mxu0 %v1233
  %1935 = vmatpush.bf16.msra.mxu0 %v1229
  %1936 = vmatmul.bf16.gmra.mxu0 %v420
  %v1937 = vpop.f32.mrf.mxu0
  %v1938 = vadd.f32 %v1925, %v1937
  %v1939 = vpop.f32.mrf.mxu0
  %1940 = vdwg.mxu0
  %1941 = vmatpush.bf16.msra.mxu0 %v1289
  %1942 = vmatpush.bf16.msra.mxu0 %v1285
  %1943 = vmatpush.bf16.msra.mxu0 %v1281
  %1944 = vmatpush.bf16.msra.mxu0 %v1277
  %1945 = vmatpush.bf16.msra.mxu0 %v1273
  %1946 = vmatpush.bf16.msra.mxu0 %v1269
  %1947 = vmatpush.bf16.msra.mxu0 %v1265
  %1948 = vmatpush.bf16.msra.mxu0 %v1261
  %1949 = vmatmul.bf16.gmra.mxu0 %v421
  %v1950 = vpop.f32.mrf.mxu0
  %v1951 = vadd.f32 %v1938, %v1950
  %v1952 = vpop.f32.mrf.mxu0
  %1953 = vdwg.mxu0
  %1954 = vmatpush.bf16.msra.mxu0 %v1321
  %1955 = vmatpush.bf16.msra.mxu0 %v1317
  %1956 = vmatpush.bf16.msra.mxu0 %v1313
  %1957 = vmatpush.bf16.msra.mxu0 %v1309
  %1958 = vmatpush.bf16.msra.mxu0 %v1305
  %1959 = vmatpush.bf16.msra.mxu0 %v1301
  %1960 = vmatpush.bf16.msra.mxu0 %v1297
  %1961 = vmatpush.bf16.msra.mxu0 %v1293
  %1962 = vmatmul.bf16.gmra.mxu0 %v422
  %v1963 = vpop.f32.mrf.mxu0
  %v1964 = vadd.f32 %v1951, %v1963
  %v1965 = vpop.f32.mrf.mxu0
  %1966 = vdwg.mxu0
  %1967 = vmatpush.bf16.msra.mxu0 %v1353
  %1968 = vmatpush.bf16.msra.mxu0 %v1349
  %1969 = vmatpush.bf16.msra.mxu0 %v1345
  %1970 = vmatpush.bf16.msra.mxu0 %v1341
  %1971 = vmatpush.bf16.msra.mxu0 %v1337
  %1972 = vmatpush.bf16.msra.mxu0 %v1333
  %1973 = vmatpush.bf16.msra.mxu0 %v1329
  %1974 = vmatpush.bf16.msra.mxu0 %v1325
  %1975 = vmatmul.bf16.gmra.mxu0 %v423
  %v1976 = vpop.f32.mrf.mxu0
  %v1977 = vadd.f32 %v1964, %v1976
  %v1978 = vpop.f32.mrf.mxu0
  %1979 = vdwg.mxu0
  %1980 = vmatpush.bf16.msra.mxu0 %v1385
  %1981 = vmatpush.bf16.msra.mxu0 %v1381
  %1982 = vmatpush.bf16.msra.mxu0 %v1377
  %1983 = vmatpush.bf16.msra.mxu0 %v1373
  %1984 = vmatpush.bf16.msra.mxu0 %v1369
  %1985 = vmatpush.bf16.msra.mxu0 %v1365
  %1986 = vmatpush.bf16.msra.mxu0 %v1361
  %1987 = vmatpush.bf16.msra.mxu0 %v1357
  %1988 = vmatmul.bf16.gmra.mxu0 %v424
  %v1989 = vpop.f32.mrf.mxu0
  %v1990 = vadd.f32 %v1977, %v1989
  %v1991 = vpop.f32.mrf.mxu0
  %1992 = vdwg.mxu0
  %1993 = vmatpush.bf16.msra.mxu0 %v1417
  %1994 = vmatpush.bf16.msra.mxu0 %v1413
  %1995 = vmatpush.bf16.msra.mxu0 %v1409
  %1996 = vmatpush.bf16.msra.mxu0 %v1405
  %1997 = vmatpush.bf16.msra.mxu0 %v1401
  %1998 = vmatpush.bf16.msra.mxu0 %v1397
  %1999 = vmatpush.bf16.msra.mxu0 %v1393
  %2000 = vmatpush.bf16.msra.mxu0 %v1389
  %2001 = vmatmul.bf16.gmra.mxu0 %v425
  %v2002 = vpop.f32.mrf.mxu0
  %v2003 = vadd.f32 %v1990, %v2002
  %v2004 = vpop.f32.mrf.mxu0
  %2005 = vdwg.mxu0
  %2006 = vmatpush.bf16.msra.mxu0 %v1449
  %2007 = vmatpush.bf16.msra.mxu0 %v1445
  %2008 = vmatpush.bf16.msra.mxu0 %v1441
  %2009 = vmatpush.bf16.msra.mxu0 %v1437
  %2010 = vmatpush.bf16.msra.mxu0 %v1433
  %2011 = vmatpush.bf16.msra.mxu0 %v1429
  %2012 = vmatpush.bf16.msra.mxu0 %v1425
  %2013 = vmatpush.bf16.msra.mxu0 %v1421
  %2014 = vmatmul.bf16.gmra.mxu0 %v426
  %v2015 = vpop.f32.mrf.mxu0
  %v2016 = vadd.f32 %v2003, %v2015
  %v2017 = vpop.f32.mrf.mxu0
  %2018 = vdwg.mxu0
  %2019 = vmatpush.bf16.msra.mxu0 %v1226
  %2020 = vmatpush.bf16.msra.mxu0 %v1222
  %2021 = vmatpush.bf16.msra.mxu0 %v1218
  %2022 = vmatpush.bf16.msra.mxu0 %v1214
  %2023 = vmatpush.bf16.msra.mxu0 %v1210
  %2024 = vmatpush.bf16.msra.mxu0 %v1206
  %2025 = vmatpush.bf16.msra.mxu0 %v1202
  %2026 = vmatpush.bf16.msra.mxu0 %v1198
  %2027 = vmatmul.bf16.gmra.mxu0 %v419
  %v2028 = vpop.f32.mrf.mxu0
  %v2029 = vadd.f32 0.0, %v2028
  %v2030 = vpop.f32.mrf.mxu0
  %2031 = vdwg.mxu0
  %2032 = vmatpush.bf16.msra.mxu0 %v1258
  %2033 = vmatpush.bf16.msra.mxu0 %v1254
  %2034 = vmatpush.bf16.msra.mxu0 %v1250
  %2035 = vmatpush.bf16.msra.mxu0 %v1246
  %2036 = vmatpush.bf16.msra.mxu0 %v1242
  %2037 = vmatpush.bf16.msra.mxu0 %v1238
  %2038 = vmatpush.bf16.msra.mxu0 %v1234
  %2039 = vmatpush.bf16.msra.mxu0 %v1230
  %2040 = vmatmul.bf16.gmra.mxu0 %v420
  %v2041 = vpop.f32.mrf.mxu0
  %v2042 = vadd.f32 %v2029, %v2041
  %v2043 = vpop.f32.mrf.mxu0
  %2044 = vdwg.mxu0
  %2045 = vmatpush.bf16.msra.mxu0 %v1290
  %2046 = vmatpush.bf16.msra.mxu0 %v1286
  %2047 = vmatpush.bf16.msra.mxu0 %v1282
  %2048 = vmatpush.bf16.msra.mxu0 %v1278
  %2049 = vmatpush.bf16.msra.mxu0 %v1274
  %2050 = vmatpush.bf16.msra.mxu0 %v1270
  %2051 = vmatpush.bf16.msra.mxu0 %v1266
  %2052 = vmatpush.bf16.msra.mxu0 %v1262
  %2053 = vmatmul.bf16.gmra.mxu0 %v421
  %v2054 = vpop.f32.mrf.mxu0
  %v2055 = vadd.f32 %v2042, %v2054
  %v2056 = vpop.f32.mrf.mxu0
  %2057 = vdwg.mxu0
  %2058 = vmatpush.bf16.msra.mxu0 %v1322
  %2059 = vmatpush.bf16.msra.mxu0 %v1318
  %2060 = vmatpush.bf16.msra.mxu0 %v1314
  %2061 = vmatpush.bf16.msra.mxu0 %v1310
  %2062 = vmatpush.bf16.msra.mxu0 %v1306
  %2063 = vmatpush.bf16.msra.mxu0 %v1302
  %2064 = vmatpush.bf16.msra.mxu0 %v1298
  %2065 = vmatpush.bf16.msra.mxu0 %v1294
  %2066 = vmatmul.bf16.gmra.mxu0 %v422
  %v2067 = vpop.f32.mrf.mxu0
  %v2068 = vadd.f32 %v2055, %v2067
  %v2069 = vpop.f32.mrf.mxu0
  %2070 = vdwg.mxu0
  %2071 = vmatpush.bf16.msra.mxu0 %v1354
  %2072 = vmatpush.bf16.msra.mxu0 %v1350
  %2073 = vmatpush.bf16.msra.mxu0 %v1346
  %2074 = vmatpush.bf16.msra.mxu0 %v1342
  %2075 = vmatpush.bf16.msra.mxu0 %v1338
  %2076 = vmatpush.bf16.msra.mxu0 %v1334
  %2077 = vmatpush.bf16.msra.mxu0 %v1330
  %2078 = vmatpush.bf16.msra.mxu0 %v1326
  %2079 = vmatmul.bf16.gmra.mxu0 %v423
  %v2080 = vpop.f32.mrf.mxu0
  %v2081 = vadd.f32 %v2068, %v2080
  %v2082 = vpop.f32.mrf.mxu0
  %2083 = vdwg.mxu0
  %2084 = vmatpush.bf16.msra.mxu0 %v1386
  %2085 = vmatpush.bf16.msra.mxu0 %v1382
  %2086 = vmatpush.bf16.msra.mxu0 %v1378
  %2087 = vmatpush.bf16.msra.mxu0 %v1374
  %2088 = vmatpush.bf16.msra.mxu0 %v1370
  %2089 = vmatpush.bf16.msra.mxu0 %v1366
  %2090 = vmatpush.bf16.msra.mxu0 %v1362
  %2091 = vmatpush.bf16.msra.mxu0 %v1358
  %2092 = vmatmul.bf16.gmra.mxu0 %v424
  %v2093 = vpop.f32.mrf.mxu0
  %v2094 = vadd.f32 %v2081, %v2093
  %v2095 = vpop.f32.mrf.mxu0
  %2096 = vdwg.mxu0
  %2097 = vmatpush.bf16.msra.mxu0 %v1418
  %2098 = vmatpush.bf16.msra.mxu0 %v1414
  %2099 = vmatpush.bf16.msra.mxu0 %v1410
  %2100 = vmatpush.bf16.msra.mxu0 %v1406
  %2101 = vmatpush.bf16.msra.mxu0 %v1402
  %2102 = vmatpush.bf16.msra.mxu0 %v1398
  %2103 = vmatpush.bf16.msra.mxu0 %v1394
  %2104 = vmatpush.bf16.msra.mxu0 %v1390
  %2105 = vmatmul.bf16.gmra.mxu0 %v425
  %v2106 = vpop.f32.mrf.mxu0
  %v2107 = vadd.f32 %v2094, %v2106
  %v2108 = vpop.f32.mrf.mxu0
  %2109 = vdwg.mxu0
  %2110 = vmatpush.bf16.msra.mxu0 %v1450
  %2111 = vmatpush.bf16.msra.mxu0 %v1446
  %2112 = vmatpush.bf16.msra.mxu0 %v1442
  %2113 = vmatpush.bf16.msra.mxu0 %v1438
  %2114 = vmatpush.bf16.msra.mxu0 %v1434
  %2115 = vmatpush.bf16.msra.mxu0 %v1430
  %2116 = vmatpush.bf16.msra.mxu0 %v1426
  %2117 = vmatpush.bf16.msra.mxu0 %v1422
  %2118 = vmatmul.bf16.gmra.mxu0 %v426
  %v2119 = vpop.f32.mrf.mxu0
  %v2120 = vadd.f32 %v2107, %v2119
  %v2121 = vpop.f32.mrf.mxu0
  %2122 = vdwg.mxu0
  %v2123 = vpack.c.bf16 %v1912, %v1808
  %v2124 = vpack.c.bf16 %v2120, %v2016
  %2125 = vst [vmem:[%s4] sm:$0xff] %v2123
  %2126 = vst [vmem:[%s4 + $0x8] sm:$0xff] %v2124
  // Predicated region
  $region18: #{densenet121_forward.208} parent=0 // pred_check
    _
  $region19: #{densenet121_forward.208} parent=0 // pred_check_branch
    %2128 = sbr.rel (0) target = $region21
  $region20: #{densenet121_forward.208} parent=0 // pred_region
    _
  $region21: #{densenet121_forward.208} parent=0 // pred_fallthru
    _
  // Predicated region
  $region22: #{densenet121_forward.208} parent=0 // pred_check
    _
  $region23: #{densenet121_forward.208} parent=0 // pred_check_branch
    %2130 = sbr.rel (0) target = $region25
  $region24: #{densenet121_forward.208} parent=0 // pred_region
    _
  $region25: #{densenet121_forward.208} parent=0 // pred_fallthru
    _

// kernel: densenet121_forward.241
$region0: #{densenet121_forward.241}
  #allocation0 [shape = 'u32[]', space=smem, size = 0x4, offset = 0x4, fixed_abs, tag = 'smem constant byte address 0x4 - core index']
  #allocation1 [shape = 'u32[72,128]{1,0:T(1,128)}', space=vmem, size = 0x9000, scoped, tag = 'internal scratch']
  %s0 = inlined_call_operand.vmem [shape: bf16[2,1024], index: 0, kind: input, shape index: {}]
  %s1 = inlined_call_operand.vmem [shape: f32[1,1024], index: 1, kind: input, shape index: {}]
  %s2 = inlined_call_operand.vmem [shape: f32[1,1024], index: 2, kind: input, shape index: {}]
  %s3 = inlined_call_operand.vmem [shape: f32[1024,14], index: 3, kind: input, shape index: {}]
  %s4 = inlined_call_operand.vmem [shape: f32[2,14], index: 4, kind: output, shape index: {}]
  %s5 = sld [smem:[#allocation0]]
  $region26: #{densenet121_forward.241} parent=0
    _
  %s7 = ssub.s32 1, %s5
  %s8 = scalar_select 0, %s7, %s5
  // Predicated region
  $region2: #{densenet121_forward.241} parent=0 // pred_check
    _
  $region3: #{densenet121_forward.241} parent=0 // pred_check_branch
    %10 = sbr.rel (0) target = $region5
  $region4: #{densenet121_forward.241} parent=0 // pred_region
    _
  $region5: #{densenet121_forward.241} parent=0 // pred_fallthru
    _
  // Predicated region
  $region6: #{densenet121_forward.241} parent=0 // pred_check
    _
  $region7: #{densenet121_forward.241} parent=0 // pred_check_branch
    %12 = sbr.rel (0) target = $region9
  $region8: #{densenet121_forward.241} parent=0 // pred_region
    _
  $region9: #{densenet121_forward.241} parent=0 // pred_fallthru
    _
  // Predicated region
  $region10: #{densenet121_forward.241} parent=0 // pred_check
    _
  $region11: #{densenet121_forward.241} parent=0 // pred_check_branch
    %14 = sbr.rel (0) target = $region13
  $region12: #{densenet121_forward.241} parent=0 // pred_region
    _
  $region13: #{densenet121_forward.241} parent=0 // pred_fallthru
    _
  // Predicated region
  $region14: #{densenet121_forward.241} parent=0 // pred_check
    _
  $region15: #{densenet121_forward.241} parent=0 // pred_check_branch
    %16 = sbr.rel (0) target = $region17
  $region16: #{densenet121_forward.241} parent=0 // pred_region
    _
  $region17: #{densenet121_forward.241} parent=0 // pred_fallthru
    _
  %v17 = vld [vmem:[%s0] sm:$0xff]
  %v18 = vld [vmem:[%s3] sm:$0xff]
  %v19 = vld [vmem:[%s3 + $0x8] sm:$0xff]
  %v20 = vld [vmem:[%s3 + $0x10] sm:$0xff]
  %v21 = vld [vmem:[%s3 + $0x18] sm:$0xff]
  %v22 = vld [vmem:[%s3 + $0x20] sm:$0xff]
  %v23 = vld [vmem:[%s3 + $0x28] sm:$0xff]
  %v24 = vld [vmem:[%s3 + $0x30] sm:$0xff]
  %v25 = vld [vmem:[%s3 + $0x38] sm:$0xff]
  %v26 = vld [vmem:[%s3 + $0x40] sm:$0xff]
  %v27 = vld [vmem:[%s3 + $0x48] sm:$0xff]
  %v28 = vld [vmem:[%s3 + $0x50] sm:$0xff]
  %v29 = vld [vmem:[%s3 + $0x58] sm:$0xff]
  %v30 = vld [vmem:[%s3 + $0x60] sm:$0xff]
  %v31 = vld [vmem:[%s3 + $0x68] sm:$0xff]
  %v32 = vld [vmem:[%s3 + $0x70] sm:$0xff]
  %v33 = vld [vmem:[%s3 + $0x78] sm:$0xff]
  %v34 = vld [vmem:[%s3 + $0x80] sm:$0xff]
  %v35 = vld [vmem:[%s3 + $0x88] sm:$0xff]
  %v36 = vld [vmem:[%s3 + $0x90] sm:$0xff]
  %v37 = vld [vmem:[%s3 + $0x98] sm:$0xff]
  %v38 = vld [vmem:[%s3 + $0xa0] sm:$0xff]
  %v39 = vld [vmem:[%s3 + $0xa8] sm:$0xff]
  %v40 = vld [vmem:[%s3 + $0xb0] sm:$0xff]
  %v41 = vld [vmem:[%s3 + $0xb8] sm:$0xff]
  %v42 = vld [vmem:[%s3 + $0xc0] sm:$0xff]
  %v43 = vld [vmem:[%s3 + $0xc8] sm:$0xff]
  %v44 = vld [vmem:[%s3 + $0xd0] sm:$0xff]
  %v45 = vld [vmem:[%s3 + $0xd8] sm:$0xff]
  %v46 = vld [vmem:[%s3 + $0xe0] sm:$0xff]
  %v47 = vld [vmem:[%s3 + $0xe8] sm:$0xff]
  %v48 = vld [vmem:[%s3 + $0xf0] sm:$0xff]
  %v49 = vld [vmem:[%s3 + $0xf8] sm:$0xff]
  %v50 = vld [vmem:[%s3 + $0x100] sm:$0xff]
  %v51 = vld [vmem:[%s3 + $0x108] sm:$0xff]
  %v52 = vld [vmem:[%s3 + $0x110] sm:$0xff]
  %v53 = vld [vmem:[%s3 + $0x118] sm:$0xff]
  %v54 = vld [vmem:[%s3 + $0x120] sm:$0xff]
  %v55 = vld [vmem:[%s3 + $0x128] sm:$0xff]
  %v56 = vld [vmem:[%s3 + $0x130] sm:$0xff]
  %v57 = vld [vmem:[%s3 + $0x138] sm:$0xff]
  %v58 = vld [vmem:[%s3 + $0x140] sm:$0xff]
  %v59 = vld [vmem:[%s3 + $0x148] sm:$0xff]
  %v60 = vld [vmem:[%s3 + $0x150] sm:$0xff]
  %v61 = vld [vmem:[%s3 + $0x158] sm:$0xff]
  %v62 = vld [vmem:[%s3 + $0x160] sm:$0xff]
  %v63 = vld [vmem:[%s3 + $0x168] sm:$0xff]
  %v64 = vld [vmem:[%s3 + $0x170] sm:$0xff]
  %v65 = vld [vmem:[%s3 + $0x178] sm:$0xff]
  %v66 = vld [vmem:[%s3 + $0x180] sm:$0xff]
  %v67 = vld [vmem:[%s3 + $0x188] sm:$0xff]
  %v68 = vld [vmem:[%s3 + $0x190] sm:$0xff]
  %v69 = vld [vmem:[%s3 + $0x198] sm:$0xff]
  %v70 = vld [vmem:[%s3 + $0x1a0] sm:$0xff]
  %v71 = vld [vmem:[%s3 + $0x1a8] sm:$0xff]
  %v72 = vld [vmem:[%s3 + $0x1b0] sm:$0xff]
  %v73 = vld [vmem:[%s3 + $0x1b8] sm:$0xff]
  %v74 = vld [vmem:[%s3 + $0x1c0] sm:$0xff]
  %v75 = vld [vmem:[%s3 + $0x1c8] sm:$0xff]
  %v76 = vld [vmem:[%s3 + $0x1d0] sm:$0xff]
  %v77 = vld [vmem:[%s3 + $0x1d8] sm:$0xff]
  %v78 = vld [vmem:[%s3 + $0x1e0] sm:$0xff]
  %v79 = vld [vmem:[%s3 + $0x1e8] sm:$0xff]
  %v80 = vld [vmem:[%s3 + $0x1f0] sm:$0xff]
  %v81 = vld [vmem:[%s3 + $0x1f8] sm:$0xff]
  %v82 = vld [vmem:[%s3 + $0x200] sm:$0xff]
  %v83 = vld [vmem:[%s3 + $0x208] sm:$0xff]
  %v84 = vld [vmem:[%s3 + $0x210] sm:$0xff]
  %v85 = vld [vmem:[%s3 + $0x218] sm:$0xff]
  %v86 = vld [vmem:[%s3 + $0x220] sm:$0xff]
  %v87 = vld [vmem:[%s3 + $0x228] sm:$0xff]
  %v88 = vld [vmem:[%s3 + $0x230] sm:$0xff]
  %v89 = vld [vmem:[%s3 + $0x238] sm:$0xff]
  %v90 = vld [vmem:[%s3 + $0x240] sm:$0xff]
  %v91 = vld [vmem:[%s3 + $0x248] sm:$0xff]
  %v92 = vld [vmem:[%s3 + $0x250] sm:$0xff]
  %v93 = vld [vmem:[%s3 + $0x258] sm:$0xff]
  %v94 = vld [vmem:[%s3 + $0x260] sm:$0xff]
  %v95 = vld [vmem:[%s3 + $0x268] sm:$0xff]
  %v96 = vld [vmem:[%s3 + $0x270] sm:$0xff]
  %v97 = vld [vmem:[%s3 + $0x278] sm:$0xff]
  %v98 = vld [vmem:[%s3 + $0x280] sm:$0xff]
  %v99 = vld [vmem:[%s3 + $0x288] sm:$0xff]
  %v100 = vld [vmem:[%s3 + $0x290] sm:$0xff]
  %v101 = vld [vmem:[%s3 + $0x298] sm:$0xff]
  %v102 = vld [vmem:[%s3 + $0x2a0] sm:$0xff]
  %v103 = vld [vmem:[%s3 + $0x2a8] sm:$0xff]
  %v104 = vld [vmem:[%s3 + $0x2b0] sm:$0xff]
  %v105 = vld [vmem:[%s3 + $0x2b8] sm:$0xff]
  %v106 = vld [vmem:[%s3 + $0x2c0] sm:$0xff]
  %v107 = vld [vmem:[%s3 + $0x2c8] sm:$0xff]
  %v108 = vld [vmem:[%s3 + $0x2d0] sm:$0xff]
  %v109 = vld [vmem:[%s3 + $0x2d8] sm:$0xff]
  %v110 = vld [vmem:[%s3 + $0x2e0] sm:$0xff]
  %v111 = vld [vmem:[%s3 + $0x2e8] sm:$0xff]
  %v112 = vld [vmem:[%s3 + $0x2f0] sm:$0xff]
  %v113 = vld [vmem:[%s3 + $0x2f8] sm:$0xff]
  %v114 = vld [vmem:[%s3 + $0x300] sm:$0xff]
  %v115 = vld [vmem:[%s3 + $0x308] sm:$0xff]
  %v116 = vld [vmem:[%s3 + $0x310] sm:$0xff]
  %v117 = vld [vmem:[%s3 + $0x318] sm:$0xff]
  %v118 = vld [vmem:[%s3 + $0x320] sm:$0xff]
  %v119 = vld [vmem:[%s3 + $0x328] sm:$0xff]
  %v120 = vld [vmem:[%s3 + $0x330] sm:$0xff]
  %v121 = vld [vmem:[%s3 + $0x338] sm:$0xff]
  %v122 = vld [vmem:[%s3 + $0x340] sm:$0xff]
  %v123 = vld [vmem:[%s3 + $0x348] sm:$0xff]
  %v124 = vld [vmem:[%s3 + $0x350] sm:$0xff]
  %v125 = vld [vmem:[%s3 + $0x358] sm:$0xff]
  %v126 = vld [vmem:[%s3 + $0x360] sm:$0xff]
  %v127 = vld [vmem:[%s3 + $0x368] sm:$0xff]
  %v128 = vld [vmem:[%s3 + $0x370] sm:$0xff]
  %v129 = vld [vmem:[%s3 + $0x378] sm:$0xff]
  %v130 = vld [vmem:[%s3 + $0x380] sm:$0xff]
  %v131 = vld [vmem:[%s3 + $0x388] sm:$0xff]
  %v132 = vld [vmem:[%s3 + $0x390] sm:$0xff]
  %v133 = vld [vmem:[%s3 + $0x398] sm:$0xff]
  %v134 = vld [vmem:[%s3 + $0x3a0] sm:$0xff]
  %v135 = vld [vmem:[%s3 + $0x3a8] sm:$0xff]
  %v136 = vld [vmem:[%s3 + $0x3b0] sm:$0xff]
  %v137 = vld [vmem:[%s3 + $0x3b8] sm:$0xff]
  %v138 = vld [vmem:[%s3 + $0x3c0] sm:$0xff]
  %v139 = vld [vmem:[%s3 + $0x3c8] sm:$0xff]
  %v140 = vld [vmem:[%s3 + $0x3d0] sm:$0xff]
  %v141 = vld [vmem:[%s3 + $0x3d8] sm:$0xff]
  %v142 = vld [vmem:[%s3 + $0x3e0] sm:$0xff]
  %v143 = vld [vmem:[%s3 + $0x3e8] sm:$0xff]
  %v144 = vld [vmem:[%s3 + $0x3f0] sm:$0xff]
  %v145 = vld [vmem:[%s3 + $0x3f8] sm:$0xff]
  %v146 = vld [vmem:[%s1] sm:$0xff]
  %v147 = vunpack.c.l.bf16 %v17
  %v148 = vunpack.c.h.bf16 %v17
  %v150 = vperm.slane %v146, 0
  %v151 = vperm.slane %v146, 1
  %v152 = vperm.slane %v146, 2
  %v153 = vperm.slane %v146, 3
  %v154 = vperm.slane %v146, 4
  %v155 = vperm.slane %v146, 5
  %v156 = vperm.slane %v146, 6
  %v157 = vperm.slane %v146, 7
  %v158 = vrot.slane %v151, 6
  %v159 = vrot.slane %v152, 4
  %v160 = vrot.slane %v153, 2
  %v161 = vrot.slane %v155, 6
  %v162 = vrot.slane %v156, 4
  %v163 = vrot.slane %v157, 2
  %vm164 = vcmask 1041408
  %v165 = vsel %vm164, %v150, %v158
  %vm166 = vcmask 1045508
  %v167 = vsel %vm166, %v159, %v160
  %vm168 = vcmask 1043456
  %v169 = vsel %vm168, %v165, %v167
  %v170 = vsel %vm164, %v154, %v161
  %v171 = vsel %vm166, %v162, %v163
  %v172 = vsel %vm168, %v170, %v171
  %v175 = vmul.f32 %v147, %v169
  %v176 = vmul.f32 %v148, %v172
  %v177 = vld [vmem:[%s2] sm:$0xff]
  %v179 = vperm.slane %v177, 0
  %v180 = vperm.slane %v177, 1
  %v181 = vperm.slane %v177, 2
  %v182 = vperm.slane %v177, 3
  %v183 = vperm.slane %v177, 4
  %v184 = vperm.slane %v177, 5
  %v185 = vperm.slane %v177, 6
  %v186 = vperm.slane %v177, 7
  %v187 = vrot.slane %v180, 6
  %v188 = vrot.slane %v181, 4
  %v189 = vrot.slane %v182, 2
  %v190 = vrot.slane %v184, 6
  %v191 = vrot.slane %v185, 4
  %v192 = vrot.slane %v186, 2
  %v193 = vsel %vm164, %v179, %v187
  %v194 = vsel %vm166, %v188, %v189
  %v195 = vsel %vm168, %v193, %v194
  %v196 = vsel %vm164, %v183, %v190
  %v197 = vsel %vm166, %v191, %v192
  %v198 = vsel %vm168, %v196, %v197
  %v201 = vadd.f32 %v175, %v195
  %v202 = vadd.f32 %v176, %v198
  %v203 = vmax.f32 %v201, 0.0
  %v204 = vmax.f32 %v202, 0.0
  %207 = vst [vmem:[#allocation1] ss:$4 sm:$0xff] %v203
  %s208 = scalar_lea.vmem [#allocation1], 32
  %209 = vst [vmem:[%s208] ss:$4 sm:$0xff] %v204
  %v210 = vld.sshfl [vmem:[#allocation1] sm:$0xff pattern:$0x73625140]
  %v211 = vld.sshfl [vmem:[#allocation1 + $0x8] sm:$0xff pattern:$0x73625140]
  %v212 = vld.sshfl [vmem:[#allocation1 + $0x10] sm:$0xff pattern:$0x73625140]
  %v213 = vld.sshfl [vmem:[#allocation1 + $0x18] sm:$0xff pattern:$0x73625140]
  %v214 = vld.sshfl [vmem:[#allocation1 + $0x20] sm:$0xff pattern:$0x73625140]
  %v215 = vld.sshfl [vmem:[#allocation1 + $0x28] sm:$0xff pattern:$0x73625140]
  %v216 = vld.sshfl [vmem:[#allocation1 + $0x30] sm:$0xff pattern:$0x73625140]
  %v217 = vld.sshfl [vmem:[#allocation1 + $0x38] sm:$0xff pattern:$0x73625140]
  %226 = vmatpush.msra.mxu0 %v33
  %227 = vmatpush.msra.mxu0 %v32
  %228 = vmatpush.msra.mxu0 %v31
  %229 = vmatpush.msra.mxu0 %v30
  %230 = vmatpush.msra.mxu0 %v29
  %231 = vmatpush.msra.mxu0 %v28
  %232 = vmatpush.msra.mxu0 %v27
  %233 = vmatpush.msra.mxu0 %v26
  %234 = vmatpush.msra.mxu0 %v25
  %235 = vmatpush.msra.mxu0 %v24
  %236 = vmatpush.msra.mxu0 %v23
  %237 = vmatpush.msra.mxu0 %v22
  %238 = vmatpush.msra.mxu0 %v21
  %239 = vmatpush.msra.mxu0 %v20
  %240 = vmatpush.msra.mxu0 %v19
  %241 = vmatpush.msra.mxu0 %v18
  %242 = vmatmul.f32.gmra.mxu0 %v210
  %v243 = vpop.f32.mrf.mxu0
  %v244 = vadd.f32 0.0, %v243
  %245 = vdwg.mxu0
  %246 = vmatpush.msra.mxu0 %v49
  %247 = vmatpush.msra.mxu0 %v48
  %248 = vmatpush.msra.mxu0 %v47
  %249 = vmatpush.msra.mxu0 %v46
  %250 = vmatpush.msra.mxu0 %v45
  %251 = vmatpush.msra.mxu0 %v44
  %252 = vmatpush.msra.mxu0 %v43
  %253 = vmatpush.msra.mxu0 %v42
  %254 = vmatpush.msra.mxu0 %v41
  %255 = vmatpush.msra.mxu0 %v40
  %256 = vmatpush.msra.mxu0 %v39
  %257 = vmatpush.msra.mxu0 %v38
  %258 = vmatpush.msra.mxu0 %v37
  %259 = vmatpush.msra.mxu0 %v36
  %260 = vmatpush.msra.mxu0 %v35
  %261 = vmatpush.msra.mxu0 %v34
  %262 = vmatmul.f32.gmra.mxu0 %v211
  %v263 = vpop.f32.mrf.mxu0
  %v264 = vadd.f32 %v244, %v263
  %265 = vdwg.mxu0
  %266 = vmatpush.msra.mxu0 %v65
  %267 = vmatpush.msra.mxu0 %v64
  %268 = vmatpush.msra.mxu0 %v63
  %269 = vmatpush.msra.mxu0 %v62
  %270 = vmatpush.msra.mxu0 %v61
  %271 = vmatpush.msra.mxu0 %v60
  %272 = vmatpush.msra.mxu0 %v59
  %273 = vmatpush.msra.mxu0 %v58
  %274 = vmatpush.msra.mxu0 %v57
  %275 = vmatpush.msra.mxu0 %v56
  %276 = vmatpush.msra.mxu0 %v55
  %277 = vmatpush.msra.mxu0 %v54
  %278 = vmatpush.msra.mxu0 %v53
  %279 = vmatpush.msra.mxu0 %v52
  %280 = vmatpush.msra.mxu0 %v51
  %281 = vmatpush.msra.mxu0 %v50
  %282 = vmatmul.f32.gmra.mxu0 %v212
  %v283 = vpop.f32.mrf.mxu0
  %v284 = vadd.f32 %v264, %v283
  %285 = vdwg.mxu0
  %286 = vmatpush.msra.mxu0 %v81
  %287 = vmatpush.msra.mxu0 %v80
  %288 = vmatpush.msra.mxu0 %v79
  %289 = vmatpush.msra.mxu0 %v78
  %290 = vmatpush.msra.mxu0 %v77
  %291 = vmatpush.msra.mxu0 %v76
  %292 = vmatpush.msra.mxu0 %v75
  %293 = vmatpush.msra.mxu0 %v74
  %294 = vmatpush.msra.mxu0 %v73
  %295 = vmatpush.msra.mxu0 %v72
  %296 = vmatpush.msra.mxu0 %v71
  %297 = vmatpush.msra.mxu0 %v70
  %298 = vmatpush.msra.mxu0 %v69
  %299 = vmatpush.msra.mxu0 %v68
  %300 = vmatpush.msra.mxu0 %v67
  %301 = vmatpush.msra.mxu0 %v66
  %302 = vmatmul.f32.gmra.mxu0 %v213
  %v303 = vpop.f32.mrf.mxu0
  %v304 = vadd.f32 %v284, %v303
  %305 = vdwg.mxu0
  %306 = vmatpush.msra.mxu0 %v97
  %307 = vmatpush.msra.mxu0 %v96
  %308 = vmatpush.msra.mxu0 %v95
  %309 = vmatpush.msra.mxu0 %v94
  %310 = vmatpush.msra.mxu0 %v93
  %311 = vmatpush.msra.mxu0 %v92
  %312 = vmatpush.msra.mxu0 %v91
  %313 = vmatpush.msra.mxu0 %v90
  %314 = vmatpush.msra.mxu0 %v89
  %315 = vmatpush.msra.mxu0 %v88
  %316 = vmatpush.msra.mxu0 %v87
  %317 = vmatpush.msra.mxu0 %v86
  %318 = vmatpush.msra.mxu0 %v85
  %319 = vmatpush.msra.mxu0 %v84
  %320 = vmatpush.msra.mxu0 %v83
  %321 = vmatpush.msra.mxu0 %v82
  %322 = vmatmul.f32.gmra.mxu0 %v214
  %v323 = vpop.f32.mrf.mxu0
  %v324 = vadd.f32 %v304, %v323
  %325 = vdwg.mxu0
  %326 = vmatpush.msra.mxu0 %v113
  %327 = vmatpush.msra.mxu0 %v112
  %328 = vmatpush.msra.mxu0 %v111
  %329 = vmatpush.msra.mxu0 %v110
  %330 = vmatpush.msra.mxu0 %v109
  %331 = vmatpush.msra.mxu0 %v108
  %332 = vmatpush.msra.mxu0 %v107
  %333 = vmatpush.msra.mxu0 %v106
  %334 = vmatpush.msra.mxu0 %v105
  %335 = vmatpush.msra.mxu0 %v104
  %336 = vmatpush.msra.mxu0 %v103
  %337 = vmatpush.msra.mxu0 %v102
  %338 = vmatpush.msra.mxu0 %v101
  %339 = vmatpush.msra.mxu0 %v100
  %340 = vmatpush.msra.mxu0 %v99
  %341 = vmatpush.msra.mxu0 %v98
  %342 = vmatmul.f32.gmra.mxu0 %v215
  %v343 = vpop.f32.mrf.mxu0
  %v344 = vadd.f32 %v324, %v343
  %345 = vdwg.mxu0
  %346 = vmatpush.msra.mxu0 %v129
  %347 = vmatpush.msra.mxu0 %v128
  %348 = vmatpush.msra.mxu0 %v127
  %349 = vmatpush.msra.mxu0 %v126
  %350 = vmatpush.msra.mxu0 %v125
  %351 = vmatpush.msra.mxu0 %v124
  %352 = vmatpush.msra.mxu0 %v123
  %353 = vmatpush.msra.mxu0 %v122
  %354 = vmatpush.msra.mxu0 %v121
  %355 = vmatpush.msra.mxu0 %v120
  %356 = vmatpush.msra.mxu0 %v119
  %357 = vmatpush.msra.mxu0 %v118
  %358 = vmatpush.msra.mxu0 %v117
  %359 = vmatpush.msra.mxu0 %v116
  %360 = vmatpush.msra.mxu0 %v115
  %361 = vmatpush.msra.mxu0 %v114
  %362 = vmatmul.f32.gmra.mxu0 %v216
  %v363 = vpop.f32.mrf.mxu0
  %v364 = vadd.f32 %v344, %v363
  %365 = vdwg.mxu0
  %366 = vmatpush.msra.mxu0 %v145
  %367 = vmatpush.msra.mxu0 %v144
  %368 = vmatpush.msra.mxu0 %v143
  %369 = vmatpush.msra.mxu0 %v142
  %370 = vmatpush.msra.mxu0 %v141
  %371 = vmatpush.msra.mxu0 %v140
  %372 = vmatpush.msra.mxu0 %v139
  %373 = vmatpush.msra.mxu0 %v138
  %374 = vmatpush.msra.mxu0 %v137
  %375 = vmatpush.msra.mxu0 %v136
  %376 = vmatpush.msra.mxu0 %v135
  %377 = vmatpush.msra.mxu0 %v134
  %378 = vmatpush.msra.mxu0 %v133
  %379 = vmatpush.msra.mxu0 %v132
  %380 = vmatpush.msra.mxu0 %v131
  %381 = vmatpush.msra.mxu0 %v130
  %382 = vmatmul.f32.gmra.mxu0 %v217
  %v383 = vpop.f32.mrf.mxu0
  %v384 = vadd.f32 %v364, %v383
  %385 = vdwg.mxu0
  %vm386 = vcmask 107520
  %387 = vst.msk [vmem:[%s4] sm:$0x3] %vm386, %v384
  // Predicated region
  $region18: #{densenet121_forward.241} parent=0 // pred_check
    _
  $region19: #{densenet121_forward.241} parent=0 // pred_check_branch
    %389 = sbr.rel (0) target = $region21
  $region20: #{densenet121_forward.241} parent=0 // pred_region
    _
  $region21: #{densenet121_forward.241} parent=0 // pred_fallthru
    _
  // Predicated region
  $region22: #{densenet121_forward.241} parent=0 // pred_check
    _
  $region23: #{densenet121_forward.241} parent=0 // pred_check_branch
    %391 = sbr.rel (0) target = $region25
  $region24: #{densenet121_forward.241} parent=0 // pred_region
    _
  $region25: #{densenet121_forward.241} parent=0 // pred_fallthru
    _

</llo_original>
